<compile_context>
chip_gen: v6e
topology: v6e:2x2x1
jax: 0.10.0
libtpu: 0.0.40
codegen_flags: <defaults>
</compile_context>

<pallas_src>
import jax
import jax.numpy as jnp
from jax import lax
from jax.experimental import pallas as pl
from jax.experimental.pallas import tpu as pltpu


# Lane/sublane-aligned small shapes (original model: mel=80, hidden=256, embed=256; kept
# 128-lane aligned here so gate slices land on whole-vreg boundaries).
MEL_N_CHANNELS = 128
HIDDEN = 128
EMBED = 128
NUM_LAYERS = 3
BATCH = 16
SEQ = 8


def _num_tensorcores():
    """Best-effort TensorCores-per-chip (v7x: 2; v5e/v6e: 1). Safe fallback to 1."""
    try:
        info = pltpu.get_tpu_info()
    except Exception:
        return 1
    for attr in ("num_cores", "core_count", "num_tensorcores",
                 "tensorcore_count", "cores_per_chip"):
        n = getattr(info, attr, None)
        if n is None:
            continue
        try:
            n = int(n)
        except (TypeError, ValueError):
            continue
        if 1 <= n <= 16:
            return n
    return 1


def speaker_encoder_kernel(mels_ref, w_ih0_ref, w_ihr_ref, w_hh_ref, b_ref,
                           w_lin_ref, b_lin_ref, out_ref, gates0_ref):
    """One batch-chunk of the full forward pass, everything resident in VMEM.

    mels_ref  : (Bc, T, F)    batch-major mel frames for this chunk, f32
    w_ih0_ref : (F, 4H)       layer-0 input->gates weights (transposed), bf16, (i,f,o,g) cols
    w_ihr_ref : (L-1, H, 4H)  layers 1..L-1 input->gates weights (transposed), bf16
    w_hh_ref  : (L, H, 4H)    hidden->gates weights (transposed), bf16, (i,f,o,g) cols
    b_ref     : (L, 1, 4H)    b_ih + b_hh combined, f32, (i,f,o,g) cols
    w_lin_ref : (H, E)        final linear weight (transposed), bf16
    b_lin_ref : (1, E)        final linear bias, f32
    out_ref   : (Bc, E)       L2-normalized embeddings, f32
    gates0_ref: (Bc, T, 4H)   scratch: hoisted layer-0 input projections (+ bias), f32
    """
    Bc, T, F = mels_ref.shape
    H = w_hh_ref.shape[1]
    H3 = 3 * H

    # Hoisted layer-0 input projection: ONE big MXU matmul with M = Bc*T (bf16 in, f32 acc).
    # Merging the two leading dims is a layout-preserving reshape (lane dim unchanged).
    x2d = mels_ref[...].reshape(Bc * T, F).astype(jnp.bfloat16)
    g0 = jnp.dot(x2d, w_ih0_ref[...], preferred_element_type=jnp.float32)
    gates0_ref[...] = (g0 + b_ref[0]).reshape(Bc, T, 4 * H)

    def lstm_cell(g, c):
        # Gate columns pre-ordered (i, f, o, g): one sigmoid over a contiguous 3H slice and
        # one tanh over the last H slice (2 EUP dispatches per cell); cell math stays f32.
        sig = jax.nn.sigmoid(g[:, :H3])
        g_g = jnp.tanh(g[:, H3:])
        c_new = sig[:, H:2 * H] * c + sig[:, :H] * g_g
        h_new = sig[:, 2 * H:H3] * jnp.tanh(c_new)
        return h_new, c_new

    # Layer-wavefront recurrence (statically unrolled; T and NUM_LAYERS are compile-time).
    # At wave step s, layer l processes time t = s - l; layer l reads layer l-1's hidden at
    # the same t, which was produced at wave step s-1, so the per-layer chains overlap and
    # the LLO scheduler gets independent MXU / EUP / VPU work every step.
    h = [jnp.zeros((Bc, H), jnp.float32) for _ in range(NUM_LAYERS)]
    c = [jnp.zeros((Bc, H), jnp.float32) for _ in range(NUM_LAYERS)]
    for s in range(T + NUM_LAYERS - 1):
        h_prev = list(h)               # snapshot: every layer reads last wave step's outputs
        for l in range(NUM_LAYERS):
            t = s - l
            if not (0 <= t < T):
                continue
            if l == 0:
                g = gates0_ref[:, t, :]                       # hoisted x_t @ W_ih0 + b0
            else:
                g = jnp.dot(h_prev[l - 1].astype(jnp.bfloat16), w_ihr_ref[l - 1],
                            preferred_element_type=jnp.float32) + b_ref[l]
            if t > 0:                  # h_{t-1} == 0 at t == 0: recurrent matmul is skipped
                g = g + jnp.dot(h_prev[l].astype(jnp.bfloat16), w_hh_ref[l],
                                preferred_element_type=jnp.float32)
            h[l], c[l] = lstm_cell(g, c[l])

    # Linear -> ReLU -> L2 normalize (rsqrt on EUP; eps guards all-zero ReLU rows).
    emb = jnp.dot(h[NUM_LAYERS - 1].astype(jnp.bfloat16), w_lin_ref[...],
                  preferred_element_type=jnp.float32) + b_lin_ref[...]
    emb = jnp.maximum(emb, 0.0)
    ssum = jnp.sum(emb * emb, axis=1, keepdims=True)
    out_ref[...] = emb * lax.rsqrt(ssum + 1e-12)


def init_params(key):
    """PyTorch-layout parameters with uniform(-1/sqrt(H), 1/sqrt(H)) init."""
    params = {}
    k = 1.0 / jnp.sqrt(jnp.float32(HIDDEN))
    keys = jax.random.split(key, 4 * NUM_LAYERS + 2)
    ki = 0
    for layer in range(NUM_LAYERS):
        in_size = MEL_N_CHANNELS if layer == 0 else HIDDEN
        params[f"w_ih{layer}"] = jax.random.uniform(
            keys[ki], (4 * HIDDEN, in_size), jnp.float32, -k, k); ki += 1
        params[f"w_hh{layer}"] = jax.random.uniform(
            keys[ki], (4 * HIDDEN, HIDDEN), jnp.float32, -k, k); ki += 1
        params[f"b_ih{layer}"] = jax.random.uniform(
            keys[ki], (4 * HIDDEN,), jnp.float32, -k, k); ki += 1
        params[f"b_hh{layer}"] = jax.random.uniform(
            keys[ki], (4 * HIDDEN,), jnp.float32, -k, k); ki += 1
    params["w_lin"] = jax.random.uniform(keys[ki], (EMBED, HIDDEN), jnp.float32, -k, k); ki += 1
    params["b_lin"] = jax.random.uniform(keys[ki], (EMBED,), jnp.float32, -k, k); ki += 1
    return params


def _reorder_gates(w):
    """Reorder last-dim gate blocks from PyTorch (i, f, g, o) to kernel (i, f, o, g)."""
    H = HIDDEN
    return jnp.concatenate(
        [w[..., 0:H], w[..., H:2 * H], w[..., 3 * H:4 * H], w[..., 2 * H:3 * H]], axis=-1)


def pack_params(params):
    """Pack PyTorch-layout params into kernel operands (bf16 weights, f32 biases)."""
    w_hh_list, b_list, w_ihr_list = [], [], []
    for layer in range(NUM_LAYERS):
        w_hh_list.append(_reorder_gates(params[f"w_hh{layer}"].T))                   # (H, 4H)
        b_list.append(_reorder_gates(params[f"b_ih{layer}"] + params[f"b_hh{layer}"]))
        if layer > 0:
            w_ihr_list.append(_reorder_gates(params[f"w_ih{layer}"].T))               # (H, 4H)
    w_ih0 = _reorder_gates(params["w_ih0"].T).astype(jnp.bfloat16)                    # (F, 4H)
    w_ihr = jnp.stack(w_ihr_list).astype(jnp.bfloat16)                                # (L-1, H, 4H)
    w_hh = jnp.stack(w_hh_list).astype(jnp.bfloat16)                                  # (L, H, 4H)
    b_all = jnp.stack(b_list)[:, None, :].astype(jnp.float32)                         # (L, 1, 4H)
    w_lin = params["w_lin"].T.astype(jnp.bfloat16)                                    # (H, E)
    b_lin = params["b_lin"][None, :].astype(jnp.float32)                              # (1, E)
    return w_ih0, w_ihr, w_hh, b_all, w_lin, b_lin


def speaker_encoder_forward(mels, params):
    """mels: (B, T, mel_channels), float32 — batch_first, same convention as the module."""
    B, T, F = mels.shape
    H = HIDDEN

    # Generation-aware batch chunking: one chunk per TensorCore.  On single-TC chips
    # (v5e/v6e) this collapses to grid=(1,) — the whole batch in one grid step.
    n_tc = _num_tensorcores()
    if B % n_tc != 0 or (B // n_tc) % 8 != 0:
        n_tc = 1
    b_chunk = B // n_tc
    n_chunks = B // b_chunk

    w_ih0, w_ihr, w_hh, b_all, w_lin, b_lin = pack_params(params)

    out = pl.pallas_call(
        speaker_encoder_kernel,
        out_shape=jax.ShapeDtypeStruct((B, EMBED), jnp.float32),
        grid_spec=pltpu.PrefetchScalarGridSpec(
            num_scalar_prefetch=0,
            grid=(n_chunks,),
            in_specs=[
                pl.BlockSpec((b_chunk, T, F), lambda i: (i, 0, 0)),   # mels chunk (batch-major)
                pl.BlockSpec(w_ih0.shape, lambda i: (0, 0)),          # layer-0 W_ih (bf16)
                pl.BlockSpec(w_ihr.shape, lambda i: (0, 0, 0)),       # layers 1..L-1 W_ih (bf16)
                pl.BlockSpec(w_hh.shape, lambda i: (0, 0, 0)),        # W_hh stack (bf16)
                pl.BlockSpec(b_all.shape, lambda i: (0, 0, 0)),       # combined biases (f32)
                pl.BlockSpec(w_lin.shape, lambda i: (0, 0)),          # final linear weight (bf16)
                pl.BlockSpec(b_lin.shape, lambda i: (0, 0)),          # final linear bias (f32)
            ],
            out_specs=pl.BlockSpec((b_chunk, EMBED), lambda i: (i, 0)),
            scratch_shapes=[
                pltpu.VMEM((b_chunk, T, 4 * H), jnp.float32),         # hoisted layer-0 gates
            ],
        ),
        compiler_params=pltpu.CompilerParams(
            dimension_semantics=("parallel",),
        ),
    )(mels.astype(jnp.float32), w_ih0, w_ihr, w_hh, b_all, w_lin, b_lin)
    return out


def reference_forward(mels, params, matmul_dtype=jnp.float32):
    """Pure-JAX reference mirroring PyTorch semantics (i,f,g,o gate order).

    matmul_dtype=jnp.bfloat16 reproduces the kernel's bf16-input / f32-accumulate matmuls;
    matmul_dtype=jnp.float32 is the exact f32 PyTorch-style reference.
    """
    B = mels.shape[0]
    H = HIDDEN
    md = matmul_dtype

    def mm(a, w_t):
        return jnp.dot(a.astype(md), w_t.astype(md), preferred_element_type=jnp.float32)

    def run_layer(xs, layer):
        w_ih_t = params[f"w_ih{layer}"].T
        w_hh_t = params[f"w_hh{layer}"].T
        b = params[f"b_ih{layer}"] + params[f"b_hh{layer}"]

        def cell(carry, x):
            h, c = carry
            g = mm(x, w_ih_t) + mm(h, w_hh_t) + b
            i = jax.nn.sigmoid(g[:, 0 * H:1 * H])
            f = jax.nn.sigmoid(g[:, 1 * H:2 * H])
            gg = jnp.tanh(g[:, 2 * H:3 * H])
            o = jax.nn.sigmoid(g[:, 3 * H:4 * H])
            c = f * c + i * gg
            h = o * jnp.tanh(c)
            return (h, c), h

        init = (jnp.zeros((B, H), jnp.float32), jnp.zeros((B, H), jnp.float32))
        (h_last, _), outs = lax.scan(cell, init, jnp.transpose(xs, (1, 0, 2)))
        return jnp.transpose(outs, (1, 0, 2)), h_last

    x = mels.astype(jnp.float32)
    h_last = None
    for layer in range(NUM_LAYERS):
        x, h_last = run_layer(x, layer)
    emb = jnp.maximum(mm(h_last, params["w_lin"].T) + params["b_lin"], 0.0)
    return emb / jnp.linalg.norm(emb, axis=1, keepdims=True)


if __name__ == "__main__":
    key = jax.random.PRNGKey(0)
    pkey, xkey = jax.random.split(key)
    params = init_params(pkey)

    mels = jax.random.normal(xkey, (BATCH, SEQ, MEL_N_CHANNELS), jnp.float32)

    out = jax.block_until_ready(speaker_encoder_forward(mels, params))

    # (1) Exact-semantics check vs. a reference using the same bf16-input/f32-accum matmuls.
    ref_matched = reference_forward(mels, params, matmul_dtype=jnp.bfloat16)
    if not bool(jnp.allclose(out, ref_matched, atol=2e-3, rtol=2e-3)):
        raise AssertionError("Pallas kernel does not match bf16-matmul JAX reference")

    # (2) Drift bound vs. the pure-f32 PyTorch-style reference (looser: bf16 matmul inputs
    #     through a 3-layer, 8-step recurrence accumulate a few-e-3 of error).
    ref_f32 = reference_forward(mels, params, matmul_dtype=jnp.float32)
    if not bool(jnp.allclose(out, ref_f32, atol=2e-2, rtol=2e-2)):
        raise AssertionError("Pallas kernel drifted too far from the f32 reference")

    print("KERNEL_OK")
</pallas_src>

<mosaic_0001>
module attributes {stable_mosaic.version = 11 : i64} {
  func.func @speaker_encoder_kernel(%arg0: i32, %arg1: memref<16x8x128xf32, #tpu.memory_space<vmem>>, %arg2: memref<128x512xbf16, #tpu.memory_space<vmem>>, %arg3: memref<2x128x512xbf16, #tpu.memory_space<vmem>>, %arg4: memref<3x128x512xbf16, #tpu.memory_space<vmem>>, %arg5: memref<3x1x512xf32, #tpu.memory_space<vmem>>, %arg6: memref<128x128xbf16, #tpu.memory_space<vmem>>, %arg7: memref<1x128xf32, #tpu.memory_space<vmem>>, %arg8: memref<16x128xf32, #tpu.memory_space<vmem>>, %arg9: memref<16x8x512xf32, #tpu.memory_space<vmem>>) attributes {dimension_semantics = [#tpu.dimension_semantics<parallel>], iteration_bounds = array<i64: 1>, scalar_prefetch = 0 : i64, scratch_operands = 1 : i64, tpu.core_type = #tpu.core_type<tc>, window_params = [{transform_indices = @transform_0, window_bounds = array<i64: 16, 8, 128>}, {pipeline_mode = #tpu.pipeline_mode<synchronous>, transform_indices = @transform_1, window_bounds = array<i64: 128, 512>}, {pipeline_mode = #tpu.pipeline_mode<synchronous>, transform_indices = @transform_2, window_bounds = array<i64: 2, 128, 512>}, {pipeline_mode = #tpu.pipeline_mode<synchronous>, transform_indices = @transform_3, window_bounds = array<i64: 3, 128, 512>}, {pipeline_mode = #tpu.pipeline_mode<synchronous>, transform_indices = @transform_4, window_bounds = array<i64: 3, 1, 512>}, {pipeline_mode = #tpu.pipeline_mode<synchronous>, transform_indices = @transform_5, window_bounds = array<i64: 128, 128>}, {pipeline_mode = #tpu.pipeline_mode<synchronous>, transform_indices = @transform_6, window_bounds = array<i64: 1, 128>}, {transform_indices = @transform_7, window_bounds = array<i64: 16, 128>}]} {
    %c0 = arith.constant 0 : index
    %c0_0 = arith.constant 0 : index
    %c0_1 = arith.constant 0 : index
    %0 = vector.load %arg1[%c0, %c0_0, %c0_1] : memref<16x8x128xf32, #tpu.memory_space<vmem>>, vector<16x8x128xf32>
    %1 = vector.shape_cast %0 : vector<16x8x128xf32> to vector<128x128xf32>
    %2 = arith.truncf %1 : vector<128x128xf32> to vector<128x128xbf16>
    %c0_2 = arith.constant 0 : index
    %c0_3 = arith.constant 0 : index
    %3 = vector.load %arg2[%c0_2, %c0_3] : memref<128x512xbf16, #tpu.memory_space<vmem>>, vector<128x512xbf16>
    %cst = arith.constant dense<0.000000e+00> : vector<128x512xf32>
    %4 = tpu.matmul %2, %3, %cst {dimension_numbers = #tpu.dot_dimension_numbers<[1], [0], [0], [1], [0, 0, 1, 1], [], []>} : vector<128x128xbf16>, vector<128x512xbf16>, vector<128x512xf32> -> vector<128x512xf32>
    %c0_4 = arith.constant 0 : index
    %c0_5 = arith.constant 0 : index
    %c0_6 = arith.constant 0 : index
    %5 = vector.load %arg5[%c0_4, %c0_5, %c0_6] : memref<3x1x512xf32, #tpu.memory_space<vmem>>, vector<1x1x512xf32>
    %6 = vector.shape_cast %5 : vector<1x1x512xf32> to vector<1x512xf32>
    %7 = vector.broadcast %6 : vector<1x512xf32> to vector<128x512xf32>
    %8 = arith.addf %4, %7 : vector<128x512xf32>
    %9 = vector.shape_cast %8 : vector<128x512xf32> to vector<16x8x512xf32>
    %c0_7 = arith.constant 0 : index
    %c0_8 = arith.constant 0 : index
    %c0_9 = arith.constant 0 : index
    %10 = vector.load %arg9[%c0_7, %c0_8, %c0_9] : memref<16x8x512xf32, #tpu.memory_space<vmem>>, vector<16x8x512xf32>
    tpu.vector_store %arg9[%c0_7, %c0_8, %c0_9], %9 {strides = array<i32>} : memref<16x8x512xf32, #tpu.memory_space<vmem>>, vector<16x8x512xf32>,
    %cst_10 = arith.constant 0.000000e+00 : f32
    %11 = vector.broadcast %cst_10 : f32 to vector<16x128xf32>
    %cst_11 = arith.constant 0.000000e+00 : f32
    %12 = vector.broadcast %cst_11 : f32 to vector<16x128xf32>
    %cst_12 = arith.constant 0.000000e+00 : f32
    %13 = vector.broadcast %cst_12 : f32 to vector<16x128xf32>
    %c0_13 = arith.constant 0 : index
    %c0_14 = arith.constant 0 : index
    %c0_15 = arith.constant 0 : index
    %14 = vector.load %arg9[%c0_13, %c0_14, %c0_15] : memref<16x8x512xf32, #tpu.memory_space<vmem>>, vector<16x1x512xf32>
    %15 = vector.shape_cast %14 : vector<16x1x512xf32> to vector<16x512xf32>
    %16 = vector.extract_strided_slice %15 {offsets = [0, 0], sizes = [16, 384], strides = [1, 1]} : vector<16x512xf32> to vector<16x384xf32>
    %17 = arith.negf %16 : vector<16x384xf32>
    %18 = math.exp %17 : vector<16x384xf32>
    %cst_16 = arith.constant 1.000000e+00 : f32
    %19 = vector.broadcast %cst_16 : f32 to vector<16x384xf32>
    %20 = arith.addf %19, %18 : vector<16x384xf32>
    %21 = arith.divf %19, %20 : vector<16x384xf32>
    %22 = vector.extract_strided_slice %15 {offsets = [0, 384], sizes = [16, 128], strides = [1, 1]} : vector<16x512xf32> to vector<16x128xf32>
    %23 = math.tanh %22 : vector<16x128xf32>
    %24 = vector.extract_strided_slice %21 {offsets = [0, 128], sizes = [16, 128], strides = [1, 1]} : vector<16x384xf32> to vector<16x128xf32>
    %25 = arith.mulf %24, %11 : vector<16x128xf32>
    %26 = vector.extract_strided_slice %21 {offsets = [0, 0], sizes = [16, 128], strides = [1, 1]} : vector<16x384xf32> to vector<16x128xf32>
    %27 = arith.mulf %26, %23 : vector<16x128xf32>
    %28 = arith.addf %25, %27 : vector<16x128xf32>
    %29 = vector.extract_strided_slice %21 {offsets = [0, 256], sizes = [16, 128], strides = [1, 1]} : vector<16x384xf32> to vector<16x128xf32>
    %30 = math.tanh %28 : vector<16x128xf32>
    %31 = arith.mulf %29, %30 : vector<16x128xf32>
    %c0_17 = arith.constant 0 : index
    %c1 = arith.constant 1 : index
    %c0_18 = arith.constant 0 : index
    %32 = vector.load %arg9[%c0_17, %c1, %c0_18] : memref<16x8x512xf32, #tpu.memory_space<vmem>>, vector<16x1x512xf32>
    %33 = vector.shape_cast %32 : vector<16x1x512xf32> to vector<16x512xf32>
    %34 = arith.truncf %31 : vector<16x128xf32> to vector<16x128xbf16>
    %c0_19 = arith.constant 0 : index
    %c0_20 = arith.constant 0 : index
    %c0_21 = arith.constant 0 : index
    %35 = vector.load %arg4[%c0_19, %c0_20, %c0_21] : memref<3x128x512xbf16, #tpu.memory_space<vmem>>, vector<1x128x512xbf16>
    %36 = vector.shape_cast %35 : vector<1x128x512xbf16> to vector<128x512xbf16>
    %cst_22 = arith.constant dense<0.000000e+00> : vector<16x512xf32>
    %37 = tpu.matmul %34, %36, %cst_22 {dimension_numbers = #tpu.dot_dimension_numbers<[1], [0], [0], [1], [0, 0, 1, 1], [], []>} : vector<16x128xbf16>, vector<128x512xbf16>, vector<16x512xf32> -> vector<16x512xf32>
    %38 = arith.addf %33, %37 : vector<16x512xf32>
    %39 = vector.extract_strided_slice %38 {offsets = [0, 0], sizes = [16, 384], strides = [1, 1]} : vector<16x512xf32> to vector<16x384xf32>
    %40 = arith.negf %39 : vector<16x384xf32>
    %41 = math.exp %40 : vector<16x384xf32>
    %cst_23 = arith.constant 1.000000e+00 : f32
    %42 = vector.broadcast %cst_23 : f32 to vector<16x384xf32>
    %43 = arith.addf %42, %41 : vector<16x384xf32>
    %44 = arith.divf %42, %43 : vector<16x384xf32>
    %45 = vector.extract_strided_slice %38 {offsets = [0, 384], sizes = [16, 128], strides = [1, 1]} : vector<16x512xf32> to vector<16x128xf32>
    %46 = math.tanh %45 : vector<16x128xf32>
    %47 = vector.extract_strided_slice %44 {offsets = [0, 128], sizes = [16, 128], strides = [1, 1]} : vector<16x384xf32> to vector<16x128xf32>
    %48 = arith.mulf %47, %28 : vector<16x128xf32>
    %49 = vector.extract_strided_slice %44 {offsets = [0, 0], sizes = [16, 128], strides = [1, 1]} : vector<16x384xf32> to vector<16x128xf32>
    %50 = arith.mulf %49, %46 : vector<16x128xf32>
    %51 = arith.addf %48, %50 : vector<16x128xf32>
    %52 = vector.extract_strided_slice %44 {offsets = [0, 256], sizes = [16, 128], strides = [1, 1]} : vector<16x384xf32> to vector<16x128xf32>
    %53 = math.tanh %51 : vector<16x128xf32>
    %54 = arith.mulf %52, %53 : vector<16x128xf32>
    %55 = arith.truncf %31 : vector<16x128xf32> to vector<16x128xbf16>
    %c0_24 = arith.constant 0 : index
    %c0_25 = arith.constant 0 : index
    %c0_26 = arith.constant 0 : index
    %56 = vector.load %arg3[%c0_24, %c0_25, %c0_26] : memref<2x128x512xbf16, #tpu.memory_space<vmem>>, vector<1x128x512xbf16>
    %57 = vector.shape_cast %56 : vector<1x128x512xbf16> to vector<128x512xbf16>
    %cst_27 = arith.constant dense<0.000000e+00> : vector<16x512xf32>
    %58 = tpu.matmul %55, %57, %cst_27 {dimension_numbers = #tpu.dot_dimension_numbers<[1], [0], [0], [1], [0, 0, 1, 1], [], []>} : vector<16x128xbf16>, vector<128x512xbf16>, vector<16x512xf32> -> vector<16x512xf32>
    %c1_28 = arith.constant 1 : index
    %c0_29 = arith.constant 0 : index
    %c0_30 = arith.constant 0 : index
    %59 = vector.load %arg5[%c1_28, %c0_29, %c0_30] : memref<3x1x512xf32, #tpu.memory_space<vmem>>, vector<1x1x512xf32>
    %60 = vector.shape_cast %59 : vector<1x1x512xf32> to vector<1x512xf32>
    %61 = vector.broadcast %60 : vector<1x512xf32> to vector<16x512xf32>
    %62 = arith.addf %58, %61 : vector<16x512xf32>
    %63 = vector.extract_strided_slice %62 {offsets = [0, 0], sizes = [16, 384], strides = [1, 1]} : vector<16x512xf32> to vector<16x384xf32>
    %64 = arith.negf %63 : vector<16x384xf32>
    %65 = math.exp %64 : vector<16x384xf32>
    %cst_31 = arith.constant 1.000000e+00 : f32
    %66 = vector.broadcast %cst_31 : f32 to vector<16x384xf32>
    %67 = arith.addf %66, %65 : vector<16x384xf32>
    %68 = arith.divf %66, %67 : vector<16x384xf32>
    %69 = vector.extract_strided_slice %62 {offsets = [0, 384], sizes = [16, 128], strides = [1, 1]} : vector<16x512xf32> to vector<16x128xf32>
    %70 = math.tanh %69 : vector<16x128xf32>
    %71 = vector.extract_strided_slice %68 {offsets = [0, 128], sizes = [16, 128], strides = [1, 1]} : vector<16x384xf32> to vector<16x128xf32>
    %72 = arith.mulf %71, %12 : vector<16x128xf32>
    %73 = vector.extract_strided_slice %68 {offsets = [0, 0], sizes = [16, 128], strides = [1, 1]} : vector<16x384xf32> to vector<16x128xf32>
    %74 = arith.mulf %73, %70 : vector<16x128xf32>
    %75 = arith.addf %72, %74 : vector<16x128xf32>
    %76 = vector.extract_strided_slice %68 {offsets = [0, 256], sizes = [16, 128], strides = [1, 1]} : vector<16x384xf32> to vector<16x128xf32>
    %77 = math.tanh %75 : vector<16x128xf32>
    %78 = arith.mulf %76, %77 : vector<16x128xf32>
    %c0_32 = arith.constant 0 : index
    %c2 = arith.constant 2 : index
    %c0_33 = arith.constant 0 : index
    %79 = vector.load %arg9[%c0_32, %c2, %c0_33] : memref<16x8x512xf32, #tpu.memory_space<vmem>>, vector<16x1x512xf32>
    %80 = vector.shape_cast %79 : vector<16x1x512xf32> to vector<16x512xf32>
    %81 = arith.truncf %54 : vector<16x128xf32> to vector<16x128xbf16>
    %c0_34 = arith.constant 0 : index
    %c0_35 = arith.constant 0 : index
    %c0_36 = arith.constant 0 : index
    %82 = vector.load %arg4[%c0_34, %c0_35, %c0_36] : memref<3x128x512xbf16, #tpu.memory_space<vmem>>, vector<1x128x512xbf16>
    %83 = vector.shape_cast %82 : vector<1x128x512xbf16> to vector<128x512xbf16>
    %cst_37 = arith.constant dense<0.000000e+00> : vector<16x512xf32>
    %84 = tpu.matmul %81, %83, %cst_37 {dimension_numbers = #tpu.dot_dimension_numbers<[1], [0], [0], [1], [0, 0, 1, 1], [], []>} : vector<16x128xbf16>, vector<128x512xbf16>, vector<16x512xf32> -> vector<16x512xf32>
    %85 = arith.addf %80, %84 : vector<16x512xf32>
    %86 = vector.extract_strided_slice %85 {offsets = [0, 0], sizes = [16, 384], strides = [1, 1]} : vector<16x512xf32> to vector<16x384xf32>
    %87 = arith.negf %86 : vector<16x384xf32>
    %88 = math.exp %87 : vector<16x384xf32>
    %cst_38 = arith.constant 1.000000e+00 : f32
    %89 = vector.broadcast %cst_38 : f32 to vector<16x384xf32>
    %90 = arith.addf %89, %88 : vector<16x384xf32>
    %91 = arith.divf %89, %90 : vector<16x384xf32>
    %92 = vector.extract_strided_slice %85 {offsets = [0, 384], sizes = [16, 128], strides = [1, 1]} : vector<16x512xf32> to vector<16x128xf32>
    %93 = math.tanh %92 : vector<16x128xf32>
    %94 = vector.extract_strided_slice %91 {offsets = [0, 128], sizes = [16, 128], strides = [1, 1]} : vector<16x384xf32> to vector<16x128xf32>
    %95 = arith.mulf %94, %51 : vector<16x128xf32>
    %96 = vector.extract_strided_slice %91 {offsets = [0, 0], sizes = [16, 128], strides = [1, 1]} : vector<16x384xf32> to vector<16x128xf32>
    %97 = arith.mulf %96, %93 : vector<16x128xf32>
    %98 = arith.addf %95, %97 : vector<16x128xf32>
    %99 = vector.extract_strided_slice %91 {offsets = [0, 256], sizes = [16, 128], strides = [1, 1]} : vector<16x384xf32> to vector<16x128xf32>
    %100 = math.tanh %98 : vector<16x128xf32>
    %101 = arith.mulf %99, %100 : vector<16x128xf32>
    %102 = arith.truncf %54 : vector<16x128xf32> to vector<16x128xbf16>
    %c0_39 = arith.constant 0 : index
    %c0_40 = arith.constant 0 : index
    %c0_41 = arith.constant 0 : index
    %103 = vector.load %arg3[%c0_39, %c0_40, %c0_41] : memref<2x128x512xbf16, #tpu.memory_space<vmem>>, vector<1x128x512xbf16>
    %104 = vector.shape_cast %103 : vector<1x128x512xbf16> to vector<128x512xbf16>
    %cst_42 = arith.constant dense<0.000000e+00> : vector<16x512xf32>
    %105 = tpu.matmul %102, %104, %cst_42 {dimension_numbers = #tpu.dot_dimension_numbers<[1], [0], [0], [1], [0, 0, 1, 1], [], []>} : vector<16x128xbf16>, vector<128x512xbf16>, vector<16x512xf32> -> vector<16x512xf32>
    %c1_43 = arith.constant 1 : index
    %c0_44 = arith.constant 0 : index
    %c0_45 = arith.constant 0 : index
    %106 = vector.load %arg5[%c1_43, %c0_44, %c0_45] : memref<3x1x512xf32, #tpu.memory_space<vmem>>, vector<1x1x512xf32>
    %107 = vector.shape_cast %106 : vector<1x1x512xf32> to vector<1x512xf32>
    %108 = vector.broadcast %107 : vector<1x512xf32> to vector<16x512xf32>
    %109 = arith.addf %105, %108 : vector<16x512xf32>
    %110 = arith.truncf %78 : vector<16x128xf32> to vector<16x128xbf16>
    %c1_46 = arith.constant 1 : index
    %c0_47 = arith.constant 0 : index
    %c0_48 = arith.constant 0 : index
    %111 = vector.load %arg4[%c1_46, %c0_47, %c0_48] : memref<3x128x512xbf16, #tpu.memory_space<vmem>>, vector<1x128x512xbf16>
    %112 = vector.shape_cast %111 : vector<1x128x512xbf16> to vector<128x512xbf16>
    %cst_49 = arith.constant dense<0.000000e+00> : vector<16x512xf32>
    %113 = tpu.matmul %110, %112, %cst_49 {dimension_numbers = #tpu.dot_dimension_numbers<[1], [0], [0], [1], [0, 0, 1, 1], [], []>} : vector<16x128xbf16>, vector<128x512xbf16>, vector<16x512xf32> -> vector<16x512xf32>
    %114 = arith.addf %109, %113 : vector<16x512xf32>
    %115 = vector.extract_strided_slice %114 {offsets = [0, 0], sizes = [16, 384], strides = [1, 1]} : vector<16x512xf32> to vector<16x384xf32>
    %116 = arith.negf %115 : vector<16x384xf32>
    %117 = math.exp %116 : vector<16x384xf32>
    %cst_50 = arith.constant 1.000000e+00 : f32
    %118 = vector.broadcast %cst_50 : f32 to vector<16x384xf32>
    %119 = arith.addf %118, %117 : vector<16x384xf32>
    %120 = arith.divf %118, %119 : vector<16x384xf32>
    %121 = vector.extract_strided_slice %114 {offsets = [0, 384], sizes = [16, 128], strides = [1, 1]} : vector<16x512xf32> to vector<16x128xf32>
    %122 = math.tanh %121 : vector<16x128xf32>
    %123 = vector.extract_strided_slice %120 {offsets = [0, 128], sizes = [16, 128], strides = [1, 1]} : vector<16x384xf32> to vector<16x128xf32>
    %124 = arith.mulf %123, %75 : vector<16x128xf32>
    %125 = vector.extract_strided_slice %120 {offsets = [0, 0], sizes = [16, 128], strides = [1, 1]} : vector<16x384xf32> to vector<16x128xf32>
    %126 = arith.mulf %125, %122 : vector<16x128xf32>
    %127 = arith.addf %124, %126 : vector<16x128xf32>
    %128 = vector.extract_strided_slice %120 {offsets = [0, 256], sizes = [16, 128], strides = [1, 1]} : vector<16x384xf32> to vector<16x128xf32>
    %129 = math.tanh %127 : vector<16x128xf32>
    %130 = arith.mulf %128, %129 : vector<16x128xf32>
    %131 = arith.truncf %78 : vector<16x128xf32> to vector<16x128xbf16>
    %c1_51 = arith.constant 1 : index
    %c0_52 = arith.constant 0 : index
    %c0_53 = arith.constant 0 : index
    %132 = vector.load %arg3[%c1_51, %c0_52, %c0_53] : memref<2x128x512xbf16, #tpu.memory_space<vmem>>, vector<1x128x512xbf16>
    %133 = vector.shape_cast %132 : vector<1x128x512xbf16> to vector<128x512xbf16>
    %cst_54 = arith.constant dense<0.000000e+00> : vector<16x512xf32>
    %134 = tpu.matmul %131, %133, %cst_54 {dimension_numbers = #tpu.dot_dimension_numbers<[1], [0], [0], [1], [0, 0, 1, 1], [], []>} : vector<16x128xbf16>, vector<128x512xbf16>, vector<16x512xf32> -> vector<16x512xf32>
    %c2_55 = arith.constant 2 : index
    %c0_56 = arith.constant 0 : index
    %c0_57 = arith.constant 0 : index
    %135 = vector.load %arg5[%c2_55, %c0_56, %c0_57] : memref<3x1x512xf32, #tpu.memory_space<vmem>>, vector<1x1x512xf32>
    %136 = vector.shape_cast %135 : vector<1x1x512xf32> to vector<1x512xf32>
    %137 = vector.broadcast %136 : vector<1x512xf32> to vector<16x512xf32>
    %138 = arith.addf %134, %137 : vector<16x512xf32>
    %139 = vector.extract_strided_slice %138 {offsets = [0, 0], sizes = [16, 384], strides = [1, 1]} : vector<16x512xf32> to vector<16x384xf32>
    %140 = arith.negf %139 : vector<16x384xf32>
    %141 = math.exp %140 : vector<16x384xf32>
    %cst_58 = arith.constant 1.000000e+00 : f32
    %142 = vector.broadcast %cst_58 : f32 to vector<16x384xf32>
    %143 = arith.addf %142, %141 : vector<16x384xf32>
    %144 = arith.divf %142, %143 : vector<16x384xf32>
    %145 = vector.extract_strided_slice %138 {offsets = [0, 384], sizes = [16, 128], strides = [1, 1]} : vector<16x512xf32> to vector<16x128xf32>
    %146 = math.tanh %145 : vector<16x128xf32>
    %147 = vector.extract_strided_slice %144 {offsets = [0, 128], sizes = [16, 128], strides = [1, 1]} : vector<16x384xf32> to vector<16x128xf32>
    %148 = arith.mulf %147, %13 : vector<16x128xf32>
    %149 = vector.extract_strided_slice %144 {offsets = [0, 0], sizes = [16, 128], strides = [1, 1]} : vector<16x384xf32> to vector<16x128xf32>
    %150 = arith.mulf %149, %146 : vector<16x128xf32>
    %151 = arith.addf %148, %150 : vector<16x128xf32>
    %152 = vector.extract_strided_slice %144 {offsets = [0, 256], sizes = [16, 128], strides = [1, 1]} : vector<16x384xf32> to vector<16x128xf32>
    %153 = math.tanh %151 : vector<16x128xf32>
    %154 = arith.mulf %152, %153 : vector<16x128xf32>
    %c0_59 = arith.constant 0 : index
    %c3 = arith.constant 3 : index
    %c0_60 = arith.constant 0 : index
    %155 = vector.load %arg9[%c0_59, %c3, %c0_60] : memref<16x8x512xf32, #tpu.memory_space<vmem>>, vector<16x1x512xf32>
    %156 = vector.shape_cast %155 : vector<16x1x512xf32> to vector<16x512xf32>
    %157 = arith.truncf %101 : vector<16x128xf32> to vector<16x128xbf16>
    %c0_61 = arith.constant 0 : index
    %c0_62 = arith.constant 0 : index
    %c0_63 = arith.constant 0 : index
    %158 = vector.load %arg4[%c0_61, %c0_62, %c0_63] : memref<3x128x512xbf16, #tpu.memory_space<vmem>>, vector<1x128x512xbf16>
    %159 = vector.shape_cast %158 : vector<1x128x512xbf16> to vector<128x512xbf16>
    %cst_64 = arith.constant dense<0.000000e+00> : vector<16x512xf32>
    %160 = tpu.matmul %157, %159, %cst_64 {dimension_numbers = #tpu.dot_dimension_numbers<[1], [0], [0], [1], [0, 0, 1, 1], [], []>} : vector<16x128xbf16>, vector<128x512xbf16>, vector<16x512xf32> -> vector<16x512xf32>
    %161 = arith.addf %156, %160 : vector<16x512xf32>
    %162 = vector.extract_strided_slice %161 {offsets = [0, 0], sizes = [16, 384], strides = [1, 1]} : vector<16x512xf32> to vector<16x384xf32>
    %163 = arith.negf %162 : vector<16x384xf32>
    %164 = math.exp %163 : vector<16x384xf32>
    %cst_65 = arith.constant 1.000000e+00 : f32
    %165 = vector.broadcast %cst_65 : f32 to vector<16x384xf32>
    %166 = arith.addf %165, %164 : vector<16x384xf32>
    %167 = arith.divf %165, %166 : vector<16x384xf32>
    %168 = vector.extract_strided_slice %161 {offsets = [0, 384], sizes = [16, 128], strides = [1, 1]} : vector<16x512xf32> to vector<16x128xf32>
    %169 = math.tanh %168 : vector<16x128xf32>
    %170 = vector.extract_strided_slice %167 {offsets = [0, 128], sizes = [16, 128], strides = [1, 1]} : vector<16x384xf32> to vector<16x128xf32>
    %171 = arith.mulf %170, %98 : vector<16x128xf32>
    %172 = vector.extract_strided_slice %167 {offsets = [0, 0], sizes = [16, 128], strides = [1, 1]} : vector<16x384xf32> to vector<16x128xf32>
    %173 = arith.mulf %172, %169 : vector<16x128xf32>
    %174 = arith.addf %171, %173 : vector<16x128xf32>
    %175 = vector.extract_strided_slice %167 {offsets = [0, 256], sizes = [16, 128], strides = [1, 1]} : vector<16x384xf32> to vector<16x128xf32>
    %176 = math.tanh %174 : vector<16x128xf32>
    %177 = arith.mulf %175, %176 : vector<16x128xf32>
    %178 = arith.truncf %101 : vector<16x128xf32> to vector<16x128xbf16>
    %c0_66 = arith.constant 0 : index
    %c0_67 = arith.constant 0 : index
    %c0_68 = arith.constant 0 : index
    %179 = vector.load %arg3[%c0_66, %c0_67, %c0_68] : memref<2x128x512xbf16, #tpu.memory_space<vmem>>, vector<1x128x512xbf16>
    %180 = vector.shape_cast %179 : vector<1x128x512xbf16> to vector<128x512xbf16>
    %cst_69 = arith.constant dense<0.000000e+00> : vector<16x512xf32>
    %181 = tpu.matmul %178, %180, %cst_69 {dimension_numbers = #tpu.dot_dimension_numbers<[1], [0], [0], [1], [0, 0, 1, 1], [], []>} : vector<16x128xbf16>, vector<128x512xbf16>, vector<16x512xf32> -> vector<16x512xf32>
    %c1_70 = arith.constant 1 : index
    %c0_71 = arith.constant 0 : index
    %c0_72 = arith.constant 0 : index
    %182 = vector.load %arg5[%c1_70, %c0_71, %c0_72] : memref<3x1x512xf32, #tpu.memory_space<vmem>>, vector<1x1x512xf32>
    %183 = vector.shape_cast %182 : vector<1x1x512xf32> to vector<1x512xf32>
    %184 = vector.broadcast %183 : vector<1x512xf32> to vector<16x512xf32>
    %185 = arith.addf %181, %184 : vector<16x512xf32>
    %186 = arith.truncf %130 : vector<16x128xf32> to vector<16x128xbf16>
    %c1_73 = arith.constant 1 : index
    %c0_74 = arith.constant 0 : index
    %c0_75 = arith.constant 0 : index
    %187 = vector.load %arg4[%c1_73, %c0_74, %c0_75] : memref<3x128x512xbf16, #tpu.memory_space<vmem>>, vector<1x128x512xbf16>
    %188 = vector.shape_cast %187 : vector<1x128x512xbf16> to vector<128x512xbf16>
    %cst_76 = arith.constant dense<0.000000e+00> : vector<16x512xf32>
    %189 = tpu.matmul %186, %188, %cst_76 {dimension_numbers = #tpu.dot_dimension_numbers<[1], [0], [0], [1], [0, 0, 1, 1], [], []>} : vector<16x128xbf16>, vector<128x512xbf16>, vector<16x512xf32> -> vector<16x512xf32>
    %190 = arith.addf %185, %189 : vector<16x512xf32>
    %191 = vector.extract_strided_slice %190 {offsets = [0, 0], sizes = [16, 384], strides = [1, 1]} : vector<16x512xf32> to vector<16x384xf32>
    %192 = arith.negf %191 : vector<16x384xf32>
    %193 = math.exp %192 : vector<16x384xf32>
    %cst_77 = arith.constant 1.000000e+00 : f32
    %194 = vector.broadcast %cst_77 : f32 to vector<16x384xf32>
    %195 = arith.addf %194, %193 : vector<16x384xf32>
    %196 = arith.divf %194, %195 : vector<16x384xf32>
    %197 = vector.extract_strided_slice %190 {offsets = [0, 384], sizes = [16, 128], strides = [1, 1]} : vector<16x512xf32> to vector<16x128xf32>
    %198 = math.tanh %197 : vector<16x128xf32>
    %199 = vector.extract_strided_slice %196 {offsets = [0, 128], sizes = [16, 128], strides = [1, 1]} : vector<16x384xf32> to vector<16x128xf32>
    %200 = arith.mulf %199, %127 : vector<16x128xf32>
    %201 = vector.extract_strided_slice %196 {offsets = [0, 0], sizes = [16, 128], strides = [1, 1]} : vector<16x384xf32> to vector<16x128xf32>
    %202 = arith.mulf %201, %198 : vector<16x128xf32>
    %203 = arith.addf %200, %202 : vector<16x128xf32>
    %204 = vector.extract_strided_slice %196 {offsets = [0, 256], sizes = [16, 128], strides = [1, 1]} : vector<16x384xf32> to vector<16x128xf32>
    %205 = math.tanh %203 : vector<16x128xf32>
    %206 = arith.mulf %204, %205 : vector<16x128xf32>
    %207 = arith.truncf %130 : vector<16x128xf32> to vector<16x128xbf16>
    %c1_78 = arith.constant 1 : index
    %c0_79 = arith.constant 0 : index
    %c0_80 = arith.constant 0 : index
    %208 = vector.load %arg3[%c1_78, %c0_79, %c0_80] : memref<2x128x512xbf16, #tpu.memory_space<vmem>>, vector<1x128x512xbf16>
    %209 = vector.shape_cast %208 : vector<1x128x512xbf16> to vector<128x512xbf16>
    %cst_81 = arith.constant dense<0.000000e+00> : vector<16x512xf32>
    %210 = tpu.matmul %207, %209, %cst_81 {dimension_numbers = #tpu.dot_dimension_numbers<[1], [0], [0], [1], [0, 0, 1, 1], [], []>} : vector<16x128xbf16>, vector<128x512xbf16>, vector<16x512xf32> -> vector<16x512xf32>
    %c2_82 = arith.constant 2 : index
    %c0_83 = arith.constant 0 : index
    %c0_84 = arith.constant 0 : index
    %211 = vector.load %arg5[%c2_82, %c0_83, %c0_84] : memref<3x1x512xf32, #tpu.memory_space<vmem>>, vector<1x1x512xf32>
    %212 = vector.shape_cast %211 : vector<1x1x512xf32> to vector<1x512xf32>
    %213 = vector.broadcast %212 : vector<1x512xf32> to vector<16x512xf32>
    %214 = arith.addf %210, %213 : vector<16x512xf32>
    %215 = arith.truncf %154 : vector<16x128xf32> to vector<16x128xbf16>
    %c2_85 = arith.constant 2 : index
    %c0_86 = arith.constant 0 : index
    %c0_87 = arith.constant 0 : index
    %216 = vector.load %arg4[%c2_85, %c0_86, %c0_87] : memref<3x128x512xbf16, #tpu.memory_space<vmem>>, vector<1x128x512xbf16>
    %217 = vector.shape_cast %216 : vector<1x128x512xbf16> to vector<128x512xbf16>
    %cst_88 = arith.constant dense<0.000000e+00> : vector<16x512xf32>
    %218 = tpu.matmul %215, %217, %cst_88 {dimension_numbers = #tpu.dot_dimension_numbers<[1], [0], [0], [1], [0, 0, 1, 1], [], []>} : vector<16x128xbf16>, vector<128x512xbf16>, vector<16x512xf32> -> vector<16x512xf32>
    %219 = arith.addf %214, %218 : vector<16x512xf32>
    %220 = vector.extract_strided_slice %219 {offsets = [0, 0], sizes = [16, 384], strides = [1, 1]} : vector<16x512xf32> to vector<16x384xf32>
    %221 = arith.negf %220 : vector<16x384xf32>
    %222 = math.exp %221 : vector<16x384xf32>
    %cst_89 = arith.constant 1.000000e+00 : f32
    %223 = vector.broadcast %cst_89 : f32 to vector<16x384xf32>
    %224 = arith.addf %223, %222 : vector<16x384xf32>
    %225 = arith.divf %223, %224 : vector<16x384xf32>
    %226 = vector.extract_strided_slice %219 {offsets = [0, 384], sizes = [16, 128], strides = [1, 1]} : vector<16x512xf32> to vector<16x128xf32>
    %227 = math.tanh %226 : vector<16x128xf32>
    %228 = vector.extract_strided_slice %225 {offsets = [0, 128], sizes = [16, 128], strides = [1, 1]} : vector<16x384xf32> to vector<16x128xf32>
    %229 = arith.mulf %228, %151 : vector<16x128xf32>
    %230 = vector.extract_strided_slice %225 {offsets = [0, 0], sizes = [16, 128], strides = [1, 1]} : vector<16x384xf32> to vector<16x128xf32>
    %231 = arith.mulf %230, %227 : vector<16x128xf32>
    %232 = arith.addf %229, %231 : vector<16x128xf32>
    %233 = vector.extract_strided_slice %225 {offsets = [0, 256], sizes = [16, 128], strides = [1, 1]} : vector<16x384xf32> to vector<16x128xf32>
    %234 = math.tanh %232 : vector<16x128xf32>
    %235 = arith.mulf %233, %234 : vector<16x128xf32>
    %c0_90 = arith.constant 0 : index
    %c4 = arith.constant 4 : index
    %c0_91 = arith.constant 0 : index
    %236 = vector.load %arg9[%c0_90, %c4, %c0_91] : memref<16x8x512xf32, #tpu.memory_space<vmem>>, vector<16x1x512xf32>
    %237 = vector.shape_cast %236 : vector<16x1x512xf32> to vector<16x512xf32>
    %238 = arith.truncf %177 : vector<16x128xf32> to vector<16x128xbf16>
    %c0_92 = arith.constant 0 : index
    %c0_93 = arith.constant 0 : index
    %c0_94 = arith.constant 0 : index
    %239 = vector.load %arg4[%c0_92, %c0_93, %c0_94] : memref<3x128x512xbf16, #tpu.memory_space<vmem>>, vector<1x128x512xbf16>
    %240 = vector.shape_cast %239 : vector<1x128x512xbf16> to vector<128x512xbf16>
    %cst_95 = arith.constant dense<0.000000e+00> : vector<16x512xf32>
    %241 = tpu.matmul %238, %240, %cst_95 {dimension_numbers = #tpu.dot_dimension_numbers<[1], [0], [0], [1], [0, 0, 1, 1], [], []>} : vector<16x128xbf16>, vector<128x512xbf16>, vector<16x512xf32> -> vector<16x512xf32>
    %242 = arith.addf %237, %241 : vector<16x512xf32>
    %243 = vector.extract_strided_slice %242 {offsets = [0, 0], sizes = [16, 384], strides = [1, 1]} : vector<16x512xf32> to vector<16x384xf32>
    %244 = arith.negf %243 : vector<16x384xf32>
    %245 = math.exp %244 : vector<16x384xf32>
    %cst_96 = arith.constant 1.000000e+00 : f32
    %246 = vector.broadcast %cst_96 : f32 to vector<16x384xf32>
    %247 = arith.addf %246, %245 : vector<16x384xf32>
    %248 = arith.divf %246, %247 : vector<16x384xf32>
    %249 = vector.extract_strided_slice %242 {offsets = [0, 384], sizes = [16, 128], strides = [1, 1]} : vector<16x512xf32> to vector<16x128xf32>
    %250 = math.tanh %249 : vector<16x128xf32>
    %251 = vector.extract_strided_slice %248 {offsets = [0, 128], sizes = [16, 128], strides = [1, 1]} : vector<16x384xf32> to vector<16x128xf32>
    %252 = arith.mulf %251, %174 : vector<16x128xf32>
    %253 = vector.extract_strided_slice %248 {offsets = [0, 0], sizes = [16, 128], strides = [1, 1]} : vector<16x384xf32> to vector<16x128xf32>
    %254 = arith.mulf %253, %250 : vector<16x128xf32>
    %255 = arith.addf %252, %254 : vector<16x128xf32>
    %256 = vector.extract_strided_slice %248 {offsets = [0, 256], sizes = [16, 128], strides = [1, 1]} : vector<16x384xf32> to vector<16x128xf32>
    %257 = math.tanh %255 : vector<16x128xf32>
    %258 = arith.mulf %256, %257 : vector<16x128xf32>
    %259 = arith.truncf %177 : vector<16x128xf32> to vector<16x128xbf16>
    %c0_97 = arith.constant 0 : index
    %c0_98 = arith.constant 0 : index
    %c0_99 = arith.constant 0 : index
    %260 = vector.load %arg3[%c0_97, %c0_98, %c0_99] : memref<2x128x512xbf16, #tpu.memory_space<vmem>>, vector<1x128x512xbf16>
    %261 = vector.shape_cast %260 : vector<1x128x512xbf16> to vector<128x512xbf16>
    %cst_100 = arith.constant dense<0.000000e+00> : vector<16x512xf32>
    %262 = tpu.matmul %259, %261, %cst_100 {dimension_numbers = #tpu.dot_dimension_numbers<[1], [0], [0], [1], [0, 0, 1, 1], [], []>} : vector<16x128xbf16>, vector<128x512xbf16>, vector<16x512xf32> -> vector<16x512xf32>
    %c1_101 = arith.constant 1 : index
    %c0_102 = arith.constant 0 : index
    %c0_103 = arith.constant 0 : index
    %263 = vector.load %arg5[%c1_101, %c0_102, %c0_103] : memref<3x1x512xf32, #tpu.memory_space<vmem>>, vector<1x1x512xf32>
    %264 = vector.shape_cast %263 : vector<1x1x512xf32> to vector<1x512xf32>
    %265 = vector.broadcast %264 : vector<1x512xf32> to vector<16x512xf32>
    %266 = arith.addf %262, %265 : vector<16x512xf32>
    %267 = arith.truncf %206 : vector<16x128xf32> to vector<16x128xbf16>
    %c1_104 = arith.constant 1 : index
    %c0_105 = arith.constant 0 : index
    %c0_106 = arith.constant 0 : index
    %268 = vector.load %arg4[%c1_104, %c0_105, %c0_106] : memref<3x128x512xbf16, #tpu.memory_space<vmem>>, vector<1x128x512xbf16>
    %269 = vector.shape_cast %268 : vector<1x128x512xbf16> to vector<128x512xbf16>
    %cst_107 = arith.constant dense<0.000000e+00> : vector<16x512xf32>
    %270 = tpu.matmul %267, %269, %cst_107 {dimension_numbers = #tpu.dot_dimension_numbers<[1], [0], [0], [1], [0, 0, 1, 1], [], []>} : vector<16x128xbf16>, vector<128x512xbf16>, vector<16x512xf32> -> vector<16x512xf32>
    %271 = arith.addf %266, %270 : vector<16x512xf32>
    %272 = vector.extract_strided_slice %271 {offsets = [0, 0], sizes = [16, 384], strides = [1, 1]} : vector<16x512xf32> to vector<16x384xf32>
    %273 = arith.negf %272 : vector<16x384xf32>
    %274 = math.exp %273 : vector<16x384xf32>
    %cst_108 = arith.constant 1.000000e+00 : f32
    %275 = vector.broadcast %cst_108 : f32 to vector<16x384xf32>
    %276 = arith.addf %275, %274 : vector<16x384xf32>
    %277 = arith.divf %275, %276 : vector<16x384xf32>
    %278 = vector.extract_strided_slice %271 {offsets = [0, 384], sizes = [16, 128], strides = [1, 1]} : vector<16x512xf32> to vector<16x128xf32>
    %279 = math.tanh %278 : vector<16x128xf32>
    %280 = vector.extract_strided_slice %277 {offsets = [0, 128], sizes = [16, 128], strides = [1, 1]} : vector<16x384xf32> to vector<16x128xf32>
    %281 = arith.mulf %280, %203 : vector<16x128xf32>
    %282 = vector.extract_strided_slice %277 {offsets = [0, 0], sizes = [16, 128], strides = [1, 1]} : vector<16x384xf32> to vector<16x128xf32>
    %283 = arith.mulf %282, %279 : vector<16x128xf32>
    %284 = arith.addf %281, %283 : vector<16x128xf32>
    %285 = vector.extract_strided_slice %277 {offsets = [0, 256], sizes = [16, 128], strides = [1, 1]} : vector<16x384xf32> to vector<16x128xf32>
    %286 = math.tanh %284 : vector<16x128xf32>
    %287 = arith.mulf %285, %286 : vector<16x128xf32>
    %288 = arith.truncf %206 : vector<16x128xf32> to vector<16x128xbf16>
    %c1_109 = arith.constant 1 : index
    %c0_110 = arith.constant 0 : index
    %c0_111 = arith.constant 0 : index
    %289 = vector.load %arg3[%c1_109, %c0_110, %c0_111] : memref<2x128x512xbf16, #tpu.memory_space<vmem>>, vector<1x128x512xbf16>
    %290 = vector.shape_cast %289 : vector<1x128x512xbf16> to vector<128x512xbf16>
    %cst_112 = arith.constant dense<0.000000e+00> : vector<16x512xf32>
    %291 = tpu.matmul %288, %290, %cst_112 {dimension_numbers = #tpu.dot_dimension_numbers<[1], [0], [0], [1], [0, 0, 1, 1], [], []>} : vector<16x128xbf16>, vector<128x512xbf16>, vector<16x512xf32> -> vector<16x512xf32>
    %c2_113 = arith.constant 2 : index
    %c0_114 = arith.constant 0 : index
    %c0_115 = arith.constant 0 : index
    %292 = vector.load %arg5[%c2_113, %c0_114, %c0_115] : memref<3x1x512xf32, #tpu.memory_space<vmem>>, vector<1x1x512xf32>
    %293 = vector.shape_cast %292 : vector<1x1x512xf32> to vector<1x512xf32>
    %294 = vector.broadcast %293 : vector<1x512xf32> to vector<16x512xf32>
    %295 = arith.addf %291, %294 : vector<16x512xf32>
    %296 = arith.truncf %235 : vector<16x128xf32> to vector<16x128xbf16>
    %c2_116 = arith.constant 2 : index
    %c0_117 = arith.constant 0 : index
    %c0_118 = arith.constant 0 : index
    %297 = vector.load %arg4[%c2_116, %c0_117, %c0_118] : memref<3x128x512xbf16, #tpu.memory_space<vmem>>, vector<1x128x512xbf16>
    %298 = vector.shape_cast %297 : vector<1x128x512xbf16> to vector<128x512xbf16>
    %cst_119 = arith.constant dense<0.000000e+00> : vector<16x512xf32>
    %299 = tpu.matmul %296, %298, %cst_119 {dimension_numbers = #tpu.dot_dimension_numbers<[1], [0], [0], [1], [0, 0, 1, 1], [], []>} : vector<16x128xbf16>, vector<128x512xbf16>, vector<16x512xf32> -> vector<16x512xf32>
    %300 = arith.addf %295, %299 : vector<16x512xf32>
    %301 = vector.extract_strided_slice %300 {offsets = [0, 0], sizes = [16, 384], strides = [1, 1]} : vector<16x512xf32> to vector<16x384xf32>
    %302 = arith.negf %301 : vector<16x384xf32>
    %303 = math.exp %302 : vector<16x384xf32>
    %cst_120 = arith.constant 1.000000e+00 : f32
    %304 = vector.broadcast %cst_120 : f32 to vector<16x384xf32>
    %305 = arith.addf %304, %303 : vector<16x384xf32>
    %306 = arith.divf %304, %305 : vector<16x384xf32>
    %307 = vector.extract_strided_slice %300 {offsets = [0, 384], sizes = [16, 128], strides = [1, 1]} : vector<16x512xf32> to vector<16x128xf32>
    %308 = math.tanh %307 : vector<16x128xf32>
    %309 = vector.extract_strided_slice %306 {offsets = [0, 128], sizes = [16, 128], strides = [1, 1]} : vector<16x384xf32> to vector<16x128xf32>
    %310 = arith.mulf %309, %232 : vector<16x128xf32>
    %311 = vector.extract_strided_slice %306 {offsets = [0, 0], sizes = [16, 128], strides = [1, 1]} : vector<16x384xf32> to vector<16x128xf32>
    %312 = arith.mulf %311, %308 : vector<16x128xf32>
    %313 = arith.addf %310, %312 : vector<16x128xf32>
    %314 = vector.extract_strided_slice %306 {offsets = [0, 256], sizes = [16, 128], strides = [1, 1]} : vector<16x384xf32> to vector<16x128xf32>
    %315 = math.tanh %313 : vector<16x128xf32>
    %316 = arith.mulf %314, %315 : vector<16x128xf32>
    %c0_121 = arith.constant 0 : index
    %c5 = arith.constant 5 : index
    %c0_122 = arith.constant 0 : index
    %317 = vector.load %arg9[%c0_121, %c5, %c0_122] : memref<16x8x512xf32, #tpu.memory_space<vmem>>, vector<16x1x512xf32>
    %318 = vector.shape_cast %317 : vector<16x1x512xf32> to vector<16x512xf32>
    %319 = arith.truncf %258 : vector<16x128xf32> to vector<16x128xbf16>
    %c0_123 = arith.constant 0 : index
    %c0_124 = arith.constant 0 : index
    %c0_125 = arith.constant 0 : index
    %320 = vector.load %arg4[%c0_123, %c0_124, %c0_125] : memref<3x128x512xbf16, #tpu.memory_space<vmem>>, vector<1x128x512xbf16>
    %321 = vector.shape_cast %320 : vector<1x128x512xbf16> to vector<128x512xbf16>
    %cst_126 = arith.constant dense<0.000000e+00> : vector<16x512xf32>
    %322 = tpu.matmul %319, %321, %cst_126 {dimension_numbers = #tpu.dot_dimension_numbers<[1], [0], [0], [1], [0, 0, 1, 1], [], []>} : vector<16x128xbf16>, vector<128x512xbf16>, vector<16x512xf32> -> vector<16x512xf32>
    %323 = arith.addf %318, %322 : vector<16x512xf32>
    %324 = vector.extract_strided_slice %323 {offsets = [0, 0], sizes = [16, 384], strides = [1, 1]} : vector<16x512xf32> to vector<16x384xf32>
    %325 = arith.negf %324 : vector<16x384xf32>
    %326 = math.exp %325 : vector<16x384xf32>
    %cst_127 = arith.constant 1.000000e+00 : f32
    %327 = vector.broadcast %cst_127 : f32 to vector<16x384xf32>
    %328 = arith.addf %327, %326 : vector<16x384xf32>
    %329 = arith.divf %327, %328 : vector<16x384xf32>
    %330 = vector.extract_strided_slice %323 {offsets = [0, 384], sizes = [16, 128], strides = [1, 1]} : vector<16x512xf32> to vector<16x128xf32>
    %331 = math.tanh %330 : vector<16x128xf32>
    %332 = vector.extract_strided_slice %329 {offsets = [0, 128], sizes = [16, 128], strides = [1, 1]} : vector<16x384xf32> to vector<16x128xf32>
    %333 = arith.mulf %332, %255 : vector<16x128xf32>
    %334 = vector.extract_strided_slice %329 {offsets = [0, 0], sizes = [16, 128], strides = [1, 1]} : vector<16x384xf32> to vector<16x128xf32>
    %335 = arith.mulf %334, %331 : vector<16x128xf32>
    %336 = arith.addf %333, %335 : vector<16x128xf32>
    %337 = vector.extract_strided_slice %329 {offsets = [0, 256], sizes = [16, 128], strides = [1, 1]} : vector<16x384xf32> to vector<16x128xf32>
    %338 = math.tanh %336 : vector<16x128xf32>
    %339 = arith.mulf %337, %338 : vector<16x128xf32>
    %340 = arith.truncf %258 : vector<16x128xf32> to vector<16x128xbf16>
    %c0_128 = arith.constant 0 : index
    %c0_129 = arith.constant 0 : index
    %c0_130 = arith.constant 0 : index
    %341 = vector.load %arg3[%c0_128, %c0_129, %c0_130] : memref<2x128x512xbf16, #tpu.memory_space<vmem>>, vector<1x128x512xbf16>
    %342 = vector.shape_cast %341 : vector<1x128x512xbf16> to vector<128x512xbf16>
    %cst_131 = arith.constant dense<0.000000e+00> : vector<16x512xf32>
    %343 = tpu.matmul %340, %342, %cst_131 {dimension_numbers = #tpu.dot_dimension_numbers<[1], [0], [0], [1], [0, 0, 1, 1], [], []>} : vector<16x128xbf16>, vector<128x512xbf16>, vector<16x512xf32> -> vector<16x512xf32>
    %c1_132 = arith.constant 1 : index
    %c0_133 = arith.constant 0 : index
    %c0_134 = arith.constant 0 : index
    %344 = vector.load %arg5[%c1_132, %c0_133, %c0_134] : memref<3x1x512xf32, #tpu.memory_space<vmem>>, vector<1x1x512xf32>
    %345 = vector.shape_cast %344 : vector<1x1x512xf32> to vector<1x512xf32>
    %346 = vector.broadcast %345 : vector<1x512xf32> to vector<16x512xf32>
    %347 = arith.addf %343, %346 : vector<16x512xf32>
    %348 = arith.truncf %287 : vector<16x128xf32> to vector<16x128xbf16>
    %c1_135 = arith.constant 1 : index
    %c0_136 = arith.constant 0 : index
    %c0_137 = arith.constant 0 : index
    %349 = vector.load %arg4[%c1_135, %c0_136, %c0_137] : memref<3x128x512xbf16, #tpu.memory_space<vmem>>, vector<1x128x512xbf16>
    %350 = vector.shape_cast %349 : vector<1x128x512xbf16> to vector<128x512xbf16>
    %cst_138 = arith.constant dense<0.000000e+00> : vector<16x512xf32>
    %351 = tpu.matmul %348, %350, %cst_138 {dimension_numbers = #tpu.dot_dimension_numbers<[1], [0], [0], [1], [0, 0, 1, 1], [], []>} : vector<16x128xbf16>, vector<128x512xbf16>, vector<16x512xf32> -> vector<16x512xf32>
    %352 = arith.addf %347, %351 : vector<16x512xf32>
    %353 = vector.extract_strided_slice %352 {offsets = [0, 0], sizes = [16, 384], strides = [1, 1]} : vector<16x512xf32> to vector<16x384xf32>
    %354 = arith.negf %353 : vector<16x384xf32>
    %355 = math.exp %354 : vector<16x384xf32>
    %cst_139 = arith.constant 1.000000e+00 : f32
    %356 = vector.broadcast %cst_139 : f32 to vector<16x384xf32>
    %357 = arith.addf %356, %355 : vector<16x384xf32>
    %358 = arith.divf %356, %357 : vector<16x384xf32>
    %359 = vector.extract_strided_slice %352 {offsets = [0, 384], sizes = [16, 128], strides = [1, 1]} : vector<16x512xf32> to vector<16x128xf32>
    %360 = math.tanh %359 : vector<16x128xf32>
    %361 = vector.extract_strided_slice %358 {offsets = [0, 128], sizes = [16, 128], strides = [1, 1]} : vector<16x384xf32> to vector<16x128xf32>
    %362 = arith.mulf %361, %284 : vector<16x128xf32>
    %363 = vector.extract_strided_slice %358 {offsets = [0, 0], sizes = [16, 128], strides = [1, 1]} : vector<16x384xf32> to vector<16x128xf32>
    %364 = arith.mulf %363, %360 : vector<16x128xf32>
    %365 = arith.addf %362, %364 : vector<16x128xf32>
    %366 = vector.extract_strided_slice %358 {offsets = [0, 256], sizes = [16, 128], strides = [1, 1]} : vector<16x384xf32> to vector<16x128xf32>
    %367 = math.tanh %365 : vector<16x128xf32>
    %368 = arith.mulf %366, %367 : vector<16x128xf32>
    %369 = arith.truncf %287 : vector<16x128xf32> to vector<16x128xbf16>
    %c1_140 = arith.constant 1 : index
    %c0_141 = arith.constant 0 : index
    %c0_142 = arith.constant 0 : index
    %370 = vector.load %arg3[%c1_140, %c0_141, %c0_142] : memref<2x128x512xbf16, #tpu.memory_space<vmem>>, vector<1x128x512xbf16>
    %371 = vector.shape_cast %370 : vector<1x128x512xbf16> to vector<128x512xbf16>
    %cst_143 = arith.constant dense<0.000000e+00> : vector<16x512xf32>
    %372 = tpu.matmul %369, %371, %cst_143 {dimension_numbers = #tpu.dot_dimension_numbers<[1], [0], [0], [1], [0, 0, 1, 1], [], []>} : vector<16x128xbf16>, vector<128x512xbf16>, vector<16x512xf32> -> vector<16x512xf32>
    %c2_144 = arith.constant 2 : index
    %c0_145 = arith.constant 0 : index
    %c0_146 = arith.constant 0 : index
    %373 = vector.load %arg5[%c2_144, %c0_145, %c0_146] : memref<3x1x512xf32, #tpu.memory_space<vmem>>, vector<1x1x512xf32>
    %374 = vector.shape_cast %373 : vector<1x1x512xf32> to vector<1x512xf32>
    %375 = vector.broadcast %374 : vector<1x512xf32> to vector<16x512xf32>
    %376 = arith.addf %372, %375 : vector<16x512xf32>
    %377 = arith.truncf %316 : vector<16x128xf32> to vector<16x128xbf16>
    %c2_147 = arith.constant 2 : index
    %c0_148 = arith.constant 0 : index
    %c0_149 = arith.constant 0 : index
    %378 = vector.load %arg4[%c2_147, %c0_148, %c0_149] : memref<3x128x512xbf16, #tpu.memory_space<vmem>>, vector<1x128x512xbf16>
    %379 = vector.shape_cast %378 : vector<1x128x512xbf16> to vector<128x512xbf16>
    %cst_150 = arith.constant dense<0.000000e+00> : vector<16x512xf32>
    %380 = tpu.matmul %377, %379, %cst_150 {dimension_numbers = #tpu.dot_dimension_numbers<[1], [0], [0], [1], [0, 0, 1, 1], [], []>} : vector<16x128xbf16>, vector<128x512xbf16>, vector<16x512xf32> -> vector<16x512xf32>
    %381 = arith.addf %376, %380 : vector<16x512xf32>
    %382 = vector.extract_strided_slice %381 {offsets = [0, 0], sizes = [16, 384], strides = [1, 1]} : vector<16x512xf32> to vector<16x384xf32>
    %383 = arith.negf %382 : vector<16x384xf32>
    %384 = math.exp %383 : vector<16x384xf32>
    %cst_151 = arith.constant 1.000000e+00 : f32
    %385 = vector.broadcast %cst_151 : f32 to vector<16x384xf32>
    %386 = arith.addf %385, %384 : vector<16x384xf32>
    %387 = arith.divf %385, %386 : vector<16x384xf32>
    %388 = vector.extract_strided_slice %381 {offsets = [0, 384], sizes = [16, 128], strides = [1, 1]} : vector<16x512xf32> to vector<16x128xf32>
    %389 = math.tanh %388 : vector<16x128xf32>
    %390 = vector.extract_strided_slice %387 {offsets = [0, 128], sizes = [16, 128], strides = [1, 1]} : vector<16x384xf32> to vector<16x128xf32>
    %391 = arith.mulf %390, %313 : vector<16x128xf32>
    %392 = vector.extract_strided_slice %387 {offsets = [0, 0], sizes = [16, 128], strides = [1, 1]} : vector<16x384xf32> to vector<16x128xf32>
    %393 = arith.mulf %392, %389 : vector<16x128xf32>
    %394 = arith.addf %391, %393 : vector<16x128xf32>
    %395 = vector.extract_strided_slice %387 {offsets = [0, 256], sizes = [16, 128], strides = [1, 1]} : vector<16x384xf32> to vector<16x128xf32>
    %396 = math.tanh %394 : vector<16x128xf32>
    %397 = arith.mulf %395, %396 : vector<16x128xf32>
    %c0_152 = arith.constant 0 : index
    %c6 = arith.constant 6 : index
    %c0_153 = arith.constant 0 : index
    %398 = vector.load %arg9[%c0_152, %c6, %c0_153] : memref<16x8x512xf32, #tpu.memory_space<vmem>>, vector<16x1x512xf32>
    %399 = vector.shape_cast %398 : vector<16x1x512xf32> to vector<16x512xf32>
    %400 = arith.truncf %339 : vector<16x128xf32> to vector<16x128xbf16>
    %c0_154 = arith.constant 0 : index
    %c0_155 = arith.constant 0 : index
    %c0_156 = arith.constant 0 : index
    %401 = vector.load %arg4[%c0_154, %c0_155, %c0_156] : memref<3x128x512xbf16, #tpu.memory_space<vmem>>, vector<1x128x512xbf16>
    %402 = vector.shape_cast %401 : vector<1x128x512xbf16> to vector<128x512xbf16>
    %cst_157 = arith.constant dense<0.000000e+00> : vector<16x512xf32>
    %403 = tpu.matmul %400, %402, %cst_157 {dimension_numbers = #tpu.dot_dimension_numbers<[1], [0], [0], [1], [0, 0, 1, 1], [], []>} : vector<16x128xbf16>, vector<128x512xbf16>, vector<16x512xf32> -> vector<16x512xf32>
    %404 = arith.addf %399, %403 : vector<16x512xf32>
    %405 = vector.extract_strided_slice %404 {offsets = [0, 0], sizes = [16, 384], strides = [1, 1]} : vector<16x512xf32> to vector<16x384xf32>
    %406 = arith.negf %405 : vector<16x384xf32>
    %407 = math.exp %406 : vector<16x384xf32>
    %cst_158 = arith.constant 1.000000e+00 : f32
    %408 = vector.broadcast %cst_158 : f32 to vector<16x384xf32>
    %409 = arith.addf %408, %407 : vector<16x384xf32>
    %410 = arith.divf %408, %409 : vector<16x384xf32>
    %411 = vector.extract_strided_slice %404 {offsets = [0, 384], sizes = [16, 128], strides = [1, 1]} : vector<16x512xf32> to vector<16x128xf32>
    %412 = math.tanh %411 : vector<16x128xf32>
    %413 = vector.extract_strided_slice %410 {offsets = [0, 128], sizes = [16, 128], strides = [1, 1]} : vector<16x384xf32> to vector<16x128xf32>
    %414 = arith.mulf %413, %336 : vector<16x128xf32>
    %415 = vector.extract_strided_slice %410 {offsets = [0, 0], sizes = [16, 128], strides = [1, 1]} : vector<16x384xf32> to vector<16x128xf32>
    %416 = arith.mulf %415, %412 : vector<16x128xf32>
    %417 = arith.addf %414, %416 : vector<16x128xf32>
    %418 = vector.extract_strided_slice %410 {offsets = [0, 256], sizes = [16, 128], strides = [1, 1]} : vector<16x384xf32> to vector<16x128xf32>
    %419 = math.tanh %417 : vector<16x128xf32>
    %420 = arith.mulf %418, %419 : vector<16x128xf32>
    %421 = arith.truncf %339 : vector<16x128xf32> to vector<16x128xbf16>
    %c0_159 = arith.constant 0 : index
    %c0_160 = arith.constant 0 : index
    %c0_161 = arith.constant 0 : index
    %422 = vector.load %arg3[%c0_159, %c0_160, %c0_161] : memref<2x128x512xbf16, #tpu.memory_space<vmem>>, vector<1x128x512xbf16>
    %423 = vector.shape_cast %422 : vector<1x128x512xbf16> to vector<128x512xbf16>
    %cst_162 = arith.constant dense<0.000000e+00> : vector<16x512xf32>
    %424 = tpu.matmul %421, %423, %cst_162 {dimension_numbers = #tpu.dot_dimension_numbers<[1], [0], [0], [1], [0, 0, 1, 1], [], []>} : vector<16x128xbf16>, vector<128x512xbf16>, vector<16x512xf32> -> vector<16x512xf32>
    %c1_163 = arith.constant 1 : index
    %c0_164 = arith.constant 0 : index
    %c0_165 = arith.constant 0 : index
    %425 = vector.load %arg5[%c1_163, %c0_164, %c0_165] : memref<3x1x512xf32, #tpu.memory_space<vmem>>, vector<1x1x512xf32>
    %426 = vector.shape_cast %425 : vector<1x1x512xf32> to vector<1x512xf32>
    %427 = vector.broadcast %426 : vector<1x512xf32> to vector<16x512xf32>
    %428 = arith.addf %424, %427 : vector<16x512xf32>
    %429 = arith.truncf %368 : vector<16x128xf32> to vector<16x128xbf16>
    %c1_166 = arith.constant 1 : index
    %c0_167 = arith.constant 0 : index
    %c0_168 = arith.constant 0 : index
    %430 = vector.load %arg4[%c1_166, %c0_167, %c0_168] : memref<3x128x512xbf16, #tpu.memory_space<vmem>>, vector<1x128x512xbf16>
    %431 = vector.shape_cast %430 : vector<1x128x512xbf16> to vector<128x512xbf16>
    %cst_169 = arith.constant dense<0.000000e+00> : vector<16x512xf32>
    %432 = tpu.matmul %429, %431, %cst_169 {dimension_numbers = #tpu.dot_dimension_numbers<[1], [0], [0], [1], [0, 0, 1, 1], [], []>} : vector<16x128xbf16>, vector<128x512xbf16>, vector<16x512xf32> -> vector<16x512xf32>
    %433 = arith.addf %428, %432 : vector<16x512xf32>
    %434 = vector.extract_strided_slice %433 {offsets = [0, 0], sizes = [16, 384], strides = [1, 1]} : vector<16x512xf32> to vector<16x384xf32>
    %435 = arith.negf %434 : vector<16x384xf32>
    %436 = math.exp %435 : vector<16x384xf32>
    %cst_170 = arith.constant 1.000000e+00 : f32
    %437 = vector.broadcast %cst_170 : f32 to vector<16x384xf32>
    %438 = arith.addf %437, %436 : vector<16x384xf32>
    %439 = arith.divf %437, %438 : vector<16x384xf32>
    %440 = vector.extract_strided_slice %433 {offsets = [0, 384], sizes = [16, 128], strides = [1, 1]} : vector<16x512xf32> to vector<16x128xf32>
    %441 = math.tanh %440 : vector<16x128xf32>
    %442 = vector.extract_strided_slice %439 {offsets = [0, 128], sizes = [16, 128], strides = [1, 1]} : vector<16x384xf32> to vector<16x128xf32>
    %443 = arith.mulf %442, %365 : vector<16x128xf32>
    %444 = vector.extract_strided_slice %439 {offsets = [0, 0], sizes = [16, 128], strides = [1, 1]} : vector<16x384xf32> to vector<16x128xf32>
    %445 = arith.mulf %444, %441 : vector<16x128xf32>
    %446 = arith.addf %443, %445 : vector<16x128xf32>
    %447 = vector.extract_strided_slice %439 {offsets = [0, 256], sizes = [16, 128], strides = [1, 1]} : vector<16x384xf32> to vector<16x128xf32>
    %448 = math.tanh %446 : vector<16x128xf32>
    %449 = arith.mulf %447, %448 : vector<16x128xf32>
    %450 = arith.truncf %368 : vector<16x128xf32> to vector<16x128xbf16>
    %c1_171 = arith.constant 1 : index
    %c0_172 = arith.constant 0 : index
    %c0_173 = arith.constant 0 : index
    %451 = vector.load %arg3[%c1_171, %c0_172, %c0_173] : memref<2x128x512xbf16, #tpu.memory_space<vmem>>, vector<1x128x512xbf16>
    %452 = vector.shape_cast %451 : vector<1x128x512xbf16> to vector<128x512xbf16>
    %cst_174 = arith.constant dense<0.000000e+00> : vector<16x512xf32>
    %453 = tpu.matmul %450, %452, %cst_174 {dimension_numbers = #tpu.dot_dimension_numbers<[1], [0], [0], [1], [0, 0, 1, 1], [], []>} : vector<16x128xbf16>, vector<128x512xbf16>, vector<16x512xf32> -> vector<16x512xf32>
    %c2_175 = arith.constant 2 : index
    %c0_176 = arith.constant 0 : index
    %c0_177 = arith.constant 0 : index
    %454 = vector.load %arg5[%c2_175, %c0_176, %c0_177] : memref<3x1x512xf32, #tpu.memory_space<vmem>>, vector<1x1x512xf32>
    %455 = vector.shape_cast %454 : vector<1x1x512xf32> to vector<1x512xf32>
    %456 = vector.broadcast %455 : vector<1x512xf32> to vector<16x512xf32>
    %457 = arith.addf %453, %456 : vector<16x512xf32>
    %458 = arith.truncf %397 : vector<16x128xf32> to vector<16x128xbf16>
    %c2_178 = arith.constant 2 : index
    %c0_179 = arith.constant 0 : index
    %c0_180 = arith.constant 0 : index
    %459 = vector.load %arg4[%c2_178, %c0_179, %c0_180] : memref<3x128x512xbf16, #tpu.memory_space<vmem>>, vector<1x128x512xbf16>
    %460 = vector.shape_cast %459 : vector<1x128x512xbf16> to vector<128x512xbf16>
    %cst_181 = arith.constant dense<0.000000e+00> : vector<16x512xf32>
    %461 = tpu.matmul %458, %460, %cst_181 {dimension_numbers = #tpu.dot_dimension_numbers<[1], [0], [0], [1], [0, 0, 1, 1], [], []>} : vector<16x128xbf16>, vector<128x512xbf16>, vector<16x512xf32> -> vector<16x512xf32>
    %462 = arith.addf %457, %461 : vector<16x512xf32>
    %463 = vector.extract_strided_slice %462 {offsets = [0, 0], sizes = [16, 384], strides = [1, 1]} : vector<16x512xf32> to vector<16x384xf32>
    %464 = arith.negf %463 : vector<16x384xf32>
    %465 = math.exp %464 : vector<16x384xf32>
    %cst_182 = arith.constant 1.000000e+00 : f32
    %466 = vector.broadcast %cst_182 : f32 to vector<16x384xf32>
    %467 = arith.addf %466, %465 : vector<16x384xf32>
    %468 = arith.divf %466, %467 : vector<16x384xf32>
    %469 = vector.extract_strided_slice %462 {offsets = [0, 384], sizes = [16, 128], strides = [1, 1]} : vector<16x512xf32> to vector<16x128xf32>
    %470 = math.tanh %469 : vector<16x128xf32>
    %471 = vector.extract_strided_slice %468 {offsets = [0, 128], sizes = [16, 128], strides = [1, 1]} : vector<16x384xf32> to vector<16x128xf32>
    %472 = arith.mulf %471, %394 : vector<16x128xf32>
    %473 = vector.extract_strided_slice %468 {offsets = [0, 0], sizes = [16, 128], strides = [1, 1]} : vector<16x384xf32> to vector<16x128xf32>
    %474 = arith.mulf %473, %470 : vector<16x128xf32>
    %475 = arith.addf %472, %474 : vector<16x128xf32>
    %476 = vector.extract_strided_slice %468 {offsets = [0, 256], sizes = [16, 128], strides = [1, 1]} : vector<16x384xf32> to vector<16x128xf32>
    %477 = math.tanh %475 : vector<16x128xf32>
    %478 = arith.mulf %476, %477 : vector<16x128xf32>
    %c0_183 = arith.constant 0 : index
    %c7 = arith.constant 7 : index
    %c0_184 = arith.constant 0 : index
    %479 = vector.load %arg9[%c0_183, %c7, %c0_184] : memref<16x8x512xf32, #tpu.memory_space<vmem>>, vector<16x1x512xf32>
    %480 = vector.shape_cast %479 : vector<16x1x512xf32> to vector<16x512xf32>
    %481 = arith.truncf %420 : vector<16x128xf32> to vector<16x128xbf16>
    %c0_185 = arith.constant 0 : index
    %c0_186 = arith.constant 0 : index
    %c0_187 = arith.constant 0 : index
    %482 = vector.load %arg4[%c0_185, %c0_186, %c0_187] : memref<3x128x512xbf16, #tpu.memory_space<vmem>>, vector<1x128x512xbf16>
    %483 = vector.shape_cast %482 : vector<1x128x512xbf16> to vector<128x512xbf16>
    %cst_188 = arith.constant dense<0.000000e+00> : vector<16x512xf32>
    %484 = tpu.matmul %481, %483, %cst_188 {dimension_numbers = #tpu.dot_dimension_numbers<[1], [0], [0], [1], [0, 0, 1, 1], [], []>} : vector<16x128xbf16>, vector<128x512xbf16>, vector<16x512xf32> -> vector<16x512xf32>
    %485 = arith.addf %480, %484 : vector<16x512xf32>
    %486 = vector.extract_strided_slice %485 {offsets = [0, 0], sizes = [16, 384], strides = [1, 1]} : vector<16x512xf32> to vector<16x384xf32>
    %487 = arith.negf %486 : vector<16x384xf32>
    %488 = math.exp %487 : vector<16x384xf32>
    %cst_189 = arith.constant 1.000000e+00 : f32
    %489 = vector.broadcast %cst_189 : f32 to vector<16x384xf32>
    %490 = arith.addf %489, %488 : vector<16x384xf32>
    %491 = arith.divf %489, %490 : vector<16x384xf32>
    %492 = vector.extract_strided_slice %485 {offsets = [0, 384], sizes = [16, 128], strides = [1, 1]} : vector<16x512xf32> to vector<16x128xf32>
    %493 = math.tanh %492 : vector<16x128xf32>
    %494 = vector.extract_strided_slice %491 {offsets = [0, 128], sizes = [16, 128], strides = [1, 1]} : vector<16x384xf32> to vector<16x128xf32>
    %495 = arith.mulf %494, %417 : vector<16x128xf32>
    %496 = vector.extract_strided_slice %491 {offsets = [0, 0], sizes = [16, 128], strides = [1, 1]} : vector<16x384xf32> to vector<16x128xf32>
    %497 = arith.mulf %496, %493 : vector<16x128xf32>
    %498 = arith.addf %495, %497 : vector<16x128xf32>
    %499 = vector.extract_strided_slice %491 {offsets = [0, 256], sizes = [16, 128], strides = [1, 1]} : vector<16x384xf32> to vector<16x128xf32>
    %500 = math.tanh %498 : vector<16x128xf32>
    %501 = arith.mulf %499, %500 : vector<16x128xf32>
    %502 = arith.truncf %420 : vector<16x128xf32> to vector<16x128xbf16>
    %c0_190 = arith.constant 0 : index
    %c0_191 = arith.constant 0 : index
    %c0_192 = arith.constant 0 : index
    %503 = vector.load %arg3[%c0_190, %c0_191, %c0_192] : memref<2x128x512xbf16, #tpu.memory_space<vmem>>, vector<1x128x512xbf16>
    %504 = vector.shape_cast %503 : vector<1x128x512xbf16> to vector<128x512xbf16>
    %cst_193 = arith.constant dense<0.000000e+00> : vector<16x512xf32>
    %505 = tpu.matmul %502, %504, %cst_193 {dimension_numbers = #tpu.dot_dimension_numbers<[1], [0], [0], [1], [0, 0, 1, 1], [], []>} : vector<16x128xbf16>, vector<128x512xbf16>, vector<16x512xf32> -> vector<16x512xf32>
    %c1_194 = arith.constant 1 : index
    %c0_195 = arith.constant 0 : index
    %c0_196 = arith.constant 0 : index
    %506 = vector.load %arg5[%c1_194, %c0_195, %c0_196] : memref<3x1x512xf32, #tpu.memory_space<vmem>>, vector<1x1x512xf32>
    %507 = vector.shape_cast %506 : vector<1x1x512xf32> to vector<1x512xf32>
    %508 = vector.broadcast %507 : vector<1x512xf32> to vector<16x512xf32>
    %509 = arith.addf %505, %508 : vector<16x512xf32>
    %510 = arith.truncf %449 : vector<16x128xf32> to vector<16x128xbf16>
    %c1_197 = arith.constant 1 : index
    %c0_198 = arith.constant 0 : index
    %c0_199 = arith.constant 0 : index
    %511 = vector.load %arg4[%c1_197, %c0_198, %c0_199] : memref<3x128x512xbf16, #tpu.memory_space<vmem>>, vector<1x128x512xbf16>
    %512 = vector.shape_cast %511 : vector<1x128x512xbf16> to vector<128x512xbf16>
    %cst_200 = arith.constant dense<0.000000e+00> : vector<16x512xf32>
    %513 = tpu.matmul %510, %512, %cst_200 {dimension_numbers = #tpu.dot_dimension_numbers<[1], [0], [0], [1], [0, 0, 1, 1], [], []>} : vector<16x128xbf16>, vector<128x512xbf16>, vector<16x512xf32> -> vector<16x512xf32>
    %514 = arith.addf %509, %513 : vector<16x512xf32>
    %515 = vector.extract_strided_slice %514 {offsets = [0, 0], sizes = [16, 384], strides = [1, 1]} : vector<16x512xf32> to vector<16x384xf32>
    %516 = arith.negf %515 : vector<16x384xf32>
    %517 = math.exp %516 : vector<16x384xf32>
    %cst_201 = arith.constant 1.000000e+00 : f32
    %518 = vector.broadcast %cst_201 : f32 to vector<16x384xf32>
    %519 = arith.addf %518, %517 : vector<16x384xf32>
    %520 = arith.divf %518, %519 : vector<16x384xf32>
    %521 = vector.extract_strided_slice %514 {offsets = [0, 384], sizes = [16, 128], strides = [1, 1]} : vector<16x512xf32> to vector<16x128xf32>
    %522 = math.tanh %521 : vector<16x128xf32>
    %523 = vector.extract_strided_slice %520 {offsets = [0, 128], sizes = [16, 128], strides = [1, 1]} : vector<16x384xf32> to vector<16x128xf32>
    %524 = arith.mulf %523, %446 : vector<16x128xf32>
    %525 = vector.extract_strided_slice %520 {offsets = [0, 0], sizes = [16, 128], strides = [1, 1]} : vector<16x384xf32> to vector<16x128xf32>
    %526 = arith.mulf %525, %522 : vector<16x128xf32>
    %527 = arith.addf %524, %526 : vector<16x128xf32>
    %528 = vector.extract_strided_slice %520 {offsets = [0, 256], sizes = [16, 128], strides = [1, 1]} : vector<16x384xf32> to vector<16x128xf32>
    %529 = math.tanh %527 : vector<16x128xf32>
    %530 = arith.mulf %528, %529 : vector<16x128xf32>
    %531 = arith.truncf %449 : vector<16x128xf32> to vector<16x128xbf16>
    %c1_202 = arith.constant 1 : index
    %c0_203 = arith.constant 0 : index
    %c0_204 = arith.constant 0 : index
    %532 = vector.load %arg3[%c1_202, %c0_203, %c0_204] : memref<2x128x512xbf16, #tpu.memory_space<vmem>>, vector<1x128x512xbf16>
    %533 = vector.shape_cast %532 : vector<1x128x512xbf16> to vector<128x512xbf16>
    %cst_205 = arith.constant dense<0.000000e+00> : vector<16x512xf32>
    %534 = tpu.matmul %531, %533, %cst_205 {dimension_numbers = #tpu.dot_dimension_numbers<[1], [0], [0], [1], [0, 0, 1, 1], [], []>} : vector<16x128xbf16>, vector<128x512xbf16>, vector<16x512xf32> -> vector<16x512xf32>
    %c2_206 = arith.constant 2 : index
    %c0_207 = arith.constant 0 : index
    %c0_208 = arith.constant 0 : index
    %535 = vector.load %arg5[%c2_206, %c0_207, %c0_208] : memref<3x1x512xf32, #tpu.memory_space<vmem>>, vector<1x1x512xf32>
    %536 = vector.shape_cast %535 : vector<1x1x512xf32> to vector<1x512xf32>
    %537 = vector.broadcast %536 : vector<1x512xf32> to vector<16x512xf32>
    %538 = arith.addf %534, %537 : vector<16x512xf32>
    %539 = arith.truncf %478 : vector<16x128xf32> to vector<16x128xbf16>
    %c2_209 = arith.constant 2 : index
    %c0_210 = arith.constant 0 : index
    %c0_211 = arith.constant 0 : index
    %540 = vector.load %arg4[%c2_209, %c0_210, %c0_211] : memref<3x128x512xbf16, #tpu.memory_space<vmem>>, vector<1x128x512xbf16>
    %541 = vector.shape_cast %540 : vector<1x128x512xbf16> to vector<128x512xbf16>
    %cst_212 = arith.constant dense<0.000000e+00> : vector<16x512xf32>
    %542 = tpu.matmul %539, %541, %cst_212 {dimension_numbers = #tpu.dot_dimension_numbers<[1], [0], [0], [1], [0, 0, 1, 1], [], []>} : vector<16x128xbf16>, vector<128x512xbf16>, vector<16x512xf32> -> vector<16x512xf32>
    %543 = arith.addf %538, %542 : vector<16x512xf32>
    %544 = vector.extract_strided_slice %543 {offsets = [0, 0], sizes = [16, 384], strides = [1, 1]} : vector<16x512xf32> to vector<16x384xf32>
    %545 = arith.negf %544 : vector<16x384xf32>
    %546 = math.exp %545 : vector<16x384xf32>
    %cst_213 = arith.constant 1.000000e+00 : f32
    %547 = vector.broadcast %cst_213 : f32 to vector<16x384xf32>
    %548 = arith.addf %547, %546 : vector<16x384xf32>
    %549 = arith.divf %547, %548 : vector<16x384xf32>
    %550 = vector.extract_strided_slice %543 {offsets = [0, 384], sizes = [16, 128], strides = [1, 1]} : vector<16x512xf32> to vector<16x128xf32>
    %551 = math.tanh %550 : vector<16x128xf32>
    %552 = vector.extract_strided_slice %549 {offsets = [0, 128], sizes = [16, 128], strides = [1, 1]} : vector<16x384xf32> to vector<16x128xf32>
    %553 = arith.mulf %552, %475 : vector<16x128xf32>
    %554 = vector.extract_strided_slice %549 {offsets = [0, 0], sizes = [16, 128], strides = [1, 1]} : vector<16x384xf32> to vector<16x128xf32>
    %555 = arith.mulf %554, %551 : vector<16x128xf32>
    %556 = arith.addf %553, %555 : vector<16x128xf32>
    %557 = vector.extract_strided_slice %549 {offsets = [0, 256], sizes = [16, 128], strides = [1, 1]} : vector<16x384xf32> to vector<16x128xf32>
    %558 = math.tanh %556 : vector<16x128xf32>
    %559 = arith.mulf %557, %558 : vector<16x128xf32>
    %560 = arith.truncf %501 : vector<16x128xf32> to vector<16x128xbf16>
    %c0_214 = arith.constant 0 : index
    %c0_215 = arith.constant 0 : index
    %c0_216 = arith.constant 0 : index
    %561 = vector.load %arg3[%c0_214, %c0_215, %c0_216] : memref<2x128x512xbf16, #tpu.memory_space<vmem>>, vector<1x128x512xbf16>
    %562 = vector.shape_cast %561 : vector<1x128x512xbf16> to vector<128x512xbf16>
    %cst_217 = arith.constant dense<0.000000e+00> : vector<16x512xf32>
    %563 = tpu.matmul %560, %562, %cst_217 {dimension_numbers = #tpu.dot_dimension_numbers<[1], [0], [0], [1], [0, 0, 1, 1], [], []>} : vector<16x128xbf16>, vector<128x512xbf16>, vector<16x512xf32> -> vector<16x512xf32>
    %c1_218 = arith.constant 1 : index
    %c0_219 = arith.constant 0 : index
    %c0_220 = arith.constant 0 : index
    %564 = vector.load %arg5[%c1_218, %c0_219, %c0_220] : memref<3x1x512xf32, #tpu.memory_space<vmem>>, vector<1x1x512xf32>
    %565 = vector.shape_cast %564 : vector<1x1x512xf32> to vector<1x512xf32>
    %566 = vector.broadcast %565 : vector<1x512xf32> to vector<16x512xf32>
    %567 = arith.addf %563, %566 : vector<16x512xf32>
    %568 = arith.truncf %530 : vector<16x128xf32> to vector<16x128xbf16>
    %c1_221 = arith.constant 1 : index
    %c0_222 = arith.constant 0 : index
    %c0_223 = arith.constant 0 : index
    %569 = vector.load %arg4[%c1_221, %c0_222, %c0_223] : memref<3x128x512xbf16, #tpu.memory_space<vmem>>, vector<1x128x512xbf16>
    %570 = vector.shape_cast %569 : vector<1x128x512xbf16> to vector<128x512xbf16>
    %cst_224 = arith.constant dense<0.000000e+00> : vector<16x512xf32>
    %571 = tpu.matmul %568, %570, %cst_224 {dimension_numbers = #tpu.dot_dimension_numbers<[1], [0], [0], [1], [0, 0, 1, 1], [], []>} : vector<16x128xbf16>, vector<128x512xbf16>, vector<16x512xf32> -> vector<16x512xf32>
    %572 = arith.addf %567, %571 : vector<16x512xf32>
    %573 = vector.extract_strided_slice %572 {offsets = [0, 0], sizes = [16, 384], strides = [1, 1]} : vector<16x512xf32> to vector<16x384xf32>
    %574 = arith.negf %573 : vector<16x384xf32>
    %575 = math.exp %574 : vector<16x384xf32>
    %cst_225 = arith.constant 1.000000e+00 : f32
    %576 = vector.broadcast %cst_225 : f32 to vector<16x384xf32>
    %577 = arith.addf %576, %575 : vector<16x384xf32>
    %578 = arith.divf %576, %577 : vector<16x384xf32>
    %579 = vector.extract_strided_slice %572 {offsets = [0, 384], sizes = [16, 128], strides = [1, 1]} : vector<16x512xf32> to vector<16x128xf32>
    %580 = math.tanh %579 : vector<16x128xf32>
    %581 = vector.extract_strided_slice %578 {offsets = [0, 128], sizes = [16, 128], strides = [1, 1]} : vector<16x384xf32> to vector<16x128xf32>
    %582 = arith.mulf %581, %527 : vector<16x128xf32>
    %583 = vector.extract_strided_slice %578 {offsets = [0, 0], sizes = [16, 128], strides = [1, 1]} : vector<16x384xf32> to vector<16x128xf32>
    %584 = arith.mulf %583, %580 : vector<16x128xf32>
    %585 = arith.addf %582, %584 : vector<16x128xf32>
    %586 = vector.extract_strided_slice %578 {offsets = [0, 256], sizes = [16, 128], strides = [1, 1]} : vector<16x384xf32> to vector<16x128xf32>
    %587 = math.tanh %585 : vector<16x128xf32>
    %588 = arith.mulf %586, %587 : vector<16x128xf32>
    %589 = arith.truncf %530 : vector<16x128xf32> to vector<16x128xbf16>
    %c1_226 = arith.constant 1 : index
    %c0_227 = arith.constant 0 : index
    %c0_228 = arith.constant 0 : index
    %590 = vector.load %arg3[%c1_226, %c0_227, %c0_228] : memref<2x128x512xbf16, #tpu.memory_space<vmem>>, vector<1x128x512xbf16>
    %591 = vector.shape_cast %590 : vector<1x128x512xbf16> to vector<128x512xbf16>
    %cst_229 = arith.constant dense<0.000000e+00> : vector<16x512xf32>
    %592 = tpu.matmul %589, %591, %cst_229 {dimension_numbers = #tpu.dot_dimension_numbers<[1], [0], [0], [1], [0, 0, 1, 1], [], []>} : vector<16x128xbf16>, vector<128x512xbf16>, vector<16x512xf32> -> vector<16x512xf32>
    %c2_230 = arith.constant 2 : index
    %c0_231 = arith.constant 0 : index
    %c0_232 = arith.constant 0 : index
    %593 = vector.load %arg5[%c2_230, %c0_231, %c0_232] : memref<3x1x512xf32, #tpu.memory_space<vmem>>, vector<1x1x512xf32>
    %594 = vector.shape_cast %593 : vector<1x1x512xf32> to vector<1x512xf32>
    %595 = vector.broadcast %594 : vector<1x512xf32> to vector<16x512xf32>
    %596 = arith.addf %592, %595 : vector<16x512xf32>
    %597 = arith.truncf %559 : vector<16x128xf32> to vector<16x128xbf16>
    %c2_233 = arith.constant 2 : index
    %c0_234 = arith.constant 0 : index
    %c0_235 = arith.constant 0 : index
    %598 = vector.load %arg4[%c2_233, %c0_234, %c0_235] : memref<3x128x512xbf16, #tpu.memory_space<vmem>>, vector<1x128x512xbf16>
    %599 = vector.shape_cast %598 : vector<1x128x512xbf16> to vector<128x512xbf16>
    %cst_236 = arith.constant dense<0.000000e+00> : vector<16x512xf32>
    %600 = tpu.matmul %597, %599, %cst_236 {dimension_numbers = #tpu.dot_dimension_numbers<[1], [0], [0], [1], [0, 0, 1, 1], [], []>} : vector<16x128xbf16>, vector<128x512xbf16>, vector<16x512xf32> -> vector<16x512xf32>
    %601 = arith.addf %596, %600 : vector<16x512xf32>
    %602 = vector.extract_strided_slice %601 {offsets = [0, 0], sizes = [16, 384], strides = [1, 1]} : vector<16x512xf32> to vector<16x384xf32>
    %603 = arith.negf %602 : vector<16x384xf32>
    %604 = math.exp %603 : vector<16x384xf32>
    %cst_237 = arith.constant 1.000000e+00 : f32
    %605 = vector.broadcast %cst_237 : f32 to vector<16x384xf32>
    %606 = arith.addf %605, %604 : vector<16x384xf32>
    %607 = arith.divf %605, %606 : vector<16x384xf32>
    %608 = vector.extract_strided_slice %601 {offsets = [0, 384], sizes = [16, 128], strides = [1, 1]} : vector<16x512xf32> to vector<16x128xf32>
    %609 = math.tanh %608 : vector<16x128xf32>
    %610 = vector.extract_strided_slice %607 {offsets = [0, 128], sizes = [16, 128], strides = [1, 1]} : vector<16x384xf32> to vector<16x128xf32>
    %611 = arith.mulf %610, %556 : vector<16x128xf32>
    %612 = vector.extract_strided_slice %607 {offsets = [0, 0], sizes = [16, 128], strides = [1, 1]} : vector<16x384xf32> to vector<16x128xf32>
    %613 = arith.mulf %612, %609 : vector<16x128xf32>
    %614 = arith.addf %611, %613 : vector<16x128xf32>
    %615 = vector.extract_strided_slice %607 {offsets = [0, 256], sizes = [16, 128], strides = [1, 1]} : vector<16x384xf32> to vector<16x128xf32>
    %616 = math.tanh %614 : vector<16x128xf32>
    %617 = arith.mulf %615, %616 : vector<16x128xf32>
    %618 = arith.truncf %588 : vector<16x128xf32> to vector<16x128xbf16>
    %c1_238 = arith.constant 1 : index
    %c0_239 = arith.constant 0 : index
    %c0_240 = arith.constant 0 : index
    %619 = vector.load %arg3[%c1_238, %c0_239, %c0_240] : memref<2x128x512xbf16, #tpu.memory_space<vmem>>, vector<1x128x512xbf16>
    %620 = vector.shape_cast %619 : vector<1x128x512xbf16> to vector<128x512xbf16>
    %cst_241 = arith.constant dense<0.000000e+00> : vector<16x512xf32>
    %621 = tpu.matmul %618, %620, %cst_241 {dimension_numbers = #tpu.dot_dimension_numbers<[1], [0], [0], [1], [0, 0, 1, 1], [], []>} : vector<16x128xbf16>, vector<128x512xbf16>, vector<16x512xf32> -> vector<16x512xf32>
    %c2_242 = arith.constant 2 : index
    %c0_243 = arith.constant 0 : index
    %c0_244 = arith.constant 0 : index
    %622 = vector.load %arg5[%c2_242, %c0_243, %c0_244] : memref<3x1x512xf32, #tpu.memory_space<vmem>>, vector<1x1x512xf32>
    %623 = vector.shape_cast %622 : vector<1x1x512xf32> to vector<1x512xf32>
    %624 = vector.broadcast %623 : vector<1x512xf32> to vector<16x512xf32>
    %625 = arith.addf %621, %624 : vector<16x512xf32>
    %626 = arith.truncf %617 : vector<16x128xf32> to vector<16x128xbf16>
    %c2_245 = arith.constant 2 : index
    %c0_246 = arith.constant 0 : index
    %c0_247 = arith.constant 0 : index
    %627 = vector.load %arg4[%c2_245, %c0_246, %c0_247] : memref<3x128x512xbf16, #tpu.memory_space<vmem>>, vector<1x128x512xbf16>
    %628 = vector.shape_cast %627 : vector<1x128x512xbf16> to vector<128x512xbf16>
    %cst_248 = arith.constant dense<0.000000e+00> : vector<16x512xf32>
    %629 = tpu.matmul %626, %628, %cst_248 {dimension_numbers = #tpu.dot_dimension_numbers<[1], [0], [0], [1], [0, 0, 1, 1], [], []>} : vector<16x128xbf16>, vector<128x512xbf16>, vector<16x512xf32> -> vector<16x512xf32>
    %630 = arith.addf %625, %629 : vector<16x512xf32>
    %631 = vector.extract_strided_slice %630 {offsets = [0, 0], sizes = [16, 384], strides = [1, 1]} : vector<16x512xf32> to vector<16x384xf32>
    %632 = arith.negf %631 : vector<16x384xf32>
    %633 = math.exp %632 : vector<16x384xf32>
    %cst_249 = arith.constant 1.000000e+00 : f32
    %634 = vector.broadcast %cst_249 : f32 to vector<16x384xf32>
    %635 = arith.addf %634, %633 : vector<16x384xf32>
    %636 = arith.divf %634, %635 : vector<16x384xf32>
    %637 = vector.extract_strided_slice %630 {offsets = [0, 384], sizes = [16, 128], strides = [1, 1]} : vector<16x512xf32> to vector<16x128xf32>
    %638 = math.tanh %637 : vector<16x128xf32>
    %639 = vector.extract_strided_slice %636 {offsets = [0, 128], sizes = [16, 128], strides = [1, 1]} : vector<16x384xf32> to vector<16x128xf32>
    %640 = arith.mulf %639, %614 : vector<16x128xf32>
    %641 = vector.extract_strided_slice %636 {offsets = [0, 0], sizes = [16, 128], strides = [1, 1]} : vector<16x384xf32> to vector<16x128xf32>
    %642 = arith.mulf %641, %638 : vector<16x128xf32>
    %643 = arith.addf %640, %642 : vector<16x128xf32>
    %644 = vector.extract_strided_slice %636 {offsets = [0, 256], sizes = [16, 128], strides = [1, 1]} : vector<16x384xf32> to vector<16x128xf32>
    %645 = math.tanh %643 : vector<16x128xf32>
    %646 = arith.mulf %644, %645 : vector<16x128xf32>
    %647 = arith.truncf %646 : vector<16x128xf32> to vector<16x128xbf16>
    %c0_250 = arith.constant 0 : index
    %c0_251 = arith.constant 0 : index
    %648 = vector.load %arg6[%c0_250, %c0_251] : memref<128x128xbf16, #tpu.memory_space<vmem>>, vector<128x128xbf16>
    %cst_252 = arith.constant dense<0.000000e+00> : vector<16x128xf32>
    %649 = tpu.matmul %647, %648, %cst_252 {dimension_numbers = #tpu.dot_dimension_numbers<[1], [0], [0], [1], [0, 0, 1, 1], [], []>} : vector<16x128xbf16>, vector<128x128xbf16>, vector<16x128xf32> -> vector<16x128xf32>
    %c0_253 = arith.constant 0 : index
    %c0_254 = arith.constant 0 : index
    %650 = vector.load %arg7[%c0_253, %c0_254] : memref<1x128xf32, #tpu.memory_space<vmem>>, vector<1x128xf32>
    %651 = vector.broadcast %650 : vector<1x128xf32> to vector<16x128xf32>
    %652 = arith.addf %649, %651 : vector<16x128xf32>
    %cst_255 = arith.constant 0.000000e+00 : f32
    %653 = vector.broadcast %cst_255 : f32 to vector<16x128xf32>
    %654 = arith.maximumf %652, %653 : vector<16x128xf32>
    %655 = arith.mulf %654, %654 : vector<16x128xf32>
    %cst_256 = arith.constant dense<0.000000e+00> : vector<16xf32>
    %656 = vector.multi_reduction <add>, %655, %cst_256 [1] : vector<16x128xf32> to vector<16xf32>
    %657 = vector.shape_cast %656 : vector<16xf32> to vector<16x1xf32>
    %cst_257 = arith.constant 9.99999996E-13 : f32
    %658 = vector.broadcast %cst_257 : f32 to vector<16x1xf32>
    %659 = arith.addf %657, %658 : vector<16x1xf32>
    %660 = math.rsqrt %659 : vector<16x1xf32>
    %661 = vector.broadcast %660 : vector<16x1xf32> to vector<16x128xf32>
    %662 = arith.mulf %654, %661 : vector<16x128xf32>
    %c0_258 = arith.constant 0 : index
    %c0_259 = arith.constant 0 : index
    %663 = vector.load %arg8[%c0_258, %c0_259] : memref<16x128xf32, #tpu.memory_space<vmem>>, vector<16x128xf32>
    tpu.vector_store %arg8[%c0_258, %c0_259], %662 {strides = array<i32>} : memref<16x128xf32, #tpu.memory_space<vmem>>, vector<16x128xf32>,
    return
  }
  func.func @transform_0(%arg0: i32) -> (i32, i32, i32) {
    %c0_i32 = arith.constant 0 : i32
    %c0_i32_0 = arith.constant 0 : i32
    %c0_i32_1 = arith.constant 0 : i32
    return %arg0, %c0_i32, %c0_i32_0 : i32, i32, i32
  }
  func.func @transform_1(%arg0: i32) -> (i32, i32) {
    %c0_i32 = arith.constant 0 : i32
    %c0_i32_0 = arith.constant 0 : i32
    %c0_i32_1 = arith.constant 0 : i32
    return %c0_i32, %c0_i32_0 : i32, i32
  }
  func.func @transform_2(%arg0: i32) -> (i32, i32, i32) {
    %c0_i32 = arith.constant 0 : i32
    %c0_i32_0 = arith.constant 0 : i32
    %c0_i32_1 = arith.constant 0 : i32
    %c0_i32_2 = arith.constant 0 : i32
    return %c0_i32, %c0_i32_0, %c0_i32_1 : i32, i32, i32
  }
  func.func @transform_3(%arg0: i32) -> (i32, i32, i32) {
    %c0_i32 = arith.constant 0 : i32
    %c0_i32_0 = arith.constant 0 : i32
    %c0_i32_1 = arith.constant 0 : i32
    %c0_i32_2 = arith.constant 0 : i32
    return %c0_i32, %c0_i32_0, %c0_i32_1 : i32, i32, i32
  }
  func.func @transform_4(%arg0: i32) -> (i32, i32, i32) {
    %c0_i32 = arith.constant 0 : i32
    %c0_i32_0 = arith.constant 0 : i32
    %c0_i32_1 = arith.constant 0 : i32
    %c0_i32_2 = arith.constant 0 : i32
    return %c0_i32, %c0_i32_0, %c0_i32_1 : i32, i32, i32
  }
  func.func @transform_5(%arg0: i32) -> (i32, i32) {
    %c0_i32 = arith.constant 0 : i32
    %c0_i32_0 = arith.constant 0 : i32
    %c0_i32_1 = arith.constant 0 : i32
    return %c0_i32, %c0_i32_0 : i32, i32
  }
  func.func @transform_6(%arg0: i32) -> (i32, i32) {
    %c0_i32 = arith.constant 0 : i32
    %c0_i32_0 = arith.constant 0 : i32
    %c0_i32_1 = arith.constant 0 : i32
    return %c0_i32, %c0_i32_0 : i32, i32
  }
  func.func @transform_7(%arg0: i32) -> (i32, i32) {
    %c0_i32 = arith.constant 0 : i32
    %c0_i32_0 = arith.constant 0 : i32
    return %arg0, %c0_i32 : i32, i32
  }
}

</mosaic_0001>

<llo_original>
// kernel: tpu_custom_call.1
$region0: #{tpu_custom_call.1}
  #allocation0 [shape = 'u32[]', space=smem, size = 0x4, offset = 0x4, fixed_abs, tag = 'smem constant byte address 0x4 - core index']
  #allocation1 [shape = 'u32[144,128]{1,0:T(1,128)}', space=vmem, size = 0x12000, scoped, tag = 'internal scratch']
  #allocation2 [shape = 'f32[16,8,512]{2,1,0:T(8,128)}', space=vmem, size = 0x40000, scoped, tag = 'scratch operand']
  %s0 = inlined_call_operand.hbm [shape: f32[16,8,128], index: 0, kind: input, shape index: {}]
  %s1 = inlined_call_operand.hbm [shape: bf16[128,512], index: 1, kind: input, shape index: {}]
  %s2 = inlined_call_operand.hbm [shape: bf16[2,128,512], index: 2, kind: input, shape index: {}]
  %s3 = inlined_call_operand.hbm [shape: bf16[3,128,512], index: 3, kind: input, shape index: {}]
  %s4 = inlined_call_operand.hbm [shape: f32[3,1,512], index: 4, kind: input, shape index: {}]
  %s5 = inlined_call_operand.hbm [shape: bf16[128,128], index: 5, kind: input, shape index: {}]
  %s6 = inlined_call_operand.vmem [shape: f32[1,128], index: 6, kind: input, shape index: {}]
  %s7 = inlined_call_operand.hbm [shape: f32[16,128], index: 7, kind: output, shape index: {}]
  %s8 = sld [smem:[#allocation0]]
  $region62: #{tpu_custom_call.1} parent=0
    _
  %s10 = ssub.s32 1, %s8
  %s11 = scalar_select 0, %s10, %s8
  $region1: #{tpu_custom_call.1} parent=0
    #allocation3 [shape = 'u8[65536]{0}', space=vmem, size = 0x10000, scoped, tag = 'input window, operand 0, single buffered']
    #allocation4 [shape = 's32[1]{0}', space=sflag, size = 0x4, scoped, tag = 'scoped memory for tpu_custom_call.1']
    #allocation5 [shape = 's32[1]{0}', space=sflag, size = 0x4, scoped, tag = 'scoped memory for tpu_custom_call.1']
    #allocation6 [shape = 'u8[131072]{0}', space=vmem, size = 0x20000, scoped, tag = 'input window, operand 1, single buffered']
    #allocation7 [shape = 's32[1]{0}', space=sflag, size = 0x4, scoped, tag = 'scoped memory for tpu_custom_call.1']
    #allocation8 [shape = 'u8[262144]{0}', space=vmem, size = 0x40000, scoped, tag = 'input window, operand 2, single buffered']
    #allocation9 [shape = 'u8[393216]{0}', space=vmem, size = 0x60000, scoped, tag = 'input window, operand 3, single buffered']
    #allocation10 [shape = 's32[1]{0}', space=sflag, size = 0x4, scoped, tag = 'scoped memory for tpu_custom_call.1']
    #allocation11 [shape = 'u8[6144]{0}', space=vmem, size = 0x1800, scoped, tag = 'input window, operand 4, single buffered']
    #allocation12 [shape = 'u8[32768]{0}', space=vmem, size = 0x8000, scoped, tag = 'input window, operand 5, single buffered']
    #allocation13 [shape = 's32[1]{0}', space=sflag, size = 0x4, scoped, tag = 'scoped memory for tpu_custom_call.1']
    #allocation14 [shape = 'u8[8192]{0}', space=vmem, size = 0x2000, scoped, tag = 'output window, operand 0, single buffered']
    %12 = vsyncpa [#allocation4], 0
    %13 = vsyncpa [#allocation7], 0
    %14 = vsyncpa [#allocation10], 0
    %15 = vsyncpa [#allocation13], 0
    %16 = vsyncpa [#allocation5], 0
    // Predicated region
    $region2: #{tpu_custom_call.1} parent=1 // pred_check
      _
    $region3: #{tpu_custom_call.1} parent=1 // pred_check_branch
      %18 = sbr.rel (0) target = $region5
    $region4: #{tpu_custom_call.1} parent=1 // pred_region
      %s20 = ssub.s32 2048, 2048
      %21 = vsyncadd [#allocation4], %s20
      %s22 = sshll.u32 [#allocation3], 4
      %s23 = int_to_ptr.vmem [resolvable:$true] %s22
      %28 = dma.hbm_to_vmem [thread:$0]  %s0, 2048, %s23, [#allocation4], 128, 128, 8
    $region5: #{tpu_custom_call.1} parent=1 // pred_fallthru
      _
    // Predicated region
    $region6: #{tpu_custom_call.1} parent=1 // pred_check
      _
    $region7: #{tpu_custom_call.1} parent=1 // pred_check_branch
      %30 = sbr.rel (0) target = $region9
    $region8: #{tpu_custom_call.1} parent=1 // pred_region
      %s32 = ssub.s32 4096, 4096
      %33 = vsyncadd [#allocation7], %s32
      %s34 = sshll.u32 [#allocation6], 4
      %s35 = int_to_ptr.vmem [resolvable:$true] %s34
      %40 = dma.hbm_to_vmem [thread:$0]  %s1, 4096, %s35, [#allocation7], 256, 256, 16
    $region9: #{tpu_custom_call.1} parent=1 // pred_fallthru
      _
    // Predicated region
    $region10: #{tpu_custom_call.1} parent=1 // pred_check
      _
    $region11: #{tpu_custom_call.1} parent=1 // pred_check_branch
      %42 = sbr.rel (0) target = $region13
    $region12: #{tpu_custom_call.1} parent=1 // pred_region
      %s44 = ssub.s32 8192, 8192
      %45 = vsyncadd [#allocation7], %s44
      %s46 = sshll.u32 [#allocation8], 4
      %s47 = int_to_ptr.vmem [resolvable:$true] %s46
      %52 = dma.hbm_to_vmem [thread:$0]  %s2, 8192, %s47, [#allocation7], 256, 256, 16
    $region13: #{tpu_custom_call.1} parent=1 // pred_fallthru
      _
    // Predicated region
    $region14: #{tpu_custom_call.1} parent=1 // pred_check
      _
    $region15: #{tpu_custom_call.1} parent=1 // pred_check_branch
      %54 = sbr.rel (0) target = $region17
    $region16: #{tpu_custom_call.1} parent=1 // pred_region
      %s56 = ssub.s32 12288, 12288
      %57 = vsyncadd [#allocation10], %s56
      %s58 = sshll.u32 [#allocation9], 4
      %s59 = int_to_ptr.vmem [resolvable:$true] %s58
      %64 = dma.hbm_to_vmem [thread:$0]  %s3, 12288, %s59, [#allocation10], 256, 256, 16
    $region17: #{tpu_custom_call.1} parent=1 // pred_fallthru
      _
    // Predicated region
    $region18: #{tpu_custom_call.1} parent=1 // pred_check
      _
    $region19: #{tpu_custom_call.1} parent=1 // pred_check_branch
      %66 = sbr.rel (0) target = $region21
    $region20: #{tpu_custom_call.1} parent=1 // pred_region
      %s68 = ssub.s32 192, 192
      %69 = vsyncadd [#allocation10], %s68
      %s70 = sshll.u32 [#allocation11], 4
      %s71 = int_to_ptr.vmem [resolvable:$true] %s70
      %76 = dma.hbm_to_vmem [thread:$0]  %s4, 192, %s71, [#allocation10], 64, 64, 4
    $region21: #{tpu_custom_call.1} parent=1 // pred_fallthru
      _
    // Predicated region
    $region22: #{tpu_custom_call.1} parent=1 // pred_check
      _
    $region23: #{tpu_custom_call.1} parent=1 // pred_check_branch
      %78 = sbr.rel (0) target = $region25
    $region24: #{tpu_custom_call.1} parent=1 // pred_region
      %s80 = ssub.s32 1024, 1024
      %81 = vsyncadd [#allocation13], %s80
      %s82 = sshll.u32 [#allocation12], 4
      %s83 = int_to_ptr.vmem [resolvable:$true] %s82
      %88 = dma.hbm_to_vmem [thread:$0]  %s5, 1024, %s83, [#allocation13], 64, 64, 4
    $region25: #{tpu_custom_call.1} parent=1 // pred_fallthru
      _
    // Predicated region
    $region26: #{tpu_custom_call.1} parent=1 // pred_check
      _
    $region27: #{tpu_custom_call.1} parent=1 // pred_check_branch
      %90 = sbr.rel (0) target = $region29
    $region28: #{tpu_custom_call.1} parent=1 // pred_region
      _
    $region29: #{tpu_custom_call.1} parent=1 // pred_fallthru
      _
    // Predicated region
    $region30: #{tpu_custom_call.1} parent=1 // pred_check
      _
    $region31: #{tpu_custom_call.1} parent=1 // pred_check_branch
      %92 = sbr.rel (0) target = $region33
    $region32: #{tpu_custom_call.1} parent=1 // pred_region
      %93 = dma.done [#allocation4], 2048
    $region33: #{tpu_custom_call.1} parent=1 // pred_fallthru
      _
    // Predicated region
    $region34: #{tpu_custom_call.1} parent=1 // pred_check
      _
    $region35: #{tpu_custom_call.1} parent=1 // pred_check_branch
      %95 = sbr.rel (0) target = $region37
    $region36: #{tpu_custom_call.1} parent=1 // pred_region
      %96 = dma.done [#allocation7], 4096
    $region37: #{tpu_custom_call.1} parent=1 // pred_fallthru
      _
    // Predicated region
    $region38: #{tpu_custom_call.1} parent=1 // pred_check
      _
    $region39: #{tpu_custom_call.1} parent=1 // pred_check_branch
      %98 = sbr.rel (0) target = $region41
    $region40: #{tpu_custom_call.1} parent=1 // pred_region
      %99 = dma.done [#allocation7], 8192
    $region41: #{tpu_custom_call.1} parent=1 // pred_fallthru
      _
    // Predicated region
    $region42: #{tpu_custom_call.1} parent=1 // pred_check
      _
    $region43: #{tpu_custom_call.1} parent=1 // pred_check_branch
      %101 = sbr.rel (0) target = $region45
    $region44: #{tpu_custom_call.1} parent=1 // pred_region
      %102 = dma.done [#allocation10], 12288
    $region45: #{tpu_custom_call.1} parent=1 // pred_fallthru
      _
    // Predicated region
    $region46: #{tpu_custom_call.1} parent=1 // pred_check
      _
    $region47: #{tpu_custom_call.1} parent=1 // pred_check_branch
      %104 = sbr.rel (0) target = $region49
    $region48: #{tpu_custom_call.1} parent=1 // pred_region
      %105 = dma.done [#allocation10], 192
    $region49: #{tpu_custom_call.1} parent=1 // pred_fallthru
      _
    // Predicated region
    $region50: #{tpu_custom_call.1} parent=1 // pred_check
      _
    $region51: #{tpu_custom_call.1} parent=1 // pred_check_branch
      %107 = sbr.rel (0) target = $region53
    $region52: #{tpu_custom_call.1} parent=1 // pred_region
      %108 = dma.done [#allocation13], 1024
    $region53: #{tpu_custom_call.1} parent=1 // pred_fallthru
      _
    %v110 = vld [vmem:[#allocation3] sm:$0xff]
    %v111 = vld [vmem:[#allocation3 + $0x8] sm:$0xff]
    %v112 = vld [vmem:[#allocation3 + $0x10] sm:$0xff]
    %v113 = vld [vmem:[#allocation3 + $0x18] sm:$0xff]
    %v114 = vld [vmem:[#allocation3 + $0x20] sm:$0xff]
    %v115 = vld [vmem:[#allocation3 + $0x28] sm:$0xff]
    %v116 = vld [vmem:[#allocation3 + $0x30] sm:$0xff]
    %v117 = vld [vmem:[#allocation3 + $0x38] sm:$0xff]
    %v118 = vld [vmem:[#allocation3 + $0x40] sm:$0xff]
    %v119 = vld [vmem:[#allocation3 + $0x48] sm:$0xff]
    %v120 = vld [vmem:[#allocation3 + $0x50] sm:$0xff]
    %v121 = vld [vmem:[#allocation3 + $0x58] sm:$0xff]
    %v122 = vld [vmem:[#allocation3 + $0x60] sm:$0xff]
    %v123 = vld [vmem:[#allocation3 + $0x68] sm:$0xff]
    %v124 = vld [vmem:[#allocation3 + $0x70] sm:$0xff]
    %v125 = vld [vmem:[#allocation3 + $0x78] sm:$0xff]
    %v126 = vpack.c.bf16 %v111, %v110
    %v127 = vpack.c.bf16 %v113, %v112
    %v128 = vpack.c.bf16 %v115, %v114
    %v129 = vpack.c.bf16 %v117, %v116
    %v130 = vpack.c.bf16 %v119, %v118
    %v131 = vpack.c.bf16 %v121, %v120
    %v132 = vpack.c.bf16 %v123, %v122
    %v133 = vpack.c.bf16 %v125, %v124
    %v134 = vld [vmem:[#allocation6] sm:$0xff]
    %v135 = vld [vmem:[#allocation6 + $0x8] sm:$0xff]
    %v136 = vld [vmem:[#allocation6 + $0x10] sm:$0xff]
    %v137 = vld [vmem:[#allocation6 + $0x18] sm:$0xff]
    %v138 = vld [vmem:[#allocation6 + $0x20] sm:$0xff]
    %v139 = vld [vmem:[#allocation6 + $0x28] sm:$0xff]
    %v140 = vld [vmem:[#allocation6 + $0x30] sm:$0xff]
    %v141 = vld [vmem:[#allocation6 + $0x38] sm:$0xff]
    %v142 = vld [vmem:[#allocation6 + $0x40] sm:$0xff]
    %v143 = vld [vmem:[#allocation6 + $0x48] sm:$0xff]
    %v144 = vld [vmem:[#allocation6 + $0x50] sm:$0xff]
    %v145 = vld [vmem:[#allocation6 + $0x58] sm:$0xff]
    %v146 = vld [vmem:[#allocation6 + $0x60] sm:$0xff]
    %v147 = vld [vmem:[#allocation6 + $0x68] sm:$0xff]
    %v148 = vld [vmem:[#allocation6 + $0x70] sm:$0xff]
    %v149 = vld [vmem:[#allocation6 + $0x78] sm:$0xff]
    %v150 = vld [vmem:[#allocation6 + $0x80] sm:$0xff]
    %v151 = vld [vmem:[#allocation6 + $0x88] sm:$0xff]
    %v152 = vld [vmem:[#allocation6 + $0x90] sm:$0xff]
    %v153 = vld [vmem:[#allocation6 + $0x98] sm:$0xff]
    %v154 = vld [vmem:[#allocation6 + $0xa0] sm:$0xff]
    %v155 = vld [vmem:[#allocation6 + $0xa8] sm:$0xff]
    %v156 = vld [vmem:[#allocation6 + $0xb0] sm:$0xff]
    %v157 = vld [vmem:[#allocation6 + $0xb8] sm:$0xff]
    %v158 = vld [vmem:[#allocation6 + $0xc0] sm:$0xff]
    %v159 = vld [vmem:[#allocation6 + $0xc8] sm:$0xff]
    %v160 = vld [vmem:[#allocation6 + $0xd0] sm:$0xff]
    %v161 = vld [vmem:[#allocation6 + $0xd8] sm:$0xff]
    %v162 = vld [vmem:[#allocation6 + $0xe0] sm:$0xff]
    %v163 = vld [vmem:[#allocation6 + $0xe8] sm:$0xff]
    %v164 = vld [vmem:[#allocation6 + $0xf0] sm:$0xff]
    %v165 = vld [vmem:[#allocation6 + $0xf8] sm:$0xff]
    %v166 = vld [vmem:[#allocation11] sm:$0xf]
    %v168 = vlaneseq
    %v169 = vshrl.u32 %v168, 7
    %v170 = vsub.s32 0, %v169
    %v171 = vrot.slane %v166, %v170
    %v172 = vlaneseq
    %v173 = vshrl.u32 %v172, 7
    %v174 = vsub.s32 1, %v173
    %v175 = vrot.slane %v166, %v174
    %v176 = vlaneseq
    %v177 = vshrl.u32 %v176, 7
    %v178 = vsub.s32 2, %v177
    %v179 = vrot.slane %v166, %v178
    %v180 = vlaneseq
    %v181 = vshrl.u32 %v180, 7
    %v182 = vsub.s32 3, %v181
    %v183 = vrot.slane %v166, %v182
    %v220 = vunpack.c.l.b16 %v134
    %v221 = vunpack.c.h.b16 %v134
    %v222 = vunpack.c.l.b16 %v135
    %v223 = vunpack.c.h.b16 %v135
    %v224 = vunpack.c.l.b16 %v136
    %v225 = vunpack.c.h.b16 %v136
    %v226 = vunpack.c.l.b16 %v137
    %v227 = vunpack.c.h.b16 %v137
    %v228 = vunpack.c.l.b16 %v138
    %v229 = vunpack.c.h.b16 %v138
    %v230 = vunpack.c.l.b16 %v139
    %v231 = vunpack.c.h.b16 %v139
    %v232 = vunpack.c.l.b16 %v140
    %v233 = vunpack.c.h.b16 %v140
    %v234 = vunpack.c.l.b16 %v141
    %v235 = vunpack.c.h.b16 %v141
    %v236 = vunpack.c.l.b16 %v142
    %v237 = vunpack.c.h.b16 %v142
    %v238 = vunpack.c.l.b16 %v143
    %v239 = vunpack.c.h.b16 %v143
    %v240 = vunpack.c.l.b16 %v144
    %v241 = vunpack.c.h.b16 %v144
    %v242 = vunpack.c.l.b16 %v145
    %v243 = vunpack.c.h.b16 %v145
    %v244 = vunpack.c.l.b16 %v146
    %v245 = vunpack.c.h.b16 %v146
    %v246 = vunpack.c.l.b16 %v147
    %v247 = vunpack.c.h.b16 %v147
    %v248 = vunpack.c.l.b16 %v148
    %v249 = vunpack.c.h.b16 %v148
    %v250 = vunpack.c.l.b16 %v149
    %v251 = vunpack.c.h.b16 %v149
    %v252 = vunpack.c.l.b16 %v150
    %v253 = vunpack.c.h.b16 %v150
    %v254 = vunpack.c.l.b16 %v151
    %v255 = vunpack.c.h.b16 %v151
    %v256 = vunpack.c.l.b16 %v152
    %v257 = vunpack.c.h.b16 %v152
    %v258 = vunpack.c.l.b16 %v153
    %v259 = vunpack.c.h.b16 %v153
    %v260 = vunpack.c.l.b16 %v154
    %v261 = vunpack.c.h.b16 %v154
    %v262 = vunpack.c.l.b16 %v155
    %v263 = vunpack.c.h.b16 %v155
    %v264 = vunpack.c.l.b16 %v156
    %v265 = vunpack.c.h.b16 %v156
    %v266 = vunpack.c.l.b16 %v157
    %v267 = vunpack.c.h.b16 %v157
    %v268 = vunpack.c.l.b16 %v158
    %v269 = vunpack.c.h.b16 %v158
    %v270 = vunpack.c.l.b16 %v159
    %v271 = vunpack.c.h.b16 %v159
    %v272 = vunpack.c.l.b16 %v160
    %v273 = vunpack.c.h.b16 %v160
    %v274 = vunpack.c.l.b16 %v161
    %v275 = vunpack.c.h.b16 %v161
    %v276 = vunpack.c.l.b16 %v162
    %v277 = vunpack.c.h.b16 %v162
    %v278 = vunpack.c.l.b16 %v163
    %v279 = vunpack.c.h.b16 %v163
    %v280 = vunpack.c.l.b16 %v164
    %v281 = vunpack.c.h.b16 %v164
    %v282 = vunpack.c.l.b16 %v165
    %v283 = vunpack.c.h.b16 %v165
    %v284 = vpack.c.b16 %v224, %v220
    %v285 = vpack.c.b16 %v225, %v221
    %v286 = vpack.c.b16 %v226, %v222
    %v287 = vpack.c.b16 %v227, %v223
    %v288 = vpack.c.b16 %v232, %v228
    %v289 = vpack.c.b16 %v233, %v229
    %v290 = vpack.c.b16 %v234, %v230
    %v291 = vpack.c.b16 %v235, %v231
    %v292 = vpack.c.b16 %v240, %v236
    %v293 = vpack.c.b16 %v241, %v237
    %v294 = vpack.c.b16 %v242, %v238
    %v295 = vpack.c.b16 %v243, %v239
    %v296 = vpack.c.b16 %v248, %v244
    %v297 = vpack.c.b16 %v249, %v245
    %v298 = vpack.c.b16 %v250, %v246
    %v299 = vpack.c.b16 %v251, %v247
    %v300 = vpack.c.b16 %v256, %v252
    %v301 = vpack.c.b16 %v257, %v253
    %v302 = vpack.c.b16 %v258, %v254
    %v303 = vpack.c.b16 %v259, %v255
    %v304 = vpack.c.b16 %v264, %v260
    %v305 = vpack.c.b16 %v265, %v261
    %v306 = vpack.c.b16 %v266, %v262
    %v307 = vpack.c.b16 %v267, %v263
    %v308 = vpack.c.b16 %v272, %v268
    %v309 = vpack.c.b16 %v273, %v269
    %v310 = vpack.c.b16 %v274, %v270
    %v311 = vpack.c.b16 %v275, %v271
    %v312 = vpack.c.b16 %v280, %v276
    %v313 = vpack.c.b16 %v281, %v277
    %v314 = vpack.c.b16 %v282, %v278
    %v315 = vpack.c.b16 %v283, %v279
    %348 = vmatprep.subr.bf16.mxu0 %v313
    %349 = vmatpush1.bf16.msra.mxu0 %v312
    %350 = vmatprep.subr.bf16.mxu0 %v309
    %351 = vmatpush1.bf16.msra.mxu0 %v308
    %352 = vmatprep.subr.bf16.mxu0 %v305
    %353 = vmatpush1.bf16.msra.mxu0 %v304
    %354 = vmatprep.subr.bf16.mxu0 %v301
    %355 = vmatpush1.bf16.msra.mxu0 %v300
    %356 = vmatprep.subr.bf16.mxu0 %v297
    %357 = vmatpush1.bf16.msra.mxu0 %v296
    %358 = vmatprep.subr.bf16.mxu0 %v293
    %359 = vmatpush1.bf16.msra.mxu0 %v292
    %360 = vmatprep.subr.bf16.mxu0 %v289
    %361 = vmatpush1.bf16.msra.mxu0 %v288
    %362 = vmatprep.subr.bf16.mxu0 %v285
    %363 = vmatpush1.bf16.msra.mxu0 %v284
    %364 = vmatprep.subr.bf16.mxu0 0
    %365 = vmatpush2.bf16.msra.mxu0 0
    %366 = vmatprep.subr.bf16.mxu0 0
    %367 = vmatpush2.bf16.msra.mxu0 0
    %368 = vmatprep.subr.bf16.mxu0 0
    %369 = vmatpush2.bf16.msra.mxu0 0
    %370 = vmatprep.subr.bf16.mxu0 0
    %371 = vmatpush2.bf16.msra.mxu0 0
    %372 = vmatprep.subr.bf16.mxu0 0
    %373 = vmatpush2.bf16.msra.mxu0 0
    %374 = vmatprep.subr.bf16.mxu0 0
    %375 = vmatpush2.bf16.msra.mxu0 0
    %376 = vmatprep.subr.bf16.mxu0 0
    %377 = vmatpush2.bf16.msra.mxu0 0
    %378 = vmatprep.subr.bf16.mxu0 0
    %379 = vmatpush2.bf16.msra.mxu0 0
    %380 = vmatprep.mubr.bf16.mxu0 0
    %381 = vmatmul.mubr.bf16.gmra.mxu0 %v126
    %v382 = vpop.f32.mrf.mxu0
    %v383 = vadd.f32 %v171, %v382
    %v384 = vpop.f32.mrf.mxu0
    %v385 = vadd.f32 %v175, %v384
    %v386 = vpop.f32.mrf.mxu0
    %v387 = vadd.f32 %v171, %v386
    %v388 = vpop.f32.mrf.mxu0
    %v389 = vadd.f32 %v175, %v388
    %390 = vmatprep.mubr.bf16.mxu0 0
    %391 = vmatmul.mubr.bf16.gmra.mxu0 %v127
    %v392 = vpop.f32.mrf.mxu0
    %v393 = vadd.f32 %v171, %v392
    %v394 = vpop.f32.mrf.mxu0
    %v395 = vadd.f32 %v175, %v394
    %v396 = vpop.f32.mrf.mxu0
    %v397 = vadd.f32 %v171, %v396
    %v398 = vpop.f32.mrf.mxu0
    %v399 = vadd.f32 %v175, %v398
    %400 = vmatprep.mubr.bf16.mxu0 0
    %401 = vmatmul.mubr.bf16.gmra.mxu0 %v128
    %v402 = vpop.f32.mrf.mxu0
    %v403 = vadd.f32 %v171, %v402
    %v404 = vpop.f32.mrf.mxu0
    %v405 = vadd.f32 %v175, %v404
    %v406 = vpop.f32.mrf.mxu0
    %v407 = vadd.f32 %v171, %v406
    %v408 = vpop.f32.mrf.mxu0
    %v409 = vadd.f32 %v175, %v408
    %410 = vmatprep.mubr.bf16.mxu0 0
    %411 = vmatmul.mubr.bf16.gmra.mxu0 %v129
    %v412 = vpop.f32.mrf.mxu0
    %v413 = vadd.f32 %v171, %v412
    %v414 = vpop.f32.mrf.mxu0
    %v415 = vadd.f32 %v175, %v414
    %v416 = vpop.f32.mrf.mxu0
    %v417 = vadd.f32 %v171, %v416
    %v418 = vpop.f32.mrf.mxu0
    %v419 = vadd.f32 %v175, %v418
    %420 = vmatprep.mubr.bf16.mxu0 0
    %421 = vmatmul.mubr.bf16.gmra.mxu0 %v130
    %v422 = vpop.f32.mrf.mxu0
    %v423 = vadd.f32 %v171, %v422
    %v424 = vpop.f32.mrf.mxu0
    %v425 = vadd.f32 %v175, %v424
    %v426 = vpop.f32.mrf.mxu0
    %v427 = vadd.f32 %v171, %v426
    %v428 = vpop.f32.mrf.mxu0
    %v429 = vadd.f32 %v175, %v428
    %430 = vmatprep.mubr.bf16.mxu0 0
    %431 = vmatmul.mubr.bf16.gmra.mxu0 %v131
    %v432 = vpop.f32.mrf.mxu0
    %v433 = vadd.f32 %v171, %v432
    %v434 = vpop.f32.mrf.mxu0
    %v435 = vadd.f32 %v175, %v434
    %v436 = vpop.f32.mrf.mxu0
    %v437 = vadd.f32 %v171, %v436
    %v438 = vpop.f32.mrf.mxu0
    %v439 = vadd.f32 %v175, %v438
    %440 = vmatprep.mubr.bf16.mxu0 0
    %441 = vmatmul.mubr.bf16.gmra.mxu0 %v132
    %v442 = vpop.f32.mrf.mxu0
    %v443 = vadd.f32 %v171, %v442
    %v444 = vpop.f32.mrf.mxu0
    %v445 = vadd.f32 %v175, %v444
    %v446 = vpop.f32.mrf.mxu0
    %v447 = vadd.f32 %v171, %v446
    %v448 = vpop.f32.mrf.mxu0
    %v449 = vadd.f32 %v175, %v448
    %450 = vmatprep.mubr.bf16.mxu0 0
    %451 = vmatmul.mubr.bf16.gmra.mxu0 %v133
    %v452 = vpop.f32.mrf.mxu0
    %v453 = vadd.f32 %v171, %v452
    %v454 = vpop.f32.mrf.mxu0
    %v455 = vadd.f32 %v175, %v454
    %v456 = vpop.f32.mrf.mxu0
    %v457 = vadd.f32 %v171, %v456
    %v458 = vpop.f32.mrf.mxu0
    %v459 = vadd.f32 %v175, %v458
    %460 = vdwg.mxu0
    %461 = vmatprep.subr.bf16.mxu0 %v315
    %462 = vmatpush1.bf16.msra.mxu0 %v314
    %463 = vmatprep.subr.bf16.mxu0 %v311
    %464 = vmatpush1.bf16.msra.mxu0 %v310
    %465 = vmatprep.subr.bf16.mxu0 %v307
    %466 = vmatpush1.bf16.msra.mxu0 %v306
    %467 = vmatprep.subr.bf16.mxu0 %v303
    %468 = vmatpush1.bf16.msra.mxu0 %v302
    %469 = vmatprep.subr.bf16.mxu0 %v299
    %470 = vmatpush1.bf16.msra.mxu0 %v298
    %471 = vmatprep.subr.bf16.mxu0 %v295
    %472 = vmatpush1.bf16.msra.mxu0 %v294
    %473 = vmatprep.subr.bf16.mxu0 %v291
    %474 = vmatpush1.bf16.msra.mxu0 %v290
    %475 = vmatprep.subr.bf16.mxu0 %v287
    %476 = vmatpush1.bf16.msra.mxu0 %v286
    %477 = vmatprep.subr.bf16.mxu0 0
    %478 = vmatpush2.bf16.msra.mxu0 0
    %479 = vmatprep.subr.bf16.mxu0 0
    %480 = vmatpush2.bf16.msra.mxu0 0
    %481 = vmatprep.subr.bf16.mxu0 0
    %482 = vmatpush2.bf16.msra.mxu0 0
    %483 = vmatprep.subr.bf16.mxu0 0
    %484 = vmatpush2.bf16.msra.mxu0 0
    %485 = vmatprep.subr.bf16.mxu0 0
    %486 = vmatpush2.bf16.msra.mxu0 0
    %487 = vmatprep.subr.bf16.mxu0 0
    %488 = vmatpush2.bf16.msra.mxu0 0
    %489 = vmatprep.subr.bf16.mxu0 0
    %490 = vmatpush2.bf16.msra.mxu0 0
    %491 = vmatprep.subr.bf16.mxu0 0
    %492 = vmatpush2.bf16.msra.mxu0 0
    %493 = vmatprep.mubr.bf16.mxu0 0
    %494 = vmatmul.mubr.bf16.gmra.mxu0 %v126
    %v495 = vpop.f32.mrf.mxu0
    %v496 = vadd.f32 %v179, %v495
    %v497 = vpop.f32.mrf.mxu0
    %v498 = vadd.f32 %v183, %v497
    %v499 = vpop.f32.mrf.mxu0
    %v500 = vadd.f32 %v179, %v499
    %v501 = vpop.f32.mrf.mxu0
    %v502 = vadd.f32 %v183, %v501
    %503 = vmatprep.mubr.bf16.mxu0 0
    %504 = vmatmul.mubr.bf16.gmra.mxu0 %v127
    %v505 = vpop.f32.mrf.mxu0
    %v506 = vadd.f32 %v179, %v505
    %v507 = vpop.f32.mrf.mxu0
    %v508 = vadd.f32 %v183, %v507
    %v509 = vpop.f32.mrf.mxu0
    %v510 = vadd.f32 %v179, %v509
    %v511 = vpop.f32.mrf.mxu0
    %v512 = vadd.f32 %v183, %v511
    %513 = vmatprep.mubr.bf16.mxu0 0
    %514 = vmatmul.mubr.bf16.gmra.mxu0 %v128
    %v515 = vpop.f32.mrf.mxu0
    %v516 = vadd.f32 %v179, %v515
    %v517 = vpop.f32.mrf.mxu0
    %v518 = vadd.f32 %v183, %v517
    %v519 = vpop.f32.mrf.mxu0
    %v520 = vadd.f32 %v179, %v519
    %v521 = vpop.f32.mrf.mxu0
    %v522 = vadd.f32 %v183, %v521
    %523 = vmatprep.mubr.bf16.mxu0 0
    %524 = vmatmul.mubr.bf16.gmra.mxu0 %v129
    %v525 = vpop.f32.mrf.mxu0
    %v526 = vadd.f32 %v179, %v525
    %v527 = vpop.f32.mrf.mxu0
    %v528 = vadd.f32 %v183, %v527
    %v529 = vpop.f32.mrf.mxu0
    %v530 = vadd.f32 %v179, %v529
    %v531 = vpop.f32.mrf.mxu0
    %v532 = vadd.f32 %v183, %v531
    %533 = vmatprep.mubr.bf16.mxu0 0
    %534 = vmatmul.mubr.bf16.gmra.mxu0 %v130
    %v535 = vpop.f32.mrf.mxu0
    %v536 = vadd.f32 %v179, %v535
    %v537 = vpop.f32.mrf.mxu0
    %v538 = vadd.f32 %v183, %v537
    %v539 = vpop.f32.mrf.mxu0
    %v540 = vadd.f32 %v179, %v539
    %v541 = vpop.f32.mrf.mxu0
    %v542 = vadd.f32 %v183, %v541
    %543 = vmatprep.mubr.bf16.mxu0 0
    %544 = vmatmul.mubr.bf16.gmra.mxu0 %v131
    %v545 = vpop.f32.mrf.mxu0
    %v546 = vadd.f32 %v179, %v545
    %v547 = vpop.f32.mrf.mxu0
    %v548 = vadd.f32 %v183, %v547
    %v549 = vpop.f32.mrf.mxu0
    %v550 = vadd.f32 %v179, %v549
    %v551 = vpop.f32.mrf.mxu0
    %v552 = vadd.f32 %v183, %v551
    %553 = vmatprep.mubr.bf16.mxu0 0
    %554 = vmatmul.mubr.bf16.gmra.mxu0 %v132
    %v555 = vpop.f32.mrf.mxu0
    %v556 = vadd.f32 %v179, %v555
    %v557 = vpop.f32.mrf.mxu0
    %v558 = vadd.f32 %v183, %v557
    %v559 = vpop.f32.mrf.mxu0
    %v560 = vadd.f32 %v179, %v559
    %v561 = vpop.f32.mrf.mxu0
    %v562 = vadd.f32 %v183, %v561
    %563 = vmatprep.mubr.bf16.mxu0 0
    %564 = vmatmul.mubr.bf16.gmra.mxu0 %v133
    %v565 = vpop.f32.mrf.mxu0
    %v566 = vadd.f32 %v179, %v565
    %v567 = vpop.f32.mrf.mxu0
    %v568 = vadd.f32 %v183, %v567
    %v569 = vpop.f32.mrf.mxu0
    %v570 = vadd.f32 %v179, %v569
    %v571 = vpop.f32.mrf.mxu0
    %v572 = vadd.f32 %v183, %v571
    %573 = vdwg.mxu0
    %574 = vst [vmem:[#allocation2] sm:$0xff] %v383
    %575 = vst [vmem:[#allocation2 + $0x8] sm:$0xff] %v385
    %576 = vst [vmem:[#allocation2 + $0x10] sm:$0xff] %v496
    %577 = vst [vmem:[#allocation2 + $0x18] sm:$0xff] %v498
    %578 = vst [vmem:[#allocation2 + $0x20] sm:$0xff] %v387
    %579 = vst [vmem:[#allocation2 + $0x28] sm:$0xff] %v389
    %580 = vst [vmem:[#allocation2 + $0x30] sm:$0xff] %v500
    %581 = vst [vmem:[#allocation2 + $0x38] sm:$0xff] %v502
    %582 = vst [vmem:[#allocation2 + $0x40] sm:$0xff] %v393
    %583 = vst [vmem:[#allocation2 + $0x48] sm:$0xff] %v395
    %584 = vst [vmem:[#allocation2 + $0x50] sm:$0xff] %v506
    %585 = vst [vmem:[#allocation2 + $0x58] sm:$0xff] %v508
    %586 = vst [vmem:[#allocation2 + $0x60] sm:$0xff] %v397
    %587 = vst [vmem:[#allocation2 + $0x68] sm:$0xff] %v399
    %588 = vst [vmem:[#allocation2 + $0x70] sm:$0xff] %v510
    %589 = vst [vmem:[#allocation2 + $0x78] sm:$0xff] %v512
    %590 = vst [vmem:[#allocation2 + $0x80] sm:$0xff] %v403
    %591 = vst [vmem:[#allocation2 + $0x88] sm:$0xff] %v405
    %592 = vst [vmem:[#allocation2 + $0x90] sm:$0xff] %v516
    %593 = vst [vmem:[#allocation2 + $0x98] sm:$0xff] %v518
    %594 = vst [vmem:[#allocation2 + $0xa0] sm:$0xff] %v407
    %595 = vst [vmem:[#allocation2 + $0xa8] sm:$0xff] %v409
    %596 = vst [vmem:[#allocation2 + $0xb0] sm:$0xff] %v520
    %597 = vst [vmem:[#allocation2 + $0xb8] sm:$0xff] %v522
    %598 = vst [vmem:[#allocation2 + $0xc0] sm:$0xff] %v413
    %599 = vst [vmem:[#allocation2 + $0xc8] sm:$0xff] %v415
    %600 = vst [vmem:[#allocation2 + $0xd0] sm:$0xff] %v526
    %601 = vst [vmem:[#allocation2 + $0xd8] sm:$0xff] %v528
    %602 = vst [vmem:[#allocation2 + $0xe0] sm:$0xff] %v417
    %603 = vst [vmem:[#allocation2 + $0xe8] sm:$0xff] %v419
    %604 = vst [vmem:[#allocation2 + $0xf0] sm:$0xff] %v530
    %605 = vst [vmem:[#allocation2 + $0xf8] sm:$0xff] %v532
    %606 = vst [vmem:[#allocation2 + $0x100] sm:$0xff] %v423
    %607 = vst [vmem:[#allocation2 + $0x108] sm:$0xff] %v425
    %608 = vst [vmem:[#allocation2 + $0x110] sm:$0xff] %v536
    %609 = vst [vmem:[#allocation2 + $0x118] sm:$0xff] %v538
    %610 = vst [vmem:[#allocation2 + $0x120] sm:$0xff] %v427
    %611 = vst [vmem:[#allocation2 + $0x128] sm:$0xff] %v429
    %612 = vst [vmem:[#allocation2 + $0x130] sm:$0xff] %v540
    %613 = vst [vmem:[#allocation2 + $0x138] sm:$0xff] %v542
    %614 = vst [vmem:[#allocation2 + $0x140] sm:$0xff] %v433
    %615 = vst [vmem:[#allocation2 + $0x148] sm:$0xff] %v435
    %616 = vst [vmem:[#allocation2 + $0x150] sm:$0xff] %v546
    %617 = vst [vmem:[#allocation2 + $0x158] sm:$0xff] %v548
    %618 = vst [vmem:[#allocation2 + $0x160] sm:$0xff] %v437
    %619 = vst [vmem:[#allocation2 + $0x168] sm:$0xff] %v439
    %620 = vst [vmem:[#allocation2 + $0x170] sm:$0xff] %v550
    %621 = vst [vmem:[#allocation2 + $0x178] sm:$0xff] %v552
    %622 = vst [vmem:[#allocation2 + $0x180] sm:$0xff] %v443
    %623 = vst [vmem:[#allocation2 + $0x188] sm:$0xff] %v445
    %624 = vst [vmem:[#allocation2 + $0x190] sm:$0xff] %v556
    %625 = vst [vmem:[#allocation2 + $0x198] sm:$0xff] %v558
    %626 = vst [vmem:[#allocation2 + $0x1a0] sm:$0xff] %v447
    %627 = vst [vmem:[#allocation2 + $0x1a8] sm:$0xff] %v449
    %628 = vst [vmem:[#allocation2 + $0x1b0] sm:$0xff] %v560
    %629 = vst [vmem:[#allocation2 + $0x1b8] sm:$0xff] %v562
    %630 = vst [vmem:[#allocation2 + $0x1c0] sm:$0xff] %v453
    %631 = vst [vmem:[#allocation2 + $0x1c8] sm:$0xff] %v455
    %632 = vst [vmem:[#allocation2 + $0x1d0] sm:$0xff] %v566
    %633 = vst [vmem:[#allocation2 + $0x1d8] sm:$0xff] %v568
    %634 = vst [vmem:[#allocation2 + $0x1e0] sm:$0xff] %v457
    %635 = vst [vmem:[#allocation2 + $0x1e8] sm:$0xff] %v459
    %636 = vst [vmem:[#allocation2 + $0x1f0] sm:$0xff] %v570
    %637 = vst [vmem:[#allocation2 + $0x1f8] sm:$0xff] %v572
    %v638 = vld [vmem:[#allocation2] ss:$8 sm:$0xf]
    %s639 = scalar_lea.vmem [#allocation2], 32
    %v640 = vld [vmem:[%s639] ss:$8 sm:$0xf]
    %s641 = scalar_lea.vmem [#allocation2], 64
    %v642 = vld [vmem:[%s641] ss:$8 sm:$0xf]
    %s643 = scalar_lea.vmem [#allocation2], 96
    %v644 = vld [vmem:[%s643] ss:$8 sm:$0xf]
    %s645 = scalar_lea.vmem [#allocation2], 128
    %v646 = vld [vmem:[%s645] ss:$8 sm:$0xf]
    %s647 = scalar_lea.vmem [#allocation2], 160
    %v648 = vld [vmem:[%s647] ss:$8 sm:$0xf]
    %s649 = scalar_lea.vmem [#allocation2], 192
    %v650 = vld [vmem:[%s649] ss:$8 sm:$0xf]
    %s651 = scalar_lea.vmem [#allocation2], 224
    %v652 = vld [vmem:[%s651] ss:$8 sm:$0xf]
    %s653 = scalar_lea.vmem [#allocation2], 256
    %v654 = vld [vmem:[%s653] ss:$8 sm:$0xf]
    %s655 = scalar_lea.vmem [#allocation2], 288
    %v656 = vld [vmem:[%s655] ss:$8 sm:$0xf]
    %s657 = scalar_lea.vmem [#allocation2], 320
    %v658 = vld [vmem:[%s657] ss:$8 sm:$0xf]
    %s659 = scalar_lea.vmem [#allocation2], 352
    %v660 = vld [vmem:[%s659] ss:$8 sm:$0xf]
    %s661 = scalar_lea.vmem [#allocation2], 384
    %v662 = vld [vmem:[%s661] ss:$8 sm:$0xf]
    %s663 = scalar_lea.vmem [#allocation2], 416
    %v664 = vld [vmem:[%s663] ss:$8 sm:$0xf]
    %s665 = scalar_lea.vmem [#allocation2], 448
    %v666 = vld [vmem:[%s665] ss:$8 sm:$0xf]
    %s667 = scalar_lea.vmem [#allocation2], 480
    %v668 = vld [vmem:[%s667] ss:$8 sm:$0xf]
    %v669 = vxor.u32 %v638, 2147483648
    %v670 = vxor.u32 %v640, 2147483648
    %v671 = vxor.u32 %v642, 2147483648
    %v672 = vxor.u32 %v644, 2147483648
    %v673 = vxor.u32 %v646, 2147483648
    %v674 = vxor.u32 %v648, 2147483648
    %v675 = vxor.u32 %v650, 2147483648
    %v676 = vxor.u32 %v652, 2147483648
    %v677 = vxor.u32 %v654, 2147483648
    %v678 = vxor.u32 %v656, 2147483648
    %v679 = vxor.u32 %v658, 2147483648
    %v680 = vxor.u32 %v660, 2147483648
    %v681 = vxor.u32 %v662, 2147483648
    %v682 = vxor.u32 %v664, 2147483648
    %v683 = vxor.u32 %v666, 2147483648
    %v684 = vxor.u32 %v668, 2147483648
    %v685 = vmul.f32 %v669, 1.442695
    %v686 = vpow.pop %v685
    %v687 = vmul.f32 %v670, 1.442695
    %v688 = vpow.pop %v687
    %v689 = vmul.f32 %v671, 1.442695
    %v690 = vpow.pop %v689
    %v691 = vmul.f32 %v672, 1.442695
    %v692 = vpow.pop %v691
    %v693 = vmul.f32 %v673, 1.442695
    %v694 = vpow.pop %v693
    %v695 = vmul.f32 %v674, 1.442695
    %v696 = vpow.pop %v695
    %v697 = vmul.f32 %v675, 1.442695
    %v698 = vpow.pop %v697
    %v699 = vmul.f32 %v676, 1.442695
    %v700 = vpow.pop %v699
    %v701 = vmul.f32 %v677, 1.442695
    %v702 = vpow.pop %v701
    %v703 = vmul.f32 %v678, 1.442695
    %v704 = vpow.pop %v703
    %v705 = vmul.f32 %v679, 1.442695
    %v706 = vpow.pop %v705
    %v707 = vmul.f32 %v680, 1.442695
    %v708 = vpow.pop %v707
    %v709 = vmul.f32 %v681, 1.442695
    %v710 = vpow.pop %v709
    %v711 = vmul.f32 %v682, 1.442695
    %v712 = vpow.pop %v711
    %v713 = vmul.f32 %v683, 1.442695
    %v714 = vpow.pop %v713
    %v715 = vmul.f32 %v684, 1.442695
    %v716 = vpow.pop %v715
    %v717 = vadd.f32 %v686, 1.0
    %v718 = vadd.f32 %v688, 1.0
    %v719 = vadd.f32 %v690, 1.0
    %v720 = vadd.f32 %v692, 1.0
    %v721 = vadd.f32 %v694, 1.0
    %v722 = vadd.f32 %v696, 1.0
    %v723 = vadd.f32 %v698, 1.0
    %v724 = vadd.f32 %v700, 1.0
    %v725 = vadd.f32 %v702, 1.0
    %v726 = vadd.f32 %v704, 1.0
    %v727 = vadd.f32 %v706, 1.0
    %v728 = vadd.f32 %v708, 1.0
    %v729 = vadd.f32 %v710, 1.0
    %v730 = vadd.f32 %v712, 1.0
    %v731 = vadd.f32 %v714, 1.0
    %v732 = vadd.f32 %v716, 1.0
    %v733 = vrcp.pop %v717
    %v734 = vmul.f32 1.0, %v733
    %v735 = vrcp.pop %v718
    %v736 = vmul.f32 1.0, %v735
    %v737 = vrcp.pop %v719
    %v738 = vmul.f32 1.0, %v737
    %v739 = vrcp.pop %v720
    %v740 = vmul.f32 1.0, %v739
    %v741 = vrcp.pop %v721
    %v742 = vmul.f32 1.0, %v741
    %v743 = vrcp.pop %v722
    %v744 = vmul.f32 1.0, %v743
    %v745 = vrcp.pop %v723
    %v746 = vmul.f32 1.0, %v745
    %v747 = vrcp.pop %v724
    %v748 = vmul.f32 1.0, %v747
    %v749 = vrcp.pop %v725
    %v750 = vmul.f32 1.0, %v749
    %v751 = vrcp.pop %v726
    %v752 = vmul.f32 1.0, %v751
    %v753 = vrcp.pop %v727
    %v754 = vmul.f32 1.0, %v753
    %v755 = vrcp.pop %v728
    %v756 = vmul.f32 1.0, %v755
    %v757 = vrcp.pop %v729
    %v758 = vmul.f32 1.0, %v757
    %v759 = vrcp.pop %v730
    %v760 = vmul.f32 1.0, %v759
    %v761 = vrcp.pop %v731
    %v762 = vmul.f32 1.0, %v761
    %v763 = vrcp.pop %v732
    %v764 = vmul.f32 1.0, %v763
    %v781 = vrot.slane %v638, 3
    %v782 = vrot.slane %v640, 3
    %v783 = vrot.slane %v642, 3
    %v784 = vrot.slane %v644, 3
    %v785 = vrot.slane %v646, 3
    %v786 = vrot.slane %v648, 3
    %v787 = vrot.slane %v650, 3
    %v788 = vrot.slane %v652, 3
    %v789 = vrot.slane %v654, 3
    %v790 = vrot.slane %v656, 3
    %v791 = vrot.slane %v658, 3
    %v792 = vrot.slane %v660, 3
    %v793 = vrot.slane %v662, 3
    %v794 = vrot.slane %v664, 3
    %v795 = vrot.slane %v666, 3
    %v796 = vrot.slane %v668, 3
    %v813 = vtanh.pop %v781
    %v814 = vtanh.pop %v782
    %v815 = vtanh.pop %v783
    %v816 = vtanh.pop %v784
    %v817 = vtanh.pop %v785
    %v818 = vtanh.pop %v786
    %v819 = vtanh.pop %v787
    %v820 = vtanh.pop %v788
    %v821 = vtanh.pop %v789
    %v822 = vtanh.pop %v790
    %v823 = vtanh.pop %v791
    %v824 = vtanh.pop %v792
    %v825 = vtanh.pop %v793
    %v826 = vtanh.pop %v794
    %v827 = vtanh.pop %v795
    %v828 = vtanh.pop %v796
    %v845 = vrot.slane %v734, 1
    %v846 = vrot.slane %v736, 1
    %v847 = vrot.slane %v738, 1
    %v848 = vrot.slane %v740, 1
    %v849 = vrot.slane %v742, 1
    %v850 = vrot.slane %v744, 1
    %v851 = vrot.slane %v746, 1
    %v852 = vrot.slane %v748, 1
    %v853 = vrot.slane %v750, 1
    %v854 = vrot.slane %v752, 1
    %v855 = vrot.slane %v754, 1
    %v856 = vrot.slane %v756, 1
    %v857 = vrot.slane %v758, 1
    %v858 = vrot.slane %v760, 1
    %v859 = vrot.slane %v762, 1
    %v860 = vrot.slane %v764, 1
    %v877 = vmul.f32 %v845, 0.0
    %v878 = vmul.f32 %v846, 0.0
    %v879 = vmul.f32 %v847, 0.0
    %v880 = vmul.f32 %v848, 0.0
    %v881 = vmul.f32 %v849, 0.0
    %v882 = vmul.f32 %v850, 0.0
    %v883 = vmul.f32 %v851, 0.0
    %v884 = vmul.f32 %v852, 0.0
    %v885 = vmul.f32 %v853, 0.0
    %v886 = vmul.f32 %v854, 0.0
    %v887 = vmul.f32 %v855, 0.0
    %v888 = vmul.f32 %v856, 0.0
    %v889 = vmul.f32 %v857, 0.0
    %v890 = vmul.f32 %v858, 0.0
    %v891 = vmul.f32 %v859, 0.0
    %v892 = vmul.f32 %v860, 0.0
    %v893 = vmul.f32 %v734, %v813
    %v894 = vmul.f32 %v736, %v814
    %v895 = vmul.f32 %v738, %v815
    %v896 = vmul.f32 %v740, %v816
    %v897 = vmul.f32 %v742, %v817
    %v898 = vmul.f32 %v744, %v818
    %v899 = vmul.f32 %v746, %v819
    %v900 = vmul.f32 %v748, %v820
    %v901 = vmul.f32 %v750, %v821
    %v902 = vmul.f32 %v752, %v822
    %v903 = vmul.f32 %v754, %v823
    %v904 = vmul.f32 %v756, %v824
    %v905 = vmul.f32 %v758, %v825
    %v906 = vmul.f32 %v760, %v826
    %v907 = vmul.f32 %v762, %v827
    %v908 = vmul.f32 %v764, %v828
    %v909 = vadd.f32 %v877, %v893
    %v910 = vadd.f32 %v878, %v894
    %v911 = vadd.f32 %v879, %v895
    %v912 = vadd.f32 %v880, %v896
    %v913 = vadd.f32 %v881, %v897
    %v914 = vadd.f32 %v882, %v898
    %v915 = vadd.f32 %v883, %v899
    %v916 = vadd.f32 %v884, %v900
    %v917 = vadd.f32 %v885, %v901
    %v918 = vadd.f32 %v886, %v902
    %v919 = vadd.f32 %v887, %v903
    %v920 = vadd.f32 %v888, %v904
    %v921 = vadd.f32 %v889, %v905
    %v922 = vadd.f32 %v890, %v906
    %v923 = vadd.f32 %v891, %v907
    %v924 = vadd.f32 %v892, %v908
    %v925 = vtanh.pop %v909
    %v926 = vtanh.pop %v910
    %v927 = vtanh.pop %v911
    %v928 = vtanh.pop %v912
    %v929 = vtanh.pop %v913
    %v930 = vtanh.pop %v914
    %v931 = vtanh.pop %v915
    %v932 = vtanh.pop %v916
    %v933 = vtanh.pop %v917
    %v934 = vtanh.pop %v918
    %v935 = vtanh.pop %v919
    %v936 = vtanh.pop %v920
    %v937 = vtanh.pop %v921
    %v938 = vtanh.pop %v922
    %v939 = vtanh.pop %v923
    %v940 = vtanh.pop %v924
    %v941 = vrot.slane %v734, 2
    %v942 = vrot.slane %v736, 2
    %v943 = vrot.slane %v738, 2
    %v944 = vrot.slane %v740, 2
    %v945 = vrot.slane %v742, 2
    %v946 = vrot.slane %v744, 2
    %v947 = vrot.slane %v746, 2
    %v948 = vrot.slane %v748, 2
    %v949 = vrot.slane %v750, 2
    %v950 = vrot.slane %v752, 2
    %v951 = vrot.slane %v754, 2
    %v952 = vrot.slane %v756, 2
    %v953 = vrot.slane %v758, 2
    %v954 = vrot.slane %v760, 2
    %v955 = vrot.slane %v762, 2
    %v956 = vrot.slane %v764, 2
    %v973 = vmul.f32 %v941, %v925
    %v974 = vmul.f32 %v942, %v926
    %v975 = vmul.f32 %v943, %v927
    %v976 = vmul.f32 %v944, %v928
    %v977 = vmul.f32 %v945, %v929
    %v978 = vmul.f32 %v946, %v930
    %v979 = vmul.f32 %v947, %v931
    %v980 = vmul.f32 %v948, %v932
    %v981 = vmul.f32 %v949, %v933
    %v982 = vmul.f32 %v950, %v934
    %v983 = vmul.f32 %v951, %v935
    %v984 = vmul.f32 %v952, %v936
    %v985 = vmul.f32 %v953, %v937
    %v986 = vmul.f32 %v954, %v938
    %v987 = vmul.f32 %v955, %v939
    %v988 = vmul.f32 %v956, %v940
    %s989 = scalar_lea.vmem [#allocation2], 1
    %v990 = vld [vmem:[%s989] ss:$8 sm:$0xf]
    %s991 = scalar_lea.vmem [#allocation2], 33
    %v992 = vld [vmem:[%s991] ss:$8 sm:$0xf]
    %s993 = scalar_lea.vmem [#allocation2], 65
    %v994 = vld [vmem:[%s993] ss:$8 sm:$0xf]
    %s995 = scalar_lea.vmem [#allocation2], 97
    %v996 = vld [vmem:[%s995] ss:$8 sm:$0xf]
    %s997 = scalar_lea.vmem [#allocation2], 129
    %v998 = vld [vmem:[%s997] ss:$8 sm:$0xf]
    %s999 = scalar_lea.vmem [#allocation2], 161
    %v1000 = vld [vmem:[%s999] ss:$8 sm:$0xf]
    %s1001 = scalar_lea.vmem [#allocation2], 193
    %v1002 = vld [vmem:[%s1001] ss:$8 sm:$0xf]
    %s1003 = scalar_lea.vmem [#allocation2], 225
    %v1004 = vld [vmem:[%s1003] ss:$8 sm:$0xf]
    %s1005 = scalar_lea.vmem [#allocation2], 257
    %v1006 = vld [vmem:[%s1005] ss:$8 sm:$0xf]
    %s1007 = scalar_lea.vmem [#allocation2], 289
    %v1008 = vld [vmem:[%s1007] ss:$8 sm:$0xf]
    %s1009 = scalar_lea.vmem [#allocation2], 321
    %v1010 = vld [vmem:[%s1009] ss:$8 sm:$0xf]
    %s1011 = scalar_lea.vmem [#allocation2], 353
    %v1012 = vld [vmem:[%s1011] ss:$8 sm:$0xf]
    %s1013 = scalar_lea.vmem [#allocation2], 385
    %v1014 = vld [vmem:[%s1013] ss:$8 sm:$0xf]
    %s1015 = scalar_lea.vmem [#allocation2], 417
    %v1016 = vld [vmem:[%s1015] ss:$8 sm:$0xf]
    %s1017 = scalar_lea.vmem [#allocation2], 449
    %v1018 = vld [vmem:[%s1017] ss:$8 sm:$0xf]
    %s1019 = scalar_lea.vmem [#allocation2], 481
    %v1020 = vld [vmem:[%s1019] ss:$8 sm:$0xf]
    %v1021 = vpack.c.bf16 %v973, %v973
    %v1022 = vpack.c.bf16 %v974, %v974
    %v1023 = vpack.c.bf16 %v975, %v975
    %v1024 = vpack.c.bf16 %v976, %v976
    %v1025 = vpack.c.bf16 %v977, %v977
    %v1026 = vpack.c.bf16 %v978, %v978
    %v1027 = vpack.c.bf16 %v979, %v979
    %v1028 = vpack.c.bf16 %v980, %v980
    %v1029 = vpack.c.bf16 %v981, %v981
    %v1030 = vpack.c.bf16 %v982, %v982
    %v1031 = vpack.c.bf16 %v983, %v983
    %v1032 = vpack.c.bf16 %v984, %v984
    %v1033 = vpack.c.bf16 %v985, %v985
    %v1034 = vpack.c.bf16 %v986, %v986
    %v1035 = vpack.c.bf16 %v987, %v987
    %v1036 = vpack.c.bf16 %v988, %v988
    %v1037 = vld [vmem:[#allocation9] sm:$0xff]
    %v1038 = vld [vmem:[#allocation9 + $0x8] sm:$0xff]
    %v1039 = vld [vmem:[#allocation9 + $0x10] sm:$0xff]
    %v1040 = vld [vmem:[#allocation9 + $0x18] sm:$0xff]
    %v1041 = vld [vmem:[#allocation9 + $0x20] sm:$0xff]
    %v1042 = vld [vmem:[#allocation9 + $0x28] sm:$0xff]
    %v1043 = vld [vmem:[#allocation9 + $0x30] sm:$0xff]
    %v1044 = vld [vmem:[#allocation9 + $0x38] sm:$0xff]
    %v1045 = vld [vmem:[#allocation9 + $0x40] sm:$0xff]
    %v1046 = vld [vmem:[#allocation9 + $0x48] sm:$0xff]
    %v1047 = vld [vmem:[#allocation9 + $0x50] sm:$0xff]
    %v1048 = vld [vmem:[#allocation9 + $0x58] sm:$0xff]
    %v1049 = vld [vmem:[#allocation9 + $0x60] sm:$0xff]
    %v1050 = vld [vmem:[#allocation9 + $0x68] sm:$0xff]
    %v1051 = vld [vmem:[#allocation9 + $0x70] sm:$0xff]
    %v1052 = vld [vmem:[#allocation9 + $0x78] sm:$0xff]
    %v1053 = vld [vmem:[#allocation9 + $0x80] sm:$0xff]
    %v1054 = vld [vmem:[#allocation9 + $0x88] sm:$0xff]
    %v1055 = vld [vmem:[#allocation9 + $0x90] sm:$0xff]
    %v1056 = vld [vmem:[#allocation9 + $0x98] sm:$0xff]
    %v1057 = vld [vmem:[#allocation9 + $0xa0] sm:$0xff]
    %v1058 = vld [vmem:[#allocation9 + $0xa8] sm:$0xff]
    %v1059 = vld [vmem:[#allocation9 + $0xb0] sm:$0xff]
    %v1060 = vld [vmem:[#allocation9 + $0xb8] sm:$0xff]
    %v1061 = vld [vmem:[#allocation9 + $0xc0] sm:$0xff]
    %v1062 = vld [vmem:[#allocation9 + $0xc8] sm:$0xff]
    %v1063 = vld [vmem:[#allocation9 + $0xd0] sm:$0xff]
    %v1064 = vld [vmem:[#allocation9 + $0xd8] sm:$0xff]
    %v1065 = vld [vmem:[#allocation9 + $0xe0] sm:$0xff]
    %v1066 = vld [vmem:[#allocation9 + $0xe8] sm:$0xff]
    %v1067 = vld [vmem:[#allocation9 + $0xf0] sm:$0xff]
    %v1068 = vld [vmem:[#allocation9 + $0xf8] sm:$0xff]
    %v1085 = vunpack.c.l.b16 %v1021
    %v1086 = vunpack.c.l.b16 %v1022
    %v1087 = vunpack.c.l.b16 %v1023
    %v1088 = vunpack.c.l.b16 %v1024
    %v1089 = vunpack.c.l.b16 %v1025
    %v1090 = vunpack.c.l.b16 %v1026
    %v1091 = vunpack.c.l.b16 %v1027
    %v1092 = vunpack.c.l.b16 %v1028
    %v1093 = vunpack.c.l.b16 %v1029
    %v1094 = vunpack.c.l.b16 %v1030
    %v1095 = vunpack.c.l.b16 %v1031
    %v1096 = vunpack.c.l.b16 %v1032
    %v1097 = vunpack.c.l.b16 %v1033
    %v1098 = vunpack.c.l.b16 %v1034
    %v1099 = vunpack.c.l.b16 %v1035
    %v1100 = vunpack.c.l.b16 %v1036
    %v1101 = vrot.slane %v1086, 7
    %vm1102 = vcmask 1041409
    %v1103 = vsel %vm1102, %v1101, %v1085
    %v1104 = vrot.slane %v1087, 6
    %vm1105 = vcmask 1042434
    %v1106 = vsel %vm1105, %v1104, %v1103
    %v1107 = vrot.slane %v1088, 5
    %vm1108 = vcmask 1043459
    %v1109 = vsel %vm1108, %v1107, %v1106
    %v1110 = vrot.slane %v1089, 4
    %vm1111 = vcmask 1044484
    %v1112 = vsel %vm1111, %v1110, %v1109
    %v1113 = vrot.slane %v1090, 3
    %vm1114 = vcmask 1045509
    %v1115 = vsel %vm1114, %v1113, %v1112
    %v1116 = vrot.slane %v1091, 2
    %vm1117 = vcmask 1046534
    %v1118 = vsel %vm1117, %v1116, %v1115
    %v1119 = vrot.slane %v1092, 1
    %vm1120 = vcmask 1047559
    %v1121 = vsel %vm1120, %v1119, %v1118
    %v1122 = vrot.slane %v1094, 7
    %v1123 = vsel %vm1102, %v1122, %v1093
    %v1124 = vrot.slane %v1095, 6
    %v1125 = vsel %vm1105, %v1124, %v1123
    %v1126 = vrot.slane %v1096, 5
    %v1127 = vsel %vm1108, %v1126, %v1125
    %v1128 = vrot.slane %v1097, 4
    %v1129 = vsel %vm1111, %v1128, %v1127
    %v1130 = vrot.slane %v1098, 3
    %v1131 = vsel %vm1114, %v1130, %v1129
    %v1132 = vrot.slane %v1099, 2
    %v1133 = vsel %vm1117, %v1132, %v1131
    %v1134 = vrot.slane %v1100, 1
    %v1135 = vsel %vm1120, %v1134, %v1133
    %v1136 = vpack.c.b16 %v1135, %v1121
    %v1170 = vunpack.c.l.b16 %v1037
    %v1171 = vunpack.c.h.b16 %v1037
    %v1172 = vunpack.c.l.b16 %v1038
    %v1173 = vunpack.c.h.b16 %v1038
    %v1174 = vunpack.c.l.b16 %v1039
    %v1175 = vunpack.c.h.b16 %v1039
    %v1176 = vunpack.c.l.b16 %v1040
    %v1177 = vunpack.c.h.b16 %v1040
    %v1178 = vunpack.c.l.b16 %v1041
    %v1179 = vunpack.c.h.b16 %v1041
    %v1180 = vunpack.c.l.b16 %v1042
    %v1181 = vunpack.c.h.b16 %v1042
    %v1182 = vunpack.c.l.b16 %v1043
    %v1183 = vunpack.c.h.b16 %v1043
    %v1184 = vunpack.c.l.b16 %v1044
    %v1185 = vunpack.c.h.b16 %v1044
    %v1186 = vunpack.c.l.b16 %v1045
    %v1187 = vunpack.c.h.b16 %v1045
    %v1188 = vunpack.c.l.b16 %v1046
    %v1189 = vunpack.c.h.b16 %v1046
    %v1190 = vunpack.c.l.b16 %v1047
    %v1191 = vunpack.c.h.b16 %v1047
    %v1192 = vunpack.c.l.b16 %v1048
    %v1193 = vunpack.c.h.b16 %v1048
    %v1194 = vunpack.c.l.b16 %v1049
    %v1195 = vunpack.c.h.b16 %v1049
    %v1196 = vunpack.c.l.b16 %v1050
    %v1197 = vunpack.c.h.b16 %v1050
    %v1198 = vunpack.c.l.b16 %v1051
    %v1199 = vunpack.c.h.b16 %v1051
    %v1200 = vunpack.c.l.b16 %v1052
    %v1201 = vunpack.c.h.b16 %v1052
    %v1202 = vunpack.c.l.b16 %v1053
    %v1203 = vunpack.c.h.b16 %v1053
    %v1204 = vunpack.c.l.b16 %v1054
    %v1205 = vunpack.c.h.b16 %v1054
    %v1206 = vunpack.c.l.b16 %v1055
    %v1207 = vunpack.c.h.b16 %v1055
    %v1208 = vunpack.c.l.b16 %v1056
    %v1209 = vunpack.c.h.b16 %v1056
    %v1210 = vunpack.c.l.b16 %v1057
    %v1211 = vunpack.c.h.b16 %v1057
    %v1212 = vunpack.c.l.b16 %v1058
    %v1213 = vunpack.c.h.b16 %v1058
    %v1214 = vunpack.c.l.b16 %v1059
    %v1215 = vunpack.c.h.b16 %v1059
    %v1216 = vunpack.c.l.b16 %v1060
    %v1217 = vunpack.c.h.b16 %v1060
    %v1218 = vunpack.c.l.b16 %v1061
    %v1219 = vunpack.c.h.b16 %v1061
    %v1220 = vunpack.c.l.b16 %v1062
    %v1221 = vunpack.c.h.b16 %v1062
    %v1222 = vunpack.c.l.b16 %v1063
    %v1223 = vunpack.c.h.b16 %v1063
    %v1224 = vunpack.c.l.b16 %v1064
    %v1225 = vunpack.c.h.b16 %v1064
    %v1226 = vunpack.c.l.b16 %v1065
    %v1227 = vunpack.c.h.b16 %v1065
    %v1228 = vunpack.c.l.b16 %v1066
    %v1229 = vunpack.c.h.b16 %v1066
    %v1230 = vunpack.c.l.b16 %v1067
    %v1231 = vunpack.c.h.b16 %v1067
    %v1232 = vunpack.c.l.b16 %v1068
    %v1233 = vunpack.c.h.b16 %v1068
    %v1234 = vpack.c.b16 %v1174, %v1170
    %v1235 = vpack.c.b16 %v1175, %v1171
    %v1236 = vpack.c.b16 %v1176, %v1172
    %v1237 = vpack.c.b16 %v1177, %v1173
    %v1238 = vpack.c.b16 %v1182, %v1178
    %v1239 = vpack.c.b16 %v1183, %v1179
    %v1240 = vpack.c.b16 %v1184, %v1180
    %v1241 = vpack.c.b16 %v1185, %v1181
    %v1242 = vpack.c.b16 %v1190, %v1186
    %v1243 = vpack.c.b16 %v1191, %v1187
    %v1244 = vpack.c.b16 %v1192, %v1188
    %v1245 = vpack.c.b16 %v1193, %v1189
    %v1246 = vpack.c.b16 %v1198, %v1194
    %v1247 = vpack.c.b16 %v1199, %v1195
    %v1248 = vpack.c.b16 %v1200, %v1196
    %v1249 = vpack.c.b16 %v1201, %v1197
    %v1250 = vpack.c.b16 %v1206, %v1202
    %v1251 = vpack.c.b16 %v1207, %v1203
    %v1252 = vpack.c.b16 %v1208, %v1204
    %v1253 = vpack.c.b16 %v1209, %v1205
    %v1254 = vpack.c.b16 %v1214, %v1210
    %v1255 = vpack.c.b16 %v1215, %v1211
    %v1256 = vpack.c.b16 %v1216, %v1212
    %v1257 = vpack.c.b16 %v1217, %v1213
    %v1258 = vpack.c.b16 %v1222, %v1218
    %v1259 = vpack.c.b16 %v1223, %v1219
    %v1260 = vpack.c.b16 %v1224, %v1220
    %v1261 = vpack.c.b16 %v1225, %v1221
    %v1262 = vpack.c.b16 %v1230, %v1226
    %v1263 = vpack.c.b16 %v1231, %v1227
    %v1264 = vpack.c.b16 %v1232, %v1228
    %v1265 = vpack.c.b16 %v1233, %v1229
    %1298 = vmatprep.subr.bf16.mxu0 %v1263
    %1299 = vmatpush1.bf16.msra.mxu0 %v1262
    %1300 = vmatprep.subr.bf16.mxu0 %v1259
    %1301 = vmatpush1.bf16.msra.mxu0 %v1258
    %1302 = vmatprep.subr.bf16.mxu0 %v1255
    %1303 = vmatpush1.bf16.msra.mxu0 %v1254
    %1304 = vmatprep.subr.bf16.mxu0 %v1251
    %1305 = vmatpush1.bf16.msra.mxu0 %v1250
    %1306 = vmatprep.subr.bf16.mxu0 %v1247
    %1307 = vmatpush1.bf16.msra.mxu0 %v1246
    %1308 = vmatprep.subr.bf16.mxu0 %v1243
    %1309 = vmatpush1.bf16.msra.mxu0 %v1242
    %1310 = vmatprep.subr.bf16.mxu0 %v1239
    %1311 = vmatpush1.bf16.msra.mxu0 %v1238
    %1312 = vmatprep.subr.bf16.mxu0 %v1235
    %1313 = vmatpush1.bf16.msra.mxu0 %v1234
    %1314 = vmatprep.subr.bf16.mxu0 0
    %1315 = vmatpush2.bf16.msra.mxu0 0
    %1316 = vmatprep.subr.bf16.mxu0 0
    %1317 = vmatpush2.bf16.msra.mxu0 0
    %1318 = vmatprep.subr.bf16.mxu0 0
    %1319 = vmatpush2.bf16.msra.mxu0 0
    %1320 = vmatprep.subr.bf16.mxu0 0
    %1321 = vmatpush2.bf16.msra.mxu0 0
    %1322 = vmatprep.subr.bf16.mxu0 0
    %1323 = vmatpush2.bf16.msra.mxu0 0
    %1324 = vmatprep.subr.bf16.mxu0 0
    %1325 = vmatpush2.bf16.msra.mxu0 0
    %1326 = vmatprep.subr.bf16.mxu0 0
    %1327 = vmatpush2.bf16.msra.mxu0 0
    %1328 = vmatprep.subr.bf16.mxu0 0
    %1329 = vmatpush2.bf16.msra.mxu0 0
    %1330 = vmatprep.mubr.bf16.mxu0 0
    %1331 = vmatmul.mubr.bf16.gmra.mxu0 %v1136
    %v1332 = vpop.f32.mrf.mxu0
    %v1333 = vadd.f32 0.0, %v1332
    %v1334 = vpop.f32.mrf.mxu0
    %v1335 = vadd.f32 0.0, %v1334
    %v1336 = vpop.f32.mrf.mxu0
    %v1337 = vadd.f32 0.0, %v1336
    %v1338 = vpop.f32.mrf.mxu0
    %v1339 = vadd.f32 0.0, %v1338
    %1340 = vdwg.mxu0
    %1341 = vmatprep.subr.bf16.mxu0 %v1265
    %1342 = vmatpush1.bf16.msra.mxu0 %v1264
    %1343 = vmatprep.subr.bf16.mxu0 %v1261
    %1344 = vmatpush1.bf16.msra.mxu0 %v1260
    %1345 = vmatprep.subr.bf16.mxu0 %v1257
    %1346 = vmatpush1.bf16.msra.mxu0 %v1256
    %1347 = vmatprep.subr.bf16.mxu0 %v1253
    %1348 = vmatpush1.bf16.msra.mxu0 %v1252
    %1349 = vmatprep.subr.bf16.mxu0 %v1249
    %1350 = vmatpush1.bf16.msra.mxu0 %v1248
    %1351 = vmatprep.subr.bf16.mxu0 %v1245
    %1352 = vmatpush1.bf16.msra.mxu0 %v1244
    %1353 = vmatprep.subr.bf16.mxu0 %v1241
    %1354 = vmatpush1.bf16.msra.mxu0 %v1240
    %1355 = vmatprep.subr.bf16.mxu0 %v1237
    %1356 = vmatpush1.bf16.msra.mxu0 %v1236
    %1357 = vmatprep.subr.bf16.mxu0 0
    %1358 = vmatpush2.bf16.msra.mxu0 0
    %1359 = vmatprep.subr.bf16.mxu0 0
    %1360 = vmatpush2.bf16.msra.mxu0 0
    %1361 = vmatprep.subr.bf16.mxu0 0
    %1362 = vmatpush2.bf16.msra.mxu0 0
    %1363 = vmatprep.subr.bf16.mxu0 0
    %1364 = vmatpush2.bf16.msra.mxu0 0
    %1365 = vmatprep.subr.bf16.mxu0 0
    %1366 = vmatpush2.bf16.msra.mxu0 0
    %1367 = vmatprep.subr.bf16.mxu0 0
    %1368 = vmatpush2.bf16.msra.mxu0 0
    %1369 = vmatprep.subr.bf16.mxu0 0
    %1370 = vmatpush2.bf16.msra.mxu0 0
    %1371 = vmatprep.subr.bf16.mxu0 0
    %1372 = vmatpush2.bf16.msra.mxu0 0
    %1373 = vmatprep.mubr.bf16.mxu0 0
    %1374 = vmatmul.mubr.bf16.gmra.mxu0 %v1136
    %v1375 = vpop.f32.mrf.mxu0
    %v1376 = vadd.f32 0.0, %v1375
    %v1377 = vpop.f32.mrf.mxu0
    %v1378 = vadd.f32 0.0, %v1377
    %v1379 = vpop.f32.mrf.mxu0
    %v1380 = vadd.f32 0.0, %v1379
    %v1381 = vpop.f32.mrf.mxu0
    %v1382 = vadd.f32 0.0, %v1381
    %1383 = vdwg.mxu0
    %v1392 = vcombine.low %v1333, %v1335
    %v1393 = vcombine.high %v1333, %v1335
    %v1394 = vcombine.low %v1376, %v1378
    %v1395 = vcombine.high %v1376, %v1378
    %v1397 = vunpack.c.l.s4 1966171168
    %v1398 = vunpack.c.0.s8 %v1397
    %v1399 = vlaneseq
    %v1400 = vshrl.u32 %v1399, 7
    %v1401 = vsub.s32 %v1398, %v1400
    %v1402 = vrot.slane %v1392, %v1401
    %v1404 = vunpack.c.l.s4 1966171168
    %v1405 = vunpack.c.0.s8 %v1404
    %v1406 = vlaneseq
    %v1407 = vshrl.u32 %v1406, 7
    %v1408 = vsub.s32 %v1405, %v1407
    %v1409 = vrot.slane %v1393, %v1408
    %v1411 = vunpack.c.l.s4 1966171168
    %v1412 = vunpack.c.0.s8 %v1411
    %v1413 = vlaneseq
    %v1414 = vshrl.u32 %v1413, 7
    %v1415 = vsub.s32 %v1412, %v1414
    %v1416 = vrot.slane %v1394, %v1415
    %v1418 = vunpack.c.l.s4 1966171168
    %v1419 = vunpack.c.0.s8 %v1418
    %v1420 = vlaneseq
    %v1421 = vshrl.u32 %v1420, 7
    %v1422 = vsub.s32 %v1419, %v1421
    %v1423 = vrot.slane %v1395, %v1422
    %v1424 = vcombine.low %v1402, %v1416
    %v1425 = vcombine.high %v1402, %v1416
    %v1426 = vcombine.low %v1409, %v1423
    %v1427 = vcombine.high %v1409, %v1423
    %v1429 = vunpack.c.l.s4 1966171168
    %v1430 = vunpack.c.0.s8 %v1429
    %v1431 = vlaneseq
    %v1432 = vshrl.u32 %v1431, 7
    %v1433 = vsub.s32 %v1430, %v1432
    %v1434 = vrot.slane %v1424, %v1433
    %v1436 = vunpack.c.l.s4 1966171168
    %v1437 = vunpack.c.0.s8 %v1436
    %v1438 = vlaneseq
    %v1439 = vshrl.u32 %v1438, 7
    %v1440 = vsub.s32 %v1437, %v1439
    %v1441 = vrot.slane %v1426, %v1440
    %v1443 = vunpack.c.l.s4 1966171168
    %v1444 = vunpack.c.0.s8 %v1443
    %v1445 = vlaneseq
    %v1446 = vshrl.u32 %v1445, 7
    %v1447 = vsub.s32 %v1444, %v1446
    %v1448 = vrot.slane %v1425, %v1447
    %v1450 = vunpack.c.l.s4 1966171168
    %v1451 = vunpack.c.0.s8 %v1450
    %v1452 = vlaneseq
    %v1453 = vshrl.u32 %v1452, 7
    %v1454 = vsub.s32 %v1451, %v1453
    %v1455 = vrot.slane %v1427, %v1454
    %v1456 = vcombine.high %v1434, %v1434
    %v1457 = vcombine.high %v1441, %v1441
    %v1458 = vcombine.high %v1448, %v1448
    %v1459 = vcombine.high %v1455, %v1455
    %v1460 = vcombine.low %v1337, %v1339
    %v1461 = vcombine.high %v1337, %v1339
    %v1462 = vcombine.low %v1380, %v1382
    %v1463 = vcombine.high %v1380, %v1382
    %v1465 = vunpack.c.l.s4 1966171168
    %v1466 = vunpack.c.0.s8 %v1465
    %v1467 = vlaneseq
    %v1468 = vshrl.u32 %v1467, 7
    %v1469 = vsub.s32 %v1466, %v1468
    %v1470 = vrot.slane %v1460, %v1469
    %v1472 = vunpack.c.l.s4 1966171168
    %v1473 = vunpack.c.0.s8 %v1472
    %v1474 = vlaneseq
    %v1475 = vshrl.u32 %v1474, 7
    %v1476 = vsub.s32 %v1473, %v1475
    %v1477 = vrot.slane %v1461, %v1476
    %v1479 = vunpack.c.l.s4 1966171168
    %v1480 = vunpack.c.0.s8 %v1479
    %v1481 = vlaneseq
    %v1482 = vshrl.u32 %v1481, 7
    %v1483 = vsub.s32 %v1480, %v1482
    %v1484 = vrot.slane %v1462, %v1483
    %v1486 = vunpack.c.l.s4 1966171168
    %v1487 = vunpack.c.0.s8 %v1486
    %v1488 = vlaneseq
    %v1489 = vshrl.u32 %v1488, 7
    %v1490 = vsub.s32 %v1487, %v1489
    %v1491 = vrot.slane %v1463, %v1490
    %v1492 = vcombine.low %v1470, %v1484
    %v1493 = vcombine.high %v1470, %v1484
    %v1494 = vcombine.low %v1477, %v1491
    %v1495 = vcombine.high %v1477, %v1491
    %v1497 = vunpack.c.l.s4 1966171168
    %v1498 = vunpack.c.0.s8 %v1497
    %v1499 = vlaneseq
    %v1500 = vshrl.u32 %v1499, 7
    %v1501 = vsub.s32 %v1498, %v1500
    %v1502 = vrot.slane %v1492, %v1501
    %v1504 = vunpack.c.l.s4 1966171168
    %v1505 = vunpack.c.0.s8 %v1504
    %v1506 = vlaneseq
    %v1507 = vshrl.u32 %v1506, 7
    %v1508 = vsub.s32 %v1505, %v1507
    %v1509 = vrot.slane %v1494, %v1508
    %v1511 = vunpack.c.l.s4 1966171168
    %v1512 = vunpack.c.0.s8 %v1511
    %v1513 = vlaneseq
    %v1514 = vshrl.u32 %v1513, 7
    %v1515 = vsub.s32 %v1512, %v1514
    %v1516 = vrot.slane %v1493, %v1515
    %v1518 = vunpack.c.l.s4 1966171168
    %v1519 = vunpack.c.0.s8 %v1518
    %v1520 = vlaneseq
    %v1521 = vshrl.u32 %v1520, 7
    %v1522 = vsub.s32 %v1519, %v1521
    %v1523 = vrot.slane %v1495, %v1522
    %v1524 = vcombine.high %v1502, %v1502
    %v1525 = vcombine.high %v1509, %v1509
    %v1526 = vcombine.high %v1516, %v1516
    %v1527 = vcombine.high %v1523, %v1523
    %v1544 = vadd.f32 %v990, %v1434
    %v1545 = vadd.f32 %v992, %v1448
    %v1546 = vadd.f32 %v994, %v1456
    %v1547 = vadd.f32 %v996, %v1458
    %v1548 = vadd.f32 %v998, %v1441
    %v1549 = vadd.f32 %v1000, %v1455
    %v1550 = vadd.f32 %v1002, %v1457
    %v1551 = vadd.f32 %v1004, %v1459
    %v1552 = vadd.f32 %v1006, %v1502
    %v1553 = vadd.f32 %v1008, %v1516
    %v1554 = vadd.f32 %v1010, %v1524
    %v1555 = vadd.f32 %v1012, %v1526
    %v1556 = vadd.f32 %v1014, %v1509
    %v1557 = vadd.f32 %v1016, %v1523
    %v1558 = vadd.f32 %v1018, %v1525
    %v1559 = vadd.f32 %v1020, %v1527
    %v1560 = vxor.u32 %v1544, 2147483648
    %v1561 = vxor.u32 %v1545, 2147483648
    %v1562 = vxor.u32 %v1546, 2147483648
    %v1563 = vxor.u32 %v1547, 2147483648
    %v1564 = vxor.u32 %v1548, 2147483648
    %v1565 = vxor.u32 %v1549, 2147483648
    %v1566 = vxor.u32 %v1550, 2147483648
    %v1567 = vxor.u32 %v1551, 2147483648
    %v1568 = vxor.u32 %v1552, 2147483648
    %v1569 = vxor.u32 %v1553, 2147483648
    %v1570 = vxor.u32 %v1554, 2147483648
    %v1571 = vxor.u32 %v1555, 2147483648
    %v1572 = vxor.u32 %v1556, 2147483648
    %v1573 = vxor.u32 %v1557, 2147483648
    %v1574 = vxor.u32 %v1558, 2147483648
    %v1575 = vxor.u32 %v1559, 2147483648
    %v1576 = vmul.f32 %v1560, 1.442695
    %v1577 = vpow.pop %v1576
    %v1578 = vmul.f32 %v1561, 1.442695
    %v1579 = vpow.pop %v1578
    %v1580 = vmul.f32 %v1562, 1.442695
    %v1581 = vpow.pop %v1580
    %v1582 = vmul.f32 %v1563, 1.442695
    %v1583 = vpow.pop %v1582
    %v1584 = vmul.f32 %v1564, 1.442695
    %v1585 = vpow.pop %v1584
    %v1586 = vmul.f32 %v1565, 1.442695
    %v1587 = vpow.pop %v1586
    %v1588 = vmul.f32 %v1566, 1.442695
    %v1589 = vpow.pop %v1588
    %v1590 = vmul.f32 %v1567, 1.442695
    %v1591 = vpow.pop %v1590
    %v1592 = vmul.f32 %v1568, 1.442695
    %v1593 = vpow.pop %v1592
    %v1594 = vmul.f32 %v1569, 1.442695
    %v1595 = vpow.pop %v1594
    %v1596 = vmul.f32 %v1570, 1.442695
    %v1597 = vpow.pop %v1596
    %v1598 = vmul.f32 %v1571, 1.442695
    %v1599 = vpow.pop %v1598
    %v1600 = vmul.f32 %v1572, 1.442695
    %v1601 = vpow.pop %v1600
    %v1602 = vmul.f32 %v1573, 1.442695
    %v1603 = vpow.pop %v1602
    %v1604 = vmul.f32 %v1574, 1.442695
    %v1605 = vpow.pop %v1604
    %v1606 = vmul.f32 %v1575, 1.442695
    %v1607 = vpow.pop %v1606
    %v1608 = vadd.f32 %v1577, 1.0
    %v1609 = vadd.f32 %v1579, 1.0
    %v1610 = vadd.f32 %v1581, 1.0
    %v1611 = vadd.f32 %v1583, 1.0
    %v1612 = vadd.f32 %v1585, 1.0
    %v1613 = vadd.f32 %v1587, 1.0
    %v1614 = vadd.f32 %v1589, 1.0
    %v1615 = vadd.f32 %v1591, 1.0
    %v1616 = vadd.f32 %v1593, 1.0
    %v1617 = vadd.f32 %v1595, 1.0
    %v1618 = vadd.f32 %v1597, 1.0
    %v1619 = vadd.f32 %v1599, 1.0
    %v1620 = vadd.f32 %v1601, 1.0
    %v1621 = vadd.f32 %v1603, 1.0
    %v1622 = vadd.f32 %v1605, 1.0
    %v1623 = vadd.f32 %v1607, 1.0
    %v1624 = vrcp.pop %v1608
    %v1625 = vmul.f32 1.0, %v1624
    %v1626 = vrcp.pop %v1609
    %v1627 = vmul.f32 1.0, %v1626
    %v1628 = vrcp.pop %v1610
    %v1629 = vmul.f32 1.0, %v1628
    %v1630 = vrcp.pop %v1611
    %v1631 = vmul.f32 1.0, %v1630
    %v1632 = vrcp.pop %v1612
    %v1633 = vmul.f32 1.0, %v1632
    %v1634 = vrcp.pop %v1613
    %v1635 = vmul.f32 1.0, %v1634
    %v1636 = vrcp.pop %v1614
    %v1637 = vmul.f32 1.0, %v1636
    %v1638 = vrcp.pop %v1615
    %v1639 = vmul.f32 1.0, %v1638
    %v1640 = vrcp.pop %v1616
    %v1641 = vmul.f32 1.0, %v1640
    %v1642 = vrcp.pop %v1617
    %v1643 = vmul.f32 1.0, %v1642
    %v1644 = vrcp.pop %v1618
    %v1645 = vmul.f32 1.0, %v1644
    %v1646 = vrcp.pop %v1619
    %v1647 = vmul.f32 1.0, %v1646
    %v1648 = vrcp.pop %v1620
    %v1649 = vmul.f32 1.0, %v1648
    %v1650 = vrcp.pop %v1621
    %v1651 = vmul.f32 1.0, %v1650
    %v1652 = vrcp.pop %v1622
    %v1653 = vmul.f32 1.0, %v1652
    %v1654 = vrcp.pop %v1623
    %v1655 = vmul.f32 1.0, %v1654
    %v1672 = vrot.slane %v1544, 3
    %v1673 = vrot.slane %v1545, 3
    %v1674 = vrot.slane %v1546, 3
    %v1675 = vrot.slane %v1547, 3
    %v1676 = vrot.slane %v1548, 3
    %v1677 = vrot.slane %v1549, 3
    %v1678 = vrot.slane %v1550, 3
    %v1679 = vrot.slane %v1551, 3
    %v1680 = vrot.slane %v1552, 3
    %v1681 = vrot.slane %v1553, 3
    %v1682 = vrot.slane %v1554, 3
    %v1683 = vrot.slane %v1555, 3
    %v1684 = vrot.slane %v1556, 3
    %v1685 = vrot.slane %v1557, 3
    %v1686 = vrot.slane %v1558, 3
    %v1687 = vrot.slane %v1559, 3
    %v1704 = vtanh.pop %v1672
    %v1705 = vtanh.pop %v1673
    %v1706 = vtanh.pop %v1674
    %v1707 = vtanh.pop %v1675
    %v1708 = vtanh.pop %v1676
    %v1709 = vtanh.pop %v1677
    %v1710 = vtanh.pop %v1678
    %v1711 = vtanh.pop %v1679
    %v1712 = vtanh.pop %v1680
    %v1713 = vtanh.pop %v1681
    %v1714 = vtanh.pop %v1682
    %v1715 = vtanh.pop %v1683
    %v1716 = vtanh.pop %v1684
    %v1717 = vtanh.pop %v1685
    %v1718 = vtanh.pop %v1686
    %v1719 = vtanh.pop %v1687
    %v1736 = vrot.slane %v1625, 1
    %v1737 = vrot.slane %v1627, 1
    %v1738 = vrot.slane %v1629, 1
    %v1739 = vrot.slane %v1631, 1
    %v1740 = vrot.slane %v1633, 1
    %v1741 = vrot.slane %v1635, 1
    %v1742 = vrot.slane %v1637, 1
    %v1743 = vrot.slane %v1639, 1
    %v1744 = vrot.slane %v1641, 1
    %v1745 = vrot.slane %v1643, 1
    %v1746 = vrot.slane %v1645, 1
    %v1747 = vrot.slane %v1647, 1
    %v1748 = vrot.slane %v1649, 1
    %v1749 = vrot.slane %v1651, 1
    %v1750 = vrot.slane %v1653, 1
    %v1751 = vrot.slane %v1655, 1
    %v1768 = vmul.f32 %v1736, %v909
    %v1769 = vmul.f32 %v1737, %v910
    %v1770 = vmul.f32 %v1738, %v911
    %v1771 = vmul.f32 %v1739, %v912
    %v1772 = vmul.f32 %v1740, %v913
    %v1773 = vmul.f32 %v1741, %v914
    %v1774 = vmul.f32 %v1742, %v915
    %v1775 = vmul.f32 %v1743, %v916
    %v1776 = vmul.f32 %v1744, %v917
    %v1777 = vmul.f32 %v1745, %v918
    %v1778 = vmul.f32 %v1746, %v919
    %v1779 = vmul.f32 %v1747, %v920
    %v1780 = vmul.f32 %v1748, %v921
    %v1781 = vmul.f32 %v1749, %v922
    %v1782 = vmul.f32 %v1750, %v923
    %v1783 = vmul.f32 %v1751, %v924
    %v1784 = vmul.f32 %v1625, %v1704
    %v1785 = vmul.f32 %v1627, %v1705
    %v1786 = vmul.f32 %v1629, %v1706
    %v1787 = vmul.f32 %v1631, %v1707
    %v1788 = vmul.f32 %v1633, %v1708
    %v1789 = vmul.f32 %v1635, %v1709
    %v1790 = vmul.f32 %v1637, %v1710
    %v1791 = vmul.f32 %v1639, %v1711
    %v1792 = vmul.f32 %v1641, %v1712
    %v1793 = vmul.f32 %v1643, %v1713
    %v1794 = vmul.f32 %v1645, %v1714
    %v1795 = vmul.f32 %v1647, %v1715
    %v1796 = vmul.f32 %v1649, %v1716
    %v1797 = vmul.f32 %v1651, %v1717
    %v1798 = vmul.f32 %v1653, %v1718
    %v1799 = vmul.f32 %v1655, %v1719
    %v1800 = vadd.f32 %v1768, %v1784
    %v1801 = vadd.f32 %v1769, %v1785
    %v1802 = vadd.f32 %v1770, %v1786
    %v1803 = vadd.f32 %v1771, %v1787
    %v1804 = vadd.f32 %v1772, %v1788
    %v1805 = vadd.f32 %v1773, %v1789
    %v1806 = vadd.f32 %v1774, %v1790
    %v1807 = vadd.f32 %v1775, %v1791
    %v1808 = vadd.f32 %v1776, %v1792
    %v1809 = vadd.f32 %v1777, %v1793
    %v1810 = vadd.f32 %v1778, %v1794
    %v1811 = vadd.f32 %v1779, %v1795
    %v1812 = vadd.f32 %v1780, %v1796
    %v1813 = vadd.f32 %v1781, %v1797
    %v1814 = vadd.f32 %v1782, %v1798
    %v1815 = vadd.f32 %v1783, %v1799
    %v1816 = vtanh.pop %v1800
    %v1817 = vtanh.pop %v1801
    %v1818 = vtanh.pop %v1802
    %v1819 = vtanh.pop %v1803
    %v1820 = vtanh.pop %v1804
    %v1821 = vtanh.pop %v1805
    %v1822 = vtanh.pop %v1806
    %v1823 = vtanh.pop %v1807
    %v1824 = vtanh.pop %v1808
    %v1825 = vtanh.pop %v1809
    %v1826 = vtanh.pop %v1810
    %v1827 = vtanh.pop %v1811
    %v1828 = vtanh.pop %v1812
    %v1829 = vtanh.pop %v1813
    %v1830 = vtanh.pop %v1814
    %v1831 = vtanh.pop %v1815
    %v1832 = vrot.slane %v1625, 2
    %v1833 = vrot.slane %v1627, 2
    %v1834 = vrot.slane %v1629, 2
    %v1835 = vrot.slane %v1631, 2
    %v1836 = vrot.slane %v1633, 2
    %v1837 = vrot.slane %v1635, 2
    %v1838 = vrot.slane %v1637, 2
    %v1839 = vrot.slane %v1639, 2
    %v1840 = vrot.slane %v1641, 2
    %v1841 = vrot.slane %v1643, 2
    %v1842 = vrot.slane %v1645, 2
    %v1843 = vrot.slane %v1647, 2
    %v1844 = vrot.slane %v1649, 2
    %v1845 = vrot.slane %v1651, 2
    %v1846 = vrot.slane %v1653, 2
    %v1847 = vrot.slane %v1655, 2
    %v1864 = vmul.f32 %v1832, %v1816
    %v1865 = vmul.f32 %v1833, %v1817
    %v1866 = vmul.f32 %v1834, %v1818
    %v1867 = vmul.f32 %v1835, %v1819
    %v1868 = vmul.f32 %v1836, %v1820
    %v1869 = vmul.f32 %v1837, %v1821
    %v1870 = vmul.f32 %v1838, %v1822
    %v1871 = vmul.f32 %v1839, %v1823
    %v1872 = vmul.f32 %v1840, %v1824
    %v1873 = vmul.f32 %v1841, %v1825
    %v1874 = vmul.f32 %v1842, %v1826
    %v1875 = vmul.f32 %v1843, %v1827
    %v1876 = vmul.f32 %v1844, %v1828
    %v1877 = vmul.f32 %v1845, %v1829
    %v1878 = vmul.f32 %v1846, %v1830
    %v1879 = vmul.f32 %v1847, %v1831
    %v1880 = vld [vmem:[#allocation8] sm:$0xff]
    %v1881 = vld [vmem:[#allocation8 + $0x8] sm:$0xff]
    %v1882 = vld [vmem:[#allocation8 + $0x10] sm:$0xff]
    %v1883 = vld [vmem:[#allocation8 + $0x18] sm:$0xff]
    %v1884 = vld [vmem:[#allocation8 + $0x20] sm:$0xff]
    %v1885 = vld [vmem:[#allocation8 + $0x28] sm:$0xff]
    %v1886 = vld [vmem:[#allocation8 + $0x30] sm:$0xff]
    %v1887 = vld [vmem:[#allocation8 + $0x38] sm:$0xff]
    %v1888 = vld [vmem:[#allocation8 + $0x40] sm:$0xff]
    %v1889 = vld [vmem:[#allocation8 + $0x48] sm:$0xff]
    %v1890 = vld [vmem:[#allocation8 + $0x50] sm:$0xff]
    %v1891 = vld [vmem:[#allocation8 + $0x58] sm:$0xff]
    %v1892 = vld [vmem:[#allocation8 + $0x60] sm:$0xff]
    %v1893 = vld [vmem:[#allocation8 + $0x68] sm:$0xff]
    %v1894 = vld [vmem:[#allocation8 + $0x70] sm:$0xff]
    %v1895 = vld [vmem:[#allocation8 + $0x78] sm:$0xff]
    %v1896 = vld [vmem:[#allocation8 + $0x80] sm:$0xff]
    %v1897 = vld [vmem:[#allocation8 + $0x88] sm:$0xff]
    %v1898 = vld [vmem:[#allocation8 + $0x90] sm:$0xff]
    %v1899 = vld [vmem:[#allocation8 + $0x98] sm:$0xff]
    %v1900 = vld [vmem:[#allocation8 + $0xa0] sm:$0xff]
    %v1901 = vld [vmem:[#allocation8 + $0xa8] sm:$0xff]
    %v1902 = vld [vmem:[#allocation8 + $0xb0] sm:$0xff]
    %v1903 = vld [vmem:[#allocation8 + $0xb8] sm:$0xff]
    %v1904 = vld [vmem:[#allocation8 + $0xc0] sm:$0xff]
    %v1905 = vld [vmem:[#allocation8 + $0xc8] sm:$0xff]
    %v1906 = vld [vmem:[#allocation8 + $0xd0] sm:$0xff]
    %v1907 = vld [vmem:[#allocation8 + $0xd8] sm:$0xff]
    %v1908 = vld [vmem:[#allocation8 + $0xe0] sm:$0xff]
    %v1909 = vld [vmem:[#allocation8 + $0xe8] sm:$0xff]
    %v1910 = vld [vmem:[#allocation8 + $0xf0] sm:$0xff]
    %v1911 = vld [vmem:[#allocation8 + $0xf8] sm:$0xff]
    %s1912 = scalar_lea.vmem [#allocation11], 4
    %v1913 = vld [vmem:[%s1912] sm:$0xf]
    %v1915 = vlaneseq
    %v1916 = vshrl.u32 %v1915, 7
    %v1917 = vsub.s32 0, %v1916
    %v1918 = vrot.slane %v1913, %v1917
    %v1919 = vlaneseq
    %v1920 = vshrl.u32 %v1919, 7
    %v1921 = vsub.s32 1, %v1920
    %v1922 = vrot.slane %v1913, %v1921
    %v1923 = vlaneseq
    %v1924 = vshrl.u32 %v1923, 7
    %v1925 = vsub.s32 2, %v1924
    %v1926 = vrot.slane %v1913, %v1925
    %v1927 = vlaneseq
    %v1928 = vshrl.u32 %v1927, 7
    %v1929 = vsub.s32 3, %v1928
    %v1930 = vrot.slane %v1913, %v1929
    %v1967 = vunpack.c.l.b16 %v1880
    %v1968 = vunpack.c.h.b16 %v1880
    %v1969 = vunpack.c.l.b16 %v1881
    %v1970 = vunpack.c.h.b16 %v1881
    %v1971 = vunpack.c.l.b16 %v1882
    %v1972 = vunpack.c.h.b16 %v1882
    %v1973 = vunpack.c.l.b16 %v1883
    %v1974 = vunpack.c.h.b16 %v1883
    %v1975 = vunpack.c.l.b16 %v1884
    %v1976 = vunpack.c.h.b16 %v1884
    %v1977 = vunpack.c.l.b16 %v1885
    %v1978 = vunpack.c.h.b16 %v1885
    %v1979 = vunpack.c.l.b16 %v1886
    %v1980 = vunpack.c.h.b16 %v1886
    %v1981 = vunpack.c.l.b16 %v1887
    %v1982 = vunpack.c.h.b16 %v1887
    %v1983 = vunpack.c.l.b16 %v1888
    %v1984 = vunpack.c.h.b16 %v1888
    %v1985 = vunpack.c.l.b16 %v1889
    %v1986 = vunpack.c.h.b16 %v1889
    %v1987 = vunpack.c.l.b16 %v1890
    %v1988 = vunpack.c.h.b16 %v1890
    %v1989 = vunpack.c.l.b16 %v1891
    %v1990 = vunpack.c.h.b16 %v1891
    %v1991 = vunpack.c.l.b16 %v1892
    %v1992 = vunpack.c.h.b16 %v1892
    %v1993 = vunpack.c.l.b16 %v1893
    %v1994 = vunpack.c.h.b16 %v1893
    %v1995 = vunpack.c.l.b16 %v1894
    %v1996 = vunpack.c.h.b16 %v1894
    %v1997 = vunpack.c.l.b16 %v1895
    %v1998 = vunpack.c.h.b16 %v1895
    %v1999 = vunpack.c.l.b16 %v1896
    %v2000 = vunpack.c.h.b16 %v1896
    %v2001 = vunpack.c.l.b16 %v1897
    %v2002 = vunpack.c.h.b16 %v1897
    %v2003 = vunpack.c.l.b16 %v1898
    %v2004 = vunpack.c.h.b16 %v1898
    %v2005 = vunpack.c.l.b16 %v1899
    %v2006 = vunpack.c.h.b16 %v1899
    %v2007 = vunpack.c.l.b16 %v1900
    %v2008 = vunpack.c.h.b16 %v1900
    %v2009 = vunpack.c.l.b16 %v1901
    %v2010 = vunpack.c.h.b16 %v1901
    %v2011 = vunpack.c.l.b16 %v1902
    %v2012 = vunpack.c.h.b16 %v1902
    %v2013 = vunpack.c.l.b16 %v1903
    %v2014 = vunpack.c.h.b16 %v1903
    %v2015 = vunpack.c.l.b16 %v1904
    %v2016 = vunpack.c.h.b16 %v1904
    %v2017 = vunpack.c.l.b16 %v1905
    %v2018 = vunpack.c.h.b16 %v1905
    %v2019 = vunpack.c.l.b16 %v1906
    %v2020 = vunpack.c.h.b16 %v1906
    %v2021 = vunpack.c.l.b16 %v1907
    %v2022 = vunpack.c.h.b16 %v1907
    %v2023 = vunpack.c.l.b16 %v1908
    %v2024 = vunpack.c.h.b16 %v1908
    %v2025 = vunpack.c.l.b16 %v1909
    %v2026 = vunpack.c.h.b16 %v1909
    %v2027 = vunpack.c.l.b16 %v1910
    %v2028 = vunpack.c.h.b16 %v1910
    %v2029 = vunpack.c.l.b16 %v1911
    %v2030 = vunpack.c.h.b16 %v1911
    %v2031 = vpack.c.b16 %v1971, %v1967
    %v2032 = vpack.c.b16 %v1972, %v1968
    %v2033 = vpack.c.b16 %v1973, %v1969
    %v2034 = vpack.c.b16 %v1974, %v1970
    %v2035 = vpack.c.b16 %v1979, %v1975
    %v2036 = vpack.c.b16 %v1980, %v1976
    %v2037 = vpack.c.b16 %v1981, %v1977
    %v2038 = vpack.c.b16 %v1982, %v1978
    %v2039 = vpack.c.b16 %v1987, %v1983
    %v2040 = vpack.c.b16 %v1988, %v1984
    %v2041 = vpack.c.b16 %v1989, %v1985
    %v2042 = vpack.c.b16 %v1990, %v1986
    %v2043 = vpack.c.b16 %v1995, %v1991
    %v2044 = vpack.c.b16 %v1996, %v1992
    %v2045 = vpack.c.b16 %v1997, %v1993
    %v2046 = vpack.c.b16 %v1998, %v1994
    %v2047 = vpack.c.b16 %v2003, %v1999
    %v2048 = vpack.c.b16 %v2004, %v2000
    %v2049 = vpack.c.b16 %v2005, %v2001
    %v2050 = vpack.c.b16 %v2006, %v2002
    %v2051 = vpack.c.b16 %v2011, %v2007
    %v2052 = vpack.c.b16 %v2012, %v2008
    %v2053 = vpack.c.b16 %v2013, %v2009
    %v2054 = vpack.c.b16 %v2014, %v2010
    %v2055 = vpack.c.b16 %v2019, %v2015
    %v2056 = vpack.c.b16 %v2020, %v2016
    %v2057 = vpack.c.b16 %v2021, %v2017
    %v2058 = vpack.c.b16 %v2022, %v2018
    %v2059 = vpack.c.b16 %v2027, %v2023
    %v2060 = vpack.c.b16 %v2028, %v2024
    %v2061 = vpack.c.b16 %v2029, %v2025
    %v2062 = vpack.c.b16 %v2030, %v2026
    %2095 = vmatprep.subr.bf16.mxu0 %v2060
    %2096 = vmatpush1.bf16.msra.mxu0 %v2059
    %2097 = vmatprep.subr.bf16.mxu0 %v2056
    %2098 = vmatpush1.bf16.msra.mxu0 %v2055
    %2099 = vmatprep.subr.bf16.mxu0 %v2052
    %2100 = vmatpush1.bf16.msra.mxu0 %v2051
    %2101 = vmatprep.subr.bf16.mxu0 %v2048
    %2102 = vmatpush1.bf16.msra.mxu0 %v2047
    %2103 = vmatprep.subr.bf16.mxu0 %v2044
    %2104 = vmatpush1.bf16.msra.mxu0 %v2043
    %2105 = vmatprep.subr.bf16.mxu0 %v2040
    %2106 = vmatpush1.bf16.msra.mxu0 %v2039
    %2107 = vmatprep.subr.bf16.mxu0 %v2036
    %2108 = vmatpush1.bf16.msra.mxu0 %v2035
    %2109 = vmatprep.subr.bf16.mxu0 %v2032
    %2110 = vmatpush1.bf16.msra.mxu0 %v2031
    %2111 = vmatprep.subr.bf16.mxu0 0
    %2112 = vmatpush2.bf16.msra.mxu0 0
    %2113 = vmatprep.subr.bf16.mxu0 0
    %2114 = vmatpush2.bf16.msra.mxu0 0
    %2115 = vmatprep.subr.bf16.mxu0 0
    %2116 = vmatpush2.bf16.msra.mxu0 0
    %2117 = vmatprep.subr.bf16.mxu0 0
    %2118 = vmatpush2.bf16.msra.mxu0 0
    %2119 = vmatprep.subr.bf16.mxu0 0
    %2120 = vmatpush2.bf16.msra.mxu0 0
    %2121 = vmatprep.subr.bf16.mxu0 0
    %2122 = vmatpush2.bf16.msra.mxu0 0
    %2123 = vmatprep.subr.bf16.mxu0 0
    %2124 = vmatpush2.bf16.msra.mxu0 0
    %2125 = vmatprep.subr.bf16.mxu0 0
    %2126 = vmatpush2.bf16.msra.mxu0 0
    %2127 = vmatprep.mubr.bf16.mxu0 0
    %2128 = vmatmul.mubr.bf16.gmra.mxu0 %v1136
    %v2129 = vpop.f32.mrf.mxu0
    %v2130 = vadd.f32 %v1918, %v2129
    %v2131 = vpop.f32.mrf.mxu0
    %v2132 = vadd.f32 %v1922, %v2131
    %v2133 = vpop.f32.mrf.mxu0
    %v2134 = vadd.f32 %v1918, %v2133
    %v2135 = vpop.f32.mrf.mxu0
    %v2136 = vadd.f32 %v1922, %v2135
    %2137 = vdwg.mxu0
    %2138 = vmatprep.subr.bf16.mxu0 %v2062
    %2139 = vmatpush1.bf16.msra.mxu0 %v2061
    %2140 = vmatprep.subr.bf16.mxu0 %v2058
    %2141 = vmatpush1.bf16.msra.mxu0 %v2057
    %2142 = vmatprep.subr.bf16.mxu0 %v2054
    %2143 = vmatpush1.bf16.msra.mxu0 %v2053
    %2144 = vmatprep.subr.bf16.mxu0 %v2050
    %2145 = vmatpush1.bf16.msra.mxu0 %v2049
    %2146 = vmatprep.subr.bf16.mxu0 %v2046
    %2147 = vmatpush1.bf16.msra.mxu0 %v2045
    %2148 = vmatprep.subr.bf16.mxu0 %v2042
    %2149 = vmatpush1.bf16.msra.mxu0 %v2041
    %2150 = vmatprep.subr.bf16.mxu0 %v2038
    %2151 = vmatpush1.bf16.msra.mxu0 %v2037
    %2152 = vmatprep.subr.bf16.mxu0 %v2034
    %2153 = vmatpush1.bf16.msra.mxu0 %v2033
    %2154 = vmatprep.subr.bf16.mxu0 0
    %2155 = vmatpush2.bf16.msra.mxu0 0
    %2156 = vmatprep.subr.bf16.mxu0 0
    %2157 = vmatpush2.bf16.msra.mxu0 0
    %2158 = vmatprep.subr.bf16.mxu0 0
    %2159 = vmatpush2.bf16.msra.mxu0 0
    %2160 = vmatprep.subr.bf16.mxu0 0
    %2161 = vmatpush2.bf16.msra.mxu0 0
    %2162 = vmatprep.subr.bf16.mxu0 0
    %2163 = vmatpush2.bf16.msra.mxu0 0
    %2164 = vmatprep.subr.bf16.mxu0 0
    %2165 = vmatpush2.bf16.msra.mxu0 0
    %2166 = vmatprep.subr.bf16.mxu0 0
    %2167 = vmatpush2.bf16.msra.mxu0 0
    %2168 = vmatprep.subr.bf16.mxu0 0
    %2169 = vmatpush2.bf16.msra.mxu0 0
    %2170 = vmatprep.mubr.bf16.mxu0 0
    %2171 = vmatmul.mubr.bf16.gmra.mxu0 %v1136
    %v2172 = vpop.f32.mrf.mxu0
    %v2173 = vadd.f32 %v1926, %v2172
    %v2174 = vpop.f32.mrf.mxu0
    %v2175 = vadd.f32 %v1930, %v2174
    %v2176 = vpop.f32.mrf.mxu0
    %v2177 = vadd.f32 %v1926, %v2176
    %v2178 = vpop.f32.mrf.mxu0
    %v2179 = vadd.f32 %v1930, %v2178
    %2180 = vdwg.mxu0
    %v2181 = vxor.u32 %v2130, 2147483648
    %v2182 = vxor.u32 %v2132, 2147483648
    %v2183 = vxor.u32 %v2173, 2147483648
    %v2184 = vxor.u32 %v2134, 2147483648
    %v2185 = vxor.u32 %v2136, 2147483648
    %v2186 = vxor.u32 %v2177, 2147483648
    %v2187 = vmul.f32 %v2181, 1.442695
    %v2188 = vpow.pop %v2187
    %v2189 = vmul.f32 %v2182, 1.442695
    %v2190 = vpow.pop %v2189
    %v2191 = vmul.f32 %v2183, 1.442695
    %v2192 = vpow.pop %v2191
    %v2193 = vmul.f32 %v2184, 1.442695
    %v2194 = vpow.pop %v2193
    %v2195 = vmul.f32 %v2185, 1.442695
    %v2196 = vpow.pop %v2195
    %v2197 = vmul.f32 %v2186, 1.442695
    %v2198 = vpow.pop %v2197
    %v2199 = vadd.f32 %v2188, 1.0
    %v2200 = vadd.f32 %v2190, 1.0
    %v2201 = vadd.f32 %v2192, 1.0
    %v2202 = vadd.f32 %v2194, 1.0
    %v2203 = vadd.f32 %v2196, 1.0
    %v2204 = vadd.f32 %v2198, 1.0
    %v2205 = vrcp.pop %v2199
    %v2206 = vmul.f32 1.0, %v2205
    %v2207 = vrcp.pop %v2200
    %v2208 = vmul.f32 1.0, %v2207
    %v2209 = vrcp.pop %v2201
    %v2210 = vmul.f32 1.0, %v2209
    %v2211 = vrcp.pop %v2202
    %v2212 = vmul.f32 1.0, %v2211
    %v2213 = vrcp.pop %v2203
    %v2214 = vmul.f32 1.0, %v2213
    %v2215 = vrcp.pop %v2204
    %v2216 = vmul.f32 1.0, %v2215
    %v2217 = vtanh.pop %v2175
    %v2218 = vtanh.pop %v2179
    %v2219 = vmul.f32 %v2208, 0.0
    %v2220 = vmul.f32 %v2214, 0.0
    %v2221 = vmul.f32 %v2206, %v2217
    %v2222 = vmul.f32 %v2212, %v2218
    %v2223 = vadd.f32 %v2219, %v2221
    %v2224 = vadd.f32 %v2220, %v2222
    %v2225 = vtanh.pop %v2223
    %v2226 = vtanh.pop %v2224
    %v2227 = vmul.f32 %v2210, %v2225
    %v2228 = vmul.f32 %v2216, %v2226
    %s2229 = scalar_lea.vmem [#allocation2], 2
    %v2230 = vld [vmem:[%s2229] ss:$8 sm:$0xf]
    %s2231 = scalar_lea.vmem [#allocation2], 34
    %v2232 = vld [vmem:[%s2231] ss:$8 sm:$0xf]
    %s2233 = scalar_lea.vmem [#allocation2], 66
    %v2234 = vld [vmem:[%s2233] ss:$8 sm:$0xf]
    %s2235 = scalar_lea.vmem [#allocation2], 98
    %v2236 = vld [vmem:[%s2235] ss:$8 sm:$0xf]
    %s2237 = scalar_lea.vmem [#allocation2], 130
    %v2238 = vld [vmem:[%s2237] ss:$8 sm:$0xf]
    %s2239 = scalar_lea.vmem [#allocation2], 162
    %v2240 = vld [vmem:[%s2239] ss:$8 sm:$0xf]
    %s2241 = scalar_lea.vmem [#allocation2], 194
    %v2242 = vld [vmem:[%s2241] ss:$8 sm:$0xf]
    %s2243 = scalar_lea.vmem [#allocation2], 226
    %v2244 = vld [vmem:[%s2243] ss:$8 sm:$0xf]
    %s2245 = scalar_lea.vmem [#allocation2], 258
    %v2246 = vld [vmem:[%s2245] ss:$8 sm:$0xf]
    %s2247 = scalar_lea.vmem [#allocation2], 290
    %v2248 = vld [vmem:[%s2247] ss:$8 sm:$0xf]
    %s2249 = scalar_lea.vmem [#allocation2], 322
    %v2250 = vld [vmem:[%s2249] ss:$8 sm:$0xf]
    %s2251 = scalar_lea.vmem [#allocation2], 354
    %v2252 = vld [vmem:[%s2251] ss:$8 sm:$0xf]
    %s2253 = scalar_lea.vmem [#allocation2], 386
    %v2254 = vld [vmem:[%s2253] ss:$8 sm:$0xf]
    %s2255 = scalar_lea.vmem [#allocation2], 418
    %v2256 = vld [vmem:[%s2255] ss:$8 sm:$0xf]
    %s2257 = scalar_lea.vmem [#allocation2], 450
    %v2258 = vld [vmem:[%s2257] ss:$8 sm:$0xf]
    %s2259 = scalar_lea.vmem [#allocation2], 482
    %v2260 = vld [vmem:[%s2259] ss:$8 sm:$0xf]
    %v2261 = vpack.c.bf16 %v1864, %v1864
    %v2262 = vpack.c.bf16 %v1865, %v1865
    %v2263 = vpack.c.bf16 %v1866, %v1866
    %v2264 = vpack.c.bf16 %v1867, %v1867
    %v2265 = vpack.c.bf16 %v1868, %v1868
    %v2266 = vpack.c.bf16 %v1869, %v1869
    %v2267 = vpack.c.bf16 %v1870, %v1870
    %v2268 = vpack.c.bf16 %v1871, %v1871
    %v2269 = vpack.c.bf16 %v1872, %v1872
    %v2270 = vpack.c.bf16 %v1873, %v1873
    %v2271 = vpack.c.bf16 %v1874, %v1874
    %v2272 = vpack.c.bf16 %v1875, %v1875
    %v2273 = vpack.c.bf16 %v1876, %v1876
    %v2274 = vpack.c.bf16 %v1877, %v1877
    %v2275 = vpack.c.bf16 %v1878, %v1878
    %v2276 = vpack.c.bf16 %v1879, %v1879
    %v2293 = vunpack.c.l.b16 %v2261
    %v2294 = vunpack.c.l.b16 %v2262
    %v2295 = vunpack.c.l.b16 %v2263
    %v2296 = vunpack.c.l.b16 %v2264
    %v2297 = vunpack.c.l.b16 %v2265
    %v2298 = vunpack.c.l.b16 %v2266
    %v2299 = vunpack.c.l.b16 %v2267
    %v2300 = vunpack.c.l.b16 %v2268
    %v2301 = vunpack.c.l.b16 %v2269
    %v2302 = vunpack.c.l.b16 %v2270
    %v2303 = vunpack.c.l.b16 %v2271
    %v2304 = vunpack.c.l.b16 %v2272
    %v2305 = vunpack.c.l.b16 %v2273
    %v2306 = vunpack.c.l.b16 %v2274
    %v2307 = vunpack.c.l.b16 %v2275
    %v2308 = vunpack.c.l.b16 %v2276
    %v2309 = vrot.slane %v2294, 7
    %v2310 = vsel %vm1102, %v2309, %v2293
    %v2311 = vrot.slane %v2295, 6
    %v2312 = vsel %vm1105, %v2311, %v2310
    %v2313 = vrot.slane %v2296, 5
    %v2314 = vsel %vm1108, %v2313, %v2312
    %v2315 = vrot.slane %v2297, 4
    %v2316 = vsel %vm1111, %v2315, %v2314
    %v2317 = vrot.slane %v2298, 3
    %v2318 = vsel %vm1114, %v2317, %v2316
    %v2319 = vrot.slane %v2299, 2
    %v2320 = vsel %vm1117, %v2319, %v2318
    %v2321 = vrot.slane %v2300, 1
    %v2322 = vsel %vm1120, %v2321, %v2320
    %v2323 = vrot.slane %v2302, 7
    %v2324 = vsel %vm1102, %v2323, %v2301
    %v2325 = vrot.slane %v2303, 6
    %v2326 = vsel %vm1105, %v2325, %v2324
    %v2327 = vrot.slane %v2304, 5
    %v2328 = vsel %vm1108, %v2327, %v2326
    %v2329 = vrot.slane %v2305, 4
    %v2330 = vsel %vm1111, %v2329, %v2328
    %v2331 = vrot.slane %v2306, 3
    %v2332 = vsel %vm1114, %v2331, %v2330
    %v2333 = vrot.slane %v2307, 2
    %v2334 = vsel %vm1117, %v2333, %v2332
    %v2335 = vrot.slane %v2308, 1
    %v2336 = vsel %vm1120, %v2335, %v2334
    %v2337 = vpack.c.b16 %v2336, %v2322
    %2339 = vmatprep.subr.bf16.mxu0 %v1263
    %2340 = vmatpush1.bf16.msra.mxu0 %v1262
    %2341 = vmatprep.subr.bf16.mxu0 %v1259
    %2342 = vmatpush1.bf16.msra.mxu0 %v1258
    %2343 = vmatprep.subr.bf16.mxu0 %v1255
    %2344 = vmatpush1.bf16.msra.mxu0 %v1254
    %2345 = vmatprep.subr.bf16.mxu0 %v1251
    %2346 = vmatpush1.bf16.msra.mxu0 %v1250
    %2347 = vmatprep.subr.bf16.mxu0 %v1247
    %2348 = vmatpush1.bf16.msra.mxu0 %v1246
    %2349 = vmatprep.subr.bf16.mxu0 %v1243
    %2350 = vmatpush1.bf16.msra.mxu0 %v1242
    %2351 = vmatprep.subr.bf16.mxu0 %v1239
    %2352 = vmatpush1.bf16.msra.mxu0 %v1238
    %2353 = vmatprep.subr.bf16.mxu0 %v1235
    %2354 = vmatpush1.bf16.msra.mxu0 %v1234
    %2355 = vmatprep.subr.bf16.mxu0 0
    %2356 = vmatpush2.bf16.msra.mxu0 0
    %2357 = vmatprep.subr.bf16.mxu0 0
    %2358 = vmatpush2.bf16.msra.mxu0 0
    %2359 = vmatprep.subr.bf16.mxu0 0
    %2360 = vmatpush2.bf16.msra.mxu0 0
    %2361 = vmatprep.subr.bf16.mxu0 0
    %2362 = vmatpush2.bf16.msra.mxu0 0
    %2363 = vmatprep.subr.bf16.mxu0 0
    %2364 = vmatpush2.bf16.msra.mxu0 0
    %2365 = vmatprep.subr.bf16.mxu0 0
    %2366 = vmatpush2.bf16.msra.mxu0 0
    %2367 = vmatprep.subr.bf16.mxu0 0
    %2368 = vmatpush2.bf16.msra.mxu0 0
    %2369 = vmatprep.subr.bf16.mxu0 0
    %2370 = vmatpush2.bf16.msra.mxu0 0
    %2371 = vmatprep.mubr.bf16.mxu0 0
    %2372 = vmatmul.mubr.bf16.gmra.mxu0 %v2337
    %v2373 = vpop.f32.mrf.mxu0
    %v2374 = vadd.f32 0.0, %v2373
    %v2375 = vpop.f32.mrf.mxu0
    %v2376 = vadd.f32 0.0, %v2375
    %v2377 = vpop.f32.mrf.mxu0
    %v2378 = vadd.f32 0.0, %v2377
    %v2379 = vpop.f32.mrf.mxu0
    %v2380 = vadd.f32 0.0, %v2379
    %2381 = vdwg.mxu0
    %2382 = vmatprep.subr.bf16.mxu0 %v1265
    %2383 = vmatpush1.bf16.msra.mxu0 %v1264
    %2384 = vmatprep.subr.bf16.mxu0 %v1261
    %2385 = vmatpush1.bf16.msra.mxu0 %v1260
    %2386 = vmatprep.subr.bf16.mxu0 %v1257
    %2387 = vmatpush1.bf16.msra.mxu0 %v1256
    %2388 = vmatprep.subr.bf16.mxu0 %v1253
    %2389 = vmatpush1.bf16.msra.mxu0 %v1252
    %2390 = vmatprep.subr.bf16.mxu0 %v1249
    %2391 = vmatpush1.bf16.msra.mxu0 %v1248
    %2392 = vmatprep.subr.bf16.mxu0 %v1245
    %2393 = vmatpush1.bf16.msra.mxu0 %v1244
    %2394 = vmatprep.subr.bf16.mxu0 %v1241
    %2395 = vmatpush1.bf16.msra.mxu0 %v1240
    %2396 = vmatprep.subr.bf16.mxu0 %v1237
    %2397 = vmatpush1.bf16.msra.mxu0 %v1236
    %2398 = vmatprep.subr.bf16.mxu0 0
    %2399 = vmatpush2.bf16.msra.mxu0 0
    %2400 = vmatprep.subr.bf16.mxu0 0
    %2401 = vmatpush2.bf16.msra.mxu0 0
    %2402 = vmatprep.subr.bf16.mxu0 0
    %2403 = vmatpush2.bf16.msra.mxu0 0
    %2404 = vmatprep.subr.bf16.mxu0 0
    %2405 = vmatpush2.bf16.msra.mxu0 0
    %2406 = vmatprep.subr.bf16.mxu0 0
    %2407 = vmatpush2.bf16.msra.mxu0 0
    %2408 = vmatprep.subr.bf16.mxu0 0
    %2409 = vmatpush2.bf16.msra.mxu0 0
    %2410 = vmatprep.subr.bf16.mxu0 0
    %2411 = vmatpush2.bf16.msra.mxu0 0
    %2412 = vmatprep.subr.bf16.mxu0 0
    %2413 = vmatpush2.bf16.msra.mxu0 0
    %2414 = vmatprep.mubr.bf16.mxu0 0
    %2415 = vmatmul.mubr.bf16.gmra.mxu0 %v2337
    %v2416 = vpop.f32.mrf.mxu0
    %v2417 = vadd.f32 0.0, %v2416
    %v2418 = vpop.f32.mrf.mxu0
    %v2419 = vadd.f32 0.0, %v2418
    %v2420 = vpop.f32.mrf.mxu0
    %v2421 = vadd.f32 0.0, %v2420
    %v2422 = vpop.f32.mrf.mxu0
    %v2423 = vadd.f32 0.0, %v2422
    %2424 = vdwg.mxu0
    %v2433 = vcombine.low %v2374, %v2376
    %v2434 = vcombine.high %v2374, %v2376
    %v2435 = vcombine.low %v2417, %v2419
    %v2436 = vcombine.high %v2417, %v2419
    %v2438 = vunpack.c.l.s4 1966171168
    %v2439 = vunpack.c.0.s8 %v2438
    %v2440 = vlaneseq
    %v2441 = vshrl.u32 %v2440, 7
    %v2442 = vsub.s32 %v2439, %v2441
    %v2443 = vrot.slane %v2433, %v2442
    %v2445 = vunpack.c.l.s4 1966171168
    %v2446 = vunpack.c.0.s8 %v2445
    %v2447 = vlaneseq
    %v2448 = vshrl.u32 %v2447, 7
    %v2449 = vsub.s32 %v2446, %v2448
    %v2450 = vrot.slane %v2434, %v2449
    %v2452 = vunpack.c.l.s4 1966171168
    %v2453 = vunpack.c.0.s8 %v2452
    %v2454 = vlaneseq
    %v2455 = vshrl.u32 %v2454, 7
    %v2456 = vsub.s32 %v2453, %v2455
    %v2457 = vrot.slane %v2435, %v2456
    %v2459 = vunpack.c.l.s4 1966171168
    %v2460 = vunpack.c.0.s8 %v2459
    %v2461 = vlaneseq
    %v2462 = vshrl.u32 %v2461, 7
    %v2463 = vsub.s32 %v2460, %v2462
    %v2464 = vrot.slane %v2436, %v2463
    %v2465 = vcombine.low %v2443, %v2457
    %v2466 = vcombine.high %v2443, %v2457
    %v2467 = vcombine.low %v2450, %v2464
    %v2468 = vcombine.high %v2450, %v2464
    %v2470 = vunpack.c.l.s4 1966171168
    %v2471 = vunpack.c.0.s8 %v2470
    %v2472 = vlaneseq
    %v2473 = vshrl.u32 %v2472, 7
    %v2474 = vsub.s32 %v2471, %v2473
    %v2475 = vrot.slane %v2465, %v2474
    %v2477 = vunpack.c.l.s4 1966171168
    %v2478 = vunpack.c.0.s8 %v2477
    %v2479 = vlaneseq
    %v2480 = vshrl.u32 %v2479, 7
    %v2481 = vsub.s32 %v2478, %v2480
    %v2482 = vrot.slane %v2467, %v2481
    %v2484 = vunpack.c.l.s4 1966171168
    %v2485 = vunpack.c.0.s8 %v2484
    %v2486 = vlaneseq
    %v2487 = vshrl.u32 %v2486, 7
    %v2488 = vsub.s32 %v2485, %v2487
    %v2489 = vrot.slane %v2466, %v2488
    %v2491 = vunpack.c.l.s4 1966171168
    %v2492 = vunpack.c.0.s8 %v2491
    %v2493 = vlaneseq
    %v2494 = vshrl.u32 %v2493, 7
    %v2495 = vsub.s32 %v2492, %v2494
    %v2496 = vrot.slane %v2468, %v2495
    %v2497 = vcombine.high %v2475, %v2475
    %v2498 = vcombine.high %v2482, %v2482
    %v2499 = vcombine.high %v2489, %v2489
    %v2500 = vcombine.high %v2496, %v2496
    %v2501 = vcombine.low %v2378, %v2380
    %v2502 = vcombine.high %v2378, %v2380
    %v2503 = vcombine.low %v2421, %v2423
    %v2504 = vcombine.high %v2421, %v2423
    %v2506 = vunpack.c.l.s4 1966171168
    %v2507 = vunpack.c.0.s8 %v2506
    %v2508 = vlaneseq
    %v2509 = vshrl.u32 %v2508, 7
    %v2510 = vsub.s32 %v2507, %v2509
    %v2511 = vrot.slane %v2501, %v2510
    %v2513 = vunpack.c.l.s4 1966171168
    %v2514 = vunpack.c.0.s8 %v2513
    %v2515 = vlaneseq
    %v2516 = vshrl.u32 %v2515, 7
    %v2517 = vsub.s32 %v2514, %v2516
    %v2518 = vrot.slane %v2502, %v2517
    %v2520 = vunpack.c.l.s4 1966171168
    %v2521 = vunpack.c.0.s8 %v2520
    %v2522 = vlaneseq
    %v2523 = vshrl.u32 %v2522, 7
    %v2524 = vsub.s32 %v2521, %v2523
    %v2525 = vrot.slane %v2503, %v2524
    %v2527 = vunpack.c.l.s4 1966171168
    %v2528 = vunpack.c.0.s8 %v2527
    %v2529 = vlaneseq
    %v2530 = vshrl.u32 %v2529, 7
    %v2531 = vsub.s32 %v2528, %v2530
    %v2532 = vrot.slane %v2504, %v2531
    %v2533 = vcombine.low %v2511, %v2525
    %v2534 = vcombine.high %v2511, %v2525
    %v2535 = vcombine.low %v2518, %v2532
    %v2536 = vcombine.high %v2518, %v2532
    %v2538 = vunpack.c.l.s4 1966171168
    %v2539 = vunpack.c.0.s8 %v2538
    %v2540 = vlaneseq
    %v2541 = vshrl.u32 %v2540, 7
    %v2542 = vsub.s32 %v2539, %v2541
    %v2543 = vrot.slane %v2533, %v2542
    %v2545 = vunpack.c.l.s4 1966171168
    %v2546 = vunpack.c.0.s8 %v2545
    %v2547 = vlaneseq
    %v2548 = vshrl.u32 %v2547, 7
    %v2549 = vsub.s32 %v2546, %v2548
    %v2550 = vrot.slane %v2535, %v2549
    %v2552 = vunpack.c.l.s4 1966171168
    %v2553 = vunpack.c.0.s8 %v2552
    %v2554 = vlaneseq
    %v2555 = vshrl.u32 %v2554, 7
    %v2556 = vsub.s32 %v2553, %v2555
    %v2557 = vrot.slane %v2534, %v2556
    %v2559 = vunpack.c.l.s4 1966171168
    %v2560 = vunpack.c.0.s8 %v2559
    %v2561 = vlaneseq
    %v2562 = vshrl.u32 %v2561, 7
    %v2563 = vsub.s32 %v2560, %v2562
    %v2564 = vrot.slane %v2536, %v2563
    %v2565 = vcombine.high %v2543, %v2543
    %v2566 = vcombine.high %v2550, %v2550
    %v2567 = vcombine.high %v2557, %v2557
    %v2568 = vcombine.high %v2564, %v2564
    %v2585 = vadd.f32 %v2230, %v2475
    %v2586 = vadd.f32 %v2232, %v2489
    %v2587 = vadd.f32 %v2234, %v2497
    %v2588 = vadd.f32 %v2236, %v2499
    %v2589 = vadd.f32 %v2238, %v2482
    %v2590 = vadd.f32 %v2240, %v2496
    %v2591 = vadd.f32 %v2242, %v2498
    %v2592 = vadd.f32 %v2244, %v2500
    %v2593 = vadd.f32 %v2246, %v2543
    %v2594 = vadd.f32 %v2248, %v2557
    %v2595 = vadd.f32 %v2250, %v2565
    %v2596 = vadd.f32 %v2252, %v2567
    %v2597 = vadd.f32 %v2254, %v2550
    %v2598 = vadd.f32 %v2256, %v2564
    %v2599 = vadd.f32 %v2258, %v2566
    %v2600 = vadd.f32 %v2260, %v2568
    %v2601 = vxor.u32 %v2585, 2147483648
    %v2602 = vxor.u32 %v2586, 2147483648
    %v2603 = vxor.u32 %v2587, 2147483648
    %v2604 = vxor.u32 %v2588, 2147483648
    %v2605 = vxor.u32 %v2589, 2147483648
    %v2606 = vxor.u32 %v2590, 2147483648
    %v2607 = vxor.u32 %v2591, 2147483648
    %v2608 = vxor.u32 %v2592, 2147483648
    %v2609 = vxor.u32 %v2593, 2147483648
    %v2610 = vxor.u32 %v2594, 2147483648
    %v2611 = vxor.u32 %v2595, 2147483648
    %v2612 = vxor.u32 %v2596, 2147483648
    %v2613 = vxor.u32 %v2597, 2147483648
    %v2614 = vxor.u32 %v2598, 2147483648
    %v2615 = vxor.u32 %v2599, 2147483648
    %v2616 = vxor.u32 %v2600, 2147483648
    %v2617 = vmul.f32 %v2601, 1.442695
    %v2618 = vpow.pop %v2617
    %v2619 = vmul.f32 %v2602, 1.442695
    %v2620 = vpow.pop %v2619
    %v2621 = vmul.f32 %v2603, 1.442695
    %v2622 = vpow.pop %v2621
    %v2623 = vmul.f32 %v2604, 1.442695
    %v2624 = vpow.pop %v2623
    %v2625 = vmul.f32 %v2605, 1.442695
    %v2626 = vpow.pop %v2625
    %v2627 = vmul.f32 %v2606, 1.442695
    %v2628 = vpow.pop %v2627
    %v2629 = vmul.f32 %v2607, 1.442695
    %v2630 = vpow.pop %v2629
    %v2631 = vmul.f32 %v2608, 1.442695
    %v2632 = vpow.pop %v2631
    %v2633 = vmul.f32 %v2609, 1.442695
    %v2634 = vpow.pop %v2633
    %v2635 = vmul.f32 %v2610, 1.442695
    %v2636 = vpow.pop %v2635
    %v2637 = vmul.f32 %v2611, 1.442695
    %v2638 = vpow.pop %v2637
    %v2639 = vmul.f32 %v2612, 1.442695
    %v2640 = vpow.pop %v2639
    %v2641 = vmul.f32 %v2613, 1.442695
    %v2642 = vpow.pop %v2641
    %v2643 = vmul.f32 %v2614, 1.442695
    %v2644 = vpow.pop %v2643
    %v2645 = vmul.f32 %v2615, 1.442695
    %v2646 = vpow.pop %v2645
    %v2647 = vmul.f32 %v2616, 1.442695
    %v2648 = vpow.pop %v2647
    %v2649 = vadd.f32 %v2618, 1.0
    %v2650 = vadd.f32 %v2620, 1.0
    %v2651 = vadd.f32 %v2622, 1.0
    %v2652 = vadd.f32 %v2624, 1.0
    %v2653 = vadd.f32 %v2626, 1.0
    %v2654 = vadd.f32 %v2628, 1.0
    %v2655 = vadd.f32 %v2630, 1.0
    %v2656 = vadd.f32 %v2632, 1.0
    %v2657 = vadd.f32 %v2634, 1.0
    %v2658 = vadd.f32 %v2636, 1.0
    %v2659 = vadd.f32 %v2638, 1.0
    %v2660 = vadd.f32 %v2640, 1.0
    %v2661 = vadd.f32 %v2642, 1.0
    %v2662 = vadd.f32 %v2644, 1.0
    %v2663 = vadd.f32 %v2646, 1.0
    %v2664 = vadd.f32 %v2648, 1.0
    %v2665 = vrcp.pop %v2649
    %v2666 = vmul.f32 1.0, %v2665
    %v2667 = vrcp.pop %v2650
    %v2668 = vmul.f32 1.0, %v2667
    %v2669 = vrcp.pop %v2651
    %v2670 = vmul.f32 1.0, %v2669
    %v2671 = vrcp.pop %v2652
    %v2672 = vmul.f32 1.0, %v2671
    %v2673 = vrcp.pop %v2653
    %v2674 = vmul.f32 1.0, %v2673
    %v2675 = vrcp.pop %v2654
    %v2676 = vmul.f32 1.0, %v2675
    %v2677 = vrcp.pop %v2655
    %v2678 = vmul.f32 1.0, %v2677
    %v2679 = vrcp.pop %v2656
    %v2680 = vmul.f32 1.0, %v2679
    %v2681 = vrcp.pop %v2657
    %v2682 = vmul.f32 1.0, %v2681
    %v2683 = vrcp.pop %v2658
    %v2684 = vmul.f32 1.0, %v2683
    %v2685 = vrcp.pop %v2659
    %v2686 = vmul.f32 1.0, %v2685
    %v2687 = vrcp.pop %v2660
    %v2688 = vmul.f32 1.0, %v2687
    %v2689 = vrcp.pop %v2661
    %v2690 = vmul.f32 1.0, %v2689
    %v2691 = vrcp.pop %v2662
    %v2692 = vmul.f32 1.0, %v2691
    %v2693 = vrcp.pop %v2663
    %v2694 = vmul.f32 1.0, %v2693
    %v2695 = vrcp.pop %v2664
    %v2696 = vmul.f32 1.0, %v2695
    %v2713 = vrot.slane %v2585, 3
    %v2714 = vrot.slane %v2586, 3
    %v2715 = vrot.slane %v2587, 3
    %v2716 = vrot.slane %v2588, 3
    %v2717 = vrot.slane %v2589, 3
    %v2718 = vrot.slane %v2590, 3
    %v2719 = vrot.slane %v2591, 3
    %v2720 = vrot.slane %v2592, 3
    %v2721 = vrot.slane %v2593, 3
    %v2722 = vrot.slane %v2594, 3
    %v2723 = vrot.slane %v2595, 3
    %v2724 = vrot.slane %v2596, 3
    %v2725 = vrot.slane %v2597, 3
    %v2726 = vrot.slane %v2598, 3
    %v2727 = vrot.slane %v2599, 3
    %v2728 = vrot.slane %v2600, 3
    %v2745 = vtanh.pop %v2713
    %v2746 = vtanh.pop %v2714
    %v2747 = vtanh.pop %v2715
    %v2748 = vtanh.pop %v2716
    %v2749 = vtanh.pop %v2717
    %v2750 = vtanh.pop %v2718
    %v2751 = vtanh.pop %v2719
    %v2752 = vtanh.pop %v2720
    %v2753 = vtanh.pop %v2721
    %v2754 = vtanh.pop %v2722
    %v2755 = vtanh.pop %v2723
    %v2756 = vtanh.pop %v2724
    %v2757 = vtanh.pop %v2725
    %v2758 = vtanh.pop %v2726
    %v2759 = vtanh.pop %v2727
    %v2760 = vtanh.pop %v2728
    %v2777 = vrot.slane %v2666, 1
    %v2778 = vrot.slane %v2668, 1
    %v2779 = vrot.slane %v2670, 1
    %v2780 = vrot.slane %v2672, 1
    %v2781 = vrot.slane %v2674, 1
    %v2782 = vrot.slane %v2676, 1
    %v2783 = vrot.slane %v2678, 1
    %v2784 = vrot.slane %v2680, 1
    %v2785 = vrot.slane %v2682, 1
    %v2786 = vrot.slane %v2684, 1
    %v2787 = vrot.slane %v2686, 1
    %v2788 = vrot.slane %v2688, 1
    %v2789 = vrot.slane %v2690, 1
    %v2790 = vrot.slane %v2692, 1
    %v2791 = vrot.slane %v2694, 1
    %v2792 = vrot.slane %v2696, 1
    %v2809 = vmul.f32 %v2777, %v1800
    %v2810 = vmul.f32 %v2778, %v1801
    %v2811 = vmul.f32 %v2779, %v1802
    %v2812 = vmul.f32 %v2780, %v1803
    %v2813 = vmul.f32 %v2781, %v1804
    %v2814 = vmul.f32 %v2782, %v1805
    %v2815 = vmul.f32 %v2783, %v1806
    %v2816 = vmul.f32 %v2784, %v1807
    %v2817 = vmul.f32 %v2785, %v1808
    %v2818 = vmul.f32 %v2786, %v1809
    %v2819 = vmul.f32 %v2787, %v1810
    %v2820 = vmul.f32 %v2788, %v1811
    %v2821 = vmul.f32 %v2789, %v1812
    %v2822 = vmul.f32 %v2790, %v1813
    %v2823 = vmul.f32 %v2791, %v1814
    %v2824 = vmul.f32 %v2792, %v1815
    %v2825 = vmul.f32 %v2666, %v2745
    %v2826 = vmul.f32 %v2668, %v2746
    %v2827 = vmul.f32 %v2670, %v2747
    %v2828 = vmul.f32 %v2672, %v2748
    %v2829 = vmul.f32 %v2674, %v2749
    %v2830 = vmul.f32 %v2676, %v2750
    %v2831 = vmul.f32 %v2678, %v2751
    %v2832 = vmul.f32 %v2680, %v2752
    %v2833 = vmul.f32 %v2682, %v2753
    %v2834 = vmul.f32 %v2684, %v2754
    %v2835 = vmul.f32 %v2686, %v2755
    %v2836 = vmul.f32 %v2688, %v2756
    %v2837 = vmul.f32 %v2690, %v2757
    %v2838 = vmul.f32 %v2692, %v2758
    %v2839 = vmul.f32 %v2694, %v2759
    %v2840 = vmul.f32 %v2696, %v2760
    %v2841 = vadd.f32 %v2809, %v2825
    %v2842 = vadd.f32 %v2810, %v2826
    %v2843 = vadd.f32 %v2811, %v2827
    %v2844 = vadd.f32 %v2812, %v2828
    %v2845 = vadd.f32 %v2813, %v2829
    %v2846 = vadd.f32 %v2814, %v2830
    %v2847 = vadd.f32 %v2815, %v2831
    %v2848 = vadd.f32 %v2816, %v2832
    %v2849 = vadd.f32 %v2817, %v2833
    %v2850 = vadd.f32 %v2818, %v2834
    %v2851 = vadd.f32 %v2819, %v2835
    %v2852 = vadd.f32 %v2820, %v2836
    %v2853 = vadd.f32 %v2821, %v2837
    %v2854 = vadd.f32 %v2822, %v2838
    %v2855 = vadd.f32 %v2823, %v2839
    %v2856 = vadd.f32 %v2824, %v2840
    %v2857 = vtanh.pop %v2841
    %v2858 = vtanh.pop %v2842
    %v2859 = vtanh.pop %v2843
    %v2860 = vtanh.pop %v2844
    %v2861 = vtanh.pop %v2845
    %v2862 = vtanh.pop %v2846
    %v2863 = vtanh.pop %v2847
    %v2864 = vtanh.pop %v2848
    %v2865 = vtanh.pop %v2849
    %v2866 = vtanh.pop %v2850
    %v2867 = vtanh.pop %v2851
    %v2868 = vtanh.pop %v2852
    %v2869 = vtanh.pop %v2853
    %v2870 = vtanh.pop %v2854
    %v2871 = vtanh.pop %v2855
    %v2872 = vtanh.pop %v2856
    %v2873 = vrot.slane %v2666, 2
    %v2874 = vrot.slane %v2668, 2
    %v2875 = vrot.slane %v2670, 2
    %v2876 = vrot.slane %v2672, 2
    %v2877 = vrot.slane %v2674, 2
    %v2878 = vrot.slane %v2676, 2
    %v2879 = vrot.slane %v2678, 2
    %v2880 = vrot.slane %v2680, 2
    %v2881 = vrot.slane %v2682, 2
    %v2882 = vrot.slane %v2684, 2
    %v2883 = vrot.slane %v2686, 2
    %v2884 = vrot.slane %v2688, 2
    %v2885 = vrot.slane %v2690, 2
    %v2886 = vrot.slane %v2692, 2
    %v2887 = vrot.slane %v2694, 2
    %v2888 = vrot.slane %v2696, 2
    %v2905 = vmul.f32 %v2873, %v2857
    %v2906 = vmul.f32 %v2874, %v2858
    %v2907 = vmul.f32 %v2875, %v2859
    %v2908 = vmul.f32 %v2876, %v2860
    %v2909 = vmul.f32 %v2877, %v2861
    %v2910 = vmul.f32 %v2878, %v2862
    %v2911 = vmul.f32 %v2879, %v2863
    %v2912 = vmul.f32 %v2880, %v2864
    %v2913 = vmul.f32 %v2881, %v2865
    %v2914 = vmul.f32 %v2882, %v2866
    %v2915 = vmul.f32 %v2883, %v2867
    %v2916 = vmul.f32 %v2884, %v2868
    %v2917 = vmul.f32 %v2885, %v2869
    %v2918 = vmul.f32 %v2886, %v2870
    %v2919 = vmul.f32 %v2887, %v2871
    %v2920 = vmul.f32 %v2888, %v2872
    %2921 = vmatprep.subr.bf16.mxu0 %v2060
    %2922 = vmatpush1.bf16.msra.mxu0 %v2059
    %2923 = vmatprep.subr.bf16.mxu0 %v2056
    %2924 = vmatpush1.bf16.msra.mxu0 %v2055
    %2925 = vmatprep.subr.bf16.mxu0 %v2052
    %2926 = vmatpush1.bf16.msra.mxu0 %v2051
    %2927 = vmatprep.subr.bf16.mxu0 %v2048
    %2928 = vmatpush1.bf16.msra.mxu0 %v2047
    %2929 = vmatprep.subr.bf16.mxu0 %v2044
    %2930 = vmatpush1.bf16.msra.mxu0 %v2043
    %2931 = vmatprep.subr.bf16.mxu0 %v2040
    %2932 = vmatpush1.bf16.msra.mxu0 %v2039
    %2933 = vmatprep.subr.bf16.mxu0 %v2036
    %2934 = vmatpush1.bf16.msra.mxu0 %v2035
    %2935 = vmatprep.subr.bf16.mxu0 %v2032
    %2936 = vmatpush1.bf16.msra.mxu0 %v2031
    %2937 = vmatprep.subr.bf16.mxu0 0
    %2938 = vmatpush2.bf16.msra.mxu0 0
    %2939 = vmatprep.subr.bf16.mxu0 0
    %2940 = vmatpush2.bf16.msra.mxu0 0
    %2941 = vmatprep.subr.bf16.mxu0 0
    %2942 = vmatpush2.bf16.msra.mxu0 0
    %2943 = vmatprep.subr.bf16.mxu0 0
    %2944 = vmatpush2.bf16.msra.mxu0 0
    %2945 = vmatprep.subr.bf16.mxu0 0
    %2946 = vmatpush2.bf16.msra.mxu0 0
    %2947 = vmatprep.subr.bf16.mxu0 0
    %2948 = vmatpush2.bf16.msra.mxu0 0
    %2949 = vmatprep.subr.bf16.mxu0 0
    %2950 = vmatpush2.bf16.msra.mxu0 0
    %2951 = vmatprep.subr.bf16.mxu0 0
    %2952 = vmatpush2.bf16.msra.mxu0 0
    %2953 = vmatprep.mubr.bf16.mxu0 0
    %2954 = vmatmul.mubr.bf16.gmra.mxu0 %v2337
    %v2955 = vpop.f32.mrf.mxu0
    %v2956 = vadd.f32 %v1918, %v2955
    %v2957 = vpop.f32.mrf.mxu0
    %v2958 = vadd.f32 %v1922, %v2957
    %v2959 = vpop.f32.mrf.mxu0
    %v2960 = vadd.f32 %v1918, %v2959
    %v2961 = vpop.f32.mrf.mxu0
    %v2962 = vadd.f32 %v1922, %v2961
    %2963 = vdwg.mxu0
    %2964 = vmatprep.subr.bf16.mxu0 %v2062
    %2965 = vmatpush1.bf16.msra.mxu0 %v2061
    %2966 = vmatprep.subr.bf16.mxu0 %v2058
    %2967 = vmatpush1.bf16.msra.mxu0 %v2057
    %2968 = vmatprep.subr.bf16.mxu0 %v2054
    %2969 = vmatpush1.bf16.msra.mxu0 %v2053
    %2970 = vmatprep.subr.bf16.mxu0 %v2050
    %2971 = vmatpush1.bf16.msra.mxu0 %v2049
    %2972 = vmatprep.subr.bf16.mxu0 %v2046
    %2973 = vmatpush1.bf16.msra.mxu0 %v2045
    %2974 = vmatprep.subr.bf16.mxu0 %v2042
    %2975 = vmatpush1.bf16.msra.mxu0 %v2041
    %2976 = vmatprep.subr.bf16.mxu0 %v2038
    %2977 = vmatpush1.bf16.msra.mxu0 %v2037
    %2978 = vmatprep.subr.bf16.mxu0 %v2034
    %2979 = vmatpush1.bf16.msra.mxu0 %v2033
    %2980 = vmatprep.subr.bf16.mxu0 0
    %2981 = vmatpush2.bf16.msra.mxu0 0
    %2982 = vmatprep.subr.bf16.mxu0 0
    %2983 = vmatpush2.bf16.msra.mxu0 0
    %2984 = vmatprep.subr.bf16.mxu0 0
    %2985 = vmatpush2.bf16.msra.mxu0 0
    %2986 = vmatprep.subr.bf16.mxu0 0
    %2987 = vmatpush2.bf16.msra.mxu0 0
    %2988 = vmatprep.subr.bf16.mxu0 0
    %2989 = vmatpush2.bf16.msra.mxu0 0
    %2990 = vmatprep.subr.bf16.mxu0 0
    %2991 = vmatpush2.bf16.msra.mxu0 0
    %2992 = vmatprep.subr.bf16.mxu0 0
    %2993 = vmatpush2.bf16.msra.mxu0 0
    %2994 = vmatprep.subr.bf16.mxu0 0
    %2995 = vmatpush2.bf16.msra.mxu0 0
    %2996 = vmatprep.mubr.bf16.mxu0 0
    %2997 = vmatmul.mubr.bf16.gmra.mxu0 %v2337
    %v2998 = vpop.f32.mrf.mxu0
    %v2999 = vadd.f32 %v1926, %v2998
    %v3000 = vpop.f32.mrf.mxu0
    %v3001 = vadd.f32 %v1930, %v3000
    %v3002 = vpop.f32.mrf.mxu0
    %v3003 = vadd.f32 %v1926, %v3002
    %v3004 = vpop.f32.mrf.mxu0
    %v3005 = vadd.f32 %v1930, %v3004
    %3006 = vdwg.mxu0
    %v3007 = vpack.c.bf16 %v2228, %v2227
    %s3008 = scalar_lea.vmem [#allocation9], 256
    %v3009 = vld [vmem:[%s3008] sm:$0xff]
    %v3010 = vld [vmem:[%s3008 + $0x8] sm:$0xff]
    %v3011 = vld [vmem:[%s3008 + $0x10] sm:$0xff]
    %v3012 = vld [vmem:[%s3008 + $0x18] sm:$0xff]
    %v3013 = vld [vmem:[%s3008 + $0x20] sm:$0xff]
    %v3014 = vld [vmem:[%s3008 + $0x28] sm:$0xff]
    %v3015 = vld [vmem:[%s3008 + $0x30] sm:$0xff]
    %v3016 = vld [vmem:[%s3008 + $0x38] sm:$0xff]
    %v3017 = vld [vmem:[%s3008 + $0x40] sm:$0xff]
    %v3018 = vld [vmem:[%s3008 + $0x48] sm:$0xff]
    %v3019 = vld [vmem:[%s3008 + $0x50] sm:$0xff]
    %v3020 = vld [vmem:[%s3008 + $0x58] sm:$0xff]
    %v3021 = vld [vmem:[%s3008 + $0x60] sm:$0xff]
    %v3022 = vld [vmem:[%s3008 + $0x68] sm:$0xff]
    %v3023 = vld [vmem:[%s3008 + $0x70] sm:$0xff]
    %v3024 = vld [vmem:[%s3008 + $0x78] sm:$0xff]
    %v3025 = vld [vmem:[%s3008 + $0x80] sm:$0xff]
    %v3026 = vld [vmem:[%s3008 + $0x88] sm:$0xff]
    %v3027 = vld [vmem:[%s3008 + $0x90] sm:$0xff]
    %v3028 = vld [vmem:[%s3008 + $0x98] sm:$0xff]
    %v3029 = vld [vmem:[%s3008 + $0xa0] sm:$0xff]
    %v3030 = vld [vmem:[%s3008 + $0xa8] sm:$0xff]
    %v3031 = vld [vmem:[%s3008 + $0xb0] sm:$0xff]
    %v3032 = vld [vmem:[%s3008 + $0xb8] sm:$0xff]
    %v3033 = vld [vmem:[%s3008 + $0xc0] sm:$0xff]
    %v3034 = vld [vmem:[%s3008 + $0xc8] sm:$0xff]
    %v3035 = vld [vmem:[%s3008 + $0xd0] sm:$0xff]
    %v3036 = vld [vmem:[%s3008 + $0xd8] sm:$0xff]
    %v3037 = vld [vmem:[%s3008 + $0xe0] sm:$0xff]
    %v3038 = vld [vmem:[%s3008 + $0xe8] sm:$0xff]
    %v3039 = vld [vmem:[%s3008 + $0xf0] sm:$0xff]
    %v3040 = vld [vmem:[%s3008 + $0xf8] sm:$0xff]
    %v3073 = vunpack.c.l.b16 %v3009
    %v3074 = vunpack.c.h.b16 %v3009
    %v3075 = vunpack.c.l.b16 %v3010
    %v3076 = vunpack.c.h.b16 %v3010
    %v3077 = vunpack.c.l.b16 %v3011
    %v3078 = vunpack.c.h.b16 %v3011
    %v3079 = vunpack.c.l.b16 %v3012
    %v3080 = vunpack.c.h.b16 %v3012
    %v3081 = vunpack.c.l.b16 %v3013
    %v3082 = vunpack.c.h.b16 %v3013
    %v3083 = vunpack.c.l.b16 %v3014
    %v3084 = vunpack.c.h.b16 %v3014
    %v3085 = vunpack.c.l.b16 %v3015
    %v3086 = vunpack.c.h.b16 %v3015
    %v3087 = vunpack.c.l.b16 %v3016
    %v3088 = vunpack.c.h.b16 %v3016
    %v3089 = vunpack.c.l.b16 %v3017
    %v3090 = vunpack.c.h.b16 %v3017
    %v3091 = vunpack.c.l.b16 %v3018
    %v3092 = vunpack.c.h.b16 %v3018
    %v3093 = vunpack.c.l.b16 %v3019
    %v3094 = vunpack.c.h.b16 %v3019
    %v3095 = vunpack.c.l.b16 %v3020
    %v3096 = vunpack.c.h.b16 %v3020
    %v3097 = vunpack.c.l.b16 %v3021
    %v3098 = vunpack.c.h.b16 %v3021
    %v3099 = vunpack.c.l.b16 %v3022
    %v3100 = vunpack.c.h.b16 %v3022
    %v3101 = vunpack.c.l.b16 %v3023
    %v3102 = vunpack.c.h.b16 %v3023
    %v3103 = vunpack.c.l.b16 %v3024
    %v3104 = vunpack.c.h.b16 %v3024
    %v3105 = vunpack.c.l.b16 %v3025
    %v3106 = vunpack.c.h.b16 %v3025
    %v3107 = vunpack.c.l.b16 %v3026
    %v3108 = vunpack.c.h.b16 %v3026
    %v3109 = vunpack.c.l.b16 %v3027
    %v3110 = vunpack.c.h.b16 %v3027
    %v3111 = vunpack.c.l.b16 %v3028
    %v3112 = vunpack.c.h.b16 %v3028
    %v3113 = vunpack.c.l.b16 %v3029
    %v3114 = vunpack.c.h.b16 %v3029
    %v3115 = vunpack.c.l.b16 %v3030
    %v3116 = vunpack.c.h.b16 %v3030
    %v3117 = vunpack.c.l.b16 %v3031
    %v3118 = vunpack.c.h.b16 %v3031
    %v3119 = vunpack.c.l.b16 %v3032
    %v3120 = vunpack.c.h.b16 %v3032
    %v3121 = vunpack.c.l.b16 %v3033
    %v3122 = vunpack.c.h.b16 %v3033
    %v3123 = vunpack.c.l.b16 %v3034
    %v3124 = vunpack.c.h.b16 %v3034
    %v3125 = vunpack.c.l.b16 %v3035
    %v3126 = vunpack.c.h.b16 %v3035
    %v3127 = vunpack.c.l.b16 %v3036
    %v3128 = vunpack.c.h.b16 %v3036
    %v3129 = vunpack.c.l.b16 %v3037
    %v3130 = vunpack.c.h.b16 %v3037
    %v3131 = vunpack.c.l.b16 %v3038
    %v3132 = vunpack.c.h.b16 %v3038
    %v3133 = vunpack.c.l.b16 %v3039
    %v3134 = vunpack.c.h.b16 %v3039
    %v3135 = vunpack.c.l.b16 %v3040
    %v3136 = vunpack.c.h.b16 %v3040
    %v3137 = vpack.c.b16 %v3077, %v3073
    %v3138 = vpack.c.b16 %v3078, %v3074
    %v3139 = vpack.c.b16 %v3079, %v3075
    %v3140 = vpack.c.b16 %v3080, %v3076
    %v3141 = vpack.c.b16 %v3085, %v3081
    %v3142 = vpack.c.b16 %v3086, %v3082
    %v3143 = vpack.c.b16 %v3087, %v3083
    %v3144 = vpack.c.b16 %v3088, %v3084
    %v3145 = vpack.c.b16 %v3093, %v3089
    %v3146 = vpack.c.b16 %v3094, %v3090
    %v3147 = vpack.c.b16 %v3095, %v3091
    %v3148 = vpack.c.b16 %v3096, %v3092
    %v3149 = vpack.c.b16 %v3101, %v3097
    %v3150 = vpack.c.b16 %v3102, %v3098
    %v3151 = vpack.c.b16 %v3103, %v3099
    %v3152 = vpack.c.b16 %v3104, %v3100
    %v3153 = vpack.c.b16 %v3109, %v3105
    %v3154 = vpack.c.b16 %v3110, %v3106
    %v3155 = vpack.c.b16 %v3111, %v3107
    %v3156 = vpack.c.b16 %v3112, %v3108
    %v3157 = vpack.c.b16 %v3117, %v3113
    %v3158 = vpack.c.b16 %v3118, %v3114
    %v3159 = vpack.c.b16 %v3119, %v3115
    %v3160 = vpack.c.b16 %v3120, %v3116
    %v3161 = vpack.c.b16 %v3125, %v3121
    %v3162 = vpack.c.b16 %v3126, %v3122
    %v3163 = vpack.c.b16 %v3127, %v3123
    %v3164 = vpack.c.b16 %v3128, %v3124
    %v3165 = vpack.c.b16 %v3133, %v3129
    %v3166 = vpack.c.b16 %v3134, %v3130
    %v3167 = vpack.c.b16 %v3135, %v3131
    %v3168 = vpack.c.b16 %v3136, %v3132
    %3201 = vmatprep.subr.bf16.mxu0 %v3166
    %3202 = vmatpush1.bf16.msra.mxu0 %v3165
    %3203 = vmatprep.subr.bf16.mxu0 %v3162
    %3204 = vmatpush1.bf16.msra.mxu0 %v3161
    %3205 = vmatprep.subr.bf16.mxu0 %v3158
    %3206 = vmatpush1.bf16.msra.mxu0 %v3157
    %3207 = vmatprep.subr.bf16.mxu0 %v3154
    %3208 = vmatpush1.bf16.msra.mxu0 %v3153
    %3209 = vmatprep.subr.bf16.mxu0 %v3150
    %3210 = vmatpush1.bf16.msra.mxu0 %v3149
    %3211 = vmatprep.subr.bf16.mxu0 %v3146
    %3212 = vmatpush1.bf16.msra.mxu0 %v3145
    %3213 = vmatprep.subr.bf16.mxu0 %v3142
    %3214 = vmatpush1.bf16.msra.mxu0 %v3141
    %3215 = vmatprep.subr.bf16.mxu0 %v3138
    %3216 = vmatpush1.bf16.msra.mxu0 %v3137
    %3217 = vmatprep.subr.bf16.mxu0 0
    %3218 = vmatpush2.bf16.msra.mxu0 0
    %3219 = vmatprep.subr.bf16.mxu0 0
    %3220 = vmatpush2.bf16.msra.mxu0 0
    %3221 = vmatprep.subr.bf16.mxu0 0
    %3222 = vmatpush2.bf16.msra.mxu0 0
    %3223 = vmatprep.subr.bf16.mxu0 0
    %3224 = vmatpush2.bf16.msra.mxu0 0
    %3225 = vmatprep.subr.bf16.mxu0 0
    %3226 = vmatpush2.bf16.msra.mxu0 0
    %3227 = vmatprep.subr.bf16.mxu0 0
    %3228 = vmatpush2.bf16.msra.mxu0 0
    %3229 = vmatprep.subr.bf16.mxu0 0
    %3230 = vmatpush2.bf16.msra.mxu0 0
    %3231 = vmatprep.subr.bf16.mxu0 0
    %3232 = vmatpush2.bf16.msra.mxu0 0
    %3233 = vmatprep.mubr.bf16.mxu0 0
    %3234 = vmatmul.mubr.bf16.gmra.mxu0 %v3007
    %v3235 = vpop.f32.mrf.mxu0
    %v3236 = vadd.f32 0.0, %v3235
    %v3237 = vpop.f32.mrf.mxu0
    %v3238 = vadd.f32 0.0, %v3237
    %v3239 = vpop.f32.mrf.mxu0
    %v3240 = vadd.f32 0.0, %v3239
    %v3241 = vpop.f32.mrf.mxu0
    %v3242 = vadd.f32 0.0, %v3241
    %3243 = vdwg.mxu0
    %3244 = vmatprep.subr.bf16.mxu0 %v3168
    %3245 = vmatpush1.bf16.msra.mxu0 %v3167
    %3246 = vmatprep.subr.bf16.mxu0 %v3164
    %3247 = vmatpush1.bf16.msra.mxu0 %v3163
    %3248 = vmatprep.subr.bf16.mxu0 %v3160
    %3249 = vmatpush1.bf16.msra.mxu0 %v3159
    %3250 = vmatprep.subr.bf16.mxu0 %v3156
    %3251 = vmatpush1.bf16.msra.mxu0 %v3155
    %3252 = vmatprep.subr.bf16.mxu0 %v3152
    %3253 = vmatpush1.bf16.msra.mxu0 %v3151
    %3254 = vmatprep.subr.bf16.mxu0 %v3148
    %3255 = vmatpush1.bf16.msra.mxu0 %v3147
    %3256 = vmatprep.subr.bf16.mxu0 %v3144
    %3257 = vmatpush1.bf16.msra.mxu0 %v3143
    %3258 = vmatprep.subr.bf16.mxu0 %v3140
    %3259 = vmatpush1.bf16.msra.mxu0 %v3139
    %3260 = vmatprep.subr.bf16.mxu0 0
    %3261 = vmatpush2.bf16.msra.mxu0 0
    %3262 = vmatprep.subr.bf16.mxu0 0
    %3263 = vmatpush2.bf16.msra.mxu0 0
    %3264 = vmatprep.subr.bf16.mxu0 0
    %3265 = vmatpush2.bf16.msra.mxu0 0
    %3266 = vmatprep.subr.bf16.mxu0 0
    %3267 = vmatpush2.bf16.msra.mxu0 0
    %3268 = vmatprep.subr.bf16.mxu0 0
    %3269 = vmatpush2.bf16.msra.mxu0 0
    %3270 = vmatprep.subr.bf16.mxu0 0
    %3271 = vmatpush2.bf16.msra.mxu0 0
    %3272 = vmatprep.subr.bf16.mxu0 0
    %3273 = vmatpush2.bf16.msra.mxu0 0
    %3274 = vmatprep.subr.bf16.mxu0 0
    %3275 = vmatpush2.bf16.msra.mxu0 0
    %3276 = vmatprep.mubr.bf16.mxu0 0
    %3277 = vmatmul.mubr.bf16.gmra.mxu0 %v3007
    %v3278 = vpop.f32.mrf.mxu0
    %v3279 = vadd.f32 0.0, %v3278
    %v3280 = vpop.f32.mrf.mxu0
    %v3281 = vadd.f32 0.0, %v3280
    %v3282 = vpop.f32.mrf.mxu0
    %v3283 = vadd.f32 0.0, %v3282
    %v3284 = vpop.f32.mrf.mxu0
    %v3285 = vadd.f32 0.0, %v3284
    %3286 = vdwg.mxu0
    %v3287 = vadd.f32 %v2956, %v3236
    %v3288 = vadd.f32 %v2958, %v3238
    %v3289 = vadd.f32 %v2999, %v3279
    %v3290 = vadd.f32 %v3001, %v3281
    %v3291 = vadd.f32 %v2960, %v3240
    %v3292 = vadd.f32 %v2962, %v3242
    %v3293 = vadd.f32 %v3003, %v3283
    %v3294 = vadd.f32 %v3005, %v3285
    %v3295 = vxor.u32 %v3287, 2147483648
    %v3296 = vxor.u32 %v3288, 2147483648
    %v3297 = vxor.u32 %v3289, 2147483648
    %v3298 = vxor.u32 %v3291, 2147483648
    %v3299 = vxor.u32 %v3292, 2147483648
    %v3300 = vxor.u32 %v3293, 2147483648
    %v3301 = vmul.f32 %v3295, 1.442695
    %v3302 = vpow.pop %v3301
    %v3303 = vmul.f32 %v3296, 1.442695
    %v3304 = vpow.pop %v3303
    %v3305 = vmul.f32 %v3297, 1.442695
    %v3306 = vpow.pop %v3305
    %v3307 = vmul.f32 %v3298, 1.442695
    %v3308 = vpow.pop %v3307
    %v3309 = vmul.f32 %v3299, 1.442695
    %v3310 = vpow.pop %v3309
    %v3311 = vmul.f32 %v3300, 1.442695
    %v3312 = vpow.pop %v3311
    %v3313 = vadd.f32 %v3302, 1.0
    %v3314 = vadd.f32 %v3304, 1.0
    %v3315 = vadd.f32 %v3306, 1.0
    %v3316 = vadd.f32 %v3308, 1.0
    %v3317 = vadd.f32 %v3310, 1.0
    %v3318 = vadd.f32 %v3312, 1.0
    %v3319 = vrcp.pop %v3313
    %v3320 = vmul.f32 1.0, %v3319
    %v3321 = vrcp.pop %v3314
    %v3322 = vmul.f32 1.0, %v3321
    %v3323 = vrcp.pop %v3315
    %v3324 = vmul.f32 1.0, %v3323
    %v3325 = vrcp.pop %v3316
    %v3326 = vmul.f32 1.0, %v3325
    %v3327 = vrcp.pop %v3317
    %v3328 = vmul.f32 1.0, %v3327
    %v3329 = vrcp.pop %v3318
    %v3330 = vmul.f32 1.0, %v3329
    %v3331 = vtanh.pop %v3290
    %v3332 = vtanh.pop %v3294
    %v3333 = vmul.f32 %v3322, %v2223
    %v3334 = vmul.f32 %v3328, %v2224
    %v3335 = vmul.f32 %v3320, %v3331
    %v3336 = vmul.f32 %v3326, %v3332
    %v3337 = vadd.f32 %v3333, %v3335
    %v3338 = vadd.f32 %v3334, %v3336
    %v3339 = vtanh.pop %v3337
    %v3340 = vtanh.pop %v3338
    %v3341 = vmul.f32 %v3324, %v3339
    %v3342 = vmul.f32 %v3330, %v3340
    %s3343 = scalar_lea.vmem [#allocation8], 256
    %v3344 = vld [vmem:[%s3343] sm:$0xff]
    %v3345 = vld [vmem:[%s3343 + $0x8] sm:$0xff]
    %v3346 = vld [vmem:[%s3343 + $0x10] sm:$0xff]
    %v3347 = vld [vmem:[%s3343 + $0x18] sm:$0xff]
    %v3348 = vld [vmem:[%s3343 + $0x20] sm:$0xff]
    %v3349 = vld [vmem:[%s3343 + $0x28] sm:$0xff]
    %v3350 = vld [vmem:[%s3343 + $0x30] sm:$0xff]
    %v3351 = vld [vmem:[%s3343 + $0x38] sm:$0xff]
    %v3352 = vld [vmem:[%s3343 + $0x40] sm:$0xff]
    %v3353 = vld [vmem:[%s3343 + $0x48] sm:$0xff]
    %v3354 = vld [vmem:[%s3343 + $0x50] sm:$0xff]
    %v3355 = vld [vmem:[%s3343 + $0x58] sm:$0xff]
    %v3356 = vld [vmem:[%s3343 + $0x60] sm:$0xff]
    %v3357 = vld [vmem:[%s3343 + $0x68] sm:$0xff]
    %v3358 = vld [vmem:[%s3343 + $0x70] sm:$0xff]
    %v3359 = vld [vmem:[%s3343 + $0x78] sm:$0xff]
    %v3360 = vld [vmem:[%s3343 + $0x80] sm:$0xff]
    %v3361 = vld [vmem:[%s3343 + $0x88] sm:$0xff]
    %v3362 = vld [vmem:[%s3343 + $0x90] sm:$0xff]
    %v3363 = vld [vmem:[%s3343 + $0x98] sm:$0xff]
    %v3364 = vld [vmem:[%s3343 + $0xa0] sm:$0xff]
    %v3365 = vld [vmem:[%s3343 + $0xa8] sm:$0xff]
    %v3366 = vld [vmem:[%s3343 + $0xb0] sm:$0xff]
    %v3367 = vld [vmem:[%s3343 + $0xb8] sm:$0xff]
    %v3368 = vld [vmem:[%s3343 + $0xc0] sm:$0xff]
    %v3369 = vld [vmem:[%s3343 + $0xc8] sm:$0xff]
    %v3370 = vld [vmem:[%s3343 + $0xd0] sm:$0xff]
    %v3371 = vld [vmem:[%s3343 + $0xd8] sm:$0xff]
    %v3372 = vld [vmem:[%s3343 + $0xe0] sm:$0xff]
    %v3373 = vld [vmem:[%s3343 + $0xe8] sm:$0xff]
    %v3374 = vld [vmem:[%s3343 + $0xf0] sm:$0xff]
    %v3375 = vld [vmem:[%s3343 + $0xf8] sm:$0xff]
    %s3376 = scalar_lea.vmem [#allocation11], 8
    %v3377 = vld [vmem:[%s3376] sm:$0xf]
    %v3379 = vlaneseq
    %v3380 = vshrl.u32 %v3379, 7
    %v3381 = vsub.s32 0, %v3380
    %v3382 = vrot.slane %v3377, %v3381
    %v3383 = vlaneseq
    %v3384 = vshrl.u32 %v3383, 7
    %v3385 = vsub.s32 1, %v3384
    %v3386 = vrot.slane %v3377, %v3385
    %v3387 = vlaneseq
    %v3388 = vshrl.u32 %v3387, 7
    %v3389 = vsub.s32 2, %v3388
    %v3390 = vrot.slane %v3377, %v3389
    %v3391 = vlaneseq
    %v3392 = vshrl.u32 %v3391, 7
    %v3393 = vsub.s32 3, %v3392
    %v3394 = vrot.slane %v3377, %v3393
    %v3431 = vunpack.c.l.b16 %v3344
    %v3432 = vunpack.c.h.b16 %v3344
    %v3433 = vunpack.c.l.b16 %v3345
    %v3434 = vunpack.c.h.b16 %v3345
    %v3435 = vunpack.c.l.b16 %v3346
    %v3436 = vunpack.c.h.b16 %v3346
    %v3437 = vunpack.c.l.b16 %v3347
    %v3438 = vunpack.c.h.b16 %v3347
    %v3439 = vunpack.c.l.b16 %v3348
    %v3440 = vunpack.c.h.b16 %v3348
    %v3441 = vunpack.c.l.b16 %v3349
    %v3442 = vunpack.c.h.b16 %v3349
    %v3443 = vunpack.c.l.b16 %v3350
    %v3444 = vunpack.c.h.b16 %v3350
    %v3445 = vunpack.c.l.b16 %v3351
    %v3446 = vunpack.c.h.b16 %v3351
    %v3447 = vunpack.c.l.b16 %v3352
    %v3448 = vunpack.c.h.b16 %v3352
    %v3449 = vunpack.c.l.b16 %v3353
    %v3450 = vunpack.c.h.b16 %v3353
    %v3451 = vunpack.c.l.b16 %v3354
    %v3452 = vunpack.c.h.b16 %v3354
    %v3453 = vunpack.c.l.b16 %v3355
    %v3454 = vunpack.c.h.b16 %v3355
    %v3455 = vunpack.c.l.b16 %v3356
    %v3456 = vunpack.c.h.b16 %v3356
    %v3457 = vunpack.c.l.b16 %v3357
    %v3458 = vunpack.c.h.b16 %v3357
    %v3459 = vunpack.c.l.b16 %v3358
    %v3460 = vunpack.c.h.b16 %v3358
    %v3461 = vunpack.c.l.b16 %v3359
    %v3462 = vunpack.c.h.b16 %v3359
    %v3463 = vunpack.c.l.b16 %v3360
    %v3464 = vunpack.c.h.b16 %v3360
    %v3465 = vunpack.c.l.b16 %v3361
    %v3466 = vunpack.c.h.b16 %v3361
    %v3467 = vunpack.c.l.b16 %v3362
    %v3468 = vunpack.c.h.b16 %v3362
    %v3469 = vunpack.c.l.b16 %v3363
    %v3470 = vunpack.c.h.b16 %v3363
    %v3471 = vunpack.c.l.b16 %v3364
    %v3472 = vunpack.c.h.b16 %v3364
    %v3473 = vunpack.c.l.b16 %v3365
    %v3474 = vunpack.c.h.b16 %v3365
    %v3475 = vunpack.c.l.b16 %v3366
    %v3476 = vunpack.c.h.b16 %v3366
    %v3477 = vunpack.c.l.b16 %v3367
    %v3478 = vunpack.c.h.b16 %v3367
    %v3479 = vunpack.c.l.b16 %v3368
    %v3480 = vunpack.c.h.b16 %v3368
    %v3481 = vunpack.c.l.b16 %v3369
    %v3482 = vunpack.c.h.b16 %v3369
    %v3483 = vunpack.c.l.b16 %v3370
    %v3484 = vunpack.c.h.b16 %v3370
    %v3485 = vunpack.c.l.b16 %v3371
    %v3486 = vunpack.c.h.b16 %v3371
    %v3487 = vunpack.c.l.b16 %v3372
    %v3488 = vunpack.c.h.b16 %v3372
    %v3489 = vunpack.c.l.b16 %v3373
    %v3490 = vunpack.c.h.b16 %v3373
    %v3491 = vunpack.c.l.b16 %v3374
    %v3492 = vunpack.c.h.b16 %v3374
    %v3493 = vunpack.c.l.b16 %v3375
    %v3494 = vunpack.c.h.b16 %v3375
    %v3495 = vpack.c.b16 %v3435, %v3431
    %v3496 = vpack.c.b16 %v3436, %v3432
    %v3497 = vpack.c.b16 %v3437, %v3433
    %v3498 = vpack.c.b16 %v3438, %v3434
    %v3499 = vpack.c.b16 %v3443, %v3439
    %v3500 = vpack.c.b16 %v3444, %v3440
    %v3501 = vpack.c.b16 %v3445, %v3441
    %v3502 = vpack.c.b16 %v3446, %v3442
    %v3503 = vpack.c.b16 %v3451, %v3447
    %v3504 = vpack.c.b16 %v3452, %v3448
    %v3505 = vpack.c.b16 %v3453, %v3449
    %v3506 = vpack.c.b16 %v3454, %v3450
    %v3507 = vpack.c.b16 %v3459, %v3455
    %v3508 = vpack.c.b16 %v3460, %v3456
    %v3509 = vpack.c.b16 %v3461, %v3457
    %v3510 = vpack.c.b16 %v3462, %v3458
    %v3511 = vpack.c.b16 %v3467, %v3463
    %v3512 = vpack.c.b16 %v3468, %v3464
    %v3513 = vpack.c.b16 %v3469, %v3465
    %v3514 = vpack.c.b16 %v3470, %v3466
    %v3515 = vpack.c.b16 %v3475, %v3471
    %v3516 = vpack.c.b16 %v3476, %v3472
    %v3517 = vpack.c.b16 %v3477, %v3473
    %v3518 = vpack.c.b16 %v3478, %v3474
    %v3519 = vpack.c.b16 %v3483, %v3479
    %v3520 = vpack.c.b16 %v3484, %v3480
    %v3521 = vpack.c.b16 %v3485, %v3481
    %v3522 = vpack.c.b16 %v3486, %v3482
    %v3523 = vpack.c.b16 %v3491, %v3487
    %v3524 = vpack.c.b16 %v3492, %v3488
    %v3525 = vpack.c.b16 %v3493, %v3489
    %v3526 = vpack.c.b16 %v3494, %v3490
    %3559 = vmatprep.subr.bf16.mxu0 %v3524
    %3560 = vmatpush1.bf16.msra.mxu0 %v3523
    %3561 = vmatprep.subr.bf16.mxu0 %v3520
    %3562 = vmatpush1.bf16.msra.mxu0 %v3519
    %3563 = vmatprep.subr.bf16.mxu0 %v3516
    %3564 = vmatpush1.bf16.msra.mxu0 %v3515
    %3565 = vmatprep.subr.bf16.mxu0 %v3512
    %3566 = vmatpush1.bf16.msra.mxu0 %v3511
    %3567 = vmatprep.subr.bf16.mxu0 %v3508
    %3568 = vmatpush1.bf16.msra.mxu0 %v3507
    %3569 = vmatprep.subr.bf16.mxu0 %v3504
    %3570 = vmatpush1.bf16.msra.mxu0 %v3503
    %3571 = vmatprep.subr.bf16.mxu0 %v3500
    %3572 = vmatpush1.bf16.msra.mxu0 %v3499
    %3573 = vmatprep.subr.bf16.mxu0 %v3496
    %3574 = vmatpush1.bf16.msra.mxu0 %v3495
    %3575 = vmatprep.subr.bf16.mxu0 0
    %3576 = vmatpush2.bf16.msra.mxu0 0
    %3577 = vmatprep.subr.bf16.mxu0 0
    %3578 = vmatpush2.bf16.msra.mxu0 0
    %3579 = vmatprep.subr.bf16.mxu0 0
    %3580 = vmatpush2.bf16.msra.mxu0 0
    %3581 = vmatprep.subr.bf16.mxu0 0
    %3582 = vmatpush2.bf16.msra.mxu0 0
    %3583 = vmatprep.subr.bf16.mxu0 0
    %3584 = vmatpush2.bf16.msra.mxu0 0
    %3585 = vmatprep.subr.bf16.mxu0 0
    %3586 = vmatpush2.bf16.msra.mxu0 0
    %3587 = vmatprep.subr.bf16.mxu0 0
    %3588 = vmatpush2.bf16.msra.mxu0 0
    %3589 = vmatprep.subr.bf16.mxu0 0
    %3590 = vmatpush2.bf16.msra.mxu0 0
    %3591 = vmatprep.mubr.bf16.mxu0 0
    %3592 = vmatmul.mubr.bf16.gmra.mxu0 %v3007
    %v3593 = vpop.f32.mrf.mxu0
    %v3594 = vadd.f32 %v3382, %v3593
    %v3595 = vpop.f32.mrf.mxu0
    %v3596 = vadd.f32 %v3386, %v3595
    %v3597 = vpop.f32.mrf.mxu0
    %v3598 = vadd.f32 %v3382, %v3597
    %v3599 = vpop.f32.mrf.mxu0
    %v3600 = vadd.f32 %v3386, %v3599
    %3601 = vdwg.mxu0
    %3602 = vmatprep.subr.bf16.mxu0 %v3526
    %3603 = vmatpush1.bf16.msra.mxu0 %v3525
    %3604 = vmatprep.subr.bf16.mxu0 %v3522
    %3605 = vmatpush1.bf16.msra.mxu0 %v3521
    %3606 = vmatprep.subr.bf16.mxu0 %v3518
    %3607 = vmatpush1.bf16.msra.mxu0 %v3517
    %3608 = vmatprep.subr.bf16.mxu0 %v3514
    %3609 = vmatpush1.bf16.msra.mxu0 %v3513
    %3610 = vmatprep.subr.bf16.mxu0 %v3510
    %3611 = vmatpush1.bf16.msra.mxu0 %v3509
    %3612 = vmatprep.subr.bf16.mxu0 %v3506
    %3613 = vmatpush1.bf16.msra.mxu0 %v3505
    %3614 = vmatprep.subr.bf16.mxu0 %v3502
    %3615 = vmatpush1.bf16.msra.mxu0 %v3501
    %3616 = vmatprep.subr.bf16.mxu0 %v3498
    %3617 = vmatpush1.bf16.msra.mxu0 %v3497
    %3618 = vmatprep.subr.bf16.mxu0 0
    %3619 = vmatpush2.bf16.msra.mxu0 0
    %3620 = vmatprep.subr.bf16.mxu0 0
    %3621 = vmatpush2.bf16.msra.mxu0 0
    %3622 = vmatprep.subr.bf16.mxu0 0
    %3623 = vmatpush2.bf16.msra.mxu0 0
    %3624 = vmatprep.subr.bf16.mxu0 0
    %3625 = vmatpush2.bf16.msra.mxu0 0
    %3626 = vmatprep.subr.bf16.mxu0 0
    %3627 = vmatpush2.bf16.msra.mxu0 0
    %3628 = vmatprep.subr.bf16.mxu0 0
    %3629 = vmatpush2.bf16.msra.mxu0 0
    %3630 = vmatprep.subr.bf16.mxu0 0
    %3631 = vmatpush2.bf16.msra.mxu0 0
    %3632 = vmatprep.subr.bf16.mxu0 0
    %3633 = vmatpush2.bf16.msra.mxu0 0
    %3634 = vmatprep.mubr.bf16.mxu0 0
    %3635 = vmatmul.mubr.bf16.gmra.mxu0 %v3007
    %v3636 = vpop.f32.mrf.mxu0
    %v3637 = vadd.f32 %v3390, %v3636
    %v3638 = vpop.f32.mrf.mxu0
    %v3639 = vadd.f32 %v3394, %v3638
    %v3640 = vpop.f32.mrf.mxu0
    %v3641 = vadd.f32 %v3390, %v3640
    %v3642 = vpop.f32.mrf.mxu0
    %v3643 = vadd.f32 %v3394, %v3642
    %3644 = vdwg.mxu0
    %v3645 = vxor.u32 %v3594, 2147483648
    %v3646 = vxor.u32 %v3596, 2147483648
    %v3647 = vxor.u32 %v3637, 2147483648
    %v3648 = vxor.u32 %v3598, 2147483648
    %v3649 = vxor.u32 %v3600, 2147483648
    %v3650 = vxor.u32 %v3641, 2147483648
    %v3651 = vmul.f32 %v3645, 1.442695
    %v3652 = vpow.pop %v3651
    %v3653 = vmul.f32 %v3646, 1.442695
    %v3654 = vpow.pop %v3653
    %v3655 = vmul.f32 %v3647, 1.442695
    %v3656 = vpow.pop %v3655
    %v3657 = vmul.f32 %v3648, 1.442695
    %v3658 = vpow.pop %v3657
    %v3659 = vmul.f32 %v3649, 1.442695
    %v3660 = vpow.pop %v3659
    %v3661 = vmul.f32 %v3650, 1.442695
    %v3662 = vpow.pop %v3661
    %v3663 = vadd.f32 %v3652, 1.0
    %v3664 = vadd.f32 %v3654, 1.0
    %v3665 = vadd.f32 %v3656, 1.0
    %v3666 = vadd.f32 %v3658, 1.0
    %v3667 = vadd.f32 %v3660, 1.0
    %v3668 = vadd.f32 %v3662, 1.0
    %v3669 = vrcp.pop %v3663
    %v3670 = vmul.f32 1.0, %v3669
    %v3671 = vrcp.pop %v3664
    %v3672 = vmul.f32 1.0, %v3671
    %v3673 = vrcp.pop %v3665
    %v3674 = vmul.f32 1.0, %v3673
    %v3675 = vrcp.pop %v3666
    %v3676 = vmul.f32 1.0, %v3675
    %v3677 = vrcp.pop %v3667
    %v3678 = vmul.f32 1.0, %v3677
    %v3679 = vrcp.pop %v3668
    %v3680 = vmul.f32 1.0, %v3679
    %v3681 = vtanh.pop %v3639
    %v3682 = vtanh.pop %v3643
    %v3683 = vmul.f32 %v3672, 0.0
    %v3684 = vmul.f32 %v3678, 0.0
    %v3685 = vmul.f32 %v3670, %v3681
    %v3686 = vmul.f32 %v3676, %v3682
    %v3687 = vadd.f32 %v3683, %v3685
    %v3688 = vadd.f32 %v3684, %v3686
    %v3689 = vtanh.pop %v3687
    %v3690 = vtanh.pop %v3688
    %v3691 = vmul.f32 %v3674, %v3689
    %v3692 = vmul.f32 %v3680, %v3690
    %s3693 = scalar_lea.vmem [#allocation2], 3
    %v3694 = vld [vmem:[%s3693] ss:$8 sm:$0xf]
    %s3695 = scalar_lea.vmem [#allocation2], 35
    %v3696 = vld [vmem:[%s3695] ss:$8 sm:$0xf]
    %s3697 = scalar_lea.vmem [#allocation2], 67
    %v3698 = vld [vmem:[%s3697] ss:$8 sm:$0xf]
    %s3699 = scalar_lea.vmem [#allocation2], 99
    %v3700 = vld [vmem:[%s3699] ss:$8 sm:$0xf]
    %s3701 = scalar_lea.vmem [#allocation2], 131
    %v3702 = vld [vmem:[%s3701] ss:$8 sm:$0xf]
    %s3703 = scalar_lea.vmem [#allocation2], 163
    %v3704 = vld [vmem:[%s3703] ss:$8 sm:$0xf]
    %s3705 = scalar_lea.vmem [#allocation2], 195
    %v3706 = vld [vmem:[%s3705] ss:$8 sm:$0xf]
    %s3707 = scalar_lea.vmem [#allocation2], 227
    %v3708 = vld [vmem:[%s3707] ss:$8 sm:$0xf]
    %s3709 = scalar_lea.vmem [#allocation2], 259
    %v3710 = vld [vmem:[%s3709] ss:$8 sm:$0xf]
    %s3711 = scalar_lea.vmem [#allocation2], 291
    %v3712 = vld [vmem:[%s3711] ss:$8 sm:$0xf]
    %s3713 = scalar_lea.vmem [#allocation2], 323
    %v3714 = vld [vmem:[%s3713] ss:$8 sm:$0xf]
    %s3715 = scalar_lea.vmem [#allocation2], 355
    %v3716 = vld [vmem:[%s3715] ss:$8 sm:$0xf]
    %s3717 = scalar_lea.vmem [#allocation2], 387
    %v3718 = vld [vmem:[%s3717] ss:$8 sm:$0xf]
    %s3719 = scalar_lea.vmem [#allocation2], 419
    %v3720 = vld [vmem:[%s3719] ss:$8 sm:$0xf]
    %s3721 = scalar_lea.vmem [#allocation2], 451
    %v3722 = vld [vmem:[%s3721] ss:$8 sm:$0xf]
    %s3723 = scalar_lea.vmem [#allocation2], 483
    %v3724 = vld [vmem:[%s3723] ss:$8 sm:$0xf]
    %v3725 = vpack.c.bf16 %v2905, %v2905
    %v3726 = vpack.c.bf16 %v2906, %v2906
    %v3727 = vpack.c.bf16 %v2907, %v2907
    %v3728 = vpack.c.bf16 %v2908, %v2908
    %v3729 = vpack.c.bf16 %v2909, %v2909
    %v3730 = vpack.c.bf16 %v2910, %v2910
    %v3731 = vpack.c.bf16 %v2911, %v2911
    %v3732 = vpack.c.bf16 %v2912, %v2912
    %v3733 = vpack.c.bf16 %v2913, %v2913
    %v3734 = vpack.c.bf16 %v2914, %v2914
    %v3735 = vpack.c.bf16 %v2915, %v2915
    %v3736 = vpack.c.bf16 %v2916, %v2916
    %v3737 = vpack.c.bf16 %v2917, %v2917
    %v3738 = vpack.c.bf16 %v2918, %v2918
    %v3739 = vpack.c.bf16 %v2919, %v2919
    %v3740 = vpack.c.bf16 %v2920, %v2920
    %v3757 = vunpack.c.l.b16 %v3725
    %v3758 = vunpack.c.l.b16 %v3726
    %v3759 = vunpack.c.l.b16 %v3727
    %v3760 = vunpack.c.l.b16 %v3728
    %v3761 = vunpack.c.l.b16 %v3729
    %v3762 = vunpack.c.l.b16 %v3730
    %v3763 = vunpack.c.l.b16 %v3731
    %v3764 = vunpack.c.l.b16 %v3732
    %v3765 = vunpack.c.l.b16 %v3733
    %v3766 = vunpack.c.l.b16 %v3734
    %v3767 = vunpack.c.l.b16 %v3735
    %v3768 = vunpack.c.l.b16 %v3736
    %v3769 = vunpack.c.l.b16 %v3737
    %v3770 = vunpack.c.l.b16 %v3738
    %v3771 = vunpack.c.l.b16 %v3739
    %v3772 = vunpack.c.l.b16 %v3740
    %v3773 = vrot.slane %v3758, 7
    %v3774 = vsel %vm1102, %v3773, %v3757
    %v3775 = vrot.slane %v3759, 6
    %v3776 = vsel %vm1105, %v3775, %v3774
    %v3777 = vrot.slane %v3760, 5
    %v3778 = vsel %vm1108, %v3777, %v3776
    %v3779 = vrot.slane %v3761, 4
    %v3780 = vsel %vm1111, %v3779, %v3778
    %v3781 = vrot.slane %v3762, 3
    %v3782 = vsel %vm1114, %v3781, %v3780
    %v3783 = vrot.slane %v3763, 2
    %v3784 = vsel %vm1117, %v3783, %v3782
    %v3785 = vrot.slane %v3764, 1
    %v3786 = vsel %vm1120, %v3785, %v3784
    %v3787 = vrot.slane %v3766, 7
    %v3788 = vsel %vm1102, %v3787, %v3765
    %v3789 = vrot.slane %v3767, 6
    %v3790 = vsel %vm1105, %v3789, %v3788
    %v3791 = vrot.slane %v3768, 5
    %v3792 = vsel %vm1108, %v3791, %v3790
    %v3793 = vrot.slane %v3769, 4
    %v3794 = vsel %vm1111, %v3793, %v3792
    %v3795 = vrot.slane %v3770, 3
    %v3796 = vsel %vm1114, %v3795, %v3794
    %v3797 = vrot.slane %v3771, 2
    %v3798 = vsel %vm1117, %v3797, %v3796
    %v3799 = vrot.slane %v3772, 1
    %v3800 = vsel %vm1120, %v3799, %v3798
    %v3801 = vpack.c.b16 %v3800, %v3786
    %3803 = vmatprep.subr.bf16.mxu0 %v1263
    %3804 = vmatpush1.bf16.msra.mxu0 %v1262
    %3805 = vmatprep.subr.bf16.mxu0 %v1259
    %3806 = vmatpush1.bf16.msra.mxu0 %v1258
    %3807 = vmatprep.subr.bf16.mxu0 %v1255
    %3808 = vmatpush1.bf16.msra.mxu0 %v1254
    %3809 = vmatprep.subr.bf16.mxu0 %v1251
    %3810 = vmatpush1.bf16.msra.mxu0 %v1250
    %3811 = vmatprep.subr.bf16.mxu0 %v1247
    %3812 = vmatpush1.bf16.msra.mxu0 %v1246
    %3813 = vmatprep.subr.bf16.mxu0 %v1243
    %3814 = vmatpush1.bf16.msra.mxu0 %v1242
    %3815 = vmatprep.subr.bf16.mxu0 %v1239
    %3816 = vmatpush1.bf16.msra.mxu0 %v1238
    %3817 = vmatprep.subr.bf16.mxu0 %v1235
    %3818 = vmatpush1.bf16.msra.mxu0 %v1234
    %3819 = vmatprep.subr.bf16.mxu0 0
    %3820 = vmatpush2.bf16.msra.mxu0 0
    %3821 = vmatprep.subr.bf16.mxu0 0
    %3822 = vmatpush2.bf16.msra.mxu0 0
    %3823 = vmatprep.subr.bf16.mxu0 0
    %3824 = vmatpush2.bf16.msra.mxu0 0
    %3825 = vmatprep.subr.bf16.mxu0 0
    %3826 = vmatpush2.bf16.msra.mxu0 0
    %3827 = vmatprep.subr.bf16.mxu0 0
    %3828 = vmatpush2.bf16.msra.mxu0 0
    %3829 = vmatprep.subr.bf16.mxu0 0
    %3830 = vmatpush2.bf16.msra.mxu0 0
    %3831 = vmatprep.subr.bf16.mxu0 0
    %3832 = vmatpush2.bf16.msra.mxu0 0
    %3833 = vmatprep.subr.bf16.mxu0 0
    %3834 = vmatpush2.bf16.msra.mxu0 0
    %3835 = vmatprep.mubr.bf16.mxu0 0
    %3836 = vmatmul.mubr.bf16.gmra.mxu0 %v3801
    %v3837 = vpop.f32.mrf.mxu0
    %v3838 = vadd.f32 0.0, %v3837
    %v3839 = vpop.f32.mrf.mxu0
    %v3840 = vadd.f32 0.0, %v3839
    %v3841 = vpop.f32.mrf.mxu0
    %v3842 = vadd.f32 0.0, %v3841
    %v3843 = vpop.f32.mrf.mxu0
    %v3844 = vadd.f32 0.0, %v3843
    %3845 = vdwg.mxu0
    %3846 = vmatprep.subr.bf16.mxu0 %v1265
    %3847 = vmatpush1.bf16.msra.mxu0 %v1264
    %3848 = vmatprep.subr.bf16.mxu0 %v1261
    %3849 = vmatpush1.bf16.msra.mxu0 %v1260
    %3850 = vmatprep.subr.bf16.mxu0 %v1257
    %3851 = vmatpush1.bf16.msra.mxu0 %v1256
    %3852 = vmatprep.subr.bf16.mxu0 %v1253
    %3853 = vmatpush1.bf16.msra.mxu0 %v1252
    %3854 = vmatprep.subr.bf16.mxu0 %v1249
    %3855 = vmatpush1.bf16.msra.mxu0 %v1248
    %3856 = vmatprep.subr.bf16.mxu0 %v1245
    %3857 = vmatpush1.bf16.msra.mxu0 %v1244
    %3858 = vmatprep.subr.bf16.mxu0 %v1241
    %3859 = vmatpush1.bf16.msra.mxu0 %v1240
    %3860 = vmatprep.subr.bf16.mxu0 %v1237
    %3861 = vmatpush1.bf16.msra.mxu0 %v1236
    %3862 = vmatprep.subr.bf16.mxu0 0
    %3863 = vmatpush2.bf16.msra.mxu0 0
    %3864 = vmatprep.subr.bf16.mxu0 0
    %3865 = vmatpush2.bf16.msra.mxu0 0
    %3866 = vmatprep.subr.bf16.mxu0 0
    %3867 = vmatpush2.bf16.msra.mxu0 0
    %3868 = vmatprep.subr.bf16.mxu0 0
    %3869 = vmatpush2.bf16.msra.mxu0 0
    %3870 = vmatprep.subr.bf16.mxu0 0
    %3871 = vmatpush2.bf16.msra.mxu0 0
    %3872 = vmatprep.subr.bf16.mxu0 0
    %3873 = vmatpush2.bf16.msra.mxu0 0
    %3874 = vmatprep.subr.bf16.mxu0 0
    %3875 = vmatpush2.bf16.msra.mxu0 0
    %3876 = vmatprep.subr.bf16.mxu0 0
    %3877 = vmatpush2.bf16.msra.mxu0 0
    %3878 = vmatprep.mubr.bf16.mxu0 0
    %3879 = vmatmul.mubr.bf16.gmra.mxu0 %v3801
    %v3880 = vpop.f32.mrf.mxu0
    %v3881 = vadd.f32 0.0, %v3880
    %v3882 = vpop.f32.mrf.mxu0
    %v3883 = vadd.f32 0.0, %v3882
    %v3884 = vpop.f32.mrf.mxu0
    %v3885 = vadd.f32 0.0, %v3884
    %v3886 = vpop.f32.mrf.mxu0
    %v3887 = vadd.f32 0.0, %v3886
    %3888 = vdwg.mxu0
    %v3897 = vcombine.low %v3838, %v3840
    %v3898 = vcombine.high %v3838, %v3840
    %v3899 = vcombine.low %v3881, %v3883
    %v3900 = vcombine.high %v3881, %v3883
    %v3902 = vunpack.c.l.s4 1966171168
    %v3903 = vunpack.c.0.s8 %v3902
    %v3904 = vlaneseq
    %v3905 = vshrl.u32 %v3904, 7
    %v3906 = vsub.s32 %v3903, %v3905
    %v3907 = vrot.slane %v3897, %v3906
    %v3909 = vunpack.c.l.s4 1966171168
    %v3910 = vunpack.c.0.s8 %v3909
    %v3911 = vlaneseq
    %v3912 = vshrl.u32 %v3911, 7
    %v3913 = vsub.s32 %v3910, %v3912
    %v3914 = vrot.slane %v3898, %v3913
    %v3916 = vunpack.c.l.s4 1966171168
    %v3917 = vunpack.c.0.s8 %v3916
    %v3918 = vlaneseq
    %v3919 = vshrl.u32 %v3918, 7
    %v3920 = vsub.s32 %v3917, %v3919
    %v3921 = vrot.slane %v3899, %v3920
    %v3923 = vunpack.c.l.s4 1966171168
    %v3924 = vunpack.c.0.s8 %v3923
    %v3925 = vlaneseq
    %v3926 = vshrl.u32 %v3925, 7
    %v3927 = vsub.s32 %v3924, %v3926
    %v3928 = vrot.slane %v3900, %v3927
    %v3929 = vcombine.low %v3907, %v3921
    %v3930 = vcombine.high %v3907, %v3921
    %v3931 = vcombine.low %v3914, %v3928
    %v3932 = vcombine.high %v3914, %v3928
    %v3934 = vunpack.c.l.s4 1966171168
    %v3935 = vunpack.c.0.s8 %v3934
    %v3936 = vlaneseq
    %v3937 = vshrl.u32 %v3936, 7
    %v3938 = vsub.s32 %v3935, %v3937
    %v3939 = vrot.slane %v3929, %v3938
    %v3941 = vunpack.c.l.s4 1966171168
    %v3942 = vunpack.c.0.s8 %v3941
    %v3943 = vlaneseq
    %v3944 = vshrl.u32 %v3943, 7
    %v3945 = vsub.s32 %v3942, %v3944
    %v3946 = vrot.slane %v3931, %v3945
    %v3948 = vunpack.c.l.s4 1966171168
    %v3949 = vunpack.c.0.s8 %v3948
    %v3950 = vlaneseq
    %v3951 = vshrl.u32 %v3950, 7
    %v3952 = vsub.s32 %v3949, %v3951
    %v3953 = vrot.slane %v3930, %v3952
    %v3955 = vunpack.c.l.s4 1966171168
    %v3956 = vunpack.c.0.s8 %v3955
    %v3957 = vlaneseq
    %v3958 = vshrl.u32 %v3957, 7
    %v3959 = vsub.s32 %v3956, %v3958
    %v3960 = vrot.slane %v3932, %v3959
    %v3961 = vcombine.high %v3939, %v3939
    %v3962 = vcombine.high %v3946, %v3946
    %v3963 = vcombine.high %v3953, %v3953
    %v3964 = vcombine.high %v3960, %v3960
    %v3965 = vcombine.low %v3842, %v3844
    %v3966 = vcombine.high %v3842, %v3844
    %v3967 = vcombine.low %v3885, %v3887
    %v3968 = vcombine.high %v3885, %v3887
    %v3970 = vunpack.c.l.s4 1966171168
    %v3971 = vunpack.c.0.s8 %v3970
    %v3972 = vlaneseq
    %v3973 = vshrl.u32 %v3972, 7
    %v3974 = vsub.s32 %v3971, %v3973
    %v3975 = vrot.slane %v3965, %v3974
    %v3977 = vunpack.c.l.s4 1966171168
    %v3978 = vunpack.c.0.s8 %v3977
    %v3979 = vlaneseq
    %v3980 = vshrl.u32 %v3979, 7
    %v3981 = vsub.s32 %v3978, %v3980
    %v3982 = vrot.slane %v3966, %v3981
    %v3984 = vunpack.c.l.s4 1966171168
    %v3985 = vunpack.c.0.s8 %v3984
    %v3986 = vlaneseq
    %v3987 = vshrl.u32 %v3986, 7
    %v3988 = vsub.s32 %v3985, %v3987
    %v3989 = vrot.slane %v3967, %v3988
    %v3991 = vunpack.c.l.s4 1966171168
    %v3992 = vunpack.c.0.s8 %v3991
    %v3993 = vlaneseq
    %v3994 = vshrl.u32 %v3993, 7
    %v3995 = vsub.s32 %v3992, %v3994
    %v3996 = vrot.slane %v3968, %v3995
    %v3997 = vcombine.low %v3975, %v3989
    %v3998 = vcombine.high %v3975, %v3989
    %v3999 = vcombine.low %v3982, %v3996
    %v4000 = vcombine.high %v3982, %v3996
    %v4002 = vunpack.c.l.s4 1966171168
    %v4003 = vunpack.c.0.s8 %v4002
    %v4004 = vlaneseq
    %v4005 = vshrl.u32 %v4004, 7
    %v4006 = vsub.s32 %v4003, %v4005
    %v4007 = vrot.slane %v3997, %v4006
    %v4009 = vunpack.c.l.s4 1966171168
    %v4010 = vunpack.c.0.s8 %v4009
    %v4011 = vlaneseq
    %v4012 = vshrl.u32 %v4011, 7
    %v4013 = vsub.s32 %v4010, %v4012
    %v4014 = vrot.slane %v3999, %v4013
    %v4016 = vunpack.c.l.s4 1966171168
    %v4017 = vunpack.c.0.s8 %v4016
    %v4018 = vlaneseq
    %v4019 = vshrl.u32 %v4018, 7
    %v4020 = vsub.s32 %v4017, %v4019
    %v4021 = vrot.slane %v3998, %v4020
    %v4023 = vunpack.c.l.s4 1966171168
    %v4024 = vunpack.c.0.s8 %v4023
    %v4025 = vlaneseq
    %v4026 = vshrl.u32 %v4025, 7
    %v4027 = vsub.s32 %v4024, %v4026
    %v4028 = vrot.slane %v4000, %v4027
    %v4029 = vcombine.high %v4007, %v4007
    %v4030 = vcombine.high %v4014, %v4014
    %v4031 = vcombine.high %v4021, %v4021
    %v4032 = vcombine.high %v4028, %v4028
    %v4049 = vadd.f32 %v3694, %v3939
    %v4050 = vadd.f32 %v3696, %v3953
    %v4051 = vadd.f32 %v3698, %v3961
    %v4052 = vadd.f32 %v3700, %v3963
    %v4053 = vadd.f32 %v3702, %v3946
    %v4054 = vadd.f32 %v3704, %v3960
    %v4055 = vadd.f32 %v3706, %v3962
    %v4056 = vadd.f32 %v3708, %v3964
    %v4057 = vadd.f32 %v3710, %v4007
    %v4058 = vadd.f32 %v3712, %v4021
    %v4059 = vadd.f32 %v3714, %v4029
    %v4060 = vadd.f32 %v3716, %v4031
    %v4061 = vadd.f32 %v3718, %v4014
    %v4062 = vadd.f32 %v3720, %v4028
    %v4063 = vadd.f32 %v3722, %v4030
    %v4064 = vadd.f32 %v3724, %v4032
    %v4065 = vxor.u32 %v4049, 2147483648
    %v4066 = vxor.u32 %v4050, 2147483648
    %v4067 = vxor.u32 %v4051, 2147483648
    %v4068 = vxor.u32 %v4052, 2147483648
    %v4069 = vxor.u32 %v4053, 2147483648
    %v4070 = vxor.u32 %v4054, 2147483648
    %v4071 = vxor.u32 %v4055, 2147483648
    %v4072 = vxor.u32 %v4056, 2147483648
    %v4073 = vxor.u32 %v4057, 2147483648
    %v4074 = vxor.u32 %v4058, 2147483648
    %v4075 = vxor.u32 %v4059, 2147483648
    %v4076 = vxor.u32 %v4060, 2147483648
    %v4077 = vxor.u32 %v4061, 2147483648
    %v4078 = vxor.u32 %v4062, 2147483648
    %v4079 = vxor.u32 %v4063, 2147483648
    %v4080 = vxor.u32 %v4064, 2147483648
    %v4081 = vmul.f32 %v4065, 1.442695
    %v4082 = vpow.pop %v4081
    %v4083 = vmul.f32 %v4066, 1.442695
    %v4084 = vpow.pop %v4083
    %v4085 = vmul.f32 %v4067, 1.442695
    %v4086 = vpow.pop %v4085
    %v4087 = vmul.f32 %v4068, 1.442695
    %v4088 = vpow.pop %v4087
    %v4089 = vmul.f32 %v4069, 1.442695
    %v4090 = vpow.pop %v4089
    %v4091 = vmul.f32 %v4070, 1.442695
    %v4092 = vpow.pop %v4091
    %v4093 = vmul.f32 %v4071, 1.442695
    %v4094 = vpow.pop %v4093
    %v4095 = vmul.f32 %v4072, 1.442695
    %v4096 = vpow.pop %v4095
    %v4097 = vmul.f32 %v4073, 1.442695
    %v4098 = vpow.pop %v4097
    %v4099 = vmul.f32 %v4074, 1.442695
    %v4100 = vpow.pop %v4099
    %v4101 = vmul.f32 %v4075, 1.442695
    %v4102 = vpow.pop %v4101
    %v4103 = vmul.f32 %v4076, 1.442695
    %v4104 = vpow.pop %v4103
    %v4105 = vmul.f32 %v4077, 1.442695
    %v4106 = vpow.pop %v4105
    %v4107 = vmul.f32 %v4078, 1.442695
    %v4108 = vpow.pop %v4107
    %v4109 = vmul.f32 %v4079, 1.442695
    %v4110 = vpow.pop %v4109
    %v4111 = vmul.f32 %v4080, 1.442695
    %v4112 = vpow.pop %v4111
    %v4113 = vadd.f32 %v4082, 1.0
    %v4114 = vadd.f32 %v4084, 1.0
    %v4115 = vadd.f32 %v4086, 1.0
    %v4116 = vadd.f32 %v4088, 1.0
    %v4117 = vadd.f32 %v4090, 1.0
    %v4118 = vadd.f32 %v4092, 1.0
    %v4119 = vadd.f32 %v4094, 1.0
    %v4120 = vadd.f32 %v4096, 1.0
    %v4121 = vadd.f32 %v4098, 1.0
    %v4122 = vadd.f32 %v4100, 1.0
    %v4123 = vadd.f32 %v4102, 1.0
    %v4124 = vadd.f32 %v4104, 1.0
    %v4125 = vadd.f32 %v4106, 1.0
    %v4126 = vadd.f32 %v4108, 1.0
    %v4127 = vadd.f32 %v4110, 1.0
    %v4128 = vadd.f32 %v4112, 1.0
    %v4129 = vrcp.pop %v4113
    %v4130 = vmul.f32 1.0, %v4129
    %v4131 = vrcp.pop %v4114
    %v4132 = vmul.f32 1.0, %v4131
    %v4133 = vrcp.pop %v4115
    %v4134 = vmul.f32 1.0, %v4133
    %v4135 = vrcp.pop %v4116
    %v4136 = vmul.f32 1.0, %v4135
    %v4137 = vrcp.pop %v4117
    %v4138 = vmul.f32 1.0, %v4137
    %v4139 = vrcp.pop %v4118
    %v4140 = vmul.f32 1.0, %v4139
    %v4141 = vrcp.pop %v4119
    %v4142 = vmul.f32 1.0, %v4141
    %v4143 = vrcp.pop %v4120
    %v4144 = vmul.f32 1.0, %v4143
    %v4145 = vrcp.pop %v4121
    %v4146 = vmul.f32 1.0, %v4145
    %v4147 = vrcp.pop %v4122
    %v4148 = vmul.f32 1.0, %v4147
    %v4149 = vrcp.pop %v4123
    %v4150 = vmul.f32 1.0, %v4149
    %v4151 = vrcp.pop %v4124
    %v4152 = vmul.f32 1.0, %v4151
    %v4153 = vrcp.pop %v4125
    %v4154 = vmul.f32 1.0, %v4153
    %v4155 = vrcp.pop %v4126
    %v4156 = vmul.f32 1.0, %v4155
    %v4157 = vrcp.pop %v4127
    %v4158 = vmul.f32 1.0, %v4157
    %v4159 = vrcp.pop %v4128
    %v4160 = vmul.f32 1.0, %v4159
    %v4177 = vrot.slane %v4049, 3
    %v4178 = vrot.slane %v4050, 3
    %v4179 = vrot.slane %v4051, 3
    %v4180 = vrot.slane %v4052, 3
    %v4181 = vrot.slane %v4053, 3
    %v4182 = vrot.slane %v4054, 3
    %v4183 = vrot.slane %v4055, 3
    %v4184 = vrot.slane %v4056, 3
    %v4185 = vrot.slane %v4057, 3
    %v4186 = vrot.slane %v4058, 3
    %v4187 = vrot.slane %v4059, 3
    %v4188 = vrot.slane %v4060, 3
    %v4189 = vrot.slane %v4061, 3
    %v4190 = vrot.slane %v4062, 3
    %v4191 = vrot.slane %v4063, 3
    %v4192 = vrot.slane %v4064, 3
    %v4209 = vtanh.pop %v4177
    %v4210 = vtanh.pop %v4178
    %v4211 = vtanh.pop %v4179
    %v4212 = vtanh.pop %v4180
    %v4213 = vtanh.pop %v4181
    %v4214 = vtanh.pop %v4182
    %v4215 = vtanh.pop %v4183
    %v4216 = vtanh.pop %v4184
    %v4217 = vtanh.pop %v4185
    %v4218 = vtanh.pop %v4186
    %v4219 = vtanh.pop %v4187
    %v4220 = vtanh.pop %v4188
    %v4221 = vtanh.pop %v4189
    %v4222 = vtanh.pop %v4190
    %v4223 = vtanh.pop %v4191
    %v4224 = vtanh.pop %v4192
    %v4241 = vrot.slane %v4130, 1
    %v4242 = vrot.slane %v4132, 1
    %v4243 = vrot.slane %v4134, 1
    %v4244 = vrot.slane %v4136, 1
    %v4245 = vrot.slane %v4138, 1
    %v4246 = vrot.slane %v4140, 1
    %v4247 = vrot.slane %v4142, 1
    %v4248 = vrot.slane %v4144, 1
    %v4249 = vrot.slane %v4146, 1
    %v4250 = vrot.slane %v4148, 1
    %v4251 = vrot.slane %v4150, 1
    %v4252 = vrot.slane %v4152, 1
    %v4253 = vrot.slane %v4154, 1
    %v4254 = vrot.slane %v4156, 1
    %v4255 = vrot.slane %v4158, 1
    %v4256 = vrot.slane %v4160, 1
    %v4273 = vmul.f32 %v4241, %v2841
    %v4274 = vmul.f32 %v4242, %v2842
    %v4275 = vmul.f32 %v4243, %v2843
    %v4276 = vmul.f32 %v4244, %v2844
    %v4277 = vmul.f32 %v4245, %v2845
    %v4278 = vmul.f32 %v4246, %v2846
    %v4279 = vmul.f32 %v4247, %v2847
    %v4280 = vmul.f32 %v4248, %v2848
    %v4281 = vmul.f32 %v4249, %v2849
    %v4282 = vmul.f32 %v4250, %v2850
    %v4283 = vmul.f32 %v4251, %v2851
    %v4284 = vmul.f32 %v4252, %v2852
    %v4285 = vmul.f32 %v4253, %v2853
    %v4286 = vmul.f32 %v4254, %v2854
    %v4287 = vmul.f32 %v4255, %v2855
    %v4288 = vmul.f32 %v4256, %v2856
    %v4289 = vmul.f32 %v4130, %v4209
    %v4290 = vmul.f32 %v4132, %v4210
    %v4291 = vmul.f32 %v4134, %v4211
    %v4292 = vmul.f32 %v4136, %v4212
    %v4293 = vmul.f32 %v4138, %v4213
    %v4294 = vmul.f32 %v4140, %v4214
    %v4295 = vmul.f32 %v4142, %v4215
    %v4296 = vmul.f32 %v4144, %v4216
    %v4297 = vmul.f32 %v4146, %v4217
    %v4298 = vmul.f32 %v4148, %v4218
    %v4299 = vmul.f32 %v4150, %v4219
    %v4300 = vmul.f32 %v4152, %v4220
    %v4301 = vmul.f32 %v4154, %v4221
    %v4302 = vmul.f32 %v4156, %v4222
    %v4303 = vmul.f32 %v4158, %v4223
    %v4304 = vmul.f32 %v4160, %v4224
    %v4305 = vadd.f32 %v4273, %v4289
    %v4306 = vadd.f32 %v4274, %v4290
    %v4307 = vadd.f32 %v4275, %v4291
    %v4308 = vadd.f32 %v4276, %v4292
    %v4309 = vadd.f32 %v4277, %v4293
    %v4310 = vadd.f32 %v4278, %v4294
    %v4311 = vadd.f32 %v4279, %v4295
    %v4312 = vadd.f32 %v4280, %v4296
    %v4313 = vadd.f32 %v4281, %v4297
    %v4314 = vadd.f32 %v4282, %v4298
    %v4315 = vadd.f32 %v4283, %v4299
    %v4316 = vadd.f32 %v4284, %v4300
    %v4317 = vadd.f32 %v4285, %v4301
    %v4318 = vadd.f32 %v4286, %v4302
    %v4319 = vadd.f32 %v4287, %v4303
    %v4320 = vadd.f32 %v4288, %v4304
    %v4321 = vtanh.pop %v4305
    %v4322 = vtanh.pop %v4306
    %v4323 = vtanh.pop %v4307
    %v4324 = vtanh.pop %v4308
    %v4325 = vtanh.pop %v4309
    %v4326 = vtanh.pop %v4310
    %v4327 = vtanh.pop %v4311
    %v4328 = vtanh.pop %v4312
    %v4329 = vtanh.pop %v4313
    %v4330 = vtanh.pop %v4314
    %v4331 = vtanh.pop %v4315
    %v4332 = vtanh.pop %v4316
    %v4333 = vtanh.pop %v4317
    %v4334 = vtanh.pop %v4318
    %v4335 = vtanh.pop %v4319
    %v4336 = vtanh.pop %v4320
    %v4337 = vrot.slane %v4130, 2
    %v4338 = vrot.slane %v4132, 2
    %v4339 = vrot.slane %v4134, 2
    %v4340 = vrot.slane %v4136, 2
    %v4341 = vrot.slane %v4138, 2
    %v4342 = vrot.slane %v4140, 2
    %v4343 = vrot.slane %v4142, 2
    %v4344 = vrot.slane %v4144, 2
    %v4345 = vrot.slane %v4146, 2
    %v4346 = vrot.slane %v4148, 2
    %v4347 = vrot.slane %v4150, 2
    %v4348 = vrot.slane %v4152, 2
    %v4349 = vrot.slane %v4154, 2
    %v4350 = vrot.slane %v4156, 2
    %v4351 = vrot.slane %v4158, 2
    %v4352 = vrot.slane %v4160, 2
    %v4369 = vmul.f32 %v4337, %v4321
    %v4370 = vmul.f32 %v4338, %v4322
    %v4371 = vmul.f32 %v4339, %v4323
    %v4372 = vmul.f32 %v4340, %v4324
    %v4373 = vmul.f32 %v4341, %v4325
    %v4374 = vmul.f32 %v4342, %v4326
    %v4375 = vmul.f32 %v4343, %v4327
    %v4376 = vmul.f32 %v4344, %v4328
    %v4377 = vmul.f32 %v4345, %v4329
    %v4378 = vmul.f32 %v4346, %v4330
    %v4379 = vmul.f32 %v4347, %v4331
    %v4380 = vmul.f32 %v4348, %v4332
    %v4381 = vmul.f32 %v4349, %v4333
    %v4382 = vmul.f32 %v4350, %v4334
    %v4383 = vmul.f32 %v4351, %v4335
    %v4384 = vmul.f32 %v4352, %v4336
    %4385 = vmatprep.subr.bf16.mxu0 %v2060
    %4386 = vmatpush1.bf16.msra.mxu0 %v2059
    %4387 = vmatprep.subr.bf16.mxu0 %v2056
    %4388 = vmatpush1.bf16.msra.mxu0 %v2055
    %4389 = vmatprep.subr.bf16.mxu0 %v2052
    %4390 = vmatpush1.bf16.msra.mxu0 %v2051
    %4391 = vmatprep.subr.bf16.mxu0 %v2048
    %4392 = vmatpush1.bf16.msra.mxu0 %v2047
    %4393 = vmatprep.subr.bf16.mxu0 %v2044
    %4394 = vmatpush1.bf16.msra.mxu0 %v2043
    %4395 = vmatprep.subr.bf16.mxu0 %v2040
    %4396 = vmatpush1.bf16.msra.mxu0 %v2039
    %4397 = vmatprep.subr.bf16.mxu0 %v2036
    %4398 = vmatpush1.bf16.msra.mxu0 %v2035
    %4399 = vmatprep.subr.bf16.mxu0 %v2032
    %4400 = vmatpush1.bf16.msra.mxu0 %v2031
    %4401 = vmatprep.subr.bf16.mxu0 0
    %4402 = vmatpush2.bf16.msra.mxu0 0
    %4403 = vmatprep.subr.bf16.mxu0 0
    %4404 = vmatpush2.bf16.msra.mxu0 0
    %4405 = vmatprep.subr.bf16.mxu0 0
    %4406 = vmatpush2.bf16.msra.mxu0 0
    %4407 = vmatprep.subr.bf16.mxu0 0
    %4408 = vmatpush2.bf16.msra.mxu0 0
    %4409 = vmatprep.subr.bf16.mxu0 0
    %4410 = vmatpush2.bf16.msra.mxu0 0
    %4411 = vmatprep.subr.bf16.mxu0 0
    %4412 = vmatpush2.bf16.msra.mxu0 0
    %4413 = vmatprep.subr.bf16.mxu0 0
    %4414 = vmatpush2.bf16.msra.mxu0 0
    %4415 = vmatprep.subr.bf16.mxu0 0
    %4416 = vmatpush2.bf16.msra.mxu0 0
    %4417 = vmatprep.mubr.bf16.mxu0 0
    %4418 = vmatmul.mubr.bf16.gmra.mxu0 %v3801
    %v4419 = vpop.f32.mrf.mxu0
    %v4420 = vadd.f32 %v1918, %v4419
    %v4421 = vpop.f32.mrf.mxu0
    %v4422 = vadd.f32 %v1922, %v4421
    %v4423 = vpop.f32.mrf.mxu0
    %v4424 = vadd.f32 %v1918, %v4423
    %v4425 = vpop.f32.mrf.mxu0
    %v4426 = vadd.f32 %v1922, %v4425
    %4427 = vdwg.mxu0
    %4428 = vmatprep.subr.bf16.mxu0 %v2062
    %4429 = vmatpush1.bf16.msra.mxu0 %v2061
    %4430 = vmatprep.subr.bf16.mxu0 %v2058
    %4431 = vmatpush1.bf16.msra.mxu0 %v2057
    %4432 = vmatprep.subr.bf16.mxu0 %v2054
    %4433 = vmatpush1.bf16.msra.mxu0 %v2053
    %4434 = vmatprep.subr.bf16.mxu0 %v2050
    %4435 = vmatpush1.bf16.msra.mxu0 %v2049
    %4436 = vmatprep.subr.bf16.mxu0 %v2046
    %4437 = vmatpush1.bf16.msra.mxu0 %v2045
    %4438 = vmatprep.subr.bf16.mxu0 %v2042
    %4439 = vmatpush1.bf16.msra.mxu0 %v2041
    %4440 = vmatprep.subr.bf16.mxu0 %v2038
    %4441 = vmatpush1.bf16.msra.mxu0 %v2037
    %4442 = vmatprep.subr.bf16.mxu0 %v2034
    %4443 = vmatpush1.bf16.msra.mxu0 %v2033
    %4444 = vmatprep.subr.bf16.mxu0 0
    %4445 = vmatpush2.bf16.msra.mxu0 0
    %4446 = vmatprep.subr.bf16.mxu0 0
    %4447 = vmatpush2.bf16.msra.mxu0 0
    %4448 = vmatprep.subr.bf16.mxu0 0
    %4449 = vmatpush2.bf16.msra.mxu0 0
    %4450 = vmatprep.subr.bf16.mxu0 0
    %4451 = vmatpush2.bf16.msra.mxu0 0
    %4452 = vmatprep.subr.bf16.mxu0 0
    %4453 = vmatpush2.bf16.msra.mxu0 0
    %4454 = vmatprep.subr.bf16.mxu0 0
    %4455 = vmatpush2.bf16.msra.mxu0 0
    %4456 = vmatprep.subr.bf16.mxu0 0
    %4457 = vmatpush2.bf16.msra.mxu0 0
    %4458 = vmatprep.subr.bf16.mxu0 0
    %4459 = vmatpush2.bf16.msra.mxu0 0
    %4460 = vmatprep.mubr.bf16.mxu0 0
    %4461 = vmatmul.mubr.bf16.gmra.mxu0 %v3801
    %v4462 = vpop.f32.mrf.mxu0
    %v4463 = vadd.f32 %v1926, %v4462
    %v4464 = vpop.f32.mrf.mxu0
    %v4465 = vadd.f32 %v1930, %v4464
    %v4466 = vpop.f32.mrf.mxu0
    %v4467 = vadd.f32 %v1926, %v4466
    %v4468 = vpop.f32.mrf.mxu0
    %v4469 = vadd.f32 %v1930, %v4468
    %4470 = vdwg.mxu0
    %v4471 = vpack.c.bf16 %v3342, %v3341
    %4472 = vmatprep.subr.bf16.mxu0 %v3166
    %4473 = vmatpush1.bf16.msra.mxu0 %v3165
    %4474 = vmatprep.subr.bf16.mxu0 %v3162
    %4475 = vmatpush1.bf16.msra.mxu0 %v3161
    %4476 = vmatprep.subr.bf16.mxu0 %v3158
    %4477 = vmatpush1.bf16.msra.mxu0 %v3157
    %4478 = vmatprep.subr.bf16.mxu0 %v3154
    %4479 = vmatpush1.bf16.msra.mxu0 %v3153
    %4480 = vmatprep.subr.bf16.mxu0 %v3150
    %4481 = vmatpush1.bf16.msra.mxu0 %v3149
    %4482 = vmatprep.subr.bf16.mxu0 %v3146
    %4483 = vmatpush1.bf16.msra.mxu0 %v3145
    %4484 = vmatprep.subr.bf16.mxu0 %v3142
    %4485 = vmatpush1.bf16.msra.mxu0 %v3141
    %4486 = vmatprep.subr.bf16.mxu0 %v3138
    %4487 = vmatpush1.bf16.msra.mxu0 %v3137
    %4488 = vmatprep.subr.bf16.mxu0 0
    %4489 = vmatpush2.bf16.msra.mxu0 0
    %4490 = vmatprep.subr.bf16.mxu0 0
    %4491 = vmatpush2.bf16.msra.mxu0 0
    %4492 = vmatprep.subr.bf16.mxu0 0
    %4493 = vmatpush2.bf16.msra.mxu0 0
    %4494 = vmatprep.subr.bf16.mxu0 0
    %4495 = vmatpush2.bf16.msra.mxu0 0
    %4496 = vmatprep.subr.bf16.mxu0 0
    %4497 = vmatpush2.bf16.msra.mxu0 0
    %4498 = vmatprep.subr.bf16.mxu0 0
    %4499 = vmatpush2.bf16.msra.mxu0 0
    %4500 = vmatprep.subr.bf16.mxu0 0
    %4501 = vmatpush2.bf16.msra.mxu0 0
    %4502 = vmatprep.subr.bf16.mxu0 0
    %4503 = vmatpush2.bf16.msra.mxu0 0
    %4504 = vmatprep.mubr.bf16.mxu0 0
    %4505 = vmatmul.mubr.bf16.gmra.mxu0 %v4471
    %v4506 = vpop.f32.mrf.mxu0
    %v4507 = vadd.f32 0.0, %v4506
    %v4508 = vpop.f32.mrf.mxu0
    %v4509 = vadd.f32 0.0, %v4508
    %v4510 = vpop.f32.mrf.mxu0
    %v4511 = vadd.f32 0.0, %v4510
    %v4512 = vpop.f32.mrf.mxu0
    %v4513 = vadd.f32 0.0, %v4512
    %4514 = vdwg.mxu0
    %4515 = vmatprep.subr.bf16.mxu0 %v3168
    %4516 = vmatpush1.bf16.msra.mxu0 %v3167
    %4517 = vmatprep.subr.bf16.mxu0 %v3164
    %4518 = vmatpush1.bf16.msra.mxu0 %v3163
    %4519 = vmatprep.subr.bf16.mxu0 %v3160
    %4520 = vmatpush1.bf16.msra.mxu0 %v3159
    %4521 = vmatprep.subr.bf16.mxu0 %v3156
    %4522 = vmatpush1.bf16.msra.mxu0 %v3155
    %4523 = vmatprep.subr.bf16.mxu0 %v3152
    %4524 = vmatpush1.bf16.msra.mxu0 %v3151
    %4525 = vmatprep.subr.bf16.mxu0 %v3148
    %4526 = vmatpush1.bf16.msra.mxu0 %v3147
    %4527 = vmatprep.subr.bf16.mxu0 %v3144
    %4528 = vmatpush1.bf16.msra.mxu0 %v3143
    %4529 = vmatprep.subr.bf16.mxu0 %v3140
    %4530 = vmatpush1.bf16.msra.mxu0 %v3139
    %4531 = vmatprep.subr.bf16.mxu0 0
    %4532 = vmatpush2.bf16.msra.mxu0 0
    %4533 = vmatprep.subr.bf16.mxu0 0
    %4534 = vmatpush2.bf16.msra.mxu0 0
    %4535 = vmatprep.subr.bf16.mxu0 0
    %4536 = vmatpush2.bf16.msra.mxu0 0
    %4537 = vmatprep.subr.bf16.mxu0 0
    %4538 = vmatpush2.bf16.msra.mxu0 0
    %4539 = vmatprep.subr.bf16.mxu0 0
    %4540 = vmatpush2.bf16.msra.mxu0 0
    %4541 = vmatprep.subr.bf16.mxu0 0
    %4542 = vmatpush2.bf16.msra.mxu0 0
    %4543 = vmatprep.subr.bf16.mxu0 0
    %4544 = vmatpush2.bf16.msra.mxu0 0
    %4545 = vmatprep.subr.bf16.mxu0 0
    %4546 = vmatpush2.bf16.msra.mxu0 0
    %4547 = vmatprep.mubr.bf16.mxu0 0
    %4548 = vmatmul.mubr.bf16.gmra.mxu0 %v4471
    %v4549 = vpop.f32.mrf.mxu0
    %v4550 = vadd.f32 0.0, %v4549
    %v4551 = vpop.f32.mrf.mxu0
    %v4552 = vadd.f32 0.0, %v4551
    %v4553 = vpop.f32.mrf.mxu0
    %v4554 = vadd.f32 0.0, %v4553
    %v4555 = vpop.f32.mrf.mxu0
    %v4556 = vadd.f32 0.0, %v4555
    %4557 = vdwg.mxu0
    %v4558 = vadd.f32 %v4420, %v4507
    %v4559 = vadd.f32 %v4422, %v4509
    %v4560 = vadd.f32 %v4463, %v4550
    %v4561 = vadd.f32 %v4465, %v4552
    %v4562 = vadd.f32 %v4424, %v4511
    %v4563 = vadd.f32 %v4426, %v4513
    %v4564 = vadd.f32 %v4467, %v4554
    %v4565 = vadd.f32 %v4469, %v4556
    %v4566 = vxor.u32 %v4558, 2147483648
    %v4567 = vxor.u32 %v4559, 2147483648
    %v4568 = vxor.u32 %v4560, 2147483648
    %v4569 = vxor.u32 %v4562, 2147483648
    %v4570 = vxor.u32 %v4563, 2147483648
    %v4571 = vxor.u32 %v4564, 2147483648
    %v4572 = vmul.f32 %v4566, 1.442695
    %v4573 = vpow.pop %v4572
    %v4574 = vmul.f32 %v4567, 1.442695
    %v4575 = vpow.pop %v4574
    %v4576 = vmul.f32 %v4568, 1.442695
    %v4577 = vpow.pop %v4576
    %v4578 = vmul.f32 %v4569, 1.442695
    %v4579 = vpow.pop %v4578
    %v4580 = vmul.f32 %v4570, 1.442695
    %v4581 = vpow.pop %v4580
    %v4582 = vmul.f32 %v4571, 1.442695
    %v4583 = vpow.pop %v4582
    %v4584 = vadd.f32 %v4573, 1.0
    %v4585 = vadd.f32 %v4575, 1.0
    %v4586 = vadd.f32 %v4577, 1.0
    %v4587 = vadd.f32 %v4579, 1.0
    %v4588 = vadd.f32 %v4581, 1.0
    %v4589 = vadd.f32 %v4583, 1.0
    %v4590 = vrcp.pop %v4584
    %v4591 = vmul.f32 1.0, %v4590
    %v4592 = vrcp.pop %v4585
    %v4593 = vmul.f32 1.0, %v4592
    %v4594 = vrcp.pop %v4586
    %v4595 = vmul.f32 1.0, %v4594
    %v4596 = vrcp.pop %v4587
    %v4597 = vmul.f32 1.0, %v4596
    %v4598 = vrcp.pop %v4588
    %v4599 = vmul.f32 1.0, %v4598
    %v4600 = vrcp.pop %v4589
    %v4601 = vmul.f32 1.0, %v4600
    %v4602 = vtanh.pop %v4561
    %v4603 = vtanh.pop %v4565
    %v4604 = vmul.f32 %v4593, %v3337
    %v4605 = vmul.f32 %v4599, %v3338
    %v4606 = vmul.f32 %v4591, %v4602
    %v4607 = vmul.f32 %v4597, %v4603
    %v4608 = vadd.f32 %v4604, %v4606
    %v4609 = vadd.f32 %v4605, %v4607
    %v4610 = vtanh.pop %v4608
    %v4611 = vtanh.pop %v4609
    %v4612 = vmul.f32 %v4595, %v4610
    %v4613 = vmul.f32 %v4601, %v4611
    %4614 = vmatprep.subr.bf16.mxu0 %v3524
    %4615 = vmatpush1.bf16.msra.mxu0 %v3523
    %4616 = vmatprep.subr.bf16.mxu0 %v3520
    %4617 = vmatpush1.bf16.msra.mxu0 %v3519
    %4618 = vmatprep.subr.bf16.mxu0 %v3516
    %4619 = vmatpush1.bf16.msra.mxu0 %v3515
    %4620 = vmatprep.subr.bf16.mxu0 %v3512
    %4621 = vmatpush1.bf16.msra.mxu0 %v3511
    %4622 = vmatprep.subr.bf16.mxu0 %v3508
    %4623 = vmatpush1.bf16.msra.mxu0 %v3507
    %4624 = vmatprep.subr.bf16.mxu0 %v3504
    %4625 = vmatpush1.bf16.msra.mxu0 %v3503
    %4626 = vmatprep.subr.bf16.mxu0 %v3500
    %4627 = vmatpush1.bf16.msra.mxu0 %v3499
    %4628 = vmatprep.subr.bf16.mxu0 %v3496
    %4629 = vmatpush1.bf16.msra.mxu0 %v3495
    %4630 = vmatprep.subr.bf16.mxu0 0
    %4631 = vmatpush2.bf16.msra.mxu0 0
    %4632 = vmatprep.subr.bf16.mxu0 0
    %4633 = vmatpush2.bf16.msra.mxu0 0
    %4634 = vmatprep.subr.bf16.mxu0 0
    %4635 = vmatpush2.bf16.msra.mxu0 0
    %4636 = vmatprep.subr.bf16.mxu0 0
    %4637 = vmatpush2.bf16.msra.mxu0 0
    %4638 = vmatprep.subr.bf16.mxu0 0
    %4639 = vmatpush2.bf16.msra.mxu0 0
    %4640 = vmatprep.subr.bf16.mxu0 0
    %4641 = vmatpush2.bf16.msra.mxu0 0
    %4642 = vmatprep.subr.bf16.mxu0 0
    %4643 = vmatpush2.bf16.msra.mxu0 0
    %4644 = vmatprep.subr.bf16.mxu0 0
    %4645 = vmatpush2.bf16.msra.mxu0 0
    %4646 = vmatprep.mubr.bf16.mxu0 0
    %4647 = vmatmul.mubr.bf16.gmra.mxu0 %v4471
    %v4648 = vpop.f32.mrf.mxu0
    %v4649 = vadd.f32 %v3382, %v4648
    %v4650 = vpop.f32.mrf.mxu0
    %v4651 = vadd.f32 %v3386, %v4650
    %v4652 = vpop.f32.mrf.mxu0
    %v4653 = vadd.f32 %v3382, %v4652
    %v4654 = vpop.f32.mrf.mxu0
    %v4655 = vadd.f32 %v3386, %v4654
    %4656 = vdwg.mxu0
    %4657 = vmatprep.subr.bf16.mxu0 %v3526
    %4658 = vmatpush1.bf16.msra.mxu0 %v3525
    %4659 = vmatprep.subr.bf16.mxu0 %v3522
    %4660 = vmatpush1.bf16.msra.mxu0 %v3521
    %4661 = vmatprep.subr.bf16.mxu0 %v3518
    %4662 = vmatpush1.bf16.msra.mxu0 %v3517
    %4663 = vmatprep.subr.bf16.mxu0 %v3514
    %4664 = vmatpush1.bf16.msra.mxu0 %v3513
    %4665 = vmatprep.subr.bf16.mxu0 %v3510
    %4666 = vmatpush1.bf16.msra.mxu0 %v3509
    %4667 = vmatprep.subr.bf16.mxu0 %v3506
    %4668 = vmatpush1.bf16.msra.mxu0 %v3505
    %4669 = vmatprep.subr.bf16.mxu0 %v3502
    %4670 = vmatpush1.bf16.msra.mxu0 %v3501
    %4671 = vmatprep.subr.bf16.mxu0 %v3498
    %4672 = vmatpush1.bf16.msra.mxu0 %v3497
    %4673 = vmatprep.subr.bf16.mxu0 0
    %4674 = vmatpush2.bf16.msra.mxu0 0
    %4675 = vmatprep.subr.bf16.mxu0 0
    %4676 = vmatpush2.bf16.msra.mxu0 0
    %4677 = vmatprep.subr.bf16.mxu0 0
    %4678 = vmatpush2.bf16.msra.mxu0 0
    %4679 = vmatprep.subr.bf16.mxu0 0
    %4680 = vmatpush2.bf16.msra.mxu0 0
    %4681 = vmatprep.subr.bf16.mxu0 0
    %4682 = vmatpush2.bf16.msra.mxu0 0
    %4683 = vmatprep.subr.bf16.mxu0 0
    %4684 = vmatpush2.bf16.msra.mxu0 0
    %4685 = vmatprep.subr.bf16.mxu0 0
    %4686 = vmatpush2.bf16.msra.mxu0 0
    %4687 = vmatprep.subr.bf16.mxu0 0
    %4688 = vmatpush2.bf16.msra.mxu0 0
    %4689 = vmatprep.mubr.bf16.mxu0 0
    %4690 = vmatmul.mubr.bf16.gmra.mxu0 %v4471
    %v4691 = vpop.f32.mrf.mxu0
    %v4692 = vadd.f32 %v3390, %v4691
    %v4693 = vpop.f32.mrf.mxu0
    %v4694 = vadd.f32 %v3394, %v4693
    %v4695 = vpop.f32.mrf.mxu0
    %v4696 = vadd.f32 %v3390, %v4695
    %v4697 = vpop.f32.mrf.mxu0
    %v4698 = vadd.f32 %v3394, %v4697
    %4699 = vdwg.mxu0
    %v4700 = vpack.c.bf16 %v3692, %v3691
    %s4701 = scalar_lea.vmem [#allocation9], 512
    %v4702 = vld [vmem:[%s4701] sm:$0xff]
    %v4703 = vld [vmem:[%s4701 + $0x8] sm:$0xff]
    %v4704 = vld [vmem:[%s4701 + $0x10] sm:$0xff]
    %v4705 = vld [vmem:[%s4701 + $0x18] sm:$0xff]
    %v4706 = vld [vmem:[%s4701 + $0x20] sm:$0xff]
    %v4707 = vld [vmem:[%s4701 + $0x28] sm:$0xff]
    %v4708 = vld [vmem:[%s4701 + $0x30] sm:$0xff]
    %v4709 = vld [vmem:[%s4701 + $0x38] sm:$0xff]
    %v4710 = vld [vmem:[%s4701 + $0x40] sm:$0xff]
    %v4711 = vld [vmem:[%s4701 + $0x48] sm:$0xff]
    %v4712 = vld [vmem:[%s4701 + $0x50] sm:$0xff]
    %v4713 = vld [vmem:[%s4701 + $0x58] sm:$0xff]
    %v4714 = vld [vmem:[%s4701 + $0x60] sm:$0xff]
    %v4715 = vld [vmem:[%s4701 + $0x68] sm:$0xff]
    %v4716 = vld [vmem:[%s4701 + $0x70] sm:$0xff]
    %v4717 = vld [vmem:[%s4701 + $0x78] sm:$0xff]
    %v4718 = vld [vmem:[%s4701 + $0x80] sm:$0xff]
    %v4719 = vld [vmem:[%s4701 + $0x88] sm:$0xff]
    %v4720 = vld [vmem:[%s4701 + $0x90] sm:$0xff]
    %v4721 = vld [vmem:[%s4701 + $0x98] sm:$0xff]
    %v4722 = vld [vmem:[%s4701 + $0xa0] sm:$0xff]
    %v4723 = vld [vmem:[%s4701 + $0xa8] sm:$0xff]
    %v4724 = vld [vmem:[%s4701 + $0xb0] sm:$0xff]
    %v4725 = vld [vmem:[%s4701 + $0xb8] sm:$0xff]
    %v4726 = vld [vmem:[%s4701 + $0xc0] sm:$0xff]
    %v4727 = vld [vmem:[%s4701 + $0xc8] sm:$0xff]
    %v4728 = vld [vmem:[%s4701 + $0xd0] sm:$0xff]
    %v4729 = vld [vmem:[%s4701 + $0xd8] sm:$0xff]
    %v4730 = vld [vmem:[%s4701 + $0xe0] sm:$0xff]
    %v4731 = vld [vmem:[%s4701 + $0xe8] sm:$0xff]
    %v4732 = vld [vmem:[%s4701 + $0xf0] sm:$0xff]
    %v4733 = vld [vmem:[%s4701 + $0xf8] sm:$0xff]
    %v4766 = vunpack.c.l.b16 %v4702
    %v4767 = vunpack.c.h.b16 %v4702
    %v4768 = vunpack.c.l.b16 %v4703
    %v4769 = vunpack.c.h.b16 %v4703
    %v4770 = vunpack.c.l.b16 %v4704
    %v4771 = vunpack.c.h.b16 %v4704
    %v4772 = vunpack.c.l.b16 %v4705
    %v4773 = vunpack.c.h.b16 %v4705
    %v4774 = vunpack.c.l.b16 %v4706
    %v4775 = vunpack.c.h.b16 %v4706
    %v4776 = vunpack.c.l.b16 %v4707
    %v4777 = vunpack.c.h.b16 %v4707
    %v4778 = vunpack.c.l.b16 %v4708
    %v4779 = vunpack.c.h.b16 %v4708
    %v4780 = vunpack.c.l.b16 %v4709
    %v4781 = vunpack.c.h.b16 %v4709
    %v4782 = vunpack.c.l.b16 %v4710
    %v4783 = vunpack.c.h.b16 %v4710
    %v4784 = vunpack.c.l.b16 %v4711
    %v4785 = vunpack.c.h.b16 %v4711
    %v4786 = vunpack.c.l.b16 %v4712
    %v4787 = vunpack.c.h.b16 %v4712
    %v4788 = vunpack.c.l.b16 %v4713
    %v4789 = vunpack.c.h.b16 %v4713
    %v4790 = vunpack.c.l.b16 %v4714
    %v4791 = vunpack.c.h.b16 %v4714
    %v4792 = vunpack.c.l.b16 %v4715
    %v4793 = vunpack.c.h.b16 %v4715
    %v4794 = vunpack.c.l.b16 %v4716
    %v4795 = vunpack.c.h.b16 %v4716
    %v4796 = vunpack.c.l.b16 %v4717
    %v4797 = vunpack.c.h.b16 %v4717
    %v4798 = vunpack.c.l.b16 %v4718
    %v4799 = vunpack.c.h.b16 %v4718
    %v4800 = vunpack.c.l.b16 %v4719
    %v4801 = vunpack.c.h.b16 %v4719
    %v4802 = vunpack.c.l.b16 %v4720
    %v4803 = vunpack.c.h.b16 %v4720
    %v4804 = vunpack.c.l.b16 %v4721
    %v4805 = vunpack.c.h.b16 %v4721
    %v4806 = vunpack.c.l.b16 %v4722
    %v4807 = vunpack.c.h.b16 %v4722
    %v4808 = vunpack.c.l.b16 %v4723
    %v4809 = vunpack.c.h.b16 %v4723
    %v4810 = vunpack.c.l.b16 %v4724
    %v4811 = vunpack.c.h.b16 %v4724
    %v4812 = vunpack.c.l.b16 %v4725
    %v4813 = vunpack.c.h.b16 %v4725
    %v4814 = vunpack.c.l.b16 %v4726
    %v4815 = vunpack.c.h.b16 %v4726
    %v4816 = vunpack.c.l.b16 %v4727
    %v4817 = vunpack.c.h.b16 %v4727
    %v4818 = vunpack.c.l.b16 %v4728
    %v4819 = vunpack.c.h.b16 %v4728
    %v4820 = vunpack.c.l.b16 %v4729
    %v4821 = vunpack.c.h.b16 %v4729
    %v4822 = vunpack.c.l.b16 %v4730
    %v4823 = vunpack.c.h.b16 %v4730
    %v4824 = vunpack.c.l.b16 %v4731
    %v4825 = vunpack.c.h.b16 %v4731
    %v4826 = vunpack.c.l.b16 %v4732
    %v4827 = vunpack.c.h.b16 %v4732
    %v4828 = vunpack.c.l.b16 %v4733
    %v4829 = vunpack.c.h.b16 %v4733
    %v4830 = vpack.c.b16 %v4770, %v4766
    %v4831 = vpack.c.b16 %v4771, %v4767
    %v4832 = vpack.c.b16 %v4772, %v4768
    %v4833 = vpack.c.b16 %v4773, %v4769
    %v4834 = vpack.c.b16 %v4778, %v4774
    %v4835 = vpack.c.b16 %v4779, %v4775
    %v4836 = vpack.c.b16 %v4780, %v4776
    %v4837 = vpack.c.b16 %v4781, %v4777
    %v4838 = vpack.c.b16 %v4786, %v4782
    %v4839 = vpack.c.b16 %v4787, %v4783
    %v4840 = vpack.c.b16 %v4788, %v4784
    %v4841 = vpack.c.b16 %v4789, %v4785
    %v4842 = vpack.c.b16 %v4794, %v4790
    %v4843 = vpack.c.b16 %v4795, %v4791
    %v4844 = vpack.c.b16 %v4796, %v4792
    %v4845 = vpack.c.b16 %v4797, %v4793
    %v4846 = vpack.c.b16 %v4802, %v4798
    %v4847 = vpack.c.b16 %v4803, %v4799
    %v4848 = vpack.c.b16 %v4804, %v4800
    %v4849 = vpack.c.b16 %v4805, %v4801
    %v4850 = vpack.c.b16 %v4810, %v4806
    %v4851 = vpack.c.b16 %v4811, %v4807
    %v4852 = vpack.c.b16 %v4812, %v4808
    %v4853 = vpack.c.b16 %v4813, %v4809
    %v4854 = vpack.c.b16 %v4818, %v4814
    %v4855 = vpack.c.b16 %v4819, %v4815
    %v4856 = vpack.c.b16 %v4820, %v4816
    %v4857 = vpack.c.b16 %v4821, %v4817
    %v4858 = vpack.c.b16 %v4826, %v4822
    %v4859 = vpack.c.b16 %v4827, %v4823
    %v4860 = vpack.c.b16 %v4828, %v4824
    %v4861 = vpack.c.b16 %v4829, %v4825
    %4894 = vmatprep.subr.bf16.mxu0 %v4859
    %4895 = vmatpush1.bf16.msra.mxu0 %v4858
    %4896 = vmatprep.subr.bf16.mxu0 %v4855
    %4897 = vmatpush1.bf16.msra.mxu0 %v4854
    %4898 = vmatprep.subr.bf16.mxu0 %v4851
    %4899 = vmatpush1.bf16.msra.mxu0 %v4850
    %4900 = vmatprep.subr.bf16.mxu0 %v4847
    %4901 = vmatpush1.bf16.msra.mxu0 %v4846
    %4902 = vmatprep.subr.bf16.mxu0 %v4843
    %4903 = vmatpush1.bf16.msra.mxu0 %v4842
    %4904 = vmatprep.subr.bf16.mxu0 %v4839
    %4905 = vmatpush1.bf16.msra.mxu0 %v4838
    %4906 = vmatprep.subr.bf16.mxu0 %v4835
    %4907 = vmatpush1.bf16.msra.mxu0 %v4834
    %4908 = vmatprep.subr.bf16.mxu0 %v4831
    %4909 = vmatpush1.bf16.msra.mxu0 %v4830
    %4910 = vmatprep.subr.bf16.mxu0 0
    %4911 = vmatpush2.bf16.msra.mxu0 0
    %4912 = vmatprep.subr.bf16.mxu0 0
    %4913 = vmatpush2.bf16.msra.mxu0 0
    %4914 = vmatprep.subr.bf16.mxu0 0
    %4915 = vmatpush2.bf16.msra.mxu0 0
    %4916 = vmatprep.subr.bf16.mxu0 0
    %4917 = vmatpush2.bf16.msra.mxu0 0
    %4918 = vmatprep.subr.bf16.mxu0 0
    %4919 = vmatpush2.bf16.msra.mxu0 0
    %4920 = vmatprep.subr.bf16.mxu0 0
    %4921 = vmatpush2.bf16.msra.mxu0 0
    %4922 = vmatprep.subr.bf16.mxu0 0
    %4923 = vmatpush2.bf16.msra.mxu0 0
    %4924 = vmatprep.subr.bf16.mxu0 0
    %4925 = vmatpush2.bf16.msra.mxu0 0
    %4926 = vmatprep.mubr.bf16.mxu0 0
    %4927 = vmatmul.mubr.bf16.gmra.mxu0 %v4700
    %v4928 = vpop.f32.mrf.mxu0
    %v4929 = vadd.f32 0.0, %v4928
    %v4930 = vpop.f32.mrf.mxu0
    %v4931 = vadd.f32 0.0, %v4930
    %v4932 = vpop.f32.mrf.mxu0
    %v4933 = vadd.f32 0.0, %v4932
    %v4934 = vpop.f32.mrf.mxu0
    %v4935 = vadd.f32 0.0, %v4934
    %4936 = vdwg.mxu0
    %4937 = vmatprep.subr.bf16.mxu0 %v4861
    %4938 = vmatpush1.bf16.msra.mxu0 %v4860
    %4939 = vmatprep.subr.bf16.mxu0 %v4857
    %4940 = vmatpush1.bf16.msra.mxu0 %v4856
    %4941 = vmatprep.subr.bf16.mxu0 %v4853
    %4942 = vmatpush1.bf16.msra.mxu0 %v4852
    %4943 = vmatprep.subr.bf16.mxu0 %v4849
    %4944 = vmatpush1.bf16.msra.mxu0 %v4848
    %4945 = vmatprep.subr.bf16.mxu0 %v4845
    %4946 = vmatpush1.bf16.msra.mxu0 %v4844
    %4947 = vmatprep.subr.bf16.mxu0 %v4841
    %4948 = vmatpush1.bf16.msra.mxu0 %v4840
    %4949 = vmatprep.subr.bf16.mxu0 %v4837
    %4950 = vmatpush1.bf16.msra.mxu0 %v4836
    %4951 = vmatprep.subr.bf16.mxu0 %v4833
    %4952 = vmatpush1.bf16.msra.mxu0 %v4832
    %4953 = vmatprep.subr.bf16.mxu0 0
    %4954 = vmatpush2.bf16.msra.mxu0 0
    %4955 = vmatprep.subr.bf16.mxu0 0
    %4956 = vmatpush2.bf16.msra.mxu0 0
    %4957 = vmatprep.subr.bf16.mxu0 0
    %4958 = vmatpush2.bf16.msra.mxu0 0
    %4959 = vmatprep.subr.bf16.mxu0 0
    %4960 = vmatpush2.bf16.msra.mxu0 0
    %4961 = vmatprep.subr.bf16.mxu0 0
    %4962 = vmatpush2.bf16.msra.mxu0 0
    %4963 = vmatprep.subr.bf16.mxu0 0
    %4964 = vmatpush2.bf16.msra.mxu0 0
    %4965 = vmatprep.subr.bf16.mxu0 0
    %4966 = vmatpush2.bf16.msra.mxu0 0
    %4967 = vmatprep.subr.bf16.mxu0 0
    %4968 = vmatpush2.bf16.msra.mxu0 0
    %4969 = vmatprep.mubr.bf16.mxu0 0
    %4970 = vmatmul.mubr.bf16.gmra.mxu0 %v4700
    %v4971 = vpop.f32.mrf.mxu0
    %v4972 = vadd.f32 0.0, %v4971
    %v4973 = vpop.f32.mrf.mxu0
    %v4974 = vadd.f32 0.0, %v4973
    %v4975 = vpop.f32.mrf.mxu0
    %v4976 = vadd.f32 0.0, %v4975
    %v4977 = vpop.f32.mrf.mxu0
    %v4978 = vadd.f32 0.0, %v4977
    %4979 = vdwg.mxu0
    %v4980 = vadd.f32 %v4649, %v4929
    %v4981 = vadd.f32 %v4651, %v4931
    %v4982 = vadd.f32 %v4692, %v4972
    %v4983 = vadd.f32 %v4694, %v4974
    %v4984 = vadd.f32 %v4653, %v4933
    %v4985 = vadd.f32 %v4655, %v4935
    %v4986 = vadd.f32 %v4696, %v4976
    %v4987 = vadd.f32 %v4698, %v4978
    %v4988 = vxor.u32 %v4980, 2147483648
    %v4989 = vxor.u32 %v4981, 2147483648
    %v4990 = vxor.u32 %v4982, 2147483648
    %v4991 = vxor.u32 %v4984, 2147483648
    %v4992 = vxor.u32 %v4985, 2147483648
    %v4993 = vxor.u32 %v4986, 2147483648
    %v4994 = vmul.f32 %v4988, 1.442695
    %v4995 = vpow.pop %v4994
    %v4996 = vmul.f32 %v4989, 1.442695
    %v4997 = vpow.pop %v4996
    %v4998 = vmul.f32 %v4990, 1.442695
    %v4999 = vpow.pop %v4998
    %v5000 = vmul.f32 %v4991, 1.442695
    %v5001 = vpow.pop %v5000
    %v5002 = vmul.f32 %v4992, 1.442695
    %v5003 = vpow.pop %v5002
    %v5004 = vmul.f32 %v4993, 1.442695
    %v5005 = vpow.pop %v5004
    %v5006 = vadd.f32 %v4995, 1.0
    %v5007 = vadd.f32 %v4997, 1.0
    %v5008 = vadd.f32 %v4999, 1.0
    %v5009 = vadd.f32 %v5001, 1.0
    %v5010 = vadd.f32 %v5003, 1.0
    %v5011 = vadd.f32 %v5005, 1.0
    %v5012 = vrcp.pop %v5006
    %v5013 = vmul.f32 1.0, %v5012
    %v5014 = vrcp.pop %v5007
    %v5015 = vmul.f32 1.0, %v5014
    %v5016 = vrcp.pop %v5008
    %v5017 = vmul.f32 1.0, %v5016
    %v5018 = vrcp.pop %v5009
    %v5019 = vmul.f32 1.0, %v5018
    %v5020 = vrcp.pop %v5010
    %v5021 = vmul.f32 1.0, %v5020
    %v5022 = vrcp.pop %v5011
    %v5023 = vmul.f32 1.0, %v5022
    %v5024 = vtanh.pop %v4983
    %v5025 = vtanh.pop %v4987
    %v5026 = vmul.f32 %v5015, %v3687
    %v5027 = vmul.f32 %v5021, %v3688
    %v5028 = vmul.f32 %v5013, %v5024
    %v5029 = vmul.f32 %v5019, %v5025
    %v5030 = vadd.f32 %v5026, %v5028
    %v5031 = vadd.f32 %v5027, %v5029
    %v5032 = vtanh.pop %v5030
    %v5033 = vtanh.pop %v5031
    %v5034 = vmul.f32 %v5017, %v5032
    %v5035 = vmul.f32 %v5023, %v5033
    %s5036 = scalar_lea.vmem [#allocation2], 4
    %v5037 = vld [vmem:[%s5036] ss:$8 sm:$0xf]
    %s5038 = scalar_lea.vmem [#allocation2], 36
    %v5039 = vld [vmem:[%s5038] ss:$8 sm:$0xf]
    %s5040 = scalar_lea.vmem [#allocation2], 68
    %v5041 = vld [vmem:[%s5040] ss:$8 sm:$0xf]
    %s5042 = scalar_lea.vmem [#allocation2], 100
    %v5043 = vld [vmem:[%s5042] ss:$8 sm:$0xf]
    %s5044 = scalar_lea.vmem [#allocation2], 132
    %v5045 = vld [vmem:[%s5044] ss:$8 sm:$0xf]
    %s5046 = scalar_lea.vmem [#allocation2], 164
    %v5047 = vld [vmem:[%s5046] ss:$8 sm:$0xf]
    %s5048 = scalar_lea.vmem [#allocation2], 196
    %v5049 = vld [vmem:[%s5048] ss:$8 sm:$0xf]
    %s5050 = scalar_lea.vmem [#allocation2], 228
    %v5051 = vld [vmem:[%s5050] ss:$8 sm:$0xf]
    %s5052 = scalar_lea.vmem [#allocation2], 260
    %v5053 = vld [vmem:[%s5052] ss:$8 sm:$0xf]
    %s5054 = scalar_lea.vmem [#allocation2], 292
    %v5055 = vld [vmem:[%s5054] ss:$8 sm:$0xf]
    %s5056 = scalar_lea.vmem [#allocation2], 324
    %v5057 = vld [vmem:[%s5056] ss:$8 sm:$0xf]
    %s5058 = scalar_lea.vmem [#allocation2], 356
    %v5059 = vld [vmem:[%s5058] ss:$8 sm:$0xf]
    %s5060 = scalar_lea.vmem [#allocation2], 388
    %v5061 = vld [vmem:[%s5060] ss:$8 sm:$0xf]
    %s5062 = scalar_lea.vmem [#allocation2], 420
    %v5063 = vld [vmem:[%s5062] ss:$8 sm:$0xf]
    %s5064 = scalar_lea.vmem [#allocation2], 452
    %v5065 = vld [vmem:[%s5064] ss:$8 sm:$0xf]
    %s5066 = scalar_lea.vmem [#allocation2], 484
    %v5067 = vld [vmem:[%s5066] ss:$8 sm:$0xf]
    %v5068 = vpack.c.bf16 %v4369, %v4369
    %v5069 = vpack.c.bf16 %v4370, %v4370
    %v5070 = vpack.c.bf16 %v4371, %v4371
    %v5071 = vpack.c.bf16 %v4372, %v4372
    %v5072 = vpack.c.bf16 %v4373, %v4373
    %v5073 = vpack.c.bf16 %v4374, %v4374
    %v5074 = vpack.c.bf16 %v4375, %v4375
    %v5075 = vpack.c.bf16 %v4376, %v4376
    %v5076 = vpack.c.bf16 %v4377, %v4377
    %v5077 = vpack.c.bf16 %v4378, %v4378
    %v5078 = vpack.c.bf16 %v4379, %v4379
    %v5079 = vpack.c.bf16 %v4380, %v4380
    %v5080 = vpack.c.bf16 %v4381, %v4381
    %v5081 = vpack.c.bf16 %v4382, %v4382
    %v5082 = vpack.c.bf16 %v4383, %v4383
    %v5083 = vpack.c.bf16 %v4384, %v4384
    %v5100 = vunpack.c.l.b16 %v5068
    %v5101 = vunpack.c.l.b16 %v5069
    %v5102 = vunpack.c.l.b16 %v5070
    %v5103 = vunpack.c.l.b16 %v5071
    %v5104 = vunpack.c.l.b16 %v5072
    %v5105 = vunpack.c.l.b16 %v5073
    %v5106 = vunpack.c.l.b16 %v5074
    %v5107 = vunpack.c.l.b16 %v5075
    %v5108 = vunpack.c.l.b16 %v5076
    %v5109 = vunpack.c.l.b16 %v5077
    %v5110 = vunpack.c.l.b16 %v5078
    %v5111 = vunpack.c.l.b16 %v5079
    %v5112 = vunpack.c.l.b16 %v5080
    %v5113 = vunpack.c.l.b16 %v5081
    %v5114 = vunpack.c.l.b16 %v5082
    %v5115 = vunpack.c.l.b16 %v5083
    %v5116 = vrot.slane %v5101, 7
    %v5117 = vsel %vm1102, %v5116, %v5100
    %v5118 = vrot.slane %v5102, 6
    %v5119 = vsel %vm1105, %v5118, %v5117
    %v5120 = vrot.slane %v5103, 5
    %v5121 = vsel %vm1108, %v5120, %v5119
    %v5122 = vrot.slane %v5104, 4
    %v5123 = vsel %vm1111, %v5122, %v5121
    %v5124 = vrot.slane %v5105, 3
    %v5125 = vsel %vm1114, %v5124, %v5123
    %v5126 = vrot.slane %v5106, 2
    %v5127 = vsel %vm1117, %v5126, %v5125
    %v5128 = vrot.slane %v5107, 1
    %v5129 = vsel %vm1120, %v5128, %v5127
    %v5130 = vrot.slane %v5109, 7
    %v5131 = vsel %vm1102, %v5130, %v5108
    %v5132 = vrot.slane %v5110, 6
    %v5133 = vsel %vm1105, %v5132, %v5131
    %v5134 = vrot.slane %v5111, 5
    %v5135 = vsel %vm1108, %v5134, %v5133
    %v5136 = vrot.slane %v5112, 4
    %v5137 = vsel %vm1111, %v5136, %v5135
    %v5138 = vrot.slane %v5113, 3
    %v5139 = vsel %vm1114, %v5138, %v5137
    %v5140 = vrot.slane %v5114, 2
    %v5141 = vsel %vm1117, %v5140, %v5139
    %v5142 = vrot.slane %v5115, 1
    %v5143 = vsel %vm1120, %v5142, %v5141
    %v5144 = vpack.c.b16 %v5143, %v5129
    %5146 = vmatprep.subr.bf16.mxu0 %v1263
    %5147 = vmatpush1.bf16.msra.mxu0 %v1262
    %5148 = vmatprep.subr.bf16.mxu0 %v1259
    %5149 = vmatpush1.bf16.msra.mxu0 %v1258
    %5150 = vmatprep.subr.bf16.mxu0 %v1255
    %5151 = vmatpush1.bf16.msra.mxu0 %v1254
    %5152 = vmatprep.subr.bf16.mxu0 %v1251
    %5153 = vmatpush1.bf16.msra.mxu0 %v1250
    %5154 = vmatprep.subr.bf16.mxu0 %v1247
    %5155 = vmatpush1.bf16.msra.mxu0 %v1246
    %5156 = vmatprep.subr.bf16.mxu0 %v1243
    %5157 = vmatpush1.bf16.msra.mxu0 %v1242
    %5158 = vmatprep.subr.bf16.mxu0 %v1239
    %5159 = vmatpush1.bf16.msra.mxu0 %v1238
    %5160 = vmatprep.subr.bf16.mxu0 %v1235
    %5161 = vmatpush1.bf16.msra.mxu0 %v1234
    %5162 = vmatprep.subr.bf16.mxu0 0
    %5163 = vmatpush2.bf16.msra.mxu0 0
    %5164 = vmatprep.subr.bf16.mxu0 0
    %5165 = vmatpush2.bf16.msra.mxu0 0
    %5166 = vmatprep.subr.bf16.mxu0 0
    %5167 = vmatpush2.bf16.msra.mxu0 0
    %5168 = vmatprep.subr.bf16.mxu0 0
    %5169 = vmatpush2.bf16.msra.mxu0 0
    %5170 = vmatprep.subr.bf16.mxu0 0
    %5171 = vmatpush2.bf16.msra.mxu0 0
    %5172 = vmatprep.subr.bf16.mxu0 0
    %5173 = vmatpush2.bf16.msra.mxu0 0
    %5174 = vmatprep.subr.bf16.mxu0 0
    %5175 = vmatpush2.bf16.msra.mxu0 0
    %5176 = vmatprep.subr.bf16.mxu0 0
    %5177 = vmatpush2.bf16.msra.mxu0 0
    %5178 = vmatprep.mubr.bf16.mxu0 0
    %5179 = vmatmul.mubr.bf16.gmra.mxu0 %v5144
    %v5180 = vpop.f32.mrf.mxu0
    %v5181 = vadd.f32 0.0, %v5180
    %v5182 = vpop.f32.mrf.mxu0
    %v5183 = vadd.f32 0.0, %v5182
    %v5184 = vpop.f32.mrf.mxu0
    %v5185 = vadd.f32 0.0, %v5184
    %v5186 = vpop.f32.mrf.mxu0
    %v5187 = vadd.f32 0.0, %v5186
    %5188 = vdwg.mxu0
    %5189 = vmatprep.subr.bf16.mxu0 %v1265
    %5190 = vmatpush1.bf16.msra.mxu0 %v1264
    %5191 = vmatprep.subr.bf16.mxu0 %v1261
    %5192 = vmatpush1.bf16.msra.mxu0 %v1260
    %5193 = vmatprep.subr.bf16.mxu0 %v1257
    %5194 = vmatpush1.bf16.msra.mxu0 %v1256
    %5195 = vmatprep.subr.bf16.mxu0 %v1253
    %5196 = vmatpush1.bf16.msra.mxu0 %v1252
    %5197 = vmatprep.subr.bf16.mxu0 %v1249
    %5198 = vmatpush1.bf16.msra.mxu0 %v1248
    %5199 = vmatprep.subr.bf16.mxu0 %v1245
    %5200 = vmatpush1.bf16.msra.mxu0 %v1244
    %5201 = vmatprep.subr.bf16.mxu0 %v1241
    %5202 = vmatpush1.bf16.msra.mxu0 %v1240
    %5203 = vmatprep.subr.bf16.mxu0 %v1237
    %5204 = vmatpush1.bf16.msra.mxu0 %v1236
    %5205 = vmatprep.subr.bf16.mxu0 0
    %5206 = vmatpush2.bf16.msra.mxu0 0
    %5207 = vmatprep.subr.bf16.mxu0 0
    %5208 = vmatpush2.bf16.msra.mxu0 0
    %5209 = vmatprep.subr.bf16.mxu0 0
    %5210 = vmatpush2.bf16.msra.mxu0 0
    %5211 = vmatprep.subr.bf16.mxu0 0
    %5212 = vmatpush2.bf16.msra.mxu0 0
    %5213 = vmatprep.subr.bf16.mxu0 0
    %5214 = vmatpush2.bf16.msra.mxu0 0
    %5215 = vmatprep.subr.bf16.mxu0 0
    %5216 = vmatpush2.bf16.msra.mxu0 0
    %5217 = vmatprep.subr.bf16.mxu0 0
    %5218 = vmatpush2.bf16.msra.mxu0 0
    %5219 = vmatprep.subr.bf16.mxu0 0
    %5220 = vmatpush2.bf16.msra.mxu0 0
    %5221 = vmatprep.mubr.bf16.mxu0 0
    %5222 = vmatmul.mubr.bf16.gmra.mxu0 %v5144
    %v5223 = vpop.f32.mrf.mxu0
    %v5224 = vadd.f32 0.0, %v5223
    %v5225 = vpop.f32.mrf.mxu0
    %v5226 = vadd.f32 0.0, %v5225
    %v5227 = vpop.f32.mrf.mxu0
    %v5228 = vadd.f32 0.0, %v5227
    %v5229 = vpop.f32.mrf.mxu0
    %v5230 = vadd.f32 0.0, %v5229
    %5231 = vdwg.mxu0
    %v5240 = vcombine.low %v5181, %v5183
    %v5241 = vcombine.high %v5181, %v5183
    %v5242 = vcombine.low %v5224, %v5226
    %v5243 = vcombine.high %v5224, %v5226
    %v5245 = vunpack.c.l.s4 1966171168
    %v5246 = vunpack.c.0.s8 %v5245
    %v5247 = vlaneseq
    %v5248 = vshrl.u32 %v5247, 7
    %v5249 = vsub.s32 %v5246, %v5248
    %v5250 = vrot.slane %v5240, %v5249
    %v5252 = vunpack.c.l.s4 1966171168
    %v5253 = vunpack.c.0.s8 %v5252
    %v5254 = vlaneseq
    %v5255 = vshrl.u32 %v5254, 7
    %v5256 = vsub.s32 %v5253, %v5255
    %v5257 = vrot.slane %v5241, %v5256
    %v5259 = vunpack.c.l.s4 1966171168
    %v5260 = vunpack.c.0.s8 %v5259
    %v5261 = vlaneseq
    %v5262 = vshrl.u32 %v5261, 7
    %v5263 = vsub.s32 %v5260, %v5262
    %v5264 = vrot.slane %v5242, %v5263
    %v5266 = vunpack.c.l.s4 1966171168
    %v5267 = vunpack.c.0.s8 %v5266
    %v5268 = vlaneseq
    %v5269 = vshrl.u32 %v5268, 7
    %v5270 = vsub.s32 %v5267, %v5269
    %v5271 = vrot.slane %v5243, %v5270
    %v5272 = vcombine.low %v5250, %v5264
    %v5273 = vcombine.high %v5250, %v5264
    %v5274 = vcombine.low %v5257, %v5271
    %v5275 = vcombine.high %v5257, %v5271
    %v5277 = vunpack.c.l.s4 1966171168
    %v5278 = vunpack.c.0.s8 %v5277
    %v5279 = vlaneseq
    %v5280 = vshrl.u32 %v5279, 7
    %v5281 = vsub.s32 %v5278, %v5280
    %v5282 = vrot.slane %v5272, %v5281
    %v5284 = vunpack.c.l.s4 1966171168
    %v5285 = vunpack.c.0.s8 %v5284
    %v5286 = vlaneseq
    %v5287 = vshrl.u32 %v5286, 7
    %v5288 = vsub.s32 %v5285, %v5287
    %v5289 = vrot.slane %v5274, %v5288
    %v5291 = vunpack.c.l.s4 1966171168
    %v5292 = vunpack.c.0.s8 %v5291
    %v5293 = vlaneseq
    %v5294 = vshrl.u32 %v5293, 7
    %v5295 = vsub.s32 %v5292, %v5294
    %v5296 = vrot.slane %v5273, %v5295
    %v5298 = vunpack.c.l.s4 1966171168
    %v5299 = vunpack.c.0.s8 %v5298
    %v5300 = vlaneseq
    %v5301 = vshrl.u32 %v5300, 7
    %v5302 = vsub.s32 %v5299, %v5301
    %v5303 = vrot.slane %v5275, %v5302
    %v5304 = vcombine.high %v5282, %v5282
    %v5305 = vcombine.high %v5289, %v5289
    %v5306 = vcombine.high %v5296, %v5296
    %v5307 = vcombine.high %v5303, %v5303
    %v5308 = vcombine.low %v5185, %v5187
    %v5309 = vcombine.high %v5185, %v5187
    %v5310 = vcombine.low %v5228, %v5230
    %v5311 = vcombine.high %v5228, %v5230
    %v5313 = vunpack.c.l.s4 1966171168
    %v5314 = vunpack.c.0.s8 %v5313
    %v5315 = vlaneseq
    %v5316 = vshrl.u32 %v5315, 7
    %v5317 = vsub.s32 %v5314, %v5316
    %v5318 = vrot.slane %v5308, %v5317
    %v5320 = vunpack.c.l.s4 1966171168
    %v5321 = vunpack.c.0.s8 %v5320
    %v5322 = vlaneseq
    %v5323 = vshrl.u32 %v5322, 7
    %v5324 = vsub.s32 %v5321, %v5323
    %v5325 = vrot.slane %v5309, %v5324
    %v5327 = vunpack.c.l.s4 1966171168
    %v5328 = vunpack.c.0.s8 %v5327
    %v5329 = vlaneseq
    %v5330 = vshrl.u32 %v5329, 7
    %v5331 = vsub.s32 %v5328, %v5330
    %v5332 = vrot.slane %v5310, %v5331
    %v5334 = vunpack.c.l.s4 1966171168
    %v5335 = vunpack.c.0.s8 %v5334
    %v5336 = vlaneseq
    %v5337 = vshrl.u32 %v5336, 7
    %v5338 = vsub.s32 %v5335, %v5337
    %v5339 = vrot.slane %v5311, %v5338
    %v5340 = vcombine.low %v5318, %v5332
    %v5341 = vcombine.high %v5318, %v5332
    %v5342 = vcombine.low %v5325, %v5339
    %v5343 = vcombine.high %v5325, %v5339
    %v5345 = vunpack.c.l.s4 1966171168
    %v5346 = vunpack.c.0.s8 %v5345
    %v5347 = vlaneseq
    %v5348 = vshrl.u32 %v5347, 7
    %v5349 = vsub.s32 %v5346, %v5348
    %v5350 = vrot.slane %v5340, %v5349
    %v5352 = vunpack.c.l.s4 1966171168
    %v5353 = vunpack.c.0.s8 %v5352
    %v5354 = vlaneseq
    %v5355 = vshrl.u32 %v5354, 7
    %v5356 = vsub.s32 %v5353, %v5355
    %v5357 = vrot.slane %v5342, %v5356
    %v5359 = vunpack.c.l.s4 1966171168
    %v5360 = vunpack.c.0.s8 %v5359
    %v5361 = vlaneseq
    %v5362 = vshrl.u32 %v5361, 7
    %v5363 = vsub.s32 %v5360, %v5362
    %v5364 = vrot.slane %v5341, %v5363
    %v5366 = vunpack.c.l.s4 1966171168
    %v5367 = vunpack.c.0.s8 %v5366
    %v5368 = vlaneseq
    %v5369 = vshrl.u32 %v5368, 7
    %v5370 = vsub.s32 %v5367, %v5369
    %v5371 = vrot.slane %v5343, %v5370
    %v5372 = vcombine.high %v5350, %v5350
    %v5373 = vcombine.high %v5357, %v5357
    %v5374 = vcombine.high %v5364, %v5364
    %v5375 = vcombine.high %v5371, %v5371
    %v5392 = vadd.f32 %v5037, %v5282
    %v5393 = vadd.f32 %v5039, %v5296
    %v5394 = vadd.f32 %v5041, %v5304
    %v5395 = vadd.f32 %v5043, %v5306
    %v5396 = vadd.f32 %v5045, %v5289
    %v5397 = vadd.f32 %v5047, %v5303
    %v5398 = vadd.f32 %v5049, %v5305
    %v5399 = vadd.f32 %v5051, %v5307
    %v5400 = vadd.f32 %v5053, %v5350
    %v5401 = vadd.f32 %v5055, %v5364
    %v5402 = vadd.f32 %v5057, %v5372
    %v5403 = vadd.f32 %v5059, %v5374
    %v5404 = vadd.f32 %v5061, %v5357
    %v5405 = vadd.f32 %v5063, %v5371
    %v5406 = vadd.f32 %v5065, %v5373
    %v5407 = vadd.f32 %v5067, %v5375
    %v5408 = vxor.u32 %v5392, 2147483648
    %v5409 = vxor.u32 %v5393, 2147483648
    %v5410 = vxor.u32 %v5394, 2147483648
    %v5411 = vxor.u32 %v5395, 2147483648
    %v5412 = vxor.u32 %v5396, 2147483648
    %v5413 = vxor.u32 %v5397, 2147483648
    %v5414 = vxor.u32 %v5398, 2147483648
    %v5415 = vxor.u32 %v5399, 2147483648
    %v5416 = vxor.u32 %v5400, 2147483648
    %v5417 = vxor.u32 %v5401, 2147483648
    %v5418 = vxor.u32 %v5402, 2147483648
    %v5419 = vxor.u32 %v5403, 2147483648
    %v5420 = vxor.u32 %v5404, 2147483648
    %v5421 = vxor.u32 %v5405, 2147483648
    %v5422 = vxor.u32 %v5406, 2147483648
    %v5423 = vxor.u32 %v5407, 2147483648
    %v5424 = vmul.f32 %v5408, 1.442695
    %v5425 = vpow.pop %v5424
    %v5426 = vmul.f32 %v5409, 1.442695
    %v5427 = vpow.pop %v5426
    %v5428 = vmul.f32 %v5410, 1.442695
    %v5429 = vpow.pop %v5428
    %v5430 = vmul.f32 %v5411, 1.442695
    %v5431 = vpow.pop %v5430
    %v5432 = vmul.f32 %v5412, 1.442695
    %v5433 = vpow.pop %v5432
    %v5434 = vmul.f32 %v5413, 1.442695
    %v5435 = vpow.pop %v5434
    %v5436 = vmul.f32 %v5414, 1.442695
    %v5437 = vpow.pop %v5436
    %v5438 = vmul.f32 %v5415, 1.442695
    %v5439 = vpow.pop %v5438
    %v5440 = vmul.f32 %v5416, 1.442695
    %v5441 = vpow.pop %v5440
    %v5442 = vmul.f32 %v5417, 1.442695
    %v5443 = vpow.pop %v5442
    %v5444 = vmul.f32 %v5418, 1.442695
    %v5445 = vpow.pop %v5444
    %v5446 = vmul.f32 %v5419, 1.442695
    %v5447 = vpow.pop %v5446
    %v5448 = vmul.f32 %v5420, 1.442695
    %v5449 = vpow.pop %v5448
    %v5450 = vmul.f32 %v5421, 1.442695
    %v5451 = vpow.pop %v5450
    %v5452 = vmul.f32 %v5422, 1.442695
    %v5453 = vpow.pop %v5452
    %v5454 = vmul.f32 %v5423, 1.442695
    %v5455 = vpow.pop %v5454
    %v5456 = vadd.f32 %v5425, 1.0
    %v5457 = vadd.f32 %v5427, 1.0
    %v5458 = vadd.f32 %v5429, 1.0
    %v5459 = vadd.f32 %v5431, 1.0
    %v5460 = vadd.f32 %v5433, 1.0
    %v5461 = vadd.f32 %v5435, 1.0
    %v5462 = vadd.f32 %v5437, 1.0
    %v5463 = vadd.f32 %v5439, 1.0
    %v5464 = vadd.f32 %v5441, 1.0
    %v5465 = vadd.f32 %v5443, 1.0
    %v5466 = vadd.f32 %v5445, 1.0
    %v5467 = vadd.f32 %v5447, 1.0
    %v5468 = vadd.f32 %v5449, 1.0
    %v5469 = vadd.f32 %v5451, 1.0
    %v5470 = vadd.f32 %v5453, 1.0
    %v5471 = vadd.f32 %v5455, 1.0
    %v5472 = vrcp.pop %v5456
    %v5473 = vmul.f32 1.0, %v5472
    %v5474 = vrcp.pop %v5457
    %v5475 = vmul.f32 1.0, %v5474
    %v5476 = vrcp.pop %v5458
    %v5477 = vmul.f32 1.0, %v5476
    %v5478 = vrcp.pop %v5459
    %v5479 = vmul.f32 1.0, %v5478
    %v5480 = vrcp.pop %v5460
    %v5481 = vmul.f32 1.0, %v5480
    %v5482 = vrcp.pop %v5461
    %v5483 = vmul.f32 1.0, %v5482
    %v5484 = vrcp.pop %v5462
    %v5485 = vmul.f32 1.0, %v5484
    %v5486 = vrcp.pop %v5463
    %v5487 = vmul.f32 1.0, %v5486
    %v5488 = vrcp.pop %v5464
    %v5489 = vmul.f32 1.0, %v5488
    %v5490 = vrcp.pop %v5465
    %v5491 = vmul.f32 1.0, %v5490
    %v5492 = vrcp.pop %v5466
    %v5493 = vmul.f32 1.0, %v5492
    %v5494 = vrcp.pop %v5467
    %v5495 = vmul.f32 1.0, %v5494
    %v5496 = vrcp.pop %v5468
    %v5497 = vmul.f32 1.0, %v5496
    %v5498 = vrcp.pop %v5469
    %v5499 = vmul.f32 1.0, %v5498
    %v5500 = vrcp.pop %v5470
    %v5501 = vmul.f32 1.0, %v5500
    %v5502 = vrcp.pop %v5471
    %v5503 = vmul.f32 1.0, %v5502
    %v5520 = vrot.slane %v5392, 3
    %v5521 = vrot.slane %v5393, 3
    %v5522 = vrot.slane %v5394, 3
    %v5523 = vrot.slane %v5395, 3
    %v5524 = vrot.slane %v5396, 3
    %v5525 = vrot.slane %v5397, 3
    %v5526 = vrot.slane %v5398, 3
    %v5527 = vrot.slane %v5399, 3
    %v5528 = vrot.slane %v5400, 3
    %v5529 = vrot.slane %v5401, 3
    %v5530 = vrot.slane %v5402, 3
    %v5531 = vrot.slane %v5403, 3
    %v5532 = vrot.slane %v5404, 3
    %v5533 = vrot.slane %v5405, 3
    %v5534 = vrot.slane %v5406, 3
    %v5535 = vrot.slane %v5407, 3
    %v5552 = vtanh.pop %v5520
    %v5553 = vtanh.pop %v5521
    %v5554 = vtanh.pop %v5522
    %v5555 = vtanh.pop %v5523
    %v5556 = vtanh.pop %v5524
    %v5557 = vtanh.pop %v5525
    %v5558 = vtanh.pop %v5526
    %v5559 = vtanh.pop %v5527
    %v5560 = vtanh.pop %v5528
    %v5561 = vtanh.pop %v5529
    %v5562 = vtanh.pop %v5530
    %v5563 = vtanh.pop %v5531
    %v5564 = vtanh.pop %v5532
    %v5565 = vtanh.pop %v5533
    %v5566 = vtanh.pop %v5534
    %v5567 = vtanh.pop %v5535
    %v5584 = vrot.slane %v5473, 1
    %v5585 = vrot.slane %v5475, 1
    %v5586 = vrot.slane %v5477, 1
    %v5587 = vrot.slane %v5479, 1
    %v5588 = vrot.slane %v5481, 1
    %v5589 = vrot.slane %v5483, 1
    %v5590 = vrot.slane %v5485, 1
    %v5591 = vrot.slane %v5487, 1
    %v5592 = vrot.slane %v5489, 1
    %v5593 = vrot.slane %v5491, 1
    %v5594 = vrot.slane %v5493, 1
    %v5595 = vrot.slane %v5495, 1
    %v5596 = vrot.slane %v5497, 1
    %v5597 = vrot.slane %v5499, 1
    %v5598 = vrot.slane %v5501, 1
    %v5599 = vrot.slane %v5503, 1
    %v5616 = vmul.f32 %v5584, %v4305
    %v5617 = vmul.f32 %v5585, %v4306
    %v5618 = vmul.f32 %v5586, %v4307
    %v5619 = vmul.f32 %v5587, %v4308
    %v5620 = vmul.f32 %v5588, %v4309
    %v5621 = vmul.f32 %v5589, %v4310
    %v5622 = vmul.f32 %v5590, %v4311
    %v5623 = vmul.f32 %v5591, %v4312
    %v5624 = vmul.f32 %v5592, %v4313
    %v5625 = vmul.f32 %v5593, %v4314
    %v5626 = vmul.f32 %v5594, %v4315
    %v5627 = vmul.f32 %v5595, %v4316
    %v5628 = vmul.f32 %v5596, %v4317
    %v5629 = vmul.f32 %v5597, %v4318
    %v5630 = vmul.f32 %v5598, %v4319
    %v5631 = vmul.f32 %v5599, %v4320
    %v5632 = vmul.f32 %v5473, %v5552
    %v5633 = vmul.f32 %v5475, %v5553
    %v5634 = vmul.f32 %v5477, %v5554
    %v5635 = vmul.f32 %v5479, %v5555
    %v5636 = vmul.f32 %v5481, %v5556
    %v5637 = vmul.f32 %v5483, %v5557
    %v5638 = vmul.f32 %v5485, %v5558
    %v5639 = vmul.f32 %v5487, %v5559
    %v5640 = vmul.f32 %v5489, %v5560
    %v5641 = vmul.f32 %v5491, %v5561
    %v5642 = vmul.f32 %v5493, %v5562
    %v5643 = vmul.f32 %v5495, %v5563
    %v5644 = vmul.f32 %v5497, %v5564
    %v5645 = vmul.f32 %v5499, %v5565
    %v5646 = vmul.f32 %v5501, %v5566
    %v5647 = vmul.f32 %v5503, %v5567
    %v5648 = vadd.f32 %v5616, %v5632
    %v5649 = vadd.f32 %v5617, %v5633
    %v5650 = vadd.f32 %v5618, %v5634
    %v5651 = vadd.f32 %v5619, %v5635
    %v5652 = vadd.f32 %v5620, %v5636
    %v5653 = vadd.f32 %v5621, %v5637
    %v5654 = vadd.f32 %v5622, %v5638
    %v5655 = vadd.f32 %v5623, %v5639
    %v5656 = vadd.f32 %v5624, %v5640
    %v5657 = vadd.f32 %v5625, %v5641
    %v5658 = vadd.f32 %v5626, %v5642
    %v5659 = vadd.f32 %v5627, %v5643
    %v5660 = vadd.f32 %v5628, %v5644
    %v5661 = vadd.f32 %v5629, %v5645
    %v5662 = vadd.f32 %v5630, %v5646
    %v5663 = vadd.f32 %v5631, %v5647
    %v5664 = vtanh.pop %v5648
    %v5665 = vtanh.pop %v5649
    %v5666 = vtanh.pop %v5650
    %v5667 = vtanh.pop %v5651
    %v5668 = vtanh.pop %v5652
    %v5669 = vtanh.pop %v5653
    %v5670 = vtanh.pop %v5654
    %v5671 = vtanh.pop %v5655
    %v5672 = vtanh.pop %v5656
    %v5673 = vtanh.pop %v5657
    %v5674 = vtanh.pop %v5658
    %v5675 = vtanh.pop %v5659
    %v5676 = vtanh.pop %v5660
    %v5677 = vtanh.pop %v5661
    %v5678 = vtanh.pop %v5662
    %v5679 = vtanh.pop %v5663
    %v5680 = vrot.slane %v5473, 2
    %v5681 = vrot.slane %v5475, 2
    %v5682 = vrot.slane %v5477, 2
    %v5683 = vrot.slane %v5479, 2
    %v5684 = vrot.slane %v5481, 2
    %v5685 = vrot.slane %v5483, 2
    %v5686 = vrot.slane %v5485, 2
    %v5687 = vrot.slane %v5487, 2
    %v5688 = vrot.slane %v5489, 2
    %v5689 = vrot.slane %v5491, 2
    %v5690 = vrot.slane %v5493, 2
    %v5691 = vrot.slane %v5495, 2
    %v5692 = vrot.slane %v5497, 2
    %v5693 = vrot.slane %v5499, 2
    %v5694 = vrot.slane %v5501, 2
    %v5695 = vrot.slane %v5503, 2
    %v5712 = vmul.f32 %v5680, %v5664
    %v5713 = vmul.f32 %v5681, %v5665
    %v5714 = vmul.f32 %v5682, %v5666
    %v5715 = vmul.f32 %v5683, %v5667
    %v5716 = vmul.f32 %v5684, %v5668
    %v5717 = vmul.f32 %v5685, %v5669
    %v5718 = vmul.f32 %v5686, %v5670
    %v5719 = vmul.f32 %v5687, %v5671
    %v5720 = vmul.f32 %v5688, %v5672
    %v5721 = vmul.f32 %v5689, %v5673
    %v5722 = vmul.f32 %v5690, %v5674
    %v5723 = vmul.f32 %v5691, %v5675
    %v5724 = vmul.f32 %v5692, %v5676
    %v5725 = vmul.f32 %v5693, %v5677
    %v5726 = vmul.f32 %v5694, %v5678
    %v5727 = vmul.f32 %v5695, %v5679
    %5728 = vmatprep.subr.bf16.mxu0 %v2060
    %5729 = vmatpush1.bf16.msra.mxu0 %v2059
    %5730 = vmatprep.subr.bf16.mxu0 %v2056
    %5731 = vmatpush1.bf16.msra.mxu0 %v2055
    %5732 = vmatprep.subr.bf16.mxu0 %v2052
    %5733 = vmatpush1.bf16.msra.mxu0 %v2051
    %5734 = vmatprep.subr.bf16.mxu0 %v2048
    %5735 = vmatpush1.bf16.msra.mxu0 %v2047
    %5736 = vmatprep.subr.bf16.mxu0 %v2044
    %5737 = vmatpush1.bf16.msra.mxu0 %v2043
    %5738 = vmatprep.subr.bf16.mxu0 %v2040
    %5739 = vmatpush1.bf16.msra.mxu0 %v2039
    %5740 = vmatprep.subr.bf16.mxu0 %v2036
    %5741 = vmatpush1.bf16.msra.mxu0 %v2035
    %5742 = vmatprep.subr.bf16.mxu0 %v2032
    %5743 = vmatpush1.bf16.msra.mxu0 %v2031
    %5744 = vmatprep.subr.bf16.mxu0 0
    %5745 = vmatpush2.bf16.msra.mxu0 0
    %5746 = vmatprep.subr.bf16.mxu0 0
    %5747 = vmatpush2.bf16.msra.mxu0 0
    %5748 = vmatprep.subr.bf16.mxu0 0
    %5749 = vmatpush2.bf16.msra.mxu0 0
    %5750 = vmatprep.subr.bf16.mxu0 0
    %5751 = vmatpush2.bf16.msra.mxu0 0
    %5752 = vmatprep.subr.bf16.mxu0 0
    %5753 = vmatpush2.bf16.msra.mxu0 0
    %5754 = vmatprep.subr.bf16.mxu0 0
    %5755 = vmatpush2.bf16.msra.mxu0 0
    %5756 = vmatprep.subr.bf16.mxu0 0
    %5757 = vmatpush2.bf16.msra.mxu0 0
    %5758 = vmatprep.subr.bf16.mxu0 0
    %5759 = vmatpush2.bf16.msra.mxu0 0
    %5760 = vmatprep.mubr.bf16.mxu0 0
    %5761 = vmatmul.mubr.bf16.gmra.mxu0 %v5144
    %v5762 = vpop.f32.mrf.mxu0
    %v5763 = vadd.f32 %v1918, %v5762
    %v5764 = vpop.f32.mrf.mxu0
    %v5765 = vadd.f32 %v1922, %v5764
    %v5766 = vpop.f32.mrf.mxu0
    %v5767 = vadd.f32 %v1918, %v5766
    %v5768 = vpop.f32.mrf.mxu0
    %v5769 = vadd.f32 %v1922, %v5768
    %5770 = vdwg.mxu0
    %5771 = vmatprep.subr.bf16.mxu0 %v2062
    %5772 = vmatpush1.bf16.msra.mxu0 %v2061
    %5773 = vmatprep.subr.bf16.mxu0 %v2058
    %5774 = vmatpush1.bf16.msra.mxu0 %v2057
    %5775 = vmatprep.subr.bf16.mxu0 %v2054
    %5776 = vmatpush1.bf16.msra.mxu0 %v2053
    %5777 = vmatprep.subr.bf16.mxu0 %v2050
    %5778 = vmatpush1.bf16.msra.mxu0 %v2049
    %5779 = vmatprep.subr.bf16.mxu0 %v2046
    %5780 = vmatpush1.bf16.msra.mxu0 %v2045
    %5781 = vmatprep.subr.bf16.mxu0 %v2042
    %5782 = vmatpush1.bf16.msra.mxu0 %v2041
    %5783 = vmatprep.subr.bf16.mxu0 %v2038
    %5784 = vmatpush1.bf16.msra.mxu0 %v2037
    %5785 = vmatprep.subr.bf16.mxu0 %v2034
    %5786 = vmatpush1.bf16.msra.mxu0 %v2033
    %5787 = vmatprep.subr.bf16.mxu0 0
    %5788 = vmatpush2.bf16.msra.mxu0 0
    %5789 = vmatprep.subr.bf16.mxu0 0
    %5790 = vmatpush2.bf16.msra.mxu0 0
    %5791 = vmatprep.subr.bf16.mxu0 0
    %5792 = vmatpush2.bf16.msra.mxu0 0
    %5793 = vmatprep.subr.bf16.mxu0 0
    %5794 = vmatpush2.bf16.msra.mxu0 0
    %5795 = vmatprep.subr.bf16.mxu0 0
    %5796 = vmatpush2.bf16.msra.mxu0 0
    %5797 = vmatprep.subr.bf16.mxu0 0
    %5798 = vmatpush2.bf16.msra.mxu0 0
    %5799 = vmatprep.subr.bf16.mxu0 0
    %5800 = vmatpush2.bf16.msra.mxu0 0
    %5801 = vmatprep.subr.bf16.mxu0 0
    %5802 = vmatpush2.bf16.msra.mxu0 0
    %5803 = vmatprep.mubr.bf16.mxu0 0
    %5804 = vmatmul.mubr.bf16.gmra.mxu0 %v5144
    %v5805 = vpop.f32.mrf.mxu0
    %v5806 = vadd.f32 %v1926, %v5805
    %v5807 = vpop.f32.mrf.mxu0
    %v5808 = vadd.f32 %v1930, %v5807
    %v5809 = vpop.f32.mrf.mxu0
    %v5810 = vadd.f32 %v1926, %v5809
    %v5811 = vpop.f32.mrf.mxu0
    %v5812 = vadd.f32 %v1930, %v5811
    %5813 = vdwg.mxu0
    %v5814 = vpack.c.bf16 %v4613, %v4612
    %5815 = vmatprep.subr.bf16.mxu0 %v3166
    %5816 = vmatpush1.bf16.msra.mxu0 %v3165
    %5817 = vmatprep.subr.bf16.mxu0 %v3162
    %5818 = vmatpush1.bf16.msra.mxu0 %v3161
    %5819 = vmatprep.subr.bf16.mxu0 %v3158
    %5820 = vmatpush1.bf16.msra.mxu0 %v3157
    %5821 = vmatprep.subr.bf16.mxu0 %v3154
    %5822 = vmatpush1.bf16.msra.mxu0 %v3153
    %5823 = vmatprep.subr.bf16.mxu0 %v3150
    %5824 = vmatpush1.bf16.msra.mxu0 %v3149
    %5825 = vmatprep.subr.bf16.mxu0 %v3146
    %5826 = vmatpush1.bf16.msra.mxu0 %v3145
    %5827 = vmatprep.subr.bf16.mxu0 %v3142
    %5828 = vmatpush1.bf16.msra.mxu0 %v3141
    %5829 = vmatprep.subr.bf16.mxu0 %v3138
    %5830 = vmatpush1.bf16.msra.mxu0 %v3137
    %5831 = vmatprep.subr.bf16.mxu0 0
    %5832 = vmatpush2.bf16.msra.mxu0 0
    %5833 = vmatprep.subr.bf16.mxu0 0
    %5834 = vmatpush2.bf16.msra.mxu0 0
    %5835 = vmatprep.subr.bf16.mxu0 0
    %5836 = vmatpush2.bf16.msra.mxu0 0
    %5837 = vmatprep.subr.bf16.mxu0 0
    %5838 = vmatpush2.bf16.msra.mxu0 0
    %5839 = vmatprep.subr.bf16.mxu0 0
    %5840 = vmatpush2.bf16.msra.mxu0 0
    %5841 = vmatprep.subr.bf16.mxu0 0
    %5842 = vmatpush2.bf16.msra.mxu0 0
    %5843 = vmatprep.subr.bf16.mxu0 0
    %5844 = vmatpush2.bf16.msra.mxu0 0
    %5845 = vmatprep.subr.bf16.mxu0 0
    %5846 = vmatpush2.bf16.msra.mxu0 0
    %5847 = vmatprep.mubr.bf16.mxu0 0
    %5848 = vmatmul.mubr.bf16.gmra.mxu0 %v5814
    %v5849 = vpop.f32.mrf.mxu0
    %v5850 = vadd.f32 0.0, %v5849
    %v5851 = vpop.f32.mrf.mxu0
    %v5852 = vadd.f32 0.0, %v5851
    %v5853 = vpop.f32.mrf.mxu0
    %v5854 = vadd.f32 0.0, %v5853
    %v5855 = vpop.f32.mrf.mxu0
    %v5856 = vadd.f32 0.0, %v5855
    %5857 = vdwg.mxu0
    %5858 = vmatprep.subr.bf16.mxu0 %v3168
    %5859 = vmatpush1.bf16.msra.mxu0 %v3167
    %5860 = vmatprep.subr.bf16.mxu0 %v3164
    %5861 = vmatpush1.bf16.msra.mxu0 %v3163
    %5862 = vmatprep.subr.bf16.mxu0 %v3160
    %5863 = vmatpush1.bf16.msra.mxu0 %v3159
    %5864 = vmatprep.subr.bf16.mxu0 %v3156
    %5865 = vmatpush1.bf16.msra.mxu0 %v3155
    %5866 = vmatprep.subr.bf16.mxu0 %v3152
    %5867 = vmatpush1.bf16.msra.mxu0 %v3151
    %5868 = vmatprep.subr.bf16.mxu0 %v3148
    %5869 = vmatpush1.bf16.msra.mxu0 %v3147
    %5870 = vmatprep.subr.bf16.mxu0 %v3144
    %5871 = vmatpush1.bf16.msra.mxu0 %v3143
    %5872 = vmatprep.subr.bf16.mxu0 %v3140
    %5873 = vmatpush1.bf16.msra.mxu0 %v3139
    %5874 = vmatprep.subr.bf16.mxu0 0
    %5875 = vmatpush2.bf16.msra.mxu0 0
    %5876 = vmatprep.subr.bf16.mxu0 0
    %5877 = vmatpush2.bf16.msra.mxu0 0
    %5878 = vmatprep.subr.bf16.mxu0 0
    %5879 = vmatpush2.bf16.msra.mxu0 0
    %5880 = vmatprep.subr.bf16.mxu0 0
    %5881 = vmatpush2.bf16.msra.mxu0 0
    %5882 = vmatprep.subr.bf16.mxu0 0
    %5883 = vmatpush2.bf16.msra.mxu0 0
    %5884 = vmatprep.subr.bf16.mxu0 0
    %5885 = vmatpush2.bf16.msra.mxu0 0
    %5886 = vmatprep.subr.bf16.mxu0 0
    %5887 = vmatpush2.bf16.msra.mxu0 0
    %5888 = vmatprep.subr.bf16.mxu0 0
    %5889 = vmatpush2.bf16.msra.mxu0 0
    %5890 = vmatprep.mubr.bf16.mxu0 0
    %5891 = vmatmul.mubr.bf16.gmra.mxu0 %v5814
    %v5892 = vpop.f32.mrf.mxu0
    %v5893 = vadd.f32 0.0, %v5892
    %v5894 = vpop.f32.mrf.mxu0
    %v5895 = vadd.f32 0.0, %v5894
    %v5896 = vpop.f32.mrf.mxu0
    %v5897 = vadd.f32 0.0, %v5896
    %v5898 = vpop.f32.mrf.mxu0
    %v5899 = vadd.f32 0.0, %v5898
    %5900 = vdwg.mxu0
    %v5901 = vadd.f32 %v5763, %v5850
    %v5902 = vadd.f32 %v5765, %v5852
    %v5903 = vadd.f32 %v5806, %v5893
    %v5904 = vadd.f32 %v5808, %v5895
    %v5905 = vadd.f32 %v5767, %v5854
    %v5906 = vadd.f32 %v5769, %v5856
    %v5907 = vadd.f32 %v5810, %v5897
    %v5908 = vadd.f32 %v5812, %v5899
    %v5909 = vxor.u32 %v5901, 2147483648
    %v5910 = vxor.u32 %v5902, 2147483648
    %v5911 = vxor.u32 %v5903, 2147483648
    %v5912 = vxor.u32 %v5905, 2147483648
    %v5913 = vxor.u32 %v5906, 2147483648
    %v5914 = vxor.u32 %v5907, 2147483648
    %v5915 = vmul.f32 %v5909, 1.442695
    %v5916 = vpow.pop %v5915
    %v5917 = vmul.f32 %v5910, 1.442695
    %v5918 = vpow.pop %v5917
    %v5919 = vmul.f32 %v5911, 1.442695
    %v5920 = vpow.pop %v5919
    %v5921 = vmul.f32 %v5912, 1.442695
    %v5922 = vpow.pop %v5921
    %v5923 = vmul.f32 %v5913, 1.442695
    %v5924 = vpow.pop %v5923
    %v5925 = vmul.f32 %v5914, 1.442695
    %v5926 = vpow.pop %v5925
    %v5927 = vadd.f32 %v5916, 1.0
    %v5928 = vadd.f32 %v5918, 1.0
    %v5929 = vadd.f32 %v5920, 1.0
    %v5930 = vadd.f32 %v5922, 1.0
    %v5931 = vadd.f32 %v5924, 1.0
    %v5932 = vadd.f32 %v5926, 1.0
    %v5933 = vrcp.pop %v5927
    %v5934 = vmul.f32 1.0, %v5933
    %v5935 = vrcp.pop %v5928
    %v5936 = vmul.f32 1.0, %v5935
    %v5937 = vrcp.pop %v5929
    %v5938 = vmul.f32 1.0, %v5937
    %v5939 = vrcp.pop %v5930
    %v5940 = vmul.f32 1.0, %v5939
    %v5941 = vrcp.pop %v5931
    %v5942 = vmul.f32 1.0, %v5941
    %v5943 = vrcp.pop %v5932
    %v5944 = vmul.f32 1.0, %v5943
    %v5945 = vtanh.pop %v5904
    %v5946 = vtanh.pop %v5908
    %v5947 = vmul.f32 %v5936, %v4608
    %v5948 = vmul.f32 %v5942, %v4609
    %v5949 = vmul.f32 %v5934, %v5945
    %v5950 = vmul.f32 %v5940, %v5946
    %v5951 = vadd.f32 %v5947, %v5949
    %v5952 = vadd.f32 %v5948, %v5950
    %v5953 = vtanh.pop %v5951
    %v5954 = vtanh.pop %v5952
    %v5955 = vmul.f32 %v5938, %v5953
    %v5956 = vmul.f32 %v5944, %v5954
    %5957 = vmatprep.subr.bf16.mxu0 %v3524
    %5958 = vmatpush1.bf16.msra.mxu0 %v3523
    %5959 = vmatprep.subr.bf16.mxu0 %v3520
    %5960 = vmatpush1.bf16.msra.mxu0 %v3519
    %5961 = vmatprep.subr.bf16.mxu0 %v3516
    %5962 = vmatpush1.bf16.msra.mxu0 %v3515
    %5963 = vmatprep.subr.bf16.mxu0 %v3512
    %5964 = vmatpush1.bf16.msra.mxu0 %v3511
    %5965 = vmatprep.subr.bf16.mxu0 %v3508
    %5966 = vmatpush1.bf16.msra.mxu0 %v3507
    %5967 = vmatprep.subr.bf16.mxu0 %v3504
    %5968 = vmatpush1.bf16.msra.mxu0 %v3503
    %5969 = vmatprep.subr.bf16.mxu0 %v3500
    %5970 = vmatpush1.bf16.msra.mxu0 %v3499
    %5971 = vmatprep.subr.bf16.mxu0 %v3496
    %5972 = vmatpush1.bf16.msra.mxu0 %v3495
    %5973 = vmatprep.subr.bf16.mxu0 0
    %5974 = vmatpush2.bf16.msra.mxu0 0
    %5975 = vmatprep.subr.bf16.mxu0 0
    %5976 = vmatpush2.bf16.msra.mxu0 0
    %5977 = vmatprep.subr.bf16.mxu0 0
    %5978 = vmatpush2.bf16.msra.mxu0 0
    %5979 = vmatprep.subr.bf16.mxu0 0
    %5980 = vmatpush2.bf16.msra.mxu0 0
    %5981 = vmatprep.subr.bf16.mxu0 0
    %5982 = vmatpush2.bf16.msra.mxu0 0
    %5983 = vmatprep.subr.bf16.mxu0 0
    %5984 = vmatpush2.bf16.msra.mxu0 0
    %5985 = vmatprep.subr.bf16.mxu0 0
    %5986 = vmatpush2.bf16.msra.mxu0 0
    %5987 = vmatprep.subr.bf16.mxu0 0
    %5988 = vmatpush2.bf16.msra.mxu0 0
    %5989 = vmatprep.mubr.bf16.mxu0 0
    %5990 = vmatmul.mubr.bf16.gmra.mxu0 %v5814
    %v5991 = vpop.f32.mrf.mxu0
    %v5992 = vadd.f32 %v3382, %v5991
    %v5993 = vpop.f32.mrf.mxu0
    %v5994 = vadd.f32 %v3386, %v5993
    %v5995 = vpop.f32.mrf.mxu0
    %v5996 = vadd.f32 %v3382, %v5995
    %v5997 = vpop.f32.mrf.mxu0
    %v5998 = vadd.f32 %v3386, %v5997
    %5999 = vdwg.mxu0
    %6000 = vmatprep.subr.bf16.mxu0 %v3526
    %6001 = vmatpush1.bf16.msra.mxu0 %v3525
    %6002 = vmatprep.subr.bf16.mxu0 %v3522
    %6003 = vmatpush1.bf16.msra.mxu0 %v3521
    %6004 = vmatprep.subr.bf16.mxu0 %v3518
    %6005 = vmatpush1.bf16.msra.mxu0 %v3517
    %6006 = vmatprep.subr.bf16.mxu0 %v3514
    %6007 = vmatpush1.bf16.msra.mxu0 %v3513
    %6008 = vmatprep.subr.bf16.mxu0 %v3510
    %6009 = vmatpush1.bf16.msra.mxu0 %v3509
    %6010 = vmatprep.subr.bf16.mxu0 %v3506
    %6011 = vmatpush1.bf16.msra.mxu0 %v3505
    %6012 = vmatprep.subr.bf16.mxu0 %v3502
    %6013 = vmatpush1.bf16.msra.mxu0 %v3501
    %6014 = vmatprep.subr.bf16.mxu0 %v3498
    %6015 = vmatpush1.bf16.msra.mxu0 %v3497
    %6016 = vmatprep.subr.bf16.mxu0 0
    %6017 = vmatpush2.bf16.msra.mxu0 0
    %6018 = vmatprep.subr.bf16.mxu0 0
    %6019 = vmatpush2.bf16.msra.mxu0 0
    %6020 = vmatprep.subr.bf16.mxu0 0
    %6021 = vmatpush2.bf16.msra.mxu0 0
    %6022 = vmatprep.subr.bf16.mxu0 0
    %6023 = vmatpush2.bf16.msra.mxu0 0
    %6024 = vmatprep.subr.bf16.mxu0 0
    %6025 = vmatpush2.bf16.msra.mxu0 0
    %6026 = vmatprep.subr.bf16.mxu0 0
    %6027 = vmatpush2.bf16.msra.mxu0 0
    %6028 = vmatprep.subr.bf16.mxu0 0
    %6029 = vmatpush2.bf16.msra.mxu0 0
    %6030 = vmatprep.subr.bf16.mxu0 0
    %6031 = vmatpush2.bf16.msra.mxu0 0
    %6032 = vmatprep.mubr.bf16.mxu0 0
    %6033 = vmatmul.mubr.bf16.gmra.mxu0 %v5814
    %v6034 = vpop.f32.mrf.mxu0
    %v6035 = vadd.f32 %v3390, %v6034
    %v6036 = vpop.f32.mrf.mxu0
    %v6037 = vadd.f32 %v3394, %v6036
    %v6038 = vpop.f32.mrf.mxu0
    %v6039 = vadd.f32 %v3390, %v6038
    %v6040 = vpop.f32.mrf.mxu0
    %v6041 = vadd.f32 %v3394, %v6040
    %6042 = vdwg.mxu0
    %v6043 = vpack.c.bf16 %v5035, %v5034
    %6044 = vmatprep.subr.bf16.mxu0 %v4859
    %6045 = vmatpush1.bf16.msra.mxu0 %v4858
    %6046 = vmatprep.subr.bf16.mxu0 %v4855
    %6047 = vmatpush1.bf16.msra.mxu0 %v4854
    %6048 = vmatprep.subr.bf16.mxu0 %v4851
    %6049 = vmatpush1.bf16.msra.mxu0 %v4850
    %6050 = vmatprep.subr.bf16.mxu0 %v4847
    %6051 = vmatpush1.bf16.msra.mxu0 %v4846
    %6052 = vmatprep.subr.bf16.mxu0 %v4843
    %6053 = vmatpush1.bf16.msra.mxu0 %v4842
    %6054 = vmatprep.subr.bf16.mxu0 %v4839
    %6055 = vmatpush1.bf16.msra.mxu0 %v4838
    %6056 = vmatprep.subr.bf16.mxu0 %v4835
    %6057 = vmatpush1.bf16.msra.mxu0 %v4834
    %6058 = vmatprep.subr.bf16.mxu0 %v4831
    %6059 = vmatpush1.bf16.msra.mxu0 %v4830
    %6060 = vmatprep.subr.bf16.mxu0 0
    %6061 = vmatpush2.bf16.msra.mxu0 0
    %6062 = vmatprep.subr.bf16.mxu0 0
    %6063 = vmatpush2.bf16.msra.mxu0 0
    %6064 = vmatprep.subr.bf16.mxu0 0
    %6065 = vmatpush2.bf16.msra.mxu0 0
    %6066 = vmatprep.subr.bf16.mxu0 0
    %6067 = vmatpush2.bf16.msra.mxu0 0
    %6068 = vmatprep.subr.bf16.mxu0 0
    %6069 = vmatpush2.bf16.msra.mxu0 0
    %6070 = vmatprep.subr.bf16.mxu0 0
    %6071 = vmatpush2.bf16.msra.mxu0 0
    %6072 = vmatprep.subr.bf16.mxu0 0
    %6073 = vmatpush2.bf16.msra.mxu0 0
    %6074 = vmatprep.subr.bf16.mxu0 0
    %6075 = vmatpush2.bf16.msra.mxu0 0
    %6076 = vmatprep.mubr.bf16.mxu0 0
    %6077 = vmatmul.mubr.bf16.gmra.mxu0 %v6043
    %v6078 = vpop.f32.mrf.mxu0
    %v6079 = vadd.f32 0.0, %v6078
    %v6080 = vpop.f32.mrf.mxu0
    %v6081 = vadd.f32 0.0, %v6080
    %v6082 = vpop.f32.mrf.mxu0
    %v6083 = vadd.f32 0.0, %v6082
    %v6084 = vpop.f32.mrf.mxu0
    %v6085 = vadd.f32 0.0, %v6084
    %6086 = vdwg.mxu0
    %6087 = vmatprep.subr.bf16.mxu0 %v4861
    %6088 = vmatpush1.bf16.msra.mxu0 %v4860
    %6089 = vmatprep.subr.bf16.mxu0 %v4857
    %6090 = vmatpush1.bf16.msra.mxu0 %v4856
    %6091 = vmatprep.subr.bf16.mxu0 %v4853
    %6092 = vmatpush1.bf16.msra.mxu0 %v4852
    %6093 = vmatprep.subr.bf16.mxu0 %v4849
    %6094 = vmatpush1.bf16.msra.mxu0 %v4848
    %6095 = vmatprep.subr.bf16.mxu0 %v4845
    %6096 = vmatpush1.bf16.msra.mxu0 %v4844
    %6097 = vmatprep.subr.bf16.mxu0 %v4841
    %6098 = vmatpush1.bf16.msra.mxu0 %v4840
    %6099 = vmatprep.subr.bf16.mxu0 %v4837
    %6100 = vmatpush1.bf16.msra.mxu0 %v4836
    %6101 = vmatprep.subr.bf16.mxu0 %v4833
    %6102 = vmatpush1.bf16.msra.mxu0 %v4832
    %6103 = vmatprep.subr.bf16.mxu0 0
    %6104 = vmatpush2.bf16.msra.mxu0 0
    %6105 = vmatprep.subr.bf16.mxu0 0
    %6106 = vmatpush2.bf16.msra.mxu0 0
    %6107 = vmatprep.subr.bf16.mxu0 0
    %6108 = vmatpush2.bf16.msra.mxu0 0
    %6109 = vmatprep.subr.bf16.mxu0 0
    %6110 = vmatpush2.bf16.msra.mxu0 0
    %6111 = vmatprep.subr.bf16.mxu0 0
    %6112 = vmatpush2.bf16.msra.mxu0 0
    %6113 = vmatprep.subr.bf16.mxu0 0
    %6114 = vmatpush2.bf16.msra.mxu0 0
    %6115 = vmatprep.subr.bf16.mxu0 0
    %6116 = vmatpush2.bf16.msra.mxu0 0
    %6117 = vmatprep.subr.bf16.mxu0 0
    %6118 = vmatpush2.bf16.msra.mxu0 0
    %6119 = vmatprep.mubr.bf16.mxu0 0
    %6120 = vmatmul.mubr.bf16.gmra.mxu0 %v6043
    %v6121 = vpop.f32.mrf.mxu0
    %v6122 = vadd.f32 0.0, %v6121
    %v6123 = vpop.f32.mrf.mxu0
    %v6124 = vadd.f32 0.0, %v6123
    %v6125 = vpop.f32.mrf.mxu0
    %v6126 = vadd.f32 0.0, %v6125
    %v6127 = vpop.f32.mrf.mxu0
    %v6128 = vadd.f32 0.0, %v6127
    %6129 = vdwg.mxu0
    %v6130 = vadd.f32 %v5992, %v6079
    %v6131 = vadd.f32 %v5994, %v6081
    %v6132 = vadd.f32 %v6035, %v6122
    %v6133 = vadd.f32 %v6037, %v6124
    %v6134 = vadd.f32 %v5996, %v6083
    %v6135 = vadd.f32 %v5998, %v6085
    %v6136 = vadd.f32 %v6039, %v6126
    %v6137 = vadd.f32 %v6041, %v6128
    %v6138 = vxor.u32 %v6130, 2147483648
    %v6139 = vxor.u32 %v6131, 2147483648
    %v6140 = vxor.u32 %v6132, 2147483648
    %v6141 = vxor.u32 %v6134, 2147483648
    %v6142 = vxor.u32 %v6135, 2147483648
    %v6143 = vxor.u32 %v6136, 2147483648
    %v6144 = vmul.f32 %v6138, 1.442695
    %v6145 = vpow.pop %v6144
    %v6146 = vmul.f32 %v6139, 1.442695
    %v6147 = vpow.pop %v6146
    %v6148 = vmul.f32 %v6140, 1.442695
    %v6149 = vpow.pop %v6148
    %v6150 = vmul.f32 %v6141, 1.442695
    %v6151 = vpow.pop %v6150
    %v6152 = vmul.f32 %v6142, 1.442695
    %v6153 = vpow.pop %v6152
    %v6154 = vmul.f32 %v6143, 1.442695
    %v6155 = vpow.pop %v6154
    %v6156 = vadd.f32 %v6145, 1.0
    %v6157 = vadd.f32 %v6147, 1.0
    %v6158 = vadd.f32 %v6149, 1.0
    %v6159 = vadd.f32 %v6151, 1.0
    %v6160 = vadd.f32 %v6153, 1.0
    %v6161 = vadd.f32 %v6155, 1.0
    %v6162 = vrcp.pop %v6156
    %v6163 = vmul.f32 1.0, %v6162
    %v6164 = vrcp.pop %v6157
    %v6165 = vmul.f32 1.0, %v6164
    %v6166 = vrcp.pop %v6158
    %v6167 = vmul.f32 1.0, %v6166
    %v6168 = vrcp.pop %v6159
    %v6169 = vmul.f32 1.0, %v6168
    %v6170 = vrcp.pop %v6160
    %v6171 = vmul.f32 1.0, %v6170
    %v6172 = vrcp.pop %v6161
    %v6173 = vmul.f32 1.0, %v6172
    %v6174 = vtanh.pop %v6133
    %v6175 = vtanh.pop %v6137
    %v6176 = vmul.f32 %v6165, %v5030
    %v6177 = vmul.f32 %v6171, %v5031
    %v6178 = vmul.f32 %v6163, %v6174
    %v6179 = vmul.f32 %v6169, %v6175
    %v6180 = vadd.f32 %v6176, %v6178
    %v6181 = vadd.f32 %v6177, %v6179
    %v6182 = vtanh.pop %v6180
    %v6183 = vtanh.pop %v6181
    %v6184 = vmul.f32 %v6167, %v6182
    %v6185 = vmul.f32 %v6173, %v6183
    %s6186 = scalar_lea.vmem [#allocation2], 5
    %v6187 = vld [vmem:[%s6186] ss:$8 sm:$0xf]
    %s6188 = scalar_lea.vmem [#allocation2], 37
    %v6189 = vld [vmem:[%s6188] ss:$8 sm:$0xf]
    %s6190 = scalar_lea.vmem [#allocation2], 69
    %v6191 = vld [vmem:[%s6190] ss:$8 sm:$0xf]
    %s6192 = scalar_lea.vmem [#allocation2], 101
    %v6193 = vld [vmem:[%s6192] ss:$8 sm:$0xf]
    %s6194 = scalar_lea.vmem [#allocation2], 133
    %v6195 = vld [vmem:[%s6194] ss:$8 sm:$0xf]
    %s6196 = scalar_lea.vmem [#allocation2], 165
    %v6197 = vld [vmem:[%s6196] ss:$8 sm:$0xf]
    %s6198 = scalar_lea.vmem [#allocation2], 197
    %v6199 = vld [vmem:[%s6198] ss:$8 sm:$0xf]
    %s6200 = scalar_lea.vmem [#allocation2], 229
    %v6201 = vld [vmem:[%s6200] ss:$8 sm:$0xf]
    %s6202 = scalar_lea.vmem [#allocation2], 261
    %v6203 = vld [vmem:[%s6202] ss:$8 sm:$0xf]
    %s6204 = scalar_lea.vmem [#allocation2], 293
    %v6205 = vld [vmem:[%s6204] ss:$8 sm:$0xf]
    %s6206 = scalar_lea.vmem [#allocation2], 325
    %v6207 = vld [vmem:[%s6206] ss:$8 sm:$0xf]
    %s6208 = scalar_lea.vmem [#allocation2], 357
    %v6209 = vld [vmem:[%s6208] ss:$8 sm:$0xf]
    %s6210 = scalar_lea.vmem [#allocation2], 389
    %v6211 = vld [vmem:[%s6210] ss:$8 sm:$0xf]
    %s6212 = scalar_lea.vmem [#allocation2], 421
    %v6213 = vld [vmem:[%s6212] ss:$8 sm:$0xf]
    %s6214 = scalar_lea.vmem [#allocation2], 453
    %v6215 = vld [vmem:[%s6214] ss:$8 sm:$0xf]
    %s6216 = scalar_lea.vmem [#allocation2], 485
    %v6217 = vld [vmem:[%s6216] ss:$8 sm:$0xf]
    %v6218 = vpack.c.bf16 %v5712, %v5712
    %v6219 = vpack.c.bf16 %v5713, %v5713
    %v6220 = vpack.c.bf16 %v5714, %v5714
    %v6221 = vpack.c.bf16 %v5715, %v5715
    %v6222 = vpack.c.bf16 %v5716, %v5716
    %v6223 = vpack.c.bf16 %v5717, %v5717
    %v6224 = vpack.c.bf16 %v5718, %v5718
    %v6225 = vpack.c.bf16 %v5719, %v5719
    %v6226 = vpack.c.bf16 %v5720, %v5720
    %v6227 = vpack.c.bf16 %v5721, %v5721
    %v6228 = vpack.c.bf16 %v5722, %v5722
    %v6229 = vpack.c.bf16 %v5723, %v5723
    %v6230 = vpack.c.bf16 %v5724, %v5724
    %v6231 = vpack.c.bf16 %v5725, %v5725
    %v6232 = vpack.c.bf16 %v5726, %v5726
    %v6233 = vpack.c.bf16 %v5727, %v5727
    %v6250 = vunpack.c.l.b16 %v6218
    %v6251 = vunpack.c.l.b16 %v6219
    %v6252 = vunpack.c.l.b16 %v6220
    %v6253 = vunpack.c.l.b16 %v6221
    %v6254 = vunpack.c.l.b16 %v6222
    %v6255 = vunpack.c.l.b16 %v6223
    %v6256 = vunpack.c.l.b16 %v6224
    %v6257 = vunpack.c.l.b16 %v6225
    %v6258 = vunpack.c.l.b16 %v6226
    %v6259 = vunpack.c.l.b16 %v6227
    %v6260 = vunpack.c.l.b16 %v6228
    %v6261 = vunpack.c.l.b16 %v6229
    %v6262 = vunpack.c.l.b16 %v6230
    %v6263 = vunpack.c.l.b16 %v6231
    %v6264 = vunpack.c.l.b16 %v6232
    %v6265 = vunpack.c.l.b16 %v6233
    %v6266 = vrot.slane %v6251, 7
    %v6267 = vsel %vm1102, %v6266, %v6250
    %v6268 = vrot.slane %v6252, 6
    %v6269 = vsel %vm1105, %v6268, %v6267
    %v6270 = vrot.slane %v6253, 5
    %v6271 = vsel %vm1108, %v6270, %v6269
    %v6272 = vrot.slane %v6254, 4
    %v6273 = vsel %vm1111, %v6272, %v6271
    %v6274 = vrot.slane %v6255, 3
    %v6275 = vsel %vm1114, %v6274, %v6273
    %v6276 = vrot.slane %v6256, 2
    %v6277 = vsel %vm1117, %v6276, %v6275
    %v6278 = vrot.slane %v6257, 1
    %v6279 = vsel %vm1120, %v6278, %v6277
    %v6280 = vrot.slane %v6259, 7
    %v6281 = vsel %vm1102, %v6280, %v6258
    %v6282 = vrot.slane %v6260, 6
    %v6283 = vsel %vm1105, %v6282, %v6281
    %v6284 = vrot.slane %v6261, 5
    %v6285 = vsel %vm1108, %v6284, %v6283
    %v6286 = vrot.slane %v6262, 4
    %v6287 = vsel %vm1111, %v6286, %v6285
    %v6288 = vrot.slane %v6263, 3
    %v6289 = vsel %vm1114, %v6288, %v6287
    %v6290 = vrot.slane %v6264, 2
    %v6291 = vsel %vm1117, %v6290, %v6289
    %v6292 = vrot.slane %v6265, 1
    %v6293 = vsel %vm1120, %v6292, %v6291
    %v6294 = vpack.c.b16 %v6293, %v6279
    %6296 = vmatprep.subr.bf16.mxu0 %v1263
    %6297 = vmatpush1.bf16.msra.mxu0 %v1262
    %6298 = vmatprep.subr.bf16.mxu0 %v1259
    %6299 = vmatpush1.bf16.msra.mxu0 %v1258
    %6300 = vmatprep.subr.bf16.mxu0 %v1255
    %6301 = vmatpush1.bf16.msra.mxu0 %v1254
    %6302 = vmatprep.subr.bf16.mxu0 %v1251
    %6303 = vmatpush1.bf16.msra.mxu0 %v1250
    %6304 = vmatprep.subr.bf16.mxu0 %v1247
    %6305 = vmatpush1.bf16.msra.mxu0 %v1246
    %6306 = vmatprep.subr.bf16.mxu0 %v1243
    %6307 = vmatpush1.bf16.msra.mxu0 %v1242
    %6308 = vmatprep.subr.bf16.mxu0 %v1239
    %6309 = vmatpush1.bf16.msra.mxu0 %v1238
    %6310 = vmatprep.subr.bf16.mxu0 %v1235
    %6311 = vmatpush1.bf16.msra.mxu0 %v1234
    %6312 = vmatprep.subr.bf16.mxu0 0
    %6313 = vmatpush2.bf16.msra.mxu0 0
    %6314 = vmatprep.subr.bf16.mxu0 0
    %6315 = vmatpush2.bf16.msra.mxu0 0
    %6316 = vmatprep.subr.bf16.mxu0 0
    %6317 = vmatpush2.bf16.msra.mxu0 0
    %6318 = vmatprep.subr.bf16.mxu0 0
    %6319 = vmatpush2.bf16.msra.mxu0 0
    %6320 = vmatprep.subr.bf16.mxu0 0
    %6321 = vmatpush2.bf16.msra.mxu0 0
    %6322 = vmatprep.subr.bf16.mxu0 0
    %6323 = vmatpush2.bf16.msra.mxu0 0
    %6324 = vmatprep.subr.bf16.mxu0 0
    %6325 = vmatpush2.bf16.msra.mxu0 0
    %6326 = vmatprep.subr.bf16.mxu0 0
    %6327 = vmatpush2.bf16.msra.mxu0 0
    %6328 = vmatprep.mubr.bf16.mxu0 0
    %6329 = vmatmul.mubr.bf16.gmra.mxu0 %v6294
    %v6330 = vpop.f32.mrf.mxu0
    %v6331 = vadd.f32 0.0, %v6330
    %v6332 = vpop.f32.mrf.mxu0
    %v6333 = vadd.f32 0.0, %v6332
    %v6334 = vpop.f32.mrf.mxu0
    %v6335 = vadd.f32 0.0, %v6334
    %v6336 = vpop.f32.mrf.mxu0
    %v6337 = vadd.f32 0.0, %v6336
    %6338 = vdwg.mxu0
    %6339 = vmatprep.subr.bf16.mxu0 %v1265
    %6340 = vmatpush1.bf16.msra.mxu0 %v1264
    %6341 = vmatprep.subr.bf16.mxu0 %v1261
    %6342 = vmatpush1.bf16.msra.mxu0 %v1260
    %6343 = vmatprep.subr.bf16.mxu0 %v1257
    %6344 = vmatpush1.bf16.msra.mxu0 %v1256
    %6345 = vmatprep.subr.bf16.mxu0 %v1253
    %6346 = vmatpush1.bf16.msra.mxu0 %v1252
    %6347 = vmatprep.subr.bf16.mxu0 %v1249
    %6348 = vmatpush1.bf16.msra.mxu0 %v1248
    %6349 = vmatprep.subr.bf16.mxu0 %v1245
    %6350 = vmatpush1.bf16.msra.mxu0 %v1244
    %6351 = vmatprep.subr.bf16.mxu0 %v1241
    %6352 = vmatpush1.bf16.msra.mxu0 %v1240
    %6353 = vmatprep.subr.bf16.mxu0 %v1237
    %6354 = vmatpush1.bf16.msra.mxu0 %v1236
    %6355 = vmatprep.subr.bf16.mxu0 0
    %6356 = vmatpush2.bf16.msra.mxu0 0
    %6357 = vmatprep.subr.bf16.mxu0 0
    %6358 = vmatpush2.bf16.msra.mxu0 0
    %6359 = vmatprep.subr.bf16.mxu0 0
    %6360 = vmatpush2.bf16.msra.mxu0 0
    %6361 = vmatprep.subr.bf16.mxu0 0
    %6362 = vmatpush2.bf16.msra.mxu0 0
    %6363 = vmatprep.subr.bf16.mxu0 0
    %6364 = vmatpush2.bf16.msra.mxu0 0
    %6365 = vmatprep.subr.bf16.mxu0 0
    %6366 = vmatpush2.bf16.msra.mxu0 0
    %6367 = vmatprep.subr.bf16.mxu0 0
    %6368 = vmatpush2.bf16.msra.mxu0 0
    %6369 = vmatprep.subr.bf16.mxu0 0
    %6370 = vmatpush2.bf16.msra.mxu0 0
    %6371 = vmatprep.mubr.bf16.mxu0 0
    %6372 = vmatmul.mubr.bf16.gmra.mxu0 %v6294
    %v6373 = vpop.f32.mrf.mxu0
    %v6374 = vadd.f32 0.0, %v6373
    %v6375 = vpop.f32.mrf.mxu0
    %v6376 = vadd.f32 0.0, %v6375
    %v6377 = vpop.f32.mrf.mxu0
    %v6378 = vadd.f32 0.0, %v6377
    %v6379 = vpop.f32.mrf.mxu0
    %v6380 = vadd.f32 0.0, %v6379
    %6381 = vdwg.mxu0
    %v6390 = vcombine.low %v6331, %v6333
    %v6391 = vcombine.high %v6331, %v6333
    %v6392 = vcombine.low %v6374, %v6376
    %v6393 = vcombine.high %v6374, %v6376
    %v6395 = vunpack.c.l.s4 1966171168
    %v6396 = vunpack.c.0.s8 %v6395
    %v6397 = vlaneseq
    %v6398 = vshrl.u32 %v6397, 7
    %v6399 = vsub.s32 %v6396, %v6398
    %v6400 = vrot.slane %v6390, %v6399
    %v6402 = vunpack.c.l.s4 1966171168
    %v6403 = vunpack.c.0.s8 %v6402
    %v6404 = vlaneseq
    %v6405 = vshrl.u32 %v6404, 7
    %v6406 = vsub.s32 %v6403, %v6405
    %v6407 = vrot.slane %v6391, %v6406
    %v6409 = vunpack.c.l.s4 1966171168
    %v6410 = vunpack.c.0.s8 %v6409
    %v6411 = vlaneseq
    %v6412 = vshrl.u32 %v6411, 7
    %v6413 = vsub.s32 %v6410, %v6412
    %v6414 = vrot.slane %v6392, %v6413
    %v6416 = vunpack.c.l.s4 1966171168
    %v6417 = vunpack.c.0.s8 %v6416
    %v6418 = vlaneseq
    %v6419 = vshrl.u32 %v6418, 7
    %v6420 = vsub.s32 %v6417, %v6419
    %v6421 = vrot.slane %v6393, %v6420
    %v6422 = vcombine.low %v6400, %v6414
    %v6423 = vcombine.high %v6400, %v6414
    %v6424 = vcombine.low %v6407, %v6421
    %v6425 = vcombine.high %v6407, %v6421
    %v6427 = vunpack.c.l.s4 1966171168
    %v6428 = vunpack.c.0.s8 %v6427
    %v6429 = vlaneseq
    %v6430 = vshrl.u32 %v6429, 7
    %v6431 = vsub.s32 %v6428, %v6430
    %v6432 = vrot.slane %v6422, %v6431
    %v6434 = vunpack.c.l.s4 1966171168
    %v6435 = vunpack.c.0.s8 %v6434
    %v6436 = vlaneseq
    %v6437 = vshrl.u32 %v6436, 7
    %v6438 = vsub.s32 %v6435, %v6437
    %v6439 = vrot.slane %v6424, %v6438
    %v6441 = vunpack.c.l.s4 1966171168
    %v6442 = vunpack.c.0.s8 %v6441
    %v6443 = vlaneseq
    %v6444 = vshrl.u32 %v6443, 7
    %v6445 = vsub.s32 %v6442, %v6444
    %v6446 = vrot.slane %v6423, %v6445
    %v6448 = vunpack.c.l.s4 1966171168
    %v6449 = vunpack.c.0.s8 %v6448
    %v6450 = vlaneseq
    %v6451 = vshrl.u32 %v6450, 7
    %v6452 = vsub.s32 %v6449, %v6451
    %v6453 = vrot.slane %v6425, %v6452
    %v6454 = vcombine.high %v6432, %v6432
    %v6455 = vcombine.high %v6439, %v6439
    %v6456 = vcombine.high %v6446, %v6446
    %v6457 = vcombine.high %v6453, %v6453
    %v6458 = vcombine.low %v6335, %v6337
    %v6459 = vcombine.high %v6335, %v6337
    %v6460 = vcombine.low %v6378, %v6380
    %v6461 = vcombine.high %v6378, %v6380
    %v6463 = vunpack.c.l.s4 1966171168
    %v6464 = vunpack.c.0.s8 %v6463
    %v6465 = vlaneseq
    %v6466 = vshrl.u32 %v6465, 7
    %v6467 = vsub.s32 %v6464, %v6466
    %v6468 = vrot.slane %v6458, %v6467
    %v6470 = vunpack.c.l.s4 1966171168
    %v6471 = vunpack.c.0.s8 %v6470
    %v6472 = vlaneseq
    %v6473 = vshrl.u32 %v6472, 7
    %v6474 = vsub.s32 %v6471, %v6473
    %v6475 = vrot.slane %v6459, %v6474
    %v6477 = vunpack.c.l.s4 1966171168
    %v6478 = vunpack.c.0.s8 %v6477
    %v6479 = vlaneseq
    %v6480 = vshrl.u32 %v6479, 7
    %v6481 = vsub.s32 %v6478, %v6480
    %v6482 = vrot.slane %v6460, %v6481
    %v6484 = vunpack.c.l.s4 1966171168
    %v6485 = vunpack.c.0.s8 %v6484
    %v6486 = vlaneseq
    %v6487 = vshrl.u32 %v6486, 7
    %v6488 = vsub.s32 %v6485, %v6487
    %v6489 = vrot.slane %v6461, %v6488
    %v6490 = vcombine.low %v6468, %v6482
    %v6491 = vcombine.high %v6468, %v6482
    %v6492 = vcombine.low %v6475, %v6489
    %v6493 = vcombine.high %v6475, %v6489
    %v6495 = vunpack.c.l.s4 1966171168
    %v6496 = vunpack.c.0.s8 %v6495
    %v6497 = vlaneseq
    %v6498 = vshrl.u32 %v6497, 7
    %v6499 = vsub.s32 %v6496, %v6498
    %v6500 = vrot.slane %v6490, %v6499
    %v6502 = vunpack.c.l.s4 1966171168
    %v6503 = vunpack.c.0.s8 %v6502
    %v6504 = vlaneseq
    %v6505 = vshrl.u32 %v6504, 7
    %v6506 = vsub.s32 %v6503, %v6505
    %v6507 = vrot.slane %v6492, %v6506
    %v6509 = vunpack.c.l.s4 1966171168
    %v6510 = vunpack.c.0.s8 %v6509
    %v6511 = vlaneseq
    %v6512 = vshrl.u32 %v6511, 7
    %v6513 = vsub.s32 %v6510, %v6512
    %v6514 = vrot.slane %v6491, %v6513
    %v6516 = vunpack.c.l.s4 1966171168
    %v6517 = vunpack.c.0.s8 %v6516
    %v6518 = vlaneseq
    %v6519 = vshrl.u32 %v6518, 7
    %v6520 = vsub.s32 %v6517, %v6519
    %v6521 = vrot.slane %v6493, %v6520
    %v6522 = vcombine.high %v6500, %v6500
    %v6523 = vcombine.high %v6507, %v6507
    %v6524 = vcombine.high %v6514, %v6514
    %v6525 = vcombine.high %v6521, %v6521
    %v6542 = vadd.f32 %v6187, %v6432
    %v6543 = vadd.f32 %v6189, %v6446
    %v6544 = vadd.f32 %v6191, %v6454
    %v6545 = vadd.f32 %v6193, %v6456
    %v6546 = vadd.f32 %v6195, %v6439
    %v6547 = vadd.f32 %v6197, %v6453
    %v6548 = vadd.f32 %v6199, %v6455
    %v6549 = vadd.f32 %v6201, %v6457
    %v6550 = vadd.f32 %v6203, %v6500
    %v6551 = vadd.f32 %v6205, %v6514
    %v6552 = vadd.f32 %v6207, %v6522
    %v6553 = vadd.f32 %v6209, %v6524
    %v6554 = vadd.f32 %v6211, %v6507
    %v6555 = vadd.f32 %v6213, %v6521
    %v6556 = vadd.f32 %v6215, %v6523
    %v6557 = vadd.f32 %v6217, %v6525
    %v6558 = vxor.u32 %v6542, 2147483648
    %v6559 = vxor.u32 %v6543, 2147483648
    %v6560 = vxor.u32 %v6544, 2147483648
    %v6561 = vxor.u32 %v6545, 2147483648
    %v6562 = vxor.u32 %v6546, 2147483648
    %v6563 = vxor.u32 %v6547, 2147483648
    %v6564 = vxor.u32 %v6548, 2147483648
    %v6565 = vxor.u32 %v6549, 2147483648
    %v6566 = vxor.u32 %v6550, 2147483648
    %v6567 = vxor.u32 %v6551, 2147483648
    %v6568 = vxor.u32 %v6552, 2147483648
    %v6569 = vxor.u32 %v6553, 2147483648
    %v6570 = vxor.u32 %v6554, 2147483648
    %v6571 = vxor.u32 %v6555, 2147483648
    %v6572 = vxor.u32 %v6556, 2147483648
    %v6573 = vxor.u32 %v6557, 2147483648
    %v6574 = vmul.f32 %v6558, 1.442695
    %v6575 = vpow.pop %v6574
    %v6576 = vmul.f32 %v6559, 1.442695
    %v6577 = vpow.pop %v6576
    %v6578 = vmul.f32 %v6560, 1.442695
    %v6579 = vpow.pop %v6578
    %v6580 = vmul.f32 %v6561, 1.442695
    %v6581 = vpow.pop %v6580
    %v6582 = vmul.f32 %v6562, 1.442695
    %v6583 = vpow.pop %v6582
    %v6584 = vmul.f32 %v6563, 1.442695
    %v6585 = vpow.pop %v6584
    %v6586 = vmul.f32 %v6564, 1.442695
    %v6587 = vpow.pop %v6586
    %v6588 = vmul.f32 %v6565, 1.442695
    %v6589 = vpow.pop %v6588
    %v6590 = vmul.f32 %v6566, 1.442695
    %v6591 = vpow.pop %v6590
    %v6592 = vmul.f32 %v6567, 1.442695
    %v6593 = vpow.pop %v6592
    %v6594 = vmul.f32 %v6568, 1.442695
    %v6595 = vpow.pop %v6594
    %v6596 = vmul.f32 %v6569, 1.442695
    %v6597 = vpow.pop %v6596
    %v6598 = vmul.f32 %v6570, 1.442695
    %v6599 = vpow.pop %v6598
    %v6600 = vmul.f32 %v6571, 1.442695
    %v6601 = vpow.pop %v6600
    %v6602 = vmul.f32 %v6572, 1.442695
    %v6603 = vpow.pop %v6602
    %v6604 = vmul.f32 %v6573, 1.442695
    %v6605 = vpow.pop %v6604
    %v6606 = vadd.f32 %v6575, 1.0
    %v6607 = vadd.f32 %v6577, 1.0
    %v6608 = vadd.f32 %v6579, 1.0
    %v6609 = vadd.f32 %v6581, 1.0
    %v6610 = vadd.f32 %v6583, 1.0
    %v6611 = vadd.f32 %v6585, 1.0
    %v6612 = vadd.f32 %v6587, 1.0
    %v6613 = vadd.f32 %v6589, 1.0
    %v6614 = vadd.f32 %v6591, 1.0
    %v6615 = vadd.f32 %v6593, 1.0
    %v6616 = vadd.f32 %v6595, 1.0
    %v6617 = vadd.f32 %v6597, 1.0
    %v6618 = vadd.f32 %v6599, 1.0
    %v6619 = vadd.f32 %v6601, 1.0
    %v6620 = vadd.f32 %v6603, 1.0
    %v6621 = vadd.f32 %v6605, 1.0
    %v6622 = vrcp.pop %v6606
    %v6623 = vmul.f32 1.0, %v6622
    %v6624 = vrcp.pop %v6607
    %v6625 = vmul.f32 1.0, %v6624
    %v6626 = vrcp.pop %v6608
    %v6627 = vmul.f32 1.0, %v6626
    %v6628 = vrcp.pop %v6609
    %v6629 = vmul.f32 1.0, %v6628
    %v6630 = vrcp.pop %v6610
    %v6631 = vmul.f32 1.0, %v6630
    %v6632 = vrcp.pop %v6611
    %v6633 = vmul.f32 1.0, %v6632
    %v6634 = vrcp.pop %v6612
    %v6635 = vmul.f32 1.0, %v6634
    %v6636 = vrcp.pop %v6613
    %v6637 = vmul.f32 1.0, %v6636
    %v6638 = vrcp.pop %v6614
    %v6639 = vmul.f32 1.0, %v6638
    %v6640 = vrcp.pop %v6615
    %v6641 = vmul.f32 1.0, %v6640
    %v6642 = vrcp.pop %v6616
    %v6643 = vmul.f32 1.0, %v6642
    %v6644 = vrcp.pop %v6617
    %v6645 = vmul.f32 1.0, %v6644
    %v6646 = vrcp.pop %v6618
    %v6647 = vmul.f32 1.0, %v6646
    %v6648 = vrcp.pop %v6619
    %v6649 = vmul.f32 1.0, %v6648
    %v6650 = vrcp.pop %v6620
    %v6651 = vmul.f32 1.0, %v6650
    %v6652 = vrcp.pop %v6621
    %v6653 = vmul.f32 1.0, %v6652
    %v6670 = vrot.slane %v6542, 3
    %v6671 = vrot.slane %v6543, 3
    %v6672 = vrot.slane %v6544, 3
    %v6673 = vrot.slane %v6545, 3
    %v6674 = vrot.slane %v6546, 3
    %v6675 = vrot.slane %v6547, 3
    %v6676 = vrot.slane %v6548, 3
    %v6677 = vrot.slane %v6549, 3
    %v6678 = vrot.slane %v6550, 3
    %v6679 = vrot.slane %v6551, 3
    %v6680 = vrot.slane %v6552, 3
    %v6681 = vrot.slane %v6553, 3
    %v6682 = vrot.slane %v6554, 3
    %v6683 = vrot.slane %v6555, 3
    %v6684 = vrot.slane %v6556, 3
    %v6685 = vrot.slane %v6557, 3
    %v6702 = vtanh.pop %v6670
    %v6703 = vtanh.pop %v6671
    %v6704 = vtanh.pop %v6672
    %v6705 = vtanh.pop %v6673
    %v6706 = vtanh.pop %v6674
    %v6707 = vtanh.pop %v6675
    %v6708 = vtanh.pop %v6676
    %v6709 = vtanh.pop %v6677
    %v6710 = vtanh.pop %v6678
    %v6711 = vtanh.pop %v6679
    %v6712 = vtanh.pop %v6680
    %v6713 = vtanh.pop %v6681
    %v6714 = vtanh.pop %v6682
    %v6715 = vtanh.pop %v6683
    %v6716 = vtanh.pop %v6684
    %v6717 = vtanh.pop %v6685
    %v6734 = vrot.slane %v6623, 1
    %v6735 = vrot.slane %v6625, 1
    %v6736 = vrot.slane %v6627, 1
    %v6737 = vrot.slane %v6629, 1
    %v6738 = vrot.slane %v6631, 1
    %v6739 = vrot.slane %v6633, 1
    %v6740 = vrot.slane %v6635, 1
    %v6741 = vrot.slane %v6637, 1
    %v6742 = vrot.slane %v6639, 1
    %v6743 = vrot.slane %v6641, 1
    %v6744 = vrot.slane %v6643, 1
    %v6745 = vrot.slane %v6645, 1
    %v6746 = vrot.slane %v6647, 1
    %v6747 = vrot.slane %v6649, 1
    %v6748 = vrot.slane %v6651, 1
    %v6749 = vrot.slane %v6653, 1
    %v6766 = vmul.f32 %v6734, %v5648
    %v6767 = vmul.f32 %v6735, %v5649
    %v6768 = vmul.f32 %v6736, %v5650
    %v6769 = vmul.f32 %v6737, %v5651
    %v6770 = vmul.f32 %v6738, %v5652
    %v6771 = vmul.f32 %v6739, %v5653
    %v6772 = vmul.f32 %v6740, %v5654
    %v6773 = vmul.f32 %v6741, %v5655
    %v6774 = vmul.f32 %v6742, %v5656
    %v6775 = vmul.f32 %v6743, %v5657
    %v6776 = vmul.f32 %v6744, %v5658
    %v6777 = vmul.f32 %v6745, %v5659
    %v6778 = vmul.f32 %v6746, %v5660
    %v6779 = vmul.f32 %v6747, %v5661
    %v6780 = vmul.f32 %v6748, %v5662
    %v6781 = vmul.f32 %v6749, %v5663
    %v6782 = vmul.f32 %v6623, %v6702
    %v6783 = vmul.f32 %v6625, %v6703
    %v6784 = vmul.f32 %v6627, %v6704
    %v6785 = vmul.f32 %v6629, %v6705
    %v6786 = vmul.f32 %v6631, %v6706
    %v6787 = vmul.f32 %v6633, %v6707
    %v6788 = vmul.f32 %v6635, %v6708
    %v6789 = vmul.f32 %v6637, %v6709
    %v6790 = vmul.f32 %v6639, %v6710
    %v6791 = vmul.f32 %v6641, %v6711
    %v6792 = vmul.f32 %v6643, %v6712
    %v6793 = vmul.f32 %v6645, %v6713
    %v6794 = vmul.f32 %v6647, %v6714
    %v6795 = vmul.f32 %v6649, %v6715
    %v6796 = vmul.f32 %v6651, %v6716
    %v6797 = vmul.f32 %v6653, %v6717
    %v6798 = vadd.f32 %v6766, %v6782
    %v6799 = vadd.f32 %v6767, %v6783
    %v6800 = vadd.f32 %v6768, %v6784
    %v6801 = vadd.f32 %v6769, %v6785
    %v6802 = vadd.f32 %v6770, %v6786
    %v6803 = vadd.f32 %v6771, %v6787
    %v6804 = vadd.f32 %v6772, %v6788
    %v6805 = vadd.f32 %v6773, %v6789
    %v6806 = vadd.f32 %v6774, %v6790
    %v6807 = vadd.f32 %v6775, %v6791
    %v6808 = vadd.f32 %v6776, %v6792
    %v6809 = vadd.f32 %v6777, %v6793
    %v6810 = vadd.f32 %v6778, %v6794
    %v6811 = vadd.f32 %v6779, %v6795
    %v6812 = vadd.f32 %v6780, %v6796
    %v6813 = vadd.f32 %v6781, %v6797
    %v6814 = vtanh.pop %v6798
    %v6815 = vtanh.pop %v6799
    %v6816 = vtanh.pop %v6800
    %v6817 = vtanh.pop %v6801
    %v6818 = vtanh.pop %v6802
    %v6819 = vtanh.pop %v6803
    %v6820 = vtanh.pop %v6804
    %v6821 = vtanh.pop %v6805
    %v6822 = vtanh.pop %v6806
    %v6823 = vtanh.pop %v6807
    %v6824 = vtanh.pop %v6808
    %v6825 = vtanh.pop %v6809
    %v6826 = vtanh.pop %v6810
    %v6827 = vtanh.pop %v6811
    %v6828 = vtanh.pop %v6812
    %v6829 = vtanh.pop %v6813
    %v6830 = vrot.slane %v6623, 2
    %v6831 = vrot.slane %v6625, 2
    %v6832 = vrot.slane %v6627, 2
    %v6833 = vrot.slane %v6629, 2
    %v6834 = vrot.slane %v6631, 2
    %v6835 = vrot.slane %v6633, 2
    %v6836 = vrot.slane %v6635, 2
    %v6837 = vrot.slane %v6637, 2
    %v6838 = vrot.slane %v6639, 2
    %v6839 = vrot.slane %v6641, 2
    %v6840 = vrot.slane %v6643, 2
    %v6841 = vrot.slane %v6645, 2
    %v6842 = vrot.slane %v6647, 2
    %v6843 = vrot.slane %v6649, 2
    %v6844 = vrot.slane %v6651, 2
    %v6845 = vrot.slane %v6653, 2
    %v6862 = vmul.f32 %v6830, %v6814
    %v6863 = vmul.f32 %v6831, %v6815
    %v6864 = vmul.f32 %v6832, %v6816
    %v6865 = vmul.f32 %v6833, %v6817
    %v6866 = vmul.f32 %v6834, %v6818
    %v6867 = vmul.f32 %v6835, %v6819
    %v6868 = vmul.f32 %v6836, %v6820
    %v6869 = vmul.f32 %v6837, %v6821
    %v6870 = vmul.f32 %v6838, %v6822
    %v6871 = vmul.f32 %v6839, %v6823
    %v6872 = vmul.f32 %v6840, %v6824
    %v6873 = vmul.f32 %v6841, %v6825
    %v6874 = vmul.f32 %v6842, %v6826
    %v6875 = vmul.f32 %v6843, %v6827
    %v6876 = vmul.f32 %v6844, %v6828
    %v6877 = vmul.f32 %v6845, %v6829
    %6878 = vmatprep.subr.bf16.mxu0 %v2060
    %6879 = vmatpush1.bf16.msra.mxu0 %v2059
    %6880 = vmatprep.subr.bf16.mxu0 %v2056
    %6881 = vmatpush1.bf16.msra.mxu0 %v2055
    %6882 = vmatprep.subr.bf16.mxu0 %v2052
    %6883 = vmatpush1.bf16.msra.mxu0 %v2051
    %6884 = vmatprep.subr.bf16.mxu0 %v2048
    %6885 = vmatpush1.bf16.msra.mxu0 %v2047
    %6886 = vmatprep.subr.bf16.mxu0 %v2044
    %6887 = vmatpush1.bf16.msra.mxu0 %v2043
    %6888 = vmatprep.subr.bf16.mxu0 %v2040
    %6889 = vmatpush1.bf16.msra.mxu0 %v2039
    %6890 = vmatprep.subr.bf16.mxu0 %v2036
    %6891 = vmatpush1.bf16.msra.mxu0 %v2035
    %6892 = vmatprep.subr.bf16.mxu0 %v2032
    %6893 = vmatpush1.bf16.msra.mxu0 %v2031
    %6894 = vmatprep.subr.bf16.mxu0 0
    %6895 = vmatpush2.bf16.msra.mxu0 0
    %6896 = vmatprep.subr.bf16.mxu0 0
    %6897 = vmatpush2.bf16.msra.mxu0 0
    %6898 = vmatprep.subr.bf16.mxu0 0
    %6899 = vmatpush2.bf16.msra.mxu0 0
    %6900 = vmatprep.subr.bf16.mxu0 0
    %6901 = vmatpush2.bf16.msra.mxu0 0
    %6902 = vmatprep.subr.bf16.mxu0 0
    %6903 = vmatpush2.bf16.msra.mxu0 0
    %6904 = vmatprep.subr.bf16.mxu0 0
    %6905 = vmatpush2.bf16.msra.mxu0 0
    %6906 = vmatprep.subr.bf16.mxu0 0
    %6907 = vmatpush2.bf16.msra.mxu0 0
    %6908 = vmatprep.subr.bf16.mxu0 0
    %6909 = vmatpush2.bf16.msra.mxu0 0
    %6910 = vmatprep.mubr.bf16.mxu0 0
    %6911 = vmatmul.mubr.bf16.gmra.mxu0 %v6294
    %v6912 = vpop.f32.mrf.mxu0
    %v6913 = vadd.f32 %v1918, %v6912
    %v6914 = vpop.f32.mrf.mxu0
    %v6915 = vadd.f32 %v1922, %v6914
    %v6916 = vpop.f32.mrf.mxu0
    %v6917 = vadd.f32 %v1918, %v6916
    %v6918 = vpop.f32.mrf.mxu0
    %v6919 = vadd.f32 %v1922, %v6918
    %6920 = vdwg.mxu0
    %6921 = vmatprep.subr.bf16.mxu0 %v2062
    %6922 = vmatpush1.bf16.msra.mxu0 %v2061
    %6923 = vmatprep.subr.bf16.mxu0 %v2058
    %6924 = vmatpush1.bf16.msra.mxu0 %v2057
    %6925 = vmatprep.subr.bf16.mxu0 %v2054
    %6926 = vmatpush1.bf16.msra.mxu0 %v2053
    %6927 = vmatprep.subr.bf16.mxu0 %v2050
    %6928 = vmatpush1.bf16.msra.mxu0 %v2049
    %6929 = vmatprep.subr.bf16.mxu0 %v2046
    %6930 = vmatpush1.bf16.msra.mxu0 %v2045
    %6931 = vmatprep.subr.bf16.mxu0 %v2042
    %6932 = vmatpush1.bf16.msra.mxu0 %v2041
    %6933 = vmatprep.subr.bf16.mxu0 %v2038
    %6934 = vmatpush1.bf16.msra.mxu0 %v2037
    %6935 = vmatprep.subr.bf16.mxu0 %v2034
    %6936 = vmatpush1.bf16.msra.mxu0 %v2033
    %6937 = vmatprep.subr.bf16.mxu0 0
    %6938 = vmatpush2.bf16.msra.mxu0 0
    %6939 = vmatprep.subr.bf16.mxu0 0
    %6940 = vmatpush2.bf16.msra.mxu0 0
    %6941 = vmatprep.subr.bf16.mxu0 0
    %6942 = vmatpush2.bf16.msra.mxu0 0
    %6943 = vmatprep.subr.bf16.mxu0 0
    %6944 = vmatpush2.bf16.msra.mxu0 0
    %6945 = vmatprep.subr.bf16.mxu0 0
    %6946 = vmatpush2.bf16.msra.mxu0 0
    %6947 = vmatprep.subr.bf16.mxu0 0
    %6948 = vmatpush2.bf16.msra.mxu0 0
    %6949 = vmatprep.subr.bf16.mxu0 0
    %6950 = vmatpush2.bf16.msra.mxu0 0
    %6951 = vmatprep.subr.bf16.mxu0 0
    %6952 = vmatpush2.bf16.msra.mxu0 0
    %6953 = vmatprep.mubr.bf16.mxu0 0
    %6954 = vmatmul.mubr.bf16.gmra.mxu0 %v6294
    %v6955 = vpop.f32.mrf.mxu0
    %v6956 = vadd.f32 %v1926, %v6955
    %v6957 = vpop.f32.mrf.mxu0
    %v6958 = vadd.f32 %v1930, %v6957
    %v6959 = vpop.f32.mrf.mxu0
    %v6960 = vadd.f32 %v1926, %v6959
    %v6961 = vpop.f32.mrf.mxu0
    %v6962 = vadd.f32 %v1930, %v6961
    %6963 = vdwg.mxu0
    %v6964 = vpack.c.bf16 %v5956, %v5955
    %6965 = vmatprep.subr.bf16.mxu0 %v3166
    %6966 = vmatpush1.bf16.msra.mxu0 %v3165
    %6967 = vmatprep.subr.bf16.mxu0 %v3162
    %6968 = vmatpush1.bf16.msra.mxu0 %v3161
    %6969 = vmatprep.subr.bf16.mxu0 %v3158
    %6970 = vmatpush1.bf16.msra.mxu0 %v3157
    %6971 = vmatprep.subr.bf16.mxu0 %v3154
    %6972 = vmatpush1.bf16.msra.mxu0 %v3153
    %6973 = vmatprep.subr.bf16.mxu0 %v3150
    %6974 = vmatpush1.bf16.msra.mxu0 %v3149
    %6975 = vmatprep.subr.bf16.mxu0 %v3146
    %6976 = vmatpush1.bf16.msra.mxu0 %v3145
    %6977 = vmatprep.subr.bf16.mxu0 %v3142
    %6978 = vmatpush1.bf16.msra.mxu0 %v3141
    %6979 = vmatprep.subr.bf16.mxu0 %v3138
    %6980 = vmatpush1.bf16.msra.mxu0 %v3137
    %6981 = vmatprep.subr.bf16.mxu0 0
    %6982 = vmatpush2.bf16.msra.mxu0 0
    %6983 = vmatprep.subr.bf16.mxu0 0
    %6984 = vmatpush2.bf16.msra.mxu0 0
    %6985 = vmatprep.subr.bf16.mxu0 0
    %6986 = vmatpush2.bf16.msra.mxu0 0
    %6987 = vmatprep.subr.bf16.mxu0 0
    %6988 = vmatpush2.bf16.msra.mxu0 0
    %6989 = vmatprep.subr.bf16.mxu0 0
    %6990 = vmatpush2.bf16.msra.mxu0 0
    %6991 = vmatprep.subr.bf16.mxu0 0
    %6992 = vmatpush2.bf16.msra.mxu0 0
    %6993 = vmatprep.subr.bf16.mxu0 0
    %6994 = vmatpush2.bf16.msra.mxu0 0
    %6995 = vmatprep.subr.bf16.mxu0 0
    %6996 = vmatpush2.bf16.msra.mxu0 0
    %6997 = vmatprep.mubr.bf16.mxu0 0
    %6998 = vmatmul.mubr.bf16.gmra.mxu0 %v6964
    %v6999 = vpop.f32.mrf.mxu0
    %v7000 = vadd.f32 0.0, %v6999
    %v7001 = vpop.f32.mrf.mxu0
    %v7002 = vadd.f32 0.0, %v7001
    %v7003 = vpop.f32.mrf.mxu0
    %v7004 = vadd.f32 0.0, %v7003
    %v7005 = vpop.f32.mrf.mxu0
    %v7006 = vadd.f32 0.0, %v7005
    %7007 = vdwg.mxu0
    %7008 = vmatprep.subr.bf16.mxu0 %v3168
    %7009 = vmatpush1.bf16.msra.mxu0 %v3167
    %7010 = vmatprep.subr.bf16.mxu0 %v3164
    %7011 = vmatpush1.bf16.msra.mxu0 %v3163
    %7012 = vmatprep.subr.bf16.mxu0 %v3160
    %7013 = vmatpush1.bf16.msra.mxu0 %v3159
    %7014 = vmatprep.subr.bf16.mxu0 %v3156
    %7015 = vmatpush1.bf16.msra.mxu0 %v3155
    %7016 = vmatprep.subr.bf16.mxu0 %v3152
    %7017 = vmatpush1.bf16.msra.mxu0 %v3151
    %7018 = vmatprep.subr.bf16.mxu0 %v3148
    %7019 = vmatpush1.bf16.msra.mxu0 %v3147
    %7020 = vmatprep.subr.bf16.mxu0 %v3144
    %7021 = vmatpush1.bf16.msra.mxu0 %v3143
    %7022 = vmatprep.subr.bf16.mxu0 %v3140
    %7023 = vmatpush1.bf16.msra.mxu0 %v3139
    %7024 = vmatprep.subr.bf16.mxu0 0
    %7025 = vmatpush2.bf16.msra.mxu0 0
    %7026 = vmatprep.subr.bf16.mxu0 0
    %7027 = vmatpush2.bf16.msra.mxu0 0
    %7028 = vmatprep.subr.bf16.mxu0 0
    %7029 = vmatpush2.bf16.msra.mxu0 0
    %7030 = vmatprep.subr.bf16.mxu0 0
    %7031 = vmatpush2.bf16.msra.mxu0 0
    %7032 = vmatprep.subr.bf16.mxu0 0
    %7033 = vmatpush2.bf16.msra.mxu0 0
    %7034 = vmatprep.subr.bf16.mxu0 0
    %7035 = vmatpush2.bf16.msra.mxu0 0
    %7036 = vmatprep.subr.bf16.mxu0 0
    %7037 = vmatpush2.bf16.msra.mxu0 0
    %7038 = vmatprep.subr.bf16.mxu0 0
    %7039 = vmatpush2.bf16.msra.mxu0 0
    %7040 = vmatprep.mubr.bf16.mxu0 0
    %7041 = vmatmul.mubr.bf16.gmra.mxu0 %v6964
    %v7042 = vpop.f32.mrf.mxu0
    %v7043 = vadd.f32 0.0, %v7042
    %v7044 = vpop.f32.mrf.mxu0
    %v7045 = vadd.f32 0.0, %v7044
    %v7046 = vpop.f32.mrf.mxu0
    %v7047 = vadd.f32 0.0, %v7046
    %v7048 = vpop.f32.mrf.mxu0
    %v7049 = vadd.f32 0.0, %v7048
    %7050 = vdwg.mxu0
    %v7051 = vadd.f32 %v6913, %v7000
    %v7052 = vadd.f32 %v6915, %v7002
    %v7053 = vadd.f32 %v6956, %v7043
    %v7054 = vadd.f32 %v6958, %v7045
    %v7055 = vadd.f32 %v6917, %v7004
    %v7056 = vadd.f32 %v6919, %v7006
    %v7057 = vadd.f32 %v6960, %v7047
    %v7058 = vadd.f32 %v6962, %v7049
    %v7059 = vxor.u32 %v7051, 2147483648
    %v7060 = vxor.u32 %v7052, 2147483648
    %v7061 = vxor.u32 %v7053, 2147483648
    %v7062 = vxor.u32 %v7055, 2147483648
    %v7063 = vxor.u32 %v7056, 2147483648
    %v7064 = vxor.u32 %v7057, 2147483648
    %v7065 = vmul.f32 %v7059, 1.442695
    %v7066 = vpow.pop %v7065
    %v7067 = vmul.f32 %v7060, 1.442695
    %v7068 = vpow.pop %v7067
    %v7069 = vmul.f32 %v7061, 1.442695
    %v7070 = vpow.pop %v7069
    %v7071 = vmul.f32 %v7062, 1.442695
    %v7072 = vpow.pop %v7071
    %v7073 = vmul.f32 %v7063, 1.442695
    %v7074 = vpow.pop %v7073
    %v7075 = vmul.f32 %v7064, 1.442695
    %v7076 = vpow.pop %v7075
    %v7077 = vadd.f32 %v7066, 1.0
    %v7078 = vadd.f32 %v7068, 1.0
    %v7079 = vadd.f32 %v7070, 1.0
    %v7080 = vadd.f32 %v7072, 1.0
    %v7081 = vadd.f32 %v7074, 1.0
    %v7082 = vadd.f32 %v7076, 1.0
    %v7083 = vrcp.pop %v7077
    %v7084 = vmul.f32 1.0, %v7083
    %v7085 = vrcp.pop %v7078
    %v7086 = vmul.f32 1.0, %v7085
    %v7087 = vrcp.pop %v7079
    %v7088 = vmul.f32 1.0, %v7087
    %v7089 = vrcp.pop %v7080
    %v7090 = vmul.f32 1.0, %v7089
    %v7091 = vrcp.pop %v7081
    %v7092 = vmul.f32 1.0, %v7091
    %v7093 = vrcp.pop %v7082
    %v7094 = vmul.f32 1.0, %v7093
    %v7095 = vtanh.pop %v7054
    %v7096 = vtanh.pop %v7058
    %v7097 = vmul.f32 %v7086, %v5951
    %v7098 = vmul.f32 %v7092, %v5952
    %v7099 = vmul.f32 %v7084, %v7095
    %v7100 = vmul.f32 %v7090, %v7096
    %v7101 = vadd.f32 %v7097, %v7099
    %v7102 = vadd.f32 %v7098, %v7100
    %v7103 = vtanh.pop %v7101
    %v7104 = vtanh.pop %v7102
    %v7105 = vmul.f32 %v7088, %v7103
    %v7106 = vmul.f32 %v7094, %v7104
    %7107 = vmatprep.subr.bf16.mxu0 %v3524
    %7108 = vmatpush1.bf16.msra.mxu0 %v3523
    %7109 = vmatprep.subr.bf16.mxu0 %v3520
    %7110 = vmatpush1.bf16.msra.mxu0 %v3519
    %7111 = vmatprep.subr.bf16.mxu0 %v3516
    %7112 = vmatpush1.bf16.msra.mxu0 %v3515
    %7113 = vmatprep.subr.bf16.mxu0 %v3512
    %7114 = vmatpush1.bf16.msra.mxu0 %v3511
    %7115 = vmatprep.subr.bf16.mxu0 %v3508
    %7116 = vmatpush1.bf16.msra.mxu0 %v3507
    %7117 = vmatprep.subr.bf16.mxu0 %v3504
    %7118 = vmatpush1.bf16.msra.mxu0 %v3503
    %7119 = vmatprep.subr.bf16.mxu0 %v3500
    %7120 = vmatpush1.bf16.msra.mxu0 %v3499
    %7121 = vmatprep.subr.bf16.mxu0 %v3496
    %7122 = vmatpush1.bf16.msra.mxu0 %v3495
    %7123 = vmatprep.subr.bf16.mxu0 0
    %7124 = vmatpush2.bf16.msra.mxu0 0
    %7125 = vmatprep.subr.bf16.mxu0 0
    %7126 = vmatpush2.bf16.msra.mxu0 0
    %7127 = vmatprep.subr.bf16.mxu0 0
    %7128 = vmatpush2.bf16.msra.mxu0 0
    %7129 = vmatprep.subr.bf16.mxu0 0
    %7130 = vmatpush2.bf16.msra.mxu0 0
    %7131 = vmatprep.subr.bf16.mxu0 0
    %7132 = vmatpush2.bf16.msra.mxu0 0
    %7133 = vmatprep.subr.bf16.mxu0 0
    %7134 = vmatpush2.bf16.msra.mxu0 0
    %7135 = vmatprep.subr.bf16.mxu0 0
    %7136 = vmatpush2.bf16.msra.mxu0 0
    %7137 = vmatprep.subr.bf16.mxu0 0
    %7138 = vmatpush2.bf16.msra.mxu0 0
    %7139 = vmatprep.mubr.bf16.mxu0 0
    %7140 = vmatmul.mubr.bf16.gmra.mxu0 %v6964
    %v7141 = vpop.f32.mrf.mxu0
    %v7142 = vadd.f32 %v3382, %v7141
    %v7143 = vpop.f32.mrf.mxu0
    %v7144 = vadd.f32 %v3386, %v7143
    %v7145 = vpop.f32.mrf.mxu0
    %v7146 = vadd.f32 %v3382, %v7145
    %v7147 = vpop.f32.mrf.mxu0
    %v7148 = vadd.f32 %v3386, %v7147
    %7149 = vdwg.mxu0
    %7150 = vmatprep.subr.bf16.mxu0 %v3526
    %7151 = vmatpush1.bf16.msra.mxu0 %v3525
    %7152 = vmatprep.subr.bf16.mxu0 %v3522
    %7153 = vmatpush1.bf16.msra.mxu0 %v3521
    %7154 = vmatprep.subr.bf16.mxu0 %v3518
    %7155 = vmatpush1.bf16.msra.mxu0 %v3517
    %7156 = vmatprep.subr.bf16.mxu0 %v3514
    %7157 = vmatpush1.bf16.msra.mxu0 %v3513
    %7158 = vmatprep.subr.bf16.mxu0 %v3510
    %7159 = vmatpush1.bf16.msra.mxu0 %v3509
    %7160 = vmatprep.subr.bf16.mxu0 %v3506
    %7161 = vmatpush1.bf16.msra.mxu0 %v3505
    %7162 = vmatprep.subr.bf16.mxu0 %v3502
    %7163 = vmatpush1.bf16.msra.mxu0 %v3501
    %7164 = vmatprep.subr.bf16.mxu0 %v3498
    %7165 = vmatpush1.bf16.msra.mxu0 %v3497
    %7166 = vmatprep.subr.bf16.mxu0 0
    %7167 = vmatpush2.bf16.msra.mxu0 0
    %7168 = vmatprep.subr.bf16.mxu0 0
    %7169 = vmatpush2.bf16.msra.mxu0 0
    %7170 = vmatprep.subr.bf16.mxu0 0
    %7171 = vmatpush2.bf16.msra.mxu0 0
    %7172 = vmatprep.subr.bf16.mxu0 0
    %7173 = vmatpush2.bf16.msra.mxu0 0
    %7174 = vmatprep.subr.bf16.mxu0 0
    %7175 = vmatpush2.bf16.msra.mxu0 0
    %7176 = vmatprep.subr.bf16.mxu0 0
    %7177 = vmatpush2.bf16.msra.mxu0 0
    %7178 = vmatprep.subr.bf16.mxu0 0
    %7179 = vmatpush2.bf16.msra.mxu0 0
    %7180 = vmatprep.subr.bf16.mxu0 0
    %7181 = vmatpush2.bf16.msra.mxu0 0
    %7182 = vmatprep.mubr.bf16.mxu0 0
    %7183 = vmatmul.mubr.bf16.gmra.mxu0 %v6964
    %v7184 = vpop.f32.mrf.mxu0
    %v7185 = vadd.f32 %v3390, %v7184
    %v7186 = vpop.f32.mrf.mxu0
    %v7187 = vadd.f32 %v3394, %v7186
    %v7188 = vpop.f32.mrf.mxu0
    %v7189 = vadd.f32 %v3390, %v7188
    %v7190 = vpop.f32.mrf.mxu0
    %v7191 = vadd.f32 %v3394, %v7190
    %7192 = vdwg.mxu0
    %v7193 = vpack.c.bf16 %v6185, %v6184
    %7194 = vmatprep.subr.bf16.mxu0 %v4859
    %7195 = vmatpush1.bf16.msra.mxu0 %v4858
    %7196 = vmatprep.subr.bf16.mxu0 %v4855
    %7197 = vmatpush1.bf16.msra.mxu0 %v4854
    %7198 = vmatprep.subr.bf16.mxu0 %v4851
    %7199 = vmatpush1.bf16.msra.mxu0 %v4850
    %7200 = vmatprep.subr.bf16.mxu0 %v4847
    %7201 = vmatpush1.bf16.msra.mxu0 %v4846
    %7202 = vmatprep.subr.bf16.mxu0 %v4843
    %7203 = vmatpush1.bf16.msra.mxu0 %v4842
    %7204 = vmatprep.subr.bf16.mxu0 %v4839
    %7205 = vmatpush1.bf16.msra.mxu0 %v4838
    %7206 = vmatprep.subr.bf16.mxu0 %v4835
    %7207 = vmatpush1.bf16.msra.mxu0 %v4834
    %7208 = vmatprep.subr.bf16.mxu0 %v4831
    %7209 = vmatpush1.bf16.msra.mxu0 %v4830
    %7210 = vmatprep.subr.bf16.mxu0 0
    %7211 = vmatpush2.bf16.msra.mxu0 0
    %7212 = vmatprep.subr.bf16.mxu0 0
    %7213 = vmatpush2.bf16.msra.mxu0 0
    %7214 = vmatprep.subr.bf16.mxu0 0
    %7215 = vmatpush2.bf16.msra.mxu0 0
    %7216 = vmatprep.subr.bf16.mxu0 0
    %7217 = vmatpush2.bf16.msra.mxu0 0
    %7218 = vmatprep.subr.bf16.mxu0 0
    %7219 = vmatpush2.bf16.msra.mxu0 0
    %7220 = vmatprep.subr.bf16.mxu0 0
    %7221 = vmatpush2.bf16.msra.mxu0 0
    %7222 = vmatprep.subr.bf16.mxu0 0
    %7223 = vmatpush2.bf16.msra.mxu0 0
    %7224 = vmatprep.subr.bf16.mxu0 0
    %7225 = vmatpush2.bf16.msra.mxu0 0
    %7226 = vmatprep.mubr.bf16.mxu0 0
    %7227 = vmatmul.mubr.bf16.gmra.mxu0 %v7193
    %v7228 = vpop.f32.mrf.mxu0
    %v7229 = vadd.f32 0.0, %v7228
    %v7230 = vpop.f32.mrf.mxu0
    %v7231 = vadd.f32 0.0, %v7230
    %v7232 = vpop.f32.mrf.mxu0
    %v7233 = vadd.f32 0.0, %v7232
    %v7234 = vpop.f32.mrf.mxu0
    %v7235 = vadd.f32 0.0, %v7234
    %7236 = vdwg.mxu0
    %7237 = vmatprep.subr.bf16.mxu0 %v4861
    %7238 = vmatpush1.bf16.msra.mxu0 %v4860
    %7239 = vmatprep.subr.bf16.mxu0 %v4857
    %7240 = vmatpush1.bf16.msra.mxu0 %v4856
    %7241 = vmatprep.subr.bf16.mxu0 %v4853
    %7242 = vmatpush1.bf16.msra.mxu0 %v4852
    %7243 = vmatprep.subr.bf16.mxu0 %v4849
    %7244 = vmatpush1.bf16.msra.mxu0 %v4848
    %7245 = vmatprep.subr.bf16.mxu0 %v4845
    %7246 = vmatpush1.bf16.msra.mxu0 %v4844
    %7247 = vmatprep.subr.bf16.mxu0 %v4841
    %7248 = vmatpush1.bf16.msra.mxu0 %v4840
    %7249 = vmatprep.subr.bf16.mxu0 %v4837
    %7250 = vmatpush1.bf16.msra.mxu0 %v4836
    %7251 = vmatprep.subr.bf16.mxu0 %v4833
    %7252 = vmatpush1.bf16.msra.mxu0 %v4832
    %7253 = vmatprep.subr.bf16.mxu0 0
    %7254 = vmatpush2.bf16.msra.mxu0 0
    %7255 = vmatprep.subr.bf16.mxu0 0
    %7256 = vmatpush2.bf16.msra.mxu0 0
    %7257 = vmatprep.subr.bf16.mxu0 0
    %7258 = vmatpush2.bf16.msra.mxu0 0
    %7259 = vmatprep.subr.bf16.mxu0 0
    %7260 = vmatpush2.bf16.msra.mxu0 0
    %7261 = vmatprep.subr.bf16.mxu0 0
    %7262 = vmatpush2.bf16.msra.mxu0 0
    %7263 = vmatprep.subr.bf16.mxu0 0
    %7264 = vmatpush2.bf16.msra.mxu0 0
    %7265 = vmatprep.subr.bf16.mxu0 0
    %7266 = vmatpush2.bf16.msra.mxu0 0
    %7267 = vmatprep.subr.bf16.mxu0 0
    %7268 = vmatpush2.bf16.msra.mxu0 0
    %7269 = vmatprep.mubr.bf16.mxu0 0
    %7270 = vmatmul.mubr.bf16.gmra.mxu0 %v7193
    %v7271 = vpop.f32.mrf.mxu0
    %v7272 = vadd.f32 0.0, %v7271
    %v7273 = vpop.f32.mrf.mxu0
    %v7274 = vadd.f32 0.0, %v7273
    %v7275 = vpop.f32.mrf.mxu0
    %v7276 = vadd.f32 0.0, %v7275
    %v7277 = vpop.f32.mrf.mxu0
    %v7278 = vadd.f32 0.0, %v7277
    %7279 = vdwg.mxu0
    %v7280 = vadd.f32 %v7142, %v7229
    %v7281 = vadd.f32 %v7144, %v7231
    %v7282 = vadd.f32 %v7185, %v7272
    %v7283 = vadd.f32 %v7187, %v7274
    %v7284 = vadd.f32 %v7146, %v7233
    %v7285 = vadd.f32 %v7148, %v7235
    %v7286 = vadd.f32 %v7189, %v7276
    %v7287 = vadd.f32 %v7191, %v7278
    %v7288 = vxor.u32 %v7280, 2147483648
    %v7289 = vxor.u32 %v7281, 2147483648
    %v7290 = vxor.u32 %v7282, 2147483648
    %v7291 = vxor.u32 %v7284, 2147483648
    %v7292 = vxor.u32 %v7285, 2147483648
    %v7293 = vxor.u32 %v7286, 2147483648
    %v7294 = vmul.f32 %v7288, 1.442695
    %v7295 = vpow.pop %v7294
    %v7296 = vmul.f32 %v7289, 1.442695
    %v7297 = vpow.pop %v7296
    %v7298 = vmul.f32 %v7290, 1.442695
    %v7299 = vpow.pop %v7298
    %v7300 = vmul.f32 %v7291, 1.442695
    %v7301 = vpow.pop %v7300
    %v7302 = vmul.f32 %v7292, 1.442695
    %v7303 = vpow.pop %v7302
    %v7304 = vmul.f32 %v7293, 1.442695
    %v7305 = vpow.pop %v7304
    %v7306 = vadd.f32 %v7295, 1.0
    %v7307 = vadd.f32 %v7297, 1.0
    %v7308 = vadd.f32 %v7299, 1.0
    %v7309 = vadd.f32 %v7301, 1.0
    %v7310 = vadd.f32 %v7303, 1.0
    %v7311 = vadd.f32 %v7305, 1.0
    %v7312 = vrcp.pop %v7306
    %v7313 = vmul.f32 1.0, %v7312
    %v7314 = vrcp.pop %v7307
    %v7315 = vmul.f32 1.0, %v7314
    %v7316 = vrcp.pop %v7308
    %v7317 = vmul.f32 1.0, %v7316
    %v7318 = vrcp.pop %v7309
    %v7319 = vmul.f32 1.0, %v7318
    %v7320 = vrcp.pop %v7310
    %v7321 = vmul.f32 1.0, %v7320
    %v7322 = vrcp.pop %v7311
    %v7323 = vmul.f32 1.0, %v7322
    %v7324 = vtanh.pop %v7283
    %v7325 = vtanh.pop %v7287
    %v7326 = vmul.f32 %v7315, %v6180
    %v7327 = vmul.f32 %v7321, %v6181
    %v7328 = vmul.f32 %v7313, %v7324
    %v7329 = vmul.f32 %v7319, %v7325
    %v7330 = vadd.f32 %v7326, %v7328
    %v7331 = vadd.f32 %v7327, %v7329
    %v7332 = vtanh.pop %v7330
    %v7333 = vtanh.pop %v7331
    %v7334 = vmul.f32 %v7317, %v7332
    %v7335 = vmul.f32 %v7323, %v7333
    %s7336 = scalar_lea.vmem [#allocation2], 6
    %v7337 = vld [vmem:[%s7336] ss:$8 sm:$0xf]
    %s7338 = scalar_lea.vmem [#allocation2], 38
    %v7339 = vld [vmem:[%s7338] ss:$8 sm:$0xf]
    %s7340 = scalar_lea.vmem [#allocation2], 70
    %v7341 = vld [vmem:[%s7340] ss:$8 sm:$0xf]
    %s7342 = scalar_lea.vmem [#allocation2], 102
    %v7343 = vld [vmem:[%s7342] ss:$8 sm:$0xf]
    %s7344 = scalar_lea.vmem [#allocation2], 134
    %v7345 = vld [vmem:[%s7344] ss:$8 sm:$0xf]
    %s7346 = scalar_lea.vmem [#allocation2], 166
    %v7347 = vld [vmem:[%s7346] ss:$8 sm:$0xf]
    %s7348 = scalar_lea.vmem [#allocation2], 198
    %v7349 = vld [vmem:[%s7348] ss:$8 sm:$0xf]
    %s7350 = scalar_lea.vmem [#allocation2], 230
    %v7351 = vld [vmem:[%s7350] ss:$8 sm:$0xf]
    %s7352 = scalar_lea.vmem [#allocation2], 262
    %v7353 = vld [vmem:[%s7352] ss:$8 sm:$0xf]
    %s7354 = scalar_lea.vmem [#allocation2], 294
    %v7355 = vld [vmem:[%s7354] ss:$8 sm:$0xf]
    %s7356 = scalar_lea.vmem [#allocation2], 326
    %v7357 = vld [vmem:[%s7356] ss:$8 sm:$0xf]
    %s7358 = scalar_lea.vmem [#allocation2], 358
    %v7359 = vld [vmem:[%s7358] ss:$8 sm:$0xf]
    %s7360 = scalar_lea.vmem [#allocation2], 390
    %v7361 = vld [vmem:[%s7360] ss:$8 sm:$0xf]
    %s7362 = scalar_lea.vmem [#allocation2], 422
    %v7363 = vld [vmem:[%s7362] ss:$8 sm:$0xf]
    %s7364 = scalar_lea.vmem [#allocation2], 454
    %v7365 = vld [vmem:[%s7364] ss:$8 sm:$0xf]
    %s7366 = scalar_lea.vmem [#allocation2], 486
    %v7367 = vld [vmem:[%s7366] ss:$8 sm:$0xf]
    %v7368 = vpack.c.bf16 %v6862, %v6862
    %v7369 = vpack.c.bf16 %v6863, %v6863
    %v7370 = vpack.c.bf16 %v6864, %v6864
    %v7371 = vpack.c.bf16 %v6865, %v6865
    %v7372 = vpack.c.bf16 %v6866, %v6866
    %v7373 = vpack.c.bf16 %v6867, %v6867
    %v7374 = vpack.c.bf16 %v6868, %v6868
    %v7375 = vpack.c.bf16 %v6869, %v6869
    %v7376 = vpack.c.bf16 %v6870, %v6870
    %v7377 = vpack.c.bf16 %v6871, %v6871
    %v7378 = vpack.c.bf16 %v6872, %v6872
    %v7379 = vpack.c.bf16 %v6873, %v6873
    %v7380 = vpack.c.bf16 %v6874, %v6874
    %v7381 = vpack.c.bf16 %v6875, %v6875
    %v7382 = vpack.c.bf16 %v6876, %v6876
    %v7383 = vpack.c.bf16 %v6877, %v6877
    %v7400 = vunpack.c.l.b16 %v7368
    %v7401 = vunpack.c.l.b16 %v7369
    %v7402 = vunpack.c.l.b16 %v7370
    %v7403 = vunpack.c.l.b16 %v7371
    %v7404 = vunpack.c.l.b16 %v7372
    %v7405 = vunpack.c.l.b16 %v7373
    %v7406 = vunpack.c.l.b16 %v7374
    %v7407 = vunpack.c.l.b16 %v7375
    %v7408 = vunpack.c.l.b16 %v7376
    %v7409 = vunpack.c.l.b16 %v7377
    %v7410 = vunpack.c.l.b16 %v7378
    %v7411 = vunpack.c.l.b16 %v7379
    %v7412 = vunpack.c.l.b16 %v7380
    %v7413 = vunpack.c.l.b16 %v7381
    %v7414 = vunpack.c.l.b16 %v7382
    %v7415 = vunpack.c.l.b16 %v7383
    %v7416 = vrot.slane %v7401, 7
    %v7417 = vsel %vm1102, %v7416, %v7400
    %v7418 = vrot.slane %v7402, 6
    %v7419 = vsel %vm1105, %v7418, %v7417
    %v7420 = vrot.slane %v7403, 5
    %v7421 = vsel %vm1108, %v7420, %v7419
    %v7422 = vrot.slane %v7404, 4
    %v7423 = vsel %vm1111, %v7422, %v7421
    %v7424 = vrot.slane %v7405, 3
    %v7425 = vsel %vm1114, %v7424, %v7423
    %v7426 = vrot.slane %v7406, 2
    %v7427 = vsel %vm1117, %v7426, %v7425
    %v7428 = vrot.slane %v7407, 1
    %v7429 = vsel %vm1120, %v7428, %v7427
    %v7430 = vrot.slane %v7409, 7
    %v7431 = vsel %vm1102, %v7430, %v7408
    %v7432 = vrot.slane %v7410, 6
    %v7433 = vsel %vm1105, %v7432, %v7431
    %v7434 = vrot.slane %v7411, 5
    %v7435 = vsel %vm1108, %v7434, %v7433
    %v7436 = vrot.slane %v7412, 4
    %v7437 = vsel %vm1111, %v7436, %v7435
    %v7438 = vrot.slane %v7413, 3
    %v7439 = vsel %vm1114, %v7438, %v7437
    %v7440 = vrot.slane %v7414, 2
    %v7441 = vsel %vm1117, %v7440, %v7439
    %v7442 = vrot.slane %v7415, 1
    %v7443 = vsel %vm1120, %v7442, %v7441
    %v7444 = vpack.c.b16 %v7443, %v7429
    %7446 = vmatprep.subr.bf16.mxu0 %v1263
    %7447 = vmatpush1.bf16.msra.mxu0 %v1262
    %7448 = vmatprep.subr.bf16.mxu0 %v1259
    %7449 = vmatpush1.bf16.msra.mxu0 %v1258
    %7450 = vmatprep.subr.bf16.mxu0 %v1255
    %7451 = vmatpush1.bf16.msra.mxu0 %v1254
    %7452 = vmatprep.subr.bf16.mxu0 %v1251
    %7453 = vmatpush1.bf16.msra.mxu0 %v1250
    %7454 = vmatprep.subr.bf16.mxu0 %v1247
    %7455 = vmatpush1.bf16.msra.mxu0 %v1246
    %7456 = vmatprep.subr.bf16.mxu0 %v1243
    %7457 = vmatpush1.bf16.msra.mxu0 %v1242
    %7458 = vmatprep.subr.bf16.mxu0 %v1239
    %7459 = vmatpush1.bf16.msra.mxu0 %v1238
    %7460 = vmatprep.subr.bf16.mxu0 %v1235
    %7461 = vmatpush1.bf16.msra.mxu0 %v1234
    %7462 = vmatprep.subr.bf16.mxu0 0
    %7463 = vmatpush2.bf16.msra.mxu0 0
    %7464 = vmatprep.subr.bf16.mxu0 0
    %7465 = vmatpush2.bf16.msra.mxu0 0
    %7466 = vmatprep.subr.bf16.mxu0 0
    %7467 = vmatpush2.bf16.msra.mxu0 0
    %7468 = vmatprep.subr.bf16.mxu0 0
    %7469 = vmatpush2.bf16.msra.mxu0 0
    %7470 = vmatprep.subr.bf16.mxu0 0
    %7471 = vmatpush2.bf16.msra.mxu0 0
    %7472 = vmatprep.subr.bf16.mxu0 0
    %7473 = vmatpush2.bf16.msra.mxu0 0
    %7474 = vmatprep.subr.bf16.mxu0 0
    %7475 = vmatpush2.bf16.msra.mxu0 0
    %7476 = vmatprep.subr.bf16.mxu0 0
    %7477 = vmatpush2.bf16.msra.mxu0 0
    %7478 = vmatprep.mubr.bf16.mxu0 0
    %7479 = vmatmul.mubr.bf16.gmra.mxu0 %v7444
    %v7480 = vpop.f32.mrf.mxu0
    %v7481 = vadd.f32 0.0, %v7480
    %v7482 = vpop.f32.mrf.mxu0
    %v7483 = vadd.f32 0.0, %v7482
    %v7484 = vpop.f32.mrf.mxu0
    %v7485 = vadd.f32 0.0, %v7484
    %v7486 = vpop.f32.mrf.mxu0
    %v7487 = vadd.f32 0.0, %v7486
    %7488 = vdwg.mxu0
    %7489 = vmatprep.subr.bf16.mxu0 %v1265
    %7490 = vmatpush1.bf16.msra.mxu0 %v1264
    %7491 = vmatprep.subr.bf16.mxu0 %v1261
    %7492 = vmatpush1.bf16.msra.mxu0 %v1260
    %7493 = vmatprep.subr.bf16.mxu0 %v1257
    %7494 = vmatpush1.bf16.msra.mxu0 %v1256
    %7495 = vmatprep.subr.bf16.mxu0 %v1253
    %7496 = vmatpush1.bf16.msra.mxu0 %v1252
    %7497 = vmatprep.subr.bf16.mxu0 %v1249
    %7498 = vmatpush1.bf16.msra.mxu0 %v1248
    %7499 = vmatprep.subr.bf16.mxu0 %v1245
    %7500 = vmatpush1.bf16.msra.mxu0 %v1244
    %7501 = vmatprep.subr.bf16.mxu0 %v1241
    %7502 = vmatpush1.bf16.msra.mxu0 %v1240
    %7503 = vmatprep.subr.bf16.mxu0 %v1237
    %7504 = vmatpush1.bf16.msra.mxu0 %v1236
    %7505 = vmatprep.subr.bf16.mxu0 0
    %7506 = vmatpush2.bf16.msra.mxu0 0
    %7507 = vmatprep.subr.bf16.mxu0 0
    %7508 = vmatpush2.bf16.msra.mxu0 0
    %7509 = vmatprep.subr.bf16.mxu0 0
    %7510 = vmatpush2.bf16.msra.mxu0 0
    %7511 = vmatprep.subr.bf16.mxu0 0
    %7512 = vmatpush2.bf16.msra.mxu0 0
    %7513 = vmatprep.subr.bf16.mxu0 0
    %7514 = vmatpush2.bf16.msra.mxu0 0
    %7515 = vmatprep.subr.bf16.mxu0 0
    %7516 = vmatpush2.bf16.msra.mxu0 0
    %7517 = vmatprep.subr.bf16.mxu0 0
    %7518 = vmatpush2.bf16.msra.mxu0 0
    %7519 = vmatprep.subr.bf16.mxu0 0
    %7520 = vmatpush2.bf16.msra.mxu0 0
    %7521 = vmatprep.mubr.bf16.mxu0 0
    %7522 = vmatmul.mubr.bf16.gmra.mxu0 %v7444
    %v7523 = vpop.f32.mrf.mxu0
    %v7524 = vadd.f32 0.0, %v7523
    %v7525 = vpop.f32.mrf.mxu0
    %v7526 = vadd.f32 0.0, %v7525
    %v7527 = vpop.f32.mrf.mxu0
    %v7528 = vadd.f32 0.0, %v7527
    %v7529 = vpop.f32.mrf.mxu0
    %v7530 = vadd.f32 0.0, %v7529
    %7531 = vdwg.mxu0
    %v7540 = vcombine.low %v7481, %v7483
    %v7541 = vcombine.high %v7481, %v7483
    %v7542 = vcombine.low %v7524, %v7526
    %v7543 = vcombine.high %v7524, %v7526
    %v7545 = vunpack.c.l.s4 1966171168
    %v7546 = vunpack.c.0.s8 %v7545
    %v7547 = vlaneseq
    %v7548 = vshrl.u32 %v7547, 7
    %v7549 = vsub.s32 %v7546, %v7548
    %v7550 = vrot.slane %v7540, %v7549
    %v7552 = vunpack.c.l.s4 1966171168
    %v7553 = vunpack.c.0.s8 %v7552
    %v7554 = vlaneseq
    %v7555 = vshrl.u32 %v7554, 7
    %v7556 = vsub.s32 %v7553, %v7555
    %v7557 = vrot.slane %v7541, %v7556
    %v7559 = vunpack.c.l.s4 1966171168
    %v7560 = vunpack.c.0.s8 %v7559
    %v7561 = vlaneseq
    %v7562 = vshrl.u32 %v7561, 7
    %v7563 = vsub.s32 %v7560, %v7562
    %v7564 = vrot.slane %v7542, %v7563
    %v7566 = vunpack.c.l.s4 1966171168
    %v7567 = vunpack.c.0.s8 %v7566
    %v7568 = vlaneseq
    %v7569 = vshrl.u32 %v7568, 7
    %v7570 = vsub.s32 %v7567, %v7569
    %v7571 = vrot.slane %v7543, %v7570
    %v7572 = vcombine.low %v7550, %v7564
    %v7573 = vcombine.high %v7550, %v7564
    %v7574 = vcombine.low %v7557, %v7571
    %v7575 = vcombine.high %v7557, %v7571
    %v7577 = vunpack.c.l.s4 1966171168
    %v7578 = vunpack.c.0.s8 %v7577
    %v7579 = vlaneseq
    %v7580 = vshrl.u32 %v7579, 7
    %v7581 = vsub.s32 %v7578, %v7580
    %v7582 = vrot.slane %v7572, %v7581
    %v7584 = vunpack.c.l.s4 1966171168
    %v7585 = vunpack.c.0.s8 %v7584
    %v7586 = vlaneseq
    %v7587 = vshrl.u32 %v7586, 7
    %v7588 = vsub.s32 %v7585, %v7587
    %v7589 = vrot.slane %v7574, %v7588
    %v7591 = vunpack.c.l.s4 1966171168
    %v7592 = vunpack.c.0.s8 %v7591
    %v7593 = vlaneseq
    %v7594 = vshrl.u32 %v7593, 7
    %v7595 = vsub.s32 %v7592, %v7594
    %v7596 = vrot.slane %v7573, %v7595
    %v7598 = vunpack.c.l.s4 1966171168
    %v7599 = vunpack.c.0.s8 %v7598
    %v7600 = vlaneseq
    %v7601 = vshrl.u32 %v7600, 7
    %v7602 = vsub.s32 %v7599, %v7601
    %v7603 = vrot.slane %v7575, %v7602
    %v7604 = vcombine.high %v7582, %v7582
    %v7605 = vcombine.high %v7589, %v7589
    %v7606 = vcombine.high %v7596, %v7596
    %v7607 = vcombine.high %v7603, %v7603
    %v7608 = vcombine.low %v7485, %v7487
    %v7609 = vcombine.high %v7485, %v7487
    %v7610 = vcombine.low %v7528, %v7530
    %v7611 = vcombine.high %v7528, %v7530
    %v7613 = vunpack.c.l.s4 1966171168
    %v7614 = vunpack.c.0.s8 %v7613
    %v7615 = vlaneseq
    %v7616 = vshrl.u32 %v7615, 7
    %v7617 = vsub.s32 %v7614, %v7616
    %v7618 = vrot.slane %v7608, %v7617
    %v7620 = vunpack.c.l.s4 1966171168
    %v7621 = vunpack.c.0.s8 %v7620
    %v7622 = vlaneseq
    %v7623 = vshrl.u32 %v7622, 7
    %v7624 = vsub.s32 %v7621, %v7623
    %v7625 = vrot.slane %v7609, %v7624
    %v7627 = vunpack.c.l.s4 1966171168
    %v7628 = vunpack.c.0.s8 %v7627
    %v7629 = vlaneseq
    %v7630 = vshrl.u32 %v7629, 7
    %v7631 = vsub.s32 %v7628, %v7630
    %v7632 = vrot.slane %v7610, %v7631
    %v7634 = vunpack.c.l.s4 1966171168
    %v7635 = vunpack.c.0.s8 %v7634
    %v7636 = vlaneseq
    %v7637 = vshrl.u32 %v7636, 7
    %v7638 = vsub.s32 %v7635, %v7637
    %v7639 = vrot.slane %v7611, %v7638
    %v7640 = vcombine.low %v7618, %v7632
    %v7641 = vcombine.high %v7618, %v7632
    %v7642 = vcombine.low %v7625, %v7639
    %v7643 = vcombine.high %v7625, %v7639
    %v7645 = vunpack.c.l.s4 1966171168
    %v7646 = vunpack.c.0.s8 %v7645
    %v7647 = vlaneseq
    %v7648 = vshrl.u32 %v7647, 7
    %v7649 = vsub.s32 %v7646, %v7648
    %v7650 = vrot.slane %v7640, %v7649
    %v7652 = vunpack.c.l.s4 1966171168
    %v7653 = vunpack.c.0.s8 %v7652
    %v7654 = vlaneseq
    %v7655 = vshrl.u32 %v7654, 7
    %v7656 = vsub.s32 %v7653, %v7655
    %v7657 = vrot.slane %v7642, %v7656
    %v7659 = vunpack.c.l.s4 1966171168
    %v7660 = vunpack.c.0.s8 %v7659
    %v7661 = vlaneseq
    %v7662 = vshrl.u32 %v7661, 7
    %v7663 = vsub.s32 %v7660, %v7662
    %v7664 = vrot.slane %v7641, %v7663
    %v7666 = vunpack.c.l.s4 1966171168
    %v7667 = vunpack.c.0.s8 %v7666
    %v7668 = vlaneseq
    %v7669 = vshrl.u32 %v7668, 7
    %v7670 = vsub.s32 %v7667, %v7669
    %v7671 = vrot.slane %v7643, %v7670
    %v7672 = vcombine.high %v7650, %v7650
    %v7673 = vcombine.high %v7657, %v7657
    %v7674 = vcombine.high %v7664, %v7664
    %v7675 = vcombine.high %v7671, %v7671
    %v7692 = vadd.f32 %v7337, %v7582
    %v7693 = vadd.f32 %v7339, %v7596
    %v7694 = vadd.f32 %v7341, %v7604
    %v7695 = vadd.f32 %v7343, %v7606
    %v7696 = vadd.f32 %v7345, %v7589
    %v7697 = vadd.f32 %v7347, %v7603
    %v7698 = vadd.f32 %v7349, %v7605
    %v7699 = vadd.f32 %v7351, %v7607
    %v7700 = vadd.f32 %v7353, %v7650
    %v7701 = vadd.f32 %v7355, %v7664
    %v7702 = vadd.f32 %v7357, %v7672
    %v7703 = vadd.f32 %v7359, %v7674
    %v7704 = vadd.f32 %v7361, %v7657
    %v7705 = vadd.f32 %v7363, %v7671
    %v7706 = vadd.f32 %v7365, %v7673
    %v7707 = vadd.f32 %v7367, %v7675
    %v7708 = vxor.u32 %v7692, 2147483648
    %v7709 = vxor.u32 %v7693, 2147483648
    %v7710 = vxor.u32 %v7694, 2147483648
    %v7711 = vxor.u32 %v7695, 2147483648
    %v7712 = vxor.u32 %v7696, 2147483648
    %v7713 = vxor.u32 %v7697, 2147483648
    %v7714 = vxor.u32 %v7698, 2147483648
    %v7715 = vxor.u32 %v7699, 2147483648
    %v7716 = vxor.u32 %v7700, 2147483648
    %v7717 = vxor.u32 %v7701, 2147483648
    %v7718 = vxor.u32 %v7702, 2147483648
    %v7719 = vxor.u32 %v7703, 2147483648
    %v7720 = vxor.u32 %v7704, 2147483648
    %v7721 = vxor.u32 %v7705, 2147483648
    %v7722 = vxor.u32 %v7706, 2147483648
    %v7723 = vxor.u32 %v7707, 2147483648
    %v7724 = vmul.f32 %v7708, 1.442695
    %v7725 = vpow.pop %v7724
    %v7726 = vmul.f32 %v7709, 1.442695
    %v7727 = vpow.pop %v7726
    %v7728 = vmul.f32 %v7710, 1.442695
    %v7729 = vpow.pop %v7728
    %v7730 = vmul.f32 %v7711, 1.442695
    %v7731 = vpow.pop %v7730
    %v7732 = vmul.f32 %v7712, 1.442695
    %v7733 = vpow.pop %v7732
    %v7734 = vmul.f32 %v7713, 1.442695
    %v7735 = vpow.pop %v7734
    %v7736 = vmul.f32 %v7714, 1.442695
    %v7737 = vpow.pop %v7736
    %v7738 = vmul.f32 %v7715, 1.442695
    %v7739 = vpow.pop %v7738
    %v7740 = vmul.f32 %v7716, 1.442695
    %v7741 = vpow.pop %v7740
    %v7742 = vmul.f32 %v7717, 1.442695
    %v7743 = vpow.pop %v7742
    %v7744 = vmul.f32 %v7718, 1.442695
    %v7745 = vpow.pop %v7744
    %v7746 = vmul.f32 %v7719, 1.442695
    %v7747 = vpow.pop %v7746
    %v7748 = vmul.f32 %v7720, 1.442695
    %v7749 = vpow.pop %v7748
    %v7750 = vmul.f32 %v7721, 1.442695
    %v7751 = vpow.pop %v7750
    %v7752 = vmul.f32 %v7722, 1.442695
    %v7753 = vpow.pop %v7752
    %v7754 = vmul.f32 %v7723, 1.442695
    %v7755 = vpow.pop %v7754
    %v7756 = vadd.f32 %v7725, 1.0
    %v7757 = vadd.f32 %v7727, 1.0
    %v7758 = vadd.f32 %v7729, 1.0
    %v7759 = vadd.f32 %v7731, 1.0
    %v7760 = vadd.f32 %v7733, 1.0
    %v7761 = vadd.f32 %v7735, 1.0
    %v7762 = vadd.f32 %v7737, 1.0
    %v7763 = vadd.f32 %v7739, 1.0
    %v7764 = vadd.f32 %v7741, 1.0
    %v7765 = vadd.f32 %v7743, 1.0
    %v7766 = vadd.f32 %v7745, 1.0
    %v7767 = vadd.f32 %v7747, 1.0
    %v7768 = vadd.f32 %v7749, 1.0
    %v7769 = vadd.f32 %v7751, 1.0
    %v7770 = vadd.f32 %v7753, 1.0
    %v7771 = vadd.f32 %v7755, 1.0
    %v7772 = vrcp.pop %v7756
    %v7773 = vmul.f32 1.0, %v7772
    %v7774 = vrcp.pop %v7757
    %v7775 = vmul.f32 1.0, %v7774
    %v7776 = vrcp.pop %v7758
    %v7777 = vmul.f32 1.0, %v7776
    %v7778 = vrcp.pop %v7759
    %v7779 = vmul.f32 1.0, %v7778
    %v7780 = vrcp.pop %v7760
    %v7781 = vmul.f32 1.0, %v7780
    %v7782 = vrcp.pop %v7761
    %v7783 = vmul.f32 1.0, %v7782
    %v7784 = vrcp.pop %v7762
    %v7785 = vmul.f32 1.0, %v7784
    %v7786 = vrcp.pop %v7763
    %v7787 = vmul.f32 1.0, %v7786
    %v7788 = vrcp.pop %v7764
    %v7789 = vmul.f32 1.0, %v7788
    %v7790 = vrcp.pop %v7765
    %v7791 = vmul.f32 1.0, %v7790
    %v7792 = vrcp.pop %v7766
    %v7793 = vmul.f32 1.0, %v7792
    %v7794 = vrcp.pop %v7767
    %v7795 = vmul.f32 1.0, %v7794
    %v7796 = vrcp.pop %v7768
    %v7797 = vmul.f32 1.0, %v7796
    %v7798 = vrcp.pop %v7769
    %v7799 = vmul.f32 1.0, %v7798
    %v7800 = vrcp.pop %v7770
    %v7801 = vmul.f32 1.0, %v7800
    %v7802 = vrcp.pop %v7771
    %v7803 = vmul.f32 1.0, %v7802
    %v7820 = vrot.slane %v7692, 3
    %v7821 = vrot.slane %v7693, 3
    %v7822 = vrot.slane %v7694, 3
    %v7823 = vrot.slane %v7695, 3
    %v7824 = vrot.slane %v7696, 3
    %v7825 = vrot.slane %v7697, 3
    %v7826 = vrot.slane %v7698, 3
    %v7827 = vrot.slane %v7699, 3
    %v7828 = vrot.slane %v7700, 3
    %v7829 = vrot.slane %v7701, 3
    %v7830 = vrot.slane %v7702, 3
    %v7831 = vrot.slane %v7703, 3
    %v7832 = vrot.slane %v7704, 3
    %v7833 = vrot.slane %v7705, 3
    %v7834 = vrot.slane %v7706, 3
    %v7835 = vrot.slane %v7707, 3
    %v7852 = vtanh.pop %v7820
    %v7853 = vtanh.pop %v7821
    %v7854 = vtanh.pop %v7822
    %v7855 = vtanh.pop %v7823
    %v7856 = vtanh.pop %v7824
    %v7857 = vtanh.pop %v7825
    %v7858 = vtanh.pop %v7826
    %v7859 = vtanh.pop %v7827
    %v7860 = vtanh.pop %v7828
    %v7861 = vtanh.pop %v7829
    %v7862 = vtanh.pop %v7830
    %v7863 = vtanh.pop %v7831
    %v7864 = vtanh.pop %v7832
    %v7865 = vtanh.pop %v7833
    %v7866 = vtanh.pop %v7834
    %v7867 = vtanh.pop %v7835
    %v7884 = vrot.slane %v7773, 1
    %v7885 = vrot.slane %v7775, 1
    %v7886 = vrot.slane %v7777, 1
    %v7887 = vrot.slane %v7779, 1
    %v7888 = vrot.slane %v7781, 1
    %v7889 = vrot.slane %v7783, 1
    %v7890 = vrot.slane %v7785, 1
    %v7891 = vrot.slane %v7787, 1
    %v7892 = vrot.slane %v7789, 1
    %v7893 = vrot.slane %v7791, 1
    %v7894 = vrot.slane %v7793, 1
    %v7895 = vrot.slane %v7795, 1
    %v7896 = vrot.slane %v7797, 1
    %v7897 = vrot.slane %v7799, 1
    %v7898 = vrot.slane %v7801, 1
    %v7899 = vrot.slane %v7803, 1
    %v7916 = vmul.f32 %v7884, %v6798
    %v7917 = vmul.f32 %v7885, %v6799
    %v7918 = vmul.f32 %v7886, %v6800
    %v7919 = vmul.f32 %v7887, %v6801
    %v7920 = vmul.f32 %v7888, %v6802
    %v7921 = vmul.f32 %v7889, %v6803
    %v7922 = vmul.f32 %v7890, %v6804
    %v7923 = vmul.f32 %v7891, %v6805
    %v7924 = vmul.f32 %v7892, %v6806
    %v7925 = vmul.f32 %v7893, %v6807
    %v7926 = vmul.f32 %v7894, %v6808
    %v7927 = vmul.f32 %v7895, %v6809
    %v7928 = vmul.f32 %v7896, %v6810
    %v7929 = vmul.f32 %v7897, %v6811
    %v7930 = vmul.f32 %v7898, %v6812
    %v7931 = vmul.f32 %v7899, %v6813
    %v7932 = vmul.f32 %v7773, %v7852
    %v7933 = vmul.f32 %v7775, %v7853
    %v7934 = vmul.f32 %v7777, %v7854
    %v7935 = vmul.f32 %v7779, %v7855
    %v7936 = vmul.f32 %v7781, %v7856
    %v7937 = vmul.f32 %v7783, %v7857
    %v7938 = vmul.f32 %v7785, %v7858
    %v7939 = vmul.f32 %v7787, %v7859
    %v7940 = vmul.f32 %v7789, %v7860
    %v7941 = vmul.f32 %v7791, %v7861
    %v7942 = vmul.f32 %v7793, %v7862
    %v7943 = vmul.f32 %v7795, %v7863
    %v7944 = vmul.f32 %v7797, %v7864
    %v7945 = vmul.f32 %v7799, %v7865
    %v7946 = vmul.f32 %v7801, %v7866
    %v7947 = vmul.f32 %v7803, %v7867
    %v7948 = vadd.f32 %v7916, %v7932
    %v7949 = vadd.f32 %v7917, %v7933
    %v7950 = vadd.f32 %v7918, %v7934
    %v7951 = vadd.f32 %v7919, %v7935
    %v7952 = vadd.f32 %v7920, %v7936
    %v7953 = vadd.f32 %v7921, %v7937
    %v7954 = vadd.f32 %v7922, %v7938
    %v7955 = vadd.f32 %v7923, %v7939
    %v7956 = vadd.f32 %v7924, %v7940
    %v7957 = vadd.f32 %v7925, %v7941
    %v7958 = vadd.f32 %v7926, %v7942
    %v7959 = vadd.f32 %v7927, %v7943
    %v7960 = vadd.f32 %v7928, %v7944
    %v7961 = vadd.f32 %v7929, %v7945
    %v7962 = vadd.f32 %v7930, %v7946
    %v7963 = vadd.f32 %v7931, %v7947
    %v7964 = vtanh.pop %v7948
    %v7965 = vtanh.pop %v7949
    %v7966 = vtanh.pop %v7950
    %v7967 = vtanh.pop %v7951
    %v7968 = vtanh.pop %v7952
    %v7969 = vtanh.pop %v7953
    %v7970 = vtanh.pop %v7954
    %v7971 = vtanh.pop %v7955
    %v7972 = vtanh.pop %v7956
    %v7973 = vtanh.pop %v7957
    %v7974 = vtanh.pop %v7958
    %v7975 = vtanh.pop %v7959
    %v7976 = vtanh.pop %v7960
    %v7977 = vtanh.pop %v7961
    %v7978 = vtanh.pop %v7962
    %v7979 = vtanh.pop %v7963
    %v7980 = vrot.slane %v7773, 2
    %v7981 = vrot.slane %v7775, 2
    %v7982 = vrot.slane %v7777, 2
    %v7983 = vrot.slane %v7779, 2
    %v7984 = vrot.slane %v7781, 2
    %v7985 = vrot.slane %v7783, 2
    %v7986 = vrot.slane %v7785, 2
    %v7987 = vrot.slane %v7787, 2
    %v7988 = vrot.slane %v7789, 2
    %v7989 = vrot.slane %v7791, 2
    %v7990 = vrot.slane %v7793, 2
    %v7991 = vrot.slane %v7795, 2
    %v7992 = vrot.slane %v7797, 2
    %v7993 = vrot.slane %v7799, 2
    %v7994 = vrot.slane %v7801, 2
    %v7995 = vrot.slane %v7803, 2
    %v8012 = vmul.f32 %v7980, %v7964
    %v8013 = vmul.f32 %v7981, %v7965
    %v8014 = vmul.f32 %v7982, %v7966
    %v8015 = vmul.f32 %v7983, %v7967
    %v8016 = vmul.f32 %v7984, %v7968
    %v8017 = vmul.f32 %v7985, %v7969
    %v8018 = vmul.f32 %v7986, %v7970
    %v8019 = vmul.f32 %v7987, %v7971
    %v8020 = vmul.f32 %v7988, %v7972
    %v8021 = vmul.f32 %v7989, %v7973
    %v8022 = vmul.f32 %v7990, %v7974
    %v8023 = vmul.f32 %v7991, %v7975
    %v8024 = vmul.f32 %v7992, %v7976
    %v8025 = vmul.f32 %v7993, %v7977
    %v8026 = vmul.f32 %v7994, %v7978
    %v8027 = vmul.f32 %v7995, %v7979
    %8028 = vmatprep.subr.bf16.mxu0 %v2060
    %8029 = vmatpush1.bf16.msra.mxu0 %v2059
    %8030 = vmatprep.subr.bf16.mxu0 %v2056
    %8031 = vmatpush1.bf16.msra.mxu0 %v2055
    %8032 = vmatprep.subr.bf16.mxu0 %v2052
    %8033 = vmatpush1.bf16.msra.mxu0 %v2051
    %8034 = vmatprep.subr.bf16.mxu0 %v2048
    %8035 = vmatpush1.bf16.msra.mxu0 %v2047
    %8036 = vmatprep.subr.bf16.mxu0 %v2044
    %8037 = vmatpush1.bf16.msra.mxu0 %v2043
    %8038 = vmatprep.subr.bf16.mxu0 %v2040
    %8039 = vmatpush1.bf16.msra.mxu0 %v2039
    %8040 = vmatprep.subr.bf16.mxu0 %v2036
    %8041 = vmatpush1.bf16.msra.mxu0 %v2035
    %8042 = vmatprep.subr.bf16.mxu0 %v2032
    %8043 = vmatpush1.bf16.msra.mxu0 %v2031
    %8044 = vmatprep.subr.bf16.mxu0 0
    %8045 = vmatpush2.bf16.msra.mxu0 0
    %8046 = vmatprep.subr.bf16.mxu0 0
    %8047 = vmatpush2.bf16.msra.mxu0 0
    %8048 = vmatprep.subr.bf16.mxu0 0
    %8049 = vmatpush2.bf16.msra.mxu0 0
    %8050 = vmatprep.subr.bf16.mxu0 0
    %8051 = vmatpush2.bf16.msra.mxu0 0
    %8052 = vmatprep.subr.bf16.mxu0 0
    %8053 = vmatpush2.bf16.msra.mxu0 0
    %8054 = vmatprep.subr.bf16.mxu0 0
    %8055 = vmatpush2.bf16.msra.mxu0 0
    %8056 = vmatprep.subr.bf16.mxu0 0
    %8057 = vmatpush2.bf16.msra.mxu0 0
    %8058 = vmatprep.subr.bf16.mxu0 0
    %8059 = vmatpush2.bf16.msra.mxu0 0
    %8060 = vmatprep.mubr.bf16.mxu0 0
    %8061 = vmatmul.mubr.bf16.gmra.mxu0 %v7444
    %v8062 = vpop.f32.mrf.mxu0
    %v8063 = vadd.f32 %v1918, %v8062
    %v8064 = vpop.f32.mrf.mxu0
    %v8065 = vadd.f32 %v1922, %v8064
    %v8066 = vpop.f32.mrf.mxu0
    %v8067 = vadd.f32 %v1918, %v8066
    %v8068 = vpop.f32.mrf.mxu0
    %v8069 = vadd.f32 %v1922, %v8068
    %8070 = vdwg.mxu0
    %8071 = vmatprep.subr.bf16.mxu0 %v2062
    %8072 = vmatpush1.bf16.msra.mxu0 %v2061
    %8073 = vmatprep.subr.bf16.mxu0 %v2058
    %8074 = vmatpush1.bf16.msra.mxu0 %v2057
    %8075 = vmatprep.subr.bf16.mxu0 %v2054
    %8076 = vmatpush1.bf16.msra.mxu0 %v2053
    %8077 = vmatprep.subr.bf16.mxu0 %v2050
    %8078 = vmatpush1.bf16.msra.mxu0 %v2049
    %8079 = vmatprep.subr.bf16.mxu0 %v2046
    %8080 = vmatpush1.bf16.msra.mxu0 %v2045
    %8081 = vmatprep.subr.bf16.mxu0 %v2042
    %8082 = vmatpush1.bf16.msra.mxu0 %v2041
    %8083 = vmatprep.subr.bf16.mxu0 %v2038
    %8084 = vmatpush1.bf16.msra.mxu0 %v2037
    %8085 = vmatprep.subr.bf16.mxu0 %v2034
    %8086 = vmatpush1.bf16.msra.mxu0 %v2033
    %8087 = vmatprep.subr.bf16.mxu0 0
    %8088 = vmatpush2.bf16.msra.mxu0 0
    %8089 = vmatprep.subr.bf16.mxu0 0
    %8090 = vmatpush2.bf16.msra.mxu0 0
    %8091 = vmatprep.subr.bf16.mxu0 0
    %8092 = vmatpush2.bf16.msra.mxu0 0
    %8093 = vmatprep.subr.bf16.mxu0 0
    %8094 = vmatpush2.bf16.msra.mxu0 0
    %8095 = vmatprep.subr.bf16.mxu0 0
    %8096 = vmatpush2.bf16.msra.mxu0 0
    %8097 = vmatprep.subr.bf16.mxu0 0
    %8098 = vmatpush2.bf16.msra.mxu0 0
    %8099 = vmatprep.subr.bf16.mxu0 0
    %8100 = vmatpush2.bf16.msra.mxu0 0
    %8101 = vmatprep.subr.bf16.mxu0 0
    %8102 = vmatpush2.bf16.msra.mxu0 0
    %8103 = vmatprep.mubr.bf16.mxu0 0
    %8104 = vmatmul.mubr.bf16.gmra.mxu0 %v7444
    %v8105 = vpop.f32.mrf.mxu0
    %v8106 = vadd.f32 %v1926, %v8105
    %v8107 = vpop.f32.mrf.mxu0
    %v8108 = vadd.f32 %v1930, %v8107
    %v8109 = vpop.f32.mrf.mxu0
    %v8110 = vadd.f32 %v1926, %v8109
    %v8111 = vpop.f32.mrf.mxu0
    %v8112 = vadd.f32 %v1930, %v8111
    %8113 = vdwg.mxu0
    %v8114 = vpack.c.bf16 %v7106, %v7105
    %8115 = vmatprep.subr.bf16.mxu0 %v3166
    %8116 = vmatpush1.bf16.msra.mxu0 %v3165
    %8117 = vmatprep.subr.bf16.mxu0 %v3162
    %8118 = vmatpush1.bf16.msra.mxu0 %v3161
    %8119 = vmatprep.subr.bf16.mxu0 %v3158
    %8120 = vmatpush1.bf16.msra.mxu0 %v3157
    %8121 = vmatprep.subr.bf16.mxu0 %v3154
    %8122 = vmatpush1.bf16.msra.mxu0 %v3153
    %8123 = vmatprep.subr.bf16.mxu0 %v3150
    %8124 = vmatpush1.bf16.msra.mxu0 %v3149
    %8125 = vmatprep.subr.bf16.mxu0 %v3146
    %8126 = vmatpush1.bf16.msra.mxu0 %v3145
    %8127 = vmatprep.subr.bf16.mxu0 %v3142
    %8128 = vmatpush1.bf16.msra.mxu0 %v3141
    %8129 = vmatprep.subr.bf16.mxu0 %v3138
    %8130 = vmatpush1.bf16.msra.mxu0 %v3137
    %8131 = vmatprep.subr.bf16.mxu0 0
    %8132 = vmatpush2.bf16.msra.mxu0 0
    %8133 = vmatprep.subr.bf16.mxu0 0
    %8134 = vmatpush2.bf16.msra.mxu0 0
    %8135 = vmatprep.subr.bf16.mxu0 0
    %8136 = vmatpush2.bf16.msra.mxu0 0
    %8137 = vmatprep.subr.bf16.mxu0 0
    %8138 = vmatpush2.bf16.msra.mxu0 0
    %8139 = vmatprep.subr.bf16.mxu0 0
    %8140 = vmatpush2.bf16.msra.mxu0 0
    %8141 = vmatprep.subr.bf16.mxu0 0
    %8142 = vmatpush2.bf16.msra.mxu0 0
    %8143 = vmatprep.subr.bf16.mxu0 0
    %8144 = vmatpush2.bf16.msra.mxu0 0
    %8145 = vmatprep.subr.bf16.mxu0 0
    %8146 = vmatpush2.bf16.msra.mxu0 0
    %8147 = vmatprep.mubr.bf16.mxu0 0
    %8148 = vmatmul.mubr.bf16.gmra.mxu0 %v8114
    %v8149 = vpop.f32.mrf.mxu0
    %v8150 = vadd.f32 0.0, %v8149
    %v8151 = vpop.f32.mrf.mxu0
    %v8152 = vadd.f32 0.0, %v8151
    %v8153 = vpop.f32.mrf.mxu0
    %v8154 = vadd.f32 0.0, %v8153
    %v8155 = vpop.f32.mrf.mxu0
    %v8156 = vadd.f32 0.0, %v8155
    %8157 = vdwg.mxu0
    %8158 = vmatprep.subr.bf16.mxu0 %v3168
    %8159 = vmatpush1.bf16.msra.mxu0 %v3167
    %8160 = vmatprep.subr.bf16.mxu0 %v3164
    %8161 = vmatpush1.bf16.msra.mxu0 %v3163
    %8162 = vmatprep.subr.bf16.mxu0 %v3160
    %8163 = vmatpush1.bf16.msra.mxu0 %v3159
    %8164 = vmatprep.subr.bf16.mxu0 %v3156
    %8165 = vmatpush1.bf16.msra.mxu0 %v3155
    %8166 = vmatprep.subr.bf16.mxu0 %v3152
    %8167 = vmatpush1.bf16.msra.mxu0 %v3151
    %8168 = vmatprep.subr.bf16.mxu0 %v3148
    %8169 = vmatpush1.bf16.msra.mxu0 %v3147
    %8170 = vmatprep.subr.bf16.mxu0 %v3144
    %8171 = vmatpush1.bf16.msra.mxu0 %v3143
    %8172 = vmatprep.subr.bf16.mxu0 %v3140
    %8173 = vmatpush1.bf16.msra.mxu0 %v3139
    %8174 = vmatprep.subr.bf16.mxu0 0
    %8175 = vmatpush2.bf16.msra.mxu0 0
    %8176 = vmatprep.subr.bf16.mxu0 0
    %8177 = vmatpush2.bf16.msra.mxu0 0
    %8178 = vmatprep.subr.bf16.mxu0 0
    %8179 = vmatpush2.bf16.msra.mxu0 0
    %8180 = vmatprep.subr.bf16.mxu0 0
    %8181 = vmatpush2.bf16.msra.mxu0 0
    %8182 = vmatprep.subr.bf16.mxu0 0
    %8183 = vmatpush2.bf16.msra.mxu0 0
    %8184 = vmatprep.subr.bf16.mxu0 0
    %8185 = vmatpush2.bf16.msra.mxu0 0
    %8186 = vmatprep.subr.bf16.mxu0 0
    %8187 = vmatpush2.bf16.msra.mxu0 0
    %8188 = vmatprep.subr.bf16.mxu0 0
    %8189 = vmatpush2.bf16.msra.mxu0 0
    %8190 = vmatprep.mubr.bf16.mxu0 0
    %8191 = vmatmul.mubr.bf16.gmra.mxu0 %v8114
    %v8192 = vpop.f32.mrf.mxu0
    %v8193 = vadd.f32 0.0, %v8192
    %v8194 = vpop.f32.mrf.mxu0
    %v8195 = vadd.f32 0.0, %v8194
    %v8196 = vpop.f32.mrf.mxu0
    %v8197 = vadd.f32 0.0, %v8196
    %v8198 = vpop.f32.mrf.mxu0
    %v8199 = vadd.f32 0.0, %v8198
    %8200 = vdwg.mxu0
    %v8201 = vadd.f32 %v8063, %v8150
    %v8202 = vadd.f32 %v8065, %v8152
    %v8203 = vadd.f32 %v8106, %v8193
    %v8204 = vadd.f32 %v8108, %v8195
    %v8205 = vadd.f32 %v8067, %v8154
    %v8206 = vadd.f32 %v8069, %v8156
    %v8207 = vadd.f32 %v8110, %v8197
    %v8208 = vadd.f32 %v8112, %v8199
    %v8209 = vxor.u32 %v8201, 2147483648
    %v8210 = vxor.u32 %v8202, 2147483648
    %v8211 = vxor.u32 %v8203, 2147483648
    %v8212 = vxor.u32 %v8205, 2147483648
    %v8213 = vxor.u32 %v8206, 2147483648
    %v8214 = vxor.u32 %v8207, 2147483648
    %v8215 = vmul.f32 %v8209, 1.442695
    %v8216 = vpow.pop %v8215
    %v8217 = vmul.f32 %v8210, 1.442695
    %v8218 = vpow.pop %v8217
    %v8219 = vmul.f32 %v8211, 1.442695
    %v8220 = vpow.pop %v8219
    %v8221 = vmul.f32 %v8212, 1.442695
    %v8222 = vpow.pop %v8221
    %v8223 = vmul.f32 %v8213, 1.442695
    %v8224 = vpow.pop %v8223
    %v8225 = vmul.f32 %v8214, 1.442695
    %v8226 = vpow.pop %v8225
    %v8227 = vadd.f32 %v8216, 1.0
    %v8228 = vadd.f32 %v8218, 1.0
    %v8229 = vadd.f32 %v8220, 1.0
    %v8230 = vadd.f32 %v8222, 1.0
    %v8231 = vadd.f32 %v8224, 1.0
    %v8232 = vadd.f32 %v8226, 1.0
    %v8233 = vrcp.pop %v8227
    %v8234 = vmul.f32 1.0, %v8233
    %v8235 = vrcp.pop %v8228
    %v8236 = vmul.f32 1.0, %v8235
    %v8237 = vrcp.pop %v8229
    %v8238 = vmul.f32 1.0, %v8237
    %v8239 = vrcp.pop %v8230
    %v8240 = vmul.f32 1.0, %v8239
    %v8241 = vrcp.pop %v8231
    %v8242 = vmul.f32 1.0, %v8241
    %v8243 = vrcp.pop %v8232
    %v8244 = vmul.f32 1.0, %v8243
    %v8245 = vtanh.pop %v8204
    %v8246 = vtanh.pop %v8208
    %v8247 = vmul.f32 %v8236, %v7101
    %v8248 = vmul.f32 %v8242, %v7102
    %v8249 = vmul.f32 %v8234, %v8245
    %v8250 = vmul.f32 %v8240, %v8246
    %v8251 = vadd.f32 %v8247, %v8249
    %v8252 = vadd.f32 %v8248, %v8250
    %v8253 = vtanh.pop %v8251
    %v8254 = vtanh.pop %v8252
    %v8255 = vmul.f32 %v8238, %v8253
    %v8256 = vmul.f32 %v8244, %v8254
    %8257 = vmatprep.subr.bf16.mxu0 %v3524
    %8258 = vmatpush1.bf16.msra.mxu0 %v3523
    %8259 = vmatprep.subr.bf16.mxu0 %v3520
    %8260 = vmatpush1.bf16.msra.mxu0 %v3519
    %8261 = vmatprep.subr.bf16.mxu0 %v3516
    %8262 = vmatpush1.bf16.msra.mxu0 %v3515
    %8263 = vmatprep.subr.bf16.mxu0 %v3512
    %8264 = vmatpush1.bf16.msra.mxu0 %v3511
    %8265 = vmatprep.subr.bf16.mxu0 %v3508
    %8266 = vmatpush1.bf16.msra.mxu0 %v3507
    %8267 = vmatprep.subr.bf16.mxu0 %v3504
    %8268 = vmatpush1.bf16.msra.mxu0 %v3503
    %8269 = vmatprep.subr.bf16.mxu0 %v3500
    %8270 = vmatpush1.bf16.msra.mxu0 %v3499
    %8271 = vmatprep.subr.bf16.mxu0 %v3496
    %8272 = vmatpush1.bf16.msra.mxu0 %v3495
    %8273 = vmatprep.subr.bf16.mxu0 0
    %8274 = vmatpush2.bf16.msra.mxu0 0
    %8275 = vmatprep.subr.bf16.mxu0 0
    %8276 = vmatpush2.bf16.msra.mxu0 0
    %8277 = vmatprep.subr.bf16.mxu0 0
    %8278 = vmatpush2.bf16.msra.mxu0 0
    %8279 = vmatprep.subr.bf16.mxu0 0
    %8280 = vmatpush2.bf16.msra.mxu0 0
    %8281 = vmatprep.subr.bf16.mxu0 0
    %8282 = vmatpush2.bf16.msra.mxu0 0
    %8283 = vmatprep.subr.bf16.mxu0 0
    %8284 = vmatpush2.bf16.msra.mxu0 0
    %8285 = vmatprep.subr.bf16.mxu0 0
    %8286 = vmatpush2.bf16.msra.mxu0 0
    %8287 = vmatprep.subr.bf16.mxu0 0
    %8288 = vmatpush2.bf16.msra.mxu0 0
    %8289 = vmatprep.mubr.bf16.mxu0 0
    %8290 = vmatmul.mubr.bf16.gmra.mxu0 %v8114
    %v8291 = vpop.f32.mrf.mxu0
    %v8292 = vadd.f32 %v3382, %v8291
    %v8293 = vpop.f32.mrf.mxu0
    %v8294 = vadd.f32 %v3386, %v8293
    %v8295 = vpop.f32.mrf.mxu0
    %v8296 = vadd.f32 %v3382, %v8295
    %v8297 = vpop.f32.mrf.mxu0
    %v8298 = vadd.f32 %v3386, %v8297
    %8299 = vdwg.mxu0
    %8300 = vmatprep.subr.bf16.mxu0 %v3526
    %8301 = vmatpush1.bf16.msra.mxu0 %v3525
    %8302 = vmatprep.subr.bf16.mxu0 %v3522
    %8303 = vmatpush1.bf16.msra.mxu0 %v3521
    %8304 = vmatprep.subr.bf16.mxu0 %v3518
    %8305 = vmatpush1.bf16.msra.mxu0 %v3517
    %8306 = vmatprep.subr.bf16.mxu0 %v3514
    %8307 = vmatpush1.bf16.msra.mxu0 %v3513
    %8308 = vmatprep.subr.bf16.mxu0 %v3510
    %8309 = vmatpush1.bf16.msra.mxu0 %v3509
    %8310 = vmatprep.subr.bf16.mxu0 %v3506
    %8311 = vmatpush1.bf16.msra.mxu0 %v3505
    %8312 = vmatprep.subr.bf16.mxu0 %v3502
    %8313 = vmatpush1.bf16.msra.mxu0 %v3501
    %8314 = vmatprep.subr.bf16.mxu0 %v3498
    %8315 = vmatpush1.bf16.msra.mxu0 %v3497
    %8316 = vmatprep.subr.bf16.mxu0 0
    %8317 = vmatpush2.bf16.msra.mxu0 0
    %8318 = vmatprep.subr.bf16.mxu0 0
    %8319 = vmatpush2.bf16.msra.mxu0 0
    %8320 = vmatprep.subr.bf16.mxu0 0
    %8321 = vmatpush2.bf16.msra.mxu0 0
    %8322 = vmatprep.subr.bf16.mxu0 0
    %8323 = vmatpush2.bf16.msra.mxu0 0
    %8324 = vmatprep.subr.bf16.mxu0 0
    %8325 = vmatpush2.bf16.msra.mxu0 0
    %8326 = vmatprep.subr.bf16.mxu0 0
    %8327 = vmatpush2.bf16.msra.mxu0 0
    %8328 = vmatprep.subr.bf16.mxu0 0
    %8329 = vmatpush2.bf16.msra.mxu0 0
    %8330 = vmatprep.subr.bf16.mxu0 0
    %8331 = vmatpush2.bf16.msra.mxu0 0
    %8332 = vmatprep.mubr.bf16.mxu0 0
    %8333 = vmatmul.mubr.bf16.gmra.mxu0 %v8114
    %v8334 = vpop.f32.mrf.mxu0
    %v8335 = vadd.f32 %v3390, %v8334
    %v8336 = vpop.f32.mrf.mxu0
    %v8337 = vadd.f32 %v3394, %v8336
    %v8338 = vpop.f32.mrf.mxu0
    %v8339 = vadd.f32 %v3390, %v8338
    %v8340 = vpop.f32.mrf.mxu0
    %v8341 = vadd.f32 %v3394, %v8340
    %8342 = vdwg.mxu0
    %v8343 = vpack.c.bf16 %v7335, %v7334
    %8344 = vmatprep.subr.bf16.mxu0 %v4859
    %8345 = vmatpush1.bf16.msra.mxu0 %v4858
    %8346 = vmatprep.subr.bf16.mxu0 %v4855
    %8347 = vmatpush1.bf16.msra.mxu0 %v4854
    %8348 = vmatprep.subr.bf16.mxu0 %v4851
    %8349 = vmatpush1.bf16.msra.mxu0 %v4850
    %8350 = vmatprep.subr.bf16.mxu0 %v4847
    %8351 = vmatpush1.bf16.msra.mxu0 %v4846
    %8352 = vmatprep.subr.bf16.mxu0 %v4843
    %8353 = vmatpush1.bf16.msra.mxu0 %v4842
    %8354 = vmatprep.subr.bf16.mxu0 %v4839
    %8355 = vmatpush1.bf16.msra.mxu0 %v4838
    %8356 = vmatprep.subr.bf16.mxu0 %v4835
    %8357 = vmatpush1.bf16.msra.mxu0 %v4834
    %8358 = vmatprep.subr.bf16.mxu0 %v4831
    %8359 = vmatpush1.bf16.msra.mxu0 %v4830
    %8360 = vmatprep.subr.bf16.mxu0 0
    %8361 = vmatpush2.bf16.msra.mxu0 0
    %8362 = vmatprep.subr.bf16.mxu0 0
    %8363 = vmatpush2.bf16.msra.mxu0 0
    %8364 = vmatprep.subr.bf16.mxu0 0
    %8365 = vmatpush2.bf16.msra.mxu0 0
    %8366 = vmatprep.subr.bf16.mxu0 0
    %8367 = vmatpush2.bf16.msra.mxu0 0
    %8368 = vmatprep.subr.bf16.mxu0 0
    %8369 = vmatpush2.bf16.msra.mxu0 0
    %8370 = vmatprep.subr.bf16.mxu0 0
    %8371 = vmatpush2.bf16.msra.mxu0 0
    %8372 = vmatprep.subr.bf16.mxu0 0
    %8373 = vmatpush2.bf16.msra.mxu0 0
    %8374 = vmatprep.subr.bf16.mxu0 0
    %8375 = vmatpush2.bf16.msra.mxu0 0
    %8376 = vmatprep.mubr.bf16.mxu0 0
    %8377 = vmatmul.mubr.bf16.gmra.mxu0 %v8343
    %v8378 = vpop.f32.mrf.mxu0
    %v8379 = vadd.f32 0.0, %v8378
    %v8380 = vpop.f32.mrf.mxu0
    %v8381 = vadd.f32 0.0, %v8380
    %v8382 = vpop.f32.mrf.mxu0
    %v8383 = vadd.f32 0.0, %v8382
    %v8384 = vpop.f32.mrf.mxu0
    %v8385 = vadd.f32 0.0, %v8384
    %8386 = vdwg.mxu0
    %8387 = vmatprep.subr.bf16.mxu0 %v4861
    %8388 = vmatpush1.bf16.msra.mxu0 %v4860
    %8389 = vmatprep.subr.bf16.mxu0 %v4857
    %8390 = vmatpush1.bf16.msra.mxu0 %v4856
    %8391 = vmatprep.subr.bf16.mxu0 %v4853
    %8392 = vmatpush1.bf16.msra.mxu0 %v4852
    %8393 = vmatprep.subr.bf16.mxu0 %v4849
    %8394 = vmatpush1.bf16.msra.mxu0 %v4848
    %8395 = vmatprep.subr.bf16.mxu0 %v4845
    %8396 = vmatpush1.bf16.msra.mxu0 %v4844
    %8397 = vmatprep.subr.bf16.mxu0 %v4841
    %8398 = vmatpush1.bf16.msra.mxu0 %v4840
    %8399 = vmatprep.subr.bf16.mxu0 %v4837
    %8400 = vmatpush1.bf16.msra.mxu0 %v4836
    %8401 = vmatprep.subr.bf16.mxu0 %v4833
    %8402 = vmatpush1.bf16.msra.mxu0 %v4832
    %8403 = vmatprep.subr.bf16.mxu0 0
    %8404 = vmatpush2.bf16.msra.mxu0 0
    %8405 = vmatprep.subr.bf16.mxu0 0
    %8406 = vmatpush2.bf16.msra.mxu0 0
    %8407 = vmatprep.subr.bf16.mxu0 0
    %8408 = vmatpush2.bf16.msra.mxu0 0
    %8409 = vmatprep.subr.bf16.mxu0 0
    %8410 = vmatpush2.bf16.msra.mxu0 0
    %8411 = vmatprep.subr.bf16.mxu0 0
    %8412 = vmatpush2.bf16.msra.mxu0 0
    %8413 = vmatprep.subr.bf16.mxu0 0
    %8414 = vmatpush2.bf16.msra.mxu0 0
    %8415 = vmatprep.subr.bf16.mxu0 0
    %8416 = vmatpush2.bf16.msra.mxu0 0
    %8417 = vmatprep.subr.bf16.mxu0 0
    %8418 = vmatpush2.bf16.msra.mxu0 0
    %8419 = vmatprep.mubr.bf16.mxu0 0
    %8420 = vmatmul.mubr.bf16.gmra.mxu0 %v8343
    %v8421 = vpop.f32.mrf.mxu0
    %v8422 = vadd.f32 0.0, %v8421
    %v8423 = vpop.f32.mrf.mxu0
    %v8424 = vadd.f32 0.0, %v8423
    %v8425 = vpop.f32.mrf.mxu0
    %v8426 = vadd.f32 0.0, %v8425
    %v8427 = vpop.f32.mrf.mxu0
    %v8428 = vadd.f32 0.0, %v8427
    %8429 = vdwg.mxu0
    %v8430 = vadd.f32 %v8292, %v8379
    %v8431 = vadd.f32 %v8294, %v8381
    %v8432 = vadd.f32 %v8335, %v8422
    %v8433 = vadd.f32 %v8337, %v8424
    %v8434 = vadd.f32 %v8296, %v8383
    %v8435 = vadd.f32 %v8298, %v8385
    %v8436 = vadd.f32 %v8339, %v8426
    %v8437 = vadd.f32 %v8341, %v8428
    %v8438 = vxor.u32 %v8430, 2147483648
    %v8439 = vxor.u32 %v8431, 2147483648
    %v8440 = vxor.u32 %v8432, 2147483648
    %v8441 = vxor.u32 %v8434, 2147483648
    %v8442 = vxor.u32 %v8435, 2147483648
    %v8443 = vxor.u32 %v8436, 2147483648
    %v8444 = vmul.f32 %v8438, 1.442695
    %v8445 = vpow.pop %v8444
    %v8446 = vmul.f32 %v8439, 1.442695
    %v8447 = vpow.pop %v8446
    %v8448 = vmul.f32 %v8440, 1.442695
    %v8449 = vpow.pop %v8448
    %v8450 = vmul.f32 %v8441, 1.442695
    %v8451 = vpow.pop %v8450
    %v8452 = vmul.f32 %v8442, 1.442695
    %v8453 = vpow.pop %v8452
    %v8454 = vmul.f32 %v8443, 1.442695
    %v8455 = vpow.pop %v8454
    %v8456 = vadd.f32 %v8445, 1.0
    %v8457 = vadd.f32 %v8447, 1.0
    %v8458 = vadd.f32 %v8449, 1.0
    %v8459 = vadd.f32 %v8451, 1.0
    %v8460 = vadd.f32 %v8453, 1.0
    %v8461 = vadd.f32 %v8455, 1.0
    %v8462 = vrcp.pop %v8456
    %v8463 = vmul.f32 1.0, %v8462
    %v8464 = vrcp.pop %v8457
    %v8465 = vmul.f32 1.0, %v8464
    %v8466 = vrcp.pop %v8458
    %v8467 = vmul.f32 1.0, %v8466
    %v8468 = vrcp.pop %v8459
    %v8469 = vmul.f32 1.0, %v8468
    %v8470 = vrcp.pop %v8460
    %v8471 = vmul.f32 1.0, %v8470
    %v8472 = vrcp.pop %v8461
    %v8473 = vmul.f32 1.0, %v8472
    %v8474 = vtanh.pop %v8433
    %v8475 = vtanh.pop %v8437
    %v8476 = vmul.f32 %v8465, %v7330
    %v8477 = vmul.f32 %v8471, %v7331
    %v8478 = vmul.f32 %v8463, %v8474
    %v8479 = vmul.f32 %v8469, %v8475
    %v8480 = vadd.f32 %v8476, %v8478
    %v8481 = vadd.f32 %v8477, %v8479
    %v8482 = vtanh.pop %v8480
    %v8483 = vtanh.pop %v8481
    %v8484 = vmul.f32 %v8467, %v8482
    %v8485 = vmul.f32 %v8473, %v8483
    %s8486 = scalar_lea.vmem [#allocation2], 7
    %v8487 = vld [vmem:[%s8486] ss:$8 sm:$0xf]
    %s8488 = scalar_lea.vmem [#allocation2], 39
    %v8489 = vld [vmem:[%s8488] ss:$8 sm:$0xf]
    %s8490 = scalar_lea.vmem [#allocation2], 71
    %v8491 = vld [vmem:[%s8490] ss:$8 sm:$0xf]
    %s8492 = scalar_lea.vmem [#allocation2], 103
    %v8493 = vld [vmem:[%s8492] ss:$8 sm:$0xf]
    %s8494 = scalar_lea.vmem [#allocation2], 135
    %v8495 = vld [vmem:[%s8494] ss:$8 sm:$0xf]
    %s8496 = scalar_lea.vmem [#allocation2], 167
    %v8497 = vld [vmem:[%s8496] ss:$8 sm:$0xf]
    %s8498 = scalar_lea.vmem [#allocation2], 199
    %v8499 = vld [vmem:[%s8498] ss:$8 sm:$0xf]
    %s8500 = scalar_lea.vmem [#allocation2], 231
    %v8501 = vld [vmem:[%s8500] ss:$8 sm:$0xf]
    %s8502 = scalar_lea.vmem [#allocation2], 263
    %v8503 = vld [vmem:[%s8502] ss:$8 sm:$0xf]
    %s8504 = scalar_lea.vmem [#allocation2], 295
    %v8505 = vld [vmem:[%s8504] ss:$8 sm:$0xf]
    %s8506 = scalar_lea.vmem [#allocation2], 327
    %v8507 = vld [vmem:[%s8506] ss:$8 sm:$0xf]
    %s8508 = scalar_lea.vmem [#allocation2], 359
    %v8509 = vld [vmem:[%s8508] ss:$8 sm:$0xf]
    %s8510 = scalar_lea.vmem [#allocation2], 391
    %v8511 = vld [vmem:[%s8510] ss:$8 sm:$0xf]
    %s8512 = scalar_lea.vmem [#allocation2], 423
    %v8513 = vld [vmem:[%s8512] ss:$8 sm:$0xf]
    %s8514 = scalar_lea.vmem [#allocation2], 455
    %v8515 = vld [vmem:[%s8514] ss:$8 sm:$0xf]
    %s8516 = scalar_lea.vmem [#allocation2], 487
    %v8517 = vld [vmem:[%s8516] ss:$8 sm:$0xf]
    %v8518 = vpack.c.bf16 %v8012, %v8012
    %v8519 = vpack.c.bf16 %v8013, %v8013
    %v8520 = vpack.c.bf16 %v8014, %v8014
    %v8521 = vpack.c.bf16 %v8015, %v8015
    %v8522 = vpack.c.bf16 %v8016, %v8016
    %v8523 = vpack.c.bf16 %v8017, %v8017
    %v8524 = vpack.c.bf16 %v8018, %v8018
    %v8525 = vpack.c.bf16 %v8019, %v8019
    %v8526 = vpack.c.bf16 %v8020, %v8020
    %v8527 = vpack.c.bf16 %v8021, %v8021
    %v8528 = vpack.c.bf16 %v8022, %v8022
    %v8529 = vpack.c.bf16 %v8023, %v8023
    %v8530 = vpack.c.bf16 %v8024, %v8024
    %v8531 = vpack.c.bf16 %v8025, %v8025
    %v8532 = vpack.c.bf16 %v8026, %v8026
    %v8533 = vpack.c.bf16 %v8027, %v8027
    %v8550 = vunpack.c.l.b16 %v8518
    %v8551 = vunpack.c.l.b16 %v8519
    %v8552 = vunpack.c.l.b16 %v8520
    %v8553 = vunpack.c.l.b16 %v8521
    %v8554 = vunpack.c.l.b16 %v8522
    %v8555 = vunpack.c.l.b16 %v8523
    %v8556 = vunpack.c.l.b16 %v8524
    %v8557 = vunpack.c.l.b16 %v8525
    %v8558 = vunpack.c.l.b16 %v8526
    %v8559 = vunpack.c.l.b16 %v8527
    %v8560 = vunpack.c.l.b16 %v8528
    %v8561 = vunpack.c.l.b16 %v8529
    %v8562 = vunpack.c.l.b16 %v8530
    %v8563 = vunpack.c.l.b16 %v8531
    %v8564 = vunpack.c.l.b16 %v8532
    %v8565 = vunpack.c.l.b16 %v8533
    %v8566 = vrot.slane %v8551, 7
    %v8567 = vsel %vm1102, %v8566, %v8550
    %v8568 = vrot.slane %v8552, 6
    %v8569 = vsel %vm1105, %v8568, %v8567
    %v8570 = vrot.slane %v8553, 5
    %v8571 = vsel %vm1108, %v8570, %v8569
    %v8572 = vrot.slane %v8554, 4
    %v8573 = vsel %vm1111, %v8572, %v8571
    %v8574 = vrot.slane %v8555, 3
    %v8575 = vsel %vm1114, %v8574, %v8573
    %v8576 = vrot.slane %v8556, 2
    %v8577 = vsel %vm1117, %v8576, %v8575
    %v8578 = vrot.slane %v8557, 1
    %v8579 = vsel %vm1120, %v8578, %v8577
    %v8580 = vrot.slane %v8559, 7
    %v8581 = vsel %vm1102, %v8580, %v8558
    %v8582 = vrot.slane %v8560, 6
    %v8583 = vsel %vm1105, %v8582, %v8581
    %v8584 = vrot.slane %v8561, 5
    %v8585 = vsel %vm1108, %v8584, %v8583
    %v8586 = vrot.slane %v8562, 4
    %v8587 = vsel %vm1111, %v8586, %v8585
    %v8588 = vrot.slane %v8563, 3
    %v8589 = vsel %vm1114, %v8588, %v8587
    %v8590 = vrot.slane %v8564, 2
    %v8591 = vsel %vm1117, %v8590, %v8589
    %v8592 = vrot.slane %v8565, 1
    %v8593 = vsel %vm1120, %v8592, %v8591
    %v8594 = vpack.c.b16 %v8593, %v8579
    %8596 = vmatprep.subr.bf16.mxu0 %v1263
    %8597 = vmatpush1.bf16.msra.mxu0 %v1262
    %8598 = vmatprep.subr.bf16.mxu0 %v1259
    %8599 = vmatpush1.bf16.msra.mxu0 %v1258
    %8600 = vmatprep.subr.bf16.mxu0 %v1255
    %8601 = vmatpush1.bf16.msra.mxu0 %v1254
    %8602 = vmatprep.subr.bf16.mxu0 %v1251
    %8603 = vmatpush1.bf16.msra.mxu0 %v1250
    %8604 = vmatprep.subr.bf16.mxu0 %v1247
    %8605 = vmatpush1.bf16.msra.mxu0 %v1246
    %8606 = vmatprep.subr.bf16.mxu0 %v1243
    %8607 = vmatpush1.bf16.msra.mxu0 %v1242
    %8608 = vmatprep.subr.bf16.mxu0 %v1239
    %8609 = vmatpush1.bf16.msra.mxu0 %v1238
    %8610 = vmatprep.subr.bf16.mxu0 %v1235
    %8611 = vmatpush1.bf16.msra.mxu0 %v1234
    %8612 = vmatprep.subr.bf16.mxu0 0
    %8613 = vmatpush2.bf16.msra.mxu0 0
    %8614 = vmatprep.subr.bf16.mxu0 0
    %8615 = vmatpush2.bf16.msra.mxu0 0
    %8616 = vmatprep.subr.bf16.mxu0 0
    %8617 = vmatpush2.bf16.msra.mxu0 0
    %8618 = vmatprep.subr.bf16.mxu0 0
    %8619 = vmatpush2.bf16.msra.mxu0 0
    %8620 = vmatprep.subr.bf16.mxu0 0
    %8621 = vmatpush2.bf16.msra.mxu0 0
    %8622 = vmatprep.subr.bf16.mxu0 0
    %8623 = vmatpush2.bf16.msra.mxu0 0
    %8624 = vmatprep.subr.bf16.mxu0 0
    %8625 = vmatpush2.bf16.msra.mxu0 0
    %8626 = vmatprep.subr.bf16.mxu0 0
    %8627 = vmatpush2.bf16.msra.mxu0 0
    %8628 = vmatprep.mubr.bf16.mxu0 0
    %8629 = vmatmul.mubr.bf16.gmra.mxu0 %v8594
    %v8630 = vpop.f32.mrf.mxu0
    %v8631 = vadd.f32 0.0, %v8630
    %v8632 = vpop.f32.mrf.mxu0
    %v8633 = vadd.f32 0.0, %v8632
    %v8634 = vpop.f32.mrf.mxu0
    %v8635 = vadd.f32 0.0, %v8634
    %v8636 = vpop.f32.mrf.mxu0
    %v8637 = vadd.f32 0.0, %v8636
    %8638 = vdwg.mxu0
    %8639 = vmatprep.subr.bf16.mxu0 %v1265
    %8640 = vmatpush1.bf16.msra.mxu0 %v1264
    %8641 = vmatprep.subr.bf16.mxu0 %v1261
    %8642 = vmatpush1.bf16.msra.mxu0 %v1260
    %8643 = vmatprep.subr.bf16.mxu0 %v1257
    %8644 = vmatpush1.bf16.msra.mxu0 %v1256
    %8645 = vmatprep.subr.bf16.mxu0 %v1253
    %8646 = vmatpush1.bf16.msra.mxu0 %v1252
    %8647 = vmatprep.subr.bf16.mxu0 %v1249
    %8648 = vmatpush1.bf16.msra.mxu0 %v1248
    %8649 = vmatprep.subr.bf16.mxu0 %v1245
    %8650 = vmatpush1.bf16.msra.mxu0 %v1244
    %8651 = vmatprep.subr.bf16.mxu0 %v1241
    %8652 = vmatpush1.bf16.msra.mxu0 %v1240
    %8653 = vmatprep.subr.bf16.mxu0 %v1237
    %8654 = vmatpush1.bf16.msra.mxu0 %v1236
    %8655 = vmatprep.subr.bf16.mxu0 0
    %8656 = vmatpush2.bf16.msra.mxu0 0
    %8657 = vmatprep.subr.bf16.mxu0 0
    %8658 = vmatpush2.bf16.msra.mxu0 0
    %8659 = vmatprep.subr.bf16.mxu0 0
    %8660 = vmatpush2.bf16.msra.mxu0 0
    %8661 = vmatprep.subr.bf16.mxu0 0
    %8662 = vmatpush2.bf16.msra.mxu0 0
    %8663 = vmatprep.subr.bf16.mxu0 0
    %8664 = vmatpush2.bf16.msra.mxu0 0
    %8665 = vmatprep.subr.bf16.mxu0 0
    %8666 = vmatpush2.bf16.msra.mxu0 0
    %8667 = vmatprep.subr.bf16.mxu0 0
    %8668 = vmatpush2.bf16.msra.mxu0 0
    %8669 = vmatprep.subr.bf16.mxu0 0
    %8670 = vmatpush2.bf16.msra.mxu0 0
    %8671 = vmatprep.mubr.bf16.mxu0 0
    %8672 = vmatmul.mubr.bf16.gmra.mxu0 %v8594
    %v8673 = vpop.f32.mrf.mxu0
    %v8674 = vadd.f32 0.0, %v8673
    %v8675 = vpop.f32.mrf.mxu0
    %v8676 = vadd.f32 0.0, %v8675
    %v8677 = vpop.f32.mrf.mxu0
    %v8678 = vadd.f32 0.0, %v8677
    %v8679 = vpop.f32.mrf.mxu0
    %v8680 = vadd.f32 0.0, %v8679
    %8681 = vdwg.mxu0
    %v8690 = vcombine.low %v8631, %v8633
    %v8691 = vcombine.high %v8631, %v8633
    %v8692 = vcombine.low %v8674, %v8676
    %v8693 = vcombine.high %v8674, %v8676
    %v8695 = vunpack.c.l.s4 1966171168
    %v8696 = vunpack.c.0.s8 %v8695
    %v8697 = vlaneseq
    %v8698 = vshrl.u32 %v8697, 7
    %v8699 = vsub.s32 %v8696, %v8698
    %v8700 = vrot.slane %v8690, %v8699
    %v8702 = vunpack.c.l.s4 1966171168
    %v8703 = vunpack.c.0.s8 %v8702
    %v8704 = vlaneseq
    %v8705 = vshrl.u32 %v8704, 7
    %v8706 = vsub.s32 %v8703, %v8705
    %v8707 = vrot.slane %v8691, %v8706
    %v8709 = vunpack.c.l.s4 1966171168
    %v8710 = vunpack.c.0.s8 %v8709
    %v8711 = vlaneseq
    %v8712 = vshrl.u32 %v8711, 7
    %v8713 = vsub.s32 %v8710, %v8712
    %v8714 = vrot.slane %v8692, %v8713
    %v8716 = vunpack.c.l.s4 1966171168
    %v8717 = vunpack.c.0.s8 %v8716
    %v8718 = vlaneseq
    %v8719 = vshrl.u32 %v8718, 7
    %v8720 = vsub.s32 %v8717, %v8719
    %v8721 = vrot.slane %v8693, %v8720
    %v8722 = vcombine.low %v8700, %v8714
    %v8723 = vcombine.high %v8700, %v8714
    %v8724 = vcombine.low %v8707, %v8721
    %v8725 = vcombine.high %v8707, %v8721
    %v8727 = vunpack.c.l.s4 1966171168
    %v8728 = vunpack.c.0.s8 %v8727
    %v8729 = vlaneseq
    %v8730 = vshrl.u32 %v8729, 7
    %v8731 = vsub.s32 %v8728, %v8730
    %v8732 = vrot.slane %v8722, %v8731
    %v8734 = vunpack.c.l.s4 1966171168
    %v8735 = vunpack.c.0.s8 %v8734
    %v8736 = vlaneseq
    %v8737 = vshrl.u32 %v8736, 7
    %v8738 = vsub.s32 %v8735, %v8737
    %v8739 = vrot.slane %v8724, %v8738
    %v8741 = vunpack.c.l.s4 1966171168
    %v8742 = vunpack.c.0.s8 %v8741
    %v8743 = vlaneseq
    %v8744 = vshrl.u32 %v8743, 7
    %v8745 = vsub.s32 %v8742, %v8744
    %v8746 = vrot.slane %v8723, %v8745
    %v8748 = vunpack.c.l.s4 1966171168
    %v8749 = vunpack.c.0.s8 %v8748
    %v8750 = vlaneseq
    %v8751 = vshrl.u32 %v8750, 7
    %v8752 = vsub.s32 %v8749, %v8751
    %v8753 = vrot.slane %v8725, %v8752
    %v8754 = vcombine.high %v8732, %v8732
    %v8755 = vcombine.high %v8739, %v8739
    %v8756 = vcombine.high %v8746, %v8746
    %v8757 = vcombine.high %v8753, %v8753
    %v8758 = vcombine.low %v8635, %v8637
    %v8759 = vcombine.high %v8635, %v8637
    %v8760 = vcombine.low %v8678, %v8680
    %v8761 = vcombine.high %v8678, %v8680
    %v8763 = vunpack.c.l.s4 1966171168
    %v8764 = vunpack.c.0.s8 %v8763
    %v8765 = vlaneseq
    %v8766 = vshrl.u32 %v8765, 7
    %v8767 = vsub.s32 %v8764, %v8766
    %v8768 = vrot.slane %v8758, %v8767
    %v8770 = vunpack.c.l.s4 1966171168
    %v8771 = vunpack.c.0.s8 %v8770
    %v8772 = vlaneseq
    %v8773 = vshrl.u32 %v8772, 7
    %v8774 = vsub.s32 %v8771, %v8773
    %v8775 = vrot.slane %v8759, %v8774
    %v8777 = vunpack.c.l.s4 1966171168
    %v8778 = vunpack.c.0.s8 %v8777
    %v8779 = vlaneseq
    %v8780 = vshrl.u32 %v8779, 7
    %v8781 = vsub.s32 %v8778, %v8780
    %v8782 = vrot.slane %v8760, %v8781
    %v8784 = vunpack.c.l.s4 1966171168
    %v8785 = vunpack.c.0.s8 %v8784
    %v8786 = vlaneseq
    %v8787 = vshrl.u32 %v8786, 7
    %v8788 = vsub.s32 %v8785, %v8787
    %v8789 = vrot.slane %v8761, %v8788
    %v8790 = vcombine.low %v8768, %v8782
    %v8791 = vcombine.high %v8768, %v8782
    %v8792 = vcombine.low %v8775, %v8789
    %v8793 = vcombine.high %v8775, %v8789
    %v8795 = vunpack.c.l.s4 1966171168
    %v8796 = vunpack.c.0.s8 %v8795
    %v8797 = vlaneseq
    %v8798 = vshrl.u32 %v8797, 7
    %v8799 = vsub.s32 %v8796, %v8798
    %v8800 = vrot.slane %v8790, %v8799
    %v8802 = vunpack.c.l.s4 1966171168
    %v8803 = vunpack.c.0.s8 %v8802
    %v8804 = vlaneseq
    %v8805 = vshrl.u32 %v8804, 7
    %v8806 = vsub.s32 %v8803, %v8805
    %v8807 = vrot.slane %v8792, %v8806
    %v8809 = vunpack.c.l.s4 1966171168
    %v8810 = vunpack.c.0.s8 %v8809
    %v8811 = vlaneseq
    %v8812 = vshrl.u32 %v8811, 7
    %v8813 = vsub.s32 %v8810, %v8812
    %v8814 = vrot.slane %v8791, %v8813
    %v8816 = vunpack.c.l.s4 1966171168
    %v8817 = vunpack.c.0.s8 %v8816
    %v8818 = vlaneseq
    %v8819 = vshrl.u32 %v8818, 7
    %v8820 = vsub.s32 %v8817, %v8819
    %v8821 = vrot.slane %v8793, %v8820
    %v8822 = vcombine.high %v8800, %v8800
    %v8823 = vcombine.high %v8807, %v8807
    %v8824 = vcombine.high %v8814, %v8814
    %v8825 = vcombine.high %v8821, %v8821
    %v8842 = vadd.f32 %v8487, %v8732
    %v8843 = vadd.f32 %v8489, %v8746
    %v8844 = vadd.f32 %v8491, %v8754
    %v8845 = vadd.f32 %v8493, %v8756
    %v8846 = vadd.f32 %v8495, %v8739
    %v8847 = vadd.f32 %v8497, %v8753
    %v8848 = vadd.f32 %v8499, %v8755
    %v8849 = vadd.f32 %v8501, %v8757
    %v8850 = vadd.f32 %v8503, %v8800
    %v8851 = vadd.f32 %v8505, %v8814
    %v8852 = vadd.f32 %v8507, %v8822
    %v8853 = vadd.f32 %v8509, %v8824
    %v8854 = vadd.f32 %v8511, %v8807
    %v8855 = vadd.f32 %v8513, %v8821
    %v8856 = vadd.f32 %v8515, %v8823
    %v8857 = vadd.f32 %v8517, %v8825
    %v8858 = vxor.u32 %v8842, 2147483648
    %v8859 = vxor.u32 %v8843, 2147483648
    %v8860 = vxor.u32 %v8844, 2147483648
    %v8861 = vxor.u32 %v8845, 2147483648
    %v8862 = vxor.u32 %v8846, 2147483648
    %v8863 = vxor.u32 %v8847, 2147483648
    %v8864 = vxor.u32 %v8848, 2147483648
    %v8865 = vxor.u32 %v8849, 2147483648
    %v8866 = vxor.u32 %v8850, 2147483648
    %v8867 = vxor.u32 %v8851, 2147483648
    %v8868 = vxor.u32 %v8852, 2147483648
    %v8869 = vxor.u32 %v8853, 2147483648
    %v8870 = vxor.u32 %v8854, 2147483648
    %v8871 = vxor.u32 %v8855, 2147483648
    %v8872 = vxor.u32 %v8856, 2147483648
    %v8873 = vxor.u32 %v8857, 2147483648
    %v8874 = vmul.f32 %v8858, 1.442695
    %v8875 = vpow.pop %v8874
    %v8876 = vmul.f32 %v8859, 1.442695
    %v8877 = vpow.pop %v8876
    %v8878 = vmul.f32 %v8860, 1.442695
    %v8879 = vpow.pop %v8878
    %v8880 = vmul.f32 %v8861, 1.442695
    %v8881 = vpow.pop %v8880
    %v8882 = vmul.f32 %v8862, 1.442695
    %v8883 = vpow.pop %v8882
    %v8884 = vmul.f32 %v8863, 1.442695
    %v8885 = vpow.pop %v8884
    %v8886 = vmul.f32 %v8864, 1.442695
    %v8887 = vpow.pop %v8886
    %v8888 = vmul.f32 %v8865, 1.442695
    %v8889 = vpow.pop %v8888
    %v8890 = vmul.f32 %v8866, 1.442695
    %v8891 = vpow.pop %v8890
    %v8892 = vmul.f32 %v8867, 1.442695
    %v8893 = vpow.pop %v8892
    %v8894 = vmul.f32 %v8868, 1.442695
    %v8895 = vpow.pop %v8894
    %v8896 = vmul.f32 %v8869, 1.442695
    %v8897 = vpow.pop %v8896
    %v8898 = vmul.f32 %v8870, 1.442695
    %v8899 = vpow.pop %v8898
    %v8900 = vmul.f32 %v8871, 1.442695
    %v8901 = vpow.pop %v8900
    %v8902 = vmul.f32 %v8872, 1.442695
    %v8903 = vpow.pop %v8902
    %v8904 = vmul.f32 %v8873, 1.442695
    %v8905 = vpow.pop %v8904
    %v8906 = vadd.f32 %v8875, 1.0
    %v8907 = vadd.f32 %v8877, 1.0
    %v8908 = vadd.f32 %v8879, 1.0
    %v8909 = vadd.f32 %v8881, 1.0
    %v8910 = vadd.f32 %v8883, 1.0
    %v8911 = vadd.f32 %v8885, 1.0
    %v8912 = vadd.f32 %v8887, 1.0
    %v8913 = vadd.f32 %v8889, 1.0
    %v8914 = vadd.f32 %v8891, 1.0
    %v8915 = vadd.f32 %v8893, 1.0
    %v8916 = vadd.f32 %v8895, 1.0
    %v8917 = vadd.f32 %v8897, 1.0
    %v8918 = vadd.f32 %v8899, 1.0
    %v8919 = vadd.f32 %v8901, 1.0
    %v8920 = vadd.f32 %v8903, 1.0
    %v8921 = vadd.f32 %v8905, 1.0
    %v8922 = vrcp.pop %v8906
    %v8923 = vmul.f32 1.0, %v8922
    %v8924 = vrcp.pop %v8907
    %v8925 = vmul.f32 1.0, %v8924
    %v8926 = vrcp.pop %v8908
    %v8927 = vmul.f32 1.0, %v8926
    %v8928 = vrcp.pop %v8909
    %v8929 = vmul.f32 1.0, %v8928
    %v8930 = vrcp.pop %v8910
    %v8931 = vmul.f32 1.0, %v8930
    %v8932 = vrcp.pop %v8911
    %v8933 = vmul.f32 1.0, %v8932
    %v8934 = vrcp.pop %v8912
    %v8935 = vmul.f32 1.0, %v8934
    %v8936 = vrcp.pop %v8913
    %v8937 = vmul.f32 1.0, %v8936
    %v8938 = vrcp.pop %v8914
    %v8939 = vmul.f32 1.0, %v8938
    %v8940 = vrcp.pop %v8915
    %v8941 = vmul.f32 1.0, %v8940
    %v8942 = vrcp.pop %v8916
    %v8943 = vmul.f32 1.0, %v8942
    %v8944 = vrcp.pop %v8917
    %v8945 = vmul.f32 1.0, %v8944
    %v8946 = vrcp.pop %v8918
    %v8947 = vmul.f32 1.0, %v8946
    %v8948 = vrcp.pop %v8919
    %v8949 = vmul.f32 1.0, %v8948
    %v8950 = vrcp.pop %v8920
    %v8951 = vmul.f32 1.0, %v8950
    %v8952 = vrcp.pop %v8921
    %v8953 = vmul.f32 1.0, %v8952
    %v8970 = vrot.slane %v8842, 3
    %v8971 = vrot.slane %v8843, 3
    %v8972 = vrot.slane %v8844, 3
    %v8973 = vrot.slane %v8845, 3
    %v8974 = vrot.slane %v8846, 3
    %v8975 = vrot.slane %v8847, 3
    %v8976 = vrot.slane %v8848, 3
    %v8977 = vrot.slane %v8849, 3
    %v8978 = vrot.slane %v8850, 3
    %v8979 = vrot.slane %v8851, 3
    %v8980 = vrot.slane %v8852, 3
    %v8981 = vrot.slane %v8853, 3
    %v8982 = vrot.slane %v8854, 3
    %v8983 = vrot.slane %v8855, 3
    %v8984 = vrot.slane %v8856, 3
    %v8985 = vrot.slane %v8857, 3
    %v9002 = vtanh.pop %v8970
    %v9003 = vtanh.pop %v8971
    %v9004 = vtanh.pop %v8972
    %v9005 = vtanh.pop %v8973
    %v9006 = vtanh.pop %v8974
    %v9007 = vtanh.pop %v8975
    %v9008 = vtanh.pop %v8976
    %v9009 = vtanh.pop %v8977
    %v9010 = vtanh.pop %v8978
    %v9011 = vtanh.pop %v8979
    %v9012 = vtanh.pop %v8980
    %v9013 = vtanh.pop %v8981
    %v9014 = vtanh.pop %v8982
    %v9015 = vtanh.pop %v8983
    %v9016 = vtanh.pop %v8984
    %v9017 = vtanh.pop %v8985
    %v9034 = vrot.slane %v8923, 1
    %v9035 = vrot.slane %v8925, 1
    %v9036 = vrot.slane %v8927, 1
    %v9037 = vrot.slane %v8929, 1
    %v9038 = vrot.slane %v8931, 1
    %v9039 = vrot.slane %v8933, 1
    %v9040 = vrot.slane %v8935, 1
    %v9041 = vrot.slane %v8937, 1
    %v9042 = vrot.slane %v8939, 1
    %v9043 = vrot.slane %v8941, 1
    %v9044 = vrot.slane %v8943, 1
    %v9045 = vrot.slane %v8945, 1
    %v9046 = vrot.slane %v8947, 1
    %v9047 = vrot.slane %v8949, 1
    %v9048 = vrot.slane %v8951, 1
    %v9049 = vrot.slane %v8953, 1
    %v9066 = vmul.f32 %v9034, %v7948
    %v9067 = vmul.f32 %v9035, %v7949
    %v9068 = vmul.f32 %v9036, %v7950
    %v9069 = vmul.f32 %v9037, %v7951
    %v9070 = vmul.f32 %v9038, %v7952
    %v9071 = vmul.f32 %v9039, %v7953
    %v9072 = vmul.f32 %v9040, %v7954
    %v9073 = vmul.f32 %v9041, %v7955
    %v9074 = vmul.f32 %v9042, %v7956
    %v9075 = vmul.f32 %v9043, %v7957
    %v9076 = vmul.f32 %v9044, %v7958
    %v9077 = vmul.f32 %v9045, %v7959
    %v9078 = vmul.f32 %v9046, %v7960
    %v9079 = vmul.f32 %v9047, %v7961
    %v9080 = vmul.f32 %v9048, %v7962
    %v9081 = vmul.f32 %v9049, %v7963
    %v9082 = vmul.f32 %v8923, %v9002
    %v9083 = vmul.f32 %v8925, %v9003
    %v9084 = vmul.f32 %v8927, %v9004
    %v9085 = vmul.f32 %v8929, %v9005
    %v9086 = vmul.f32 %v8931, %v9006
    %v9087 = vmul.f32 %v8933, %v9007
    %v9088 = vmul.f32 %v8935, %v9008
    %v9089 = vmul.f32 %v8937, %v9009
    %v9090 = vmul.f32 %v8939, %v9010
    %v9091 = vmul.f32 %v8941, %v9011
    %v9092 = vmul.f32 %v8943, %v9012
    %v9093 = vmul.f32 %v8945, %v9013
    %v9094 = vmul.f32 %v8947, %v9014
    %v9095 = vmul.f32 %v8949, %v9015
    %v9096 = vmul.f32 %v8951, %v9016
    %v9097 = vmul.f32 %v8953, %v9017
    %v9098 = vadd.f32 %v9066, %v9082
    %v9099 = vadd.f32 %v9067, %v9083
    %v9100 = vadd.f32 %v9068, %v9084
    %v9101 = vadd.f32 %v9069, %v9085
    %v9102 = vadd.f32 %v9070, %v9086
    %v9103 = vadd.f32 %v9071, %v9087
    %v9104 = vadd.f32 %v9072, %v9088
    %v9105 = vadd.f32 %v9073, %v9089
    %v9106 = vadd.f32 %v9074, %v9090
    %v9107 = vadd.f32 %v9075, %v9091
    %v9108 = vadd.f32 %v9076, %v9092
    %v9109 = vadd.f32 %v9077, %v9093
    %v9110 = vadd.f32 %v9078, %v9094
    %v9111 = vadd.f32 %v9079, %v9095
    %v9112 = vadd.f32 %v9080, %v9096
    %v9113 = vadd.f32 %v9081, %v9097
    %v9114 = vtanh.pop %v9098
    %v9115 = vtanh.pop %v9099
    %v9116 = vtanh.pop %v9100
    %v9117 = vtanh.pop %v9101
    %v9118 = vtanh.pop %v9102
    %v9119 = vtanh.pop %v9103
    %v9120 = vtanh.pop %v9104
    %v9121 = vtanh.pop %v9105
    %v9122 = vtanh.pop %v9106
    %v9123 = vtanh.pop %v9107
    %v9124 = vtanh.pop %v9108
    %v9125 = vtanh.pop %v9109
    %v9126 = vtanh.pop %v9110
    %v9127 = vtanh.pop %v9111
    %v9128 = vtanh.pop %v9112
    %v9129 = vtanh.pop %v9113
    %v9130 = vrot.slane %v8923, 2
    %v9131 = vrot.slane %v8925, 2
    %v9132 = vrot.slane %v8927, 2
    %v9133 = vrot.slane %v8929, 2
    %v9134 = vrot.slane %v8931, 2
    %v9135 = vrot.slane %v8933, 2
    %v9136 = vrot.slane %v8935, 2
    %v9137 = vrot.slane %v8937, 2
    %v9138 = vrot.slane %v8939, 2
    %v9139 = vrot.slane %v8941, 2
    %v9140 = vrot.slane %v8943, 2
    %v9141 = vrot.slane %v8945, 2
    %v9142 = vrot.slane %v8947, 2
    %v9143 = vrot.slane %v8949, 2
    %v9144 = vrot.slane %v8951, 2
    %v9145 = vrot.slane %v8953, 2
    %v9162 = vmul.f32 %v9130, %v9114
    %v9163 = vmul.f32 %v9131, %v9115
    %v9164 = vmul.f32 %v9132, %v9116
    %v9165 = vmul.f32 %v9133, %v9117
    %v9166 = vmul.f32 %v9134, %v9118
    %v9167 = vmul.f32 %v9135, %v9119
    %v9168 = vmul.f32 %v9136, %v9120
    %v9169 = vmul.f32 %v9137, %v9121
    %v9170 = vmul.f32 %v9138, %v9122
    %v9171 = vmul.f32 %v9139, %v9123
    %v9172 = vmul.f32 %v9140, %v9124
    %v9173 = vmul.f32 %v9141, %v9125
    %v9174 = vmul.f32 %v9142, %v9126
    %v9175 = vmul.f32 %v9143, %v9127
    %v9176 = vmul.f32 %v9144, %v9128
    %v9177 = vmul.f32 %v9145, %v9129
    %9178 = vmatprep.subr.bf16.mxu0 %v2060
    %9179 = vmatpush1.bf16.msra.mxu0 %v2059
    %9180 = vmatprep.subr.bf16.mxu0 %v2056
    %9181 = vmatpush1.bf16.msra.mxu0 %v2055
    %9182 = vmatprep.subr.bf16.mxu0 %v2052
    %9183 = vmatpush1.bf16.msra.mxu0 %v2051
    %9184 = vmatprep.subr.bf16.mxu0 %v2048
    %9185 = vmatpush1.bf16.msra.mxu0 %v2047
    %9186 = vmatprep.subr.bf16.mxu0 %v2044
    %9187 = vmatpush1.bf16.msra.mxu0 %v2043
    %9188 = vmatprep.subr.bf16.mxu0 %v2040
    %9189 = vmatpush1.bf16.msra.mxu0 %v2039
    %9190 = vmatprep.subr.bf16.mxu0 %v2036
    %9191 = vmatpush1.bf16.msra.mxu0 %v2035
    %9192 = vmatprep.subr.bf16.mxu0 %v2032
    %9193 = vmatpush1.bf16.msra.mxu0 %v2031
    %9194 = vmatprep.subr.bf16.mxu0 0
    %9195 = vmatpush2.bf16.msra.mxu0 0
    %9196 = vmatprep.subr.bf16.mxu0 0
    %9197 = vmatpush2.bf16.msra.mxu0 0
    %9198 = vmatprep.subr.bf16.mxu0 0
    %9199 = vmatpush2.bf16.msra.mxu0 0
    %9200 = vmatprep.subr.bf16.mxu0 0
    %9201 = vmatpush2.bf16.msra.mxu0 0
    %9202 = vmatprep.subr.bf16.mxu0 0
    %9203 = vmatpush2.bf16.msra.mxu0 0
    %9204 = vmatprep.subr.bf16.mxu0 0
    %9205 = vmatpush2.bf16.msra.mxu0 0
    %9206 = vmatprep.subr.bf16.mxu0 0
    %9207 = vmatpush2.bf16.msra.mxu0 0
    %9208 = vmatprep.subr.bf16.mxu0 0
    %9209 = vmatpush2.bf16.msra.mxu0 0
    %9210 = vmatprep.mubr.bf16.mxu0 0
    %9211 = vmatmul.mubr.bf16.gmra.mxu0 %v8594
    %v9212 = vpop.f32.mrf.mxu0
    %v9213 = vadd.f32 %v1918, %v9212
    %v9214 = vpop.f32.mrf.mxu0
    %v9215 = vadd.f32 %v1922, %v9214
    %v9216 = vpop.f32.mrf.mxu0
    %v9217 = vadd.f32 %v1918, %v9216
    %v9218 = vpop.f32.mrf.mxu0
    %v9219 = vadd.f32 %v1922, %v9218
    %9220 = vdwg.mxu0
    %9221 = vmatprep.subr.bf16.mxu0 %v2062
    %9222 = vmatpush1.bf16.msra.mxu0 %v2061
    %9223 = vmatprep.subr.bf16.mxu0 %v2058
    %9224 = vmatpush1.bf16.msra.mxu0 %v2057
    %9225 = vmatprep.subr.bf16.mxu0 %v2054
    %9226 = vmatpush1.bf16.msra.mxu0 %v2053
    %9227 = vmatprep.subr.bf16.mxu0 %v2050
    %9228 = vmatpush1.bf16.msra.mxu0 %v2049
    %9229 = vmatprep.subr.bf16.mxu0 %v2046
    %9230 = vmatpush1.bf16.msra.mxu0 %v2045
    %9231 = vmatprep.subr.bf16.mxu0 %v2042
    %9232 = vmatpush1.bf16.msra.mxu0 %v2041
    %9233 = vmatprep.subr.bf16.mxu0 %v2038
    %9234 = vmatpush1.bf16.msra.mxu0 %v2037
    %9235 = vmatprep.subr.bf16.mxu0 %v2034
    %9236 = vmatpush1.bf16.msra.mxu0 %v2033
    %9237 = vmatprep.subr.bf16.mxu0 0
    %9238 = vmatpush2.bf16.msra.mxu0 0
    %9239 = vmatprep.subr.bf16.mxu0 0
    %9240 = vmatpush2.bf16.msra.mxu0 0
    %9241 = vmatprep.subr.bf16.mxu0 0
    %9242 = vmatpush2.bf16.msra.mxu0 0
    %9243 = vmatprep.subr.bf16.mxu0 0
    %9244 = vmatpush2.bf16.msra.mxu0 0
    %9245 = vmatprep.subr.bf16.mxu0 0
    %9246 = vmatpush2.bf16.msra.mxu0 0
    %9247 = vmatprep.subr.bf16.mxu0 0
    %9248 = vmatpush2.bf16.msra.mxu0 0
    %9249 = vmatprep.subr.bf16.mxu0 0
    %9250 = vmatpush2.bf16.msra.mxu0 0
    %9251 = vmatprep.subr.bf16.mxu0 0
    %9252 = vmatpush2.bf16.msra.mxu0 0
    %9253 = vmatprep.mubr.bf16.mxu0 0
    %9254 = vmatmul.mubr.bf16.gmra.mxu0 %v8594
    %v9255 = vpop.f32.mrf.mxu0
    %v9256 = vadd.f32 %v1926, %v9255
    %v9257 = vpop.f32.mrf.mxu0
    %v9258 = vadd.f32 %v1930, %v9257
    %v9259 = vpop.f32.mrf.mxu0
    %v9260 = vadd.f32 %v1926, %v9259
    %v9261 = vpop.f32.mrf.mxu0
    %v9262 = vadd.f32 %v1930, %v9261
    %9263 = vdwg.mxu0
    %v9264 = vpack.c.bf16 %v8256, %v8255
    %9265 = vmatprep.subr.bf16.mxu0 %v3166
    %9266 = vmatpush1.bf16.msra.mxu0 %v3165
    %9267 = vmatprep.subr.bf16.mxu0 %v3162
    %9268 = vmatpush1.bf16.msra.mxu0 %v3161
    %9269 = vmatprep.subr.bf16.mxu0 %v3158
    %9270 = vmatpush1.bf16.msra.mxu0 %v3157
    %9271 = vmatprep.subr.bf16.mxu0 %v3154
    %9272 = vmatpush1.bf16.msra.mxu0 %v3153
    %9273 = vmatprep.subr.bf16.mxu0 %v3150
    %9274 = vmatpush1.bf16.msra.mxu0 %v3149
    %9275 = vmatprep.subr.bf16.mxu0 %v3146
    %9276 = vmatpush1.bf16.msra.mxu0 %v3145
    %9277 = vmatprep.subr.bf16.mxu0 %v3142
    %9278 = vmatpush1.bf16.msra.mxu0 %v3141
    %9279 = vmatprep.subr.bf16.mxu0 %v3138
    %9280 = vmatpush1.bf16.msra.mxu0 %v3137
    %9281 = vmatprep.subr.bf16.mxu0 0
    %9282 = vmatpush2.bf16.msra.mxu0 0
    %9283 = vmatprep.subr.bf16.mxu0 0
    %9284 = vmatpush2.bf16.msra.mxu0 0
    %9285 = vmatprep.subr.bf16.mxu0 0
    %9286 = vmatpush2.bf16.msra.mxu0 0
    %9287 = vmatprep.subr.bf16.mxu0 0
    %9288 = vmatpush2.bf16.msra.mxu0 0
    %9289 = vmatprep.subr.bf16.mxu0 0
    %9290 = vmatpush2.bf16.msra.mxu0 0
    %9291 = vmatprep.subr.bf16.mxu0 0
    %9292 = vmatpush2.bf16.msra.mxu0 0
    %9293 = vmatprep.subr.bf16.mxu0 0
    %9294 = vmatpush2.bf16.msra.mxu0 0
    %9295 = vmatprep.subr.bf16.mxu0 0
    %9296 = vmatpush2.bf16.msra.mxu0 0
    %9297 = vmatprep.mubr.bf16.mxu0 0
    %9298 = vmatmul.mubr.bf16.gmra.mxu0 %v9264
    %v9299 = vpop.f32.mrf.mxu0
    %v9300 = vadd.f32 0.0, %v9299
    %v9301 = vpop.f32.mrf.mxu0
    %v9302 = vadd.f32 0.0, %v9301
    %v9303 = vpop.f32.mrf.mxu0
    %v9304 = vadd.f32 0.0, %v9303
    %v9305 = vpop.f32.mrf.mxu0
    %v9306 = vadd.f32 0.0, %v9305
    %9307 = vdwg.mxu0
    %9308 = vmatprep.subr.bf16.mxu0 %v3168
    %9309 = vmatpush1.bf16.msra.mxu0 %v3167
    %9310 = vmatprep.subr.bf16.mxu0 %v3164
    %9311 = vmatpush1.bf16.msra.mxu0 %v3163
    %9312 = vmatprep.subr.bf16.mxu0 %v3160
    %9313 = vmatpush1.bf16.msra.mxu0 %v3159
    %9314 = vmatprep.subr.bf16.mxu0 %v3156
    %9315 = vmatpush1.bf16.msra.mxu0 %v3155
    %9316 = vmatprep.subr.bf16.mxu0 %v3152
    %9317 = vmatpush1.bf16.msra.mxu0 %v3151
    %9318 = vmatprep.subr.bf16.mxu0 %v3148
    %9319 = vmatpush1.bf16.msra.mxu0 %v3147
    %9320 = vmatprep.subr.bf16.mxu0 %v3144
    %9321 = vmatpush1.bf16.msra.mxu0 %v3143
    %9322 = vmatprep.subr.bf16.mxu0 %v3140
    %9323 = vmatpush1.bf16.msra.mxu0 %v3139
    %9324 = vmatprep.subr.bf16.mxu0 0
    %9325 = vmatpush2.bf16.msra.mxu0 0
    %9326 = vmatprep.subr.bf16.mxu0 0
    %9327 = vmatpush2.bf16.msra.mxu0 0
    %9328 = vmatprep.subr.bf16.mxu0 0
    %9329 = vmatpush2.bf16.msra.mxu0 0
    %9330 = vmatprep.subr.bf16.mxu0 0
    %9331 = vmatpush2.bf16.msra.mxu0 0
    %9332 = vmatprep.subr.bf16.mxu0 0
    %9333 = vmatpush2.bf16.msra.mxu0 0
    %9334 = vmatprep.subr.bf16.mxu0 0
    %9335 = vmatpush2.bf16.msra.mxu0 0
    %9336 = vmatprep.subr.bf16.mxu0 0
    %9337 = vmatpush2.bf16.msra.mxu0 0
    %9338 = vmatprep.subr.bf16.mxu0 0
    %9339 = vmatpush2.bf16.msra.mxu0 0
    %9340 = vmatprep.mubr.bf16.mxu0 0
    %9341 = vmatmul.mubr.bf16.gmra.mxu0 %v9264
    %v9342 = vpop.f32.mrf.mxu0
    %v9343 = vadd.f32 0.0, %v9342
    %v9344 = vpop.f32.mrf.mxu0
    %v9345 = vadd.f32 0.0, %v9344
    %v9346 = vpop.f32.mrf.mxu0
    %v9347 = vadd.f32 0.0, %v9346
    %v9348 = vpop.f32.mrf.mxu0
    %v9349 = vadd.f32 0.0, %v9348
    %9350 = vdwg.mxu0
    %v9351 = vadd.f32 %v9213, %v9300
    %v9352 = vadd.f32 %v9215, %v9302
    %v9353 = vadd.f32 %v9256, %v9343
    %v9354 = vadd.f32 %v9258, %v9345
    %v9355 = vadd.f32 %v9217, %v9304
    %v9356 = vadd.f32 %v9219, %v9306
    %v9357 = vadd.f32 %v9260, %v9347
    %v9358 = vadd.f32 %v9262, %v9349
    %v9359 = vxor.u32 %v9351, 2147483648
    %v9360 = vxor.u32 %v9352, 2147483648
    %v9361 = vxor.u32 %v9353, 2147483648
    %v9362 = vxor.u32 %v9355, 2147483648
    %v9363 = vxor.u32 %v9356, 2147483648
    %v9364 = vxor.u32 %v9357, 2147483648
    %v9365 = vmul.f32 %v9359, 1.442695
    %v9366 = vpow.pop %v9365
    %v9367 = vmul.f32 %v9360, 1.442695
    %v9368 = vpow.pop %v9367
    %v9369 = vmul.f32 %v9361, 1.442695
    %v9370 = vpow.pop %v9369
    %v9371 = vmul.f32 %v9362, 1.442695
    %v9372 = vpow.pop %v9371
    %v9373 = vmul.f32 %v9363, 1.442695
    %v9374 = vpow.pop %v9373
    %v9375 = vmul.f32 %v9364, 1.442695
    %v9376 = vpow.pop %v9375
    %v9377 = vadd.f32 %v9366, 1.0
    %v9378 = vadd.f32 %v9368, 1.0
    %v9379 = vadd.f32 %v9370, 1.0
    %v9380 = vadd.f32 %v9372, 1.0
    %v9381 = vadd.f32 %v9374, 1.0
    %v9382 = vadd.f32 %v9376, 1.0
    %v9383 = vrcp.pop %v9377
    %v9384 = vmul.f32 1.0, %v9383
    %v9385 = vrcp.pop %v9378
    %v9386 = vmul.f32 1.0, %v9385
    %v9387 = vrcp.pop %v9379
    %v9388 = vmul.f32 1.0, %v9387
    %v9389 = vrcp.pop %v9380
    %v9390 = vmul.f32 1.0, %v9389
    %v9391 = vrcp.pop %v9381
    %v9392 = vmul.f32 1.0, %v9391
    %v9393 = vrcp.pop %v9382
    %v9394 = vmul.f32 1.0, %v9393
    %v9395 = vtanh.pop %v9354
    %v9396 = vtanh.pop %v9358
    %v9397 = vmul.f32 %v9386, %v8251
    %v9398 = vmul.f32 %v9392, %v8252
    %v9399 = vmul.f32 %v9384, %v9395
    %v9400 = vmul.f32 %v9390, %v9396
    %v9401 = vadd.f32 %v9397, %v9399
    %v9402 = vadd.f32 %v9398, %v9400
    %v9403 = vtanh.pop %v9401
    %v9404 = vtanh.pop %v9402
    %v9405 = vmul.f32 %v9388, %v9403
    %v9406 = vmul.f32 %v9394, %v9404
    %9407 = vmatprep.subr.bf16.mxu0 %v3524
    %9408 = vmatpush1.bf16.msra.mxu0 %v3523
    %9409 = vmatprep.subr.bf16.mxu0 %v3520
    %9410 = vmatpush1.bf16.msra.mxu0 %v3519
    %9411 = vmatprep.subr.bf16.mxu0 %v3516
    %9412 = vmatpush1.bf16.msra.mxu0 %v3515
    %9413 = vmatprep.subr.bf16.mxu0 %v3512
    %9414 = vmatpush1.bf16.msra.mxu0 %v3511
    %9415 = vmatprep.subr.bf16.mxu0 %v3508
    %9416 = vmatpush1.bf16.msra.mxu0 %v3507
    %9417 = vmatprep.subr.bf16.mxu0 %v3504
    %9418 = vmatpush1.bf16.msra.mxu0 %v3503
    %9419 = vmatprep.subr.bf16.mxu0 %v3500
    %9420 = vmatpush1.bf16.msra.mxu0 %v3499
    %9421 = vmatprep.subr.bf16.mxu0 %v3496
    %9422 = vmatpush1.bf16.msra.mxu0 %v3495
    %9423 = vmatprep.subr.bf16.mxu0 0
    %9424 = vmatpush2.bf16.msra.mxu0 0
    %9425 = vmatprep.subr.bf16.mxu0 0
    %9426 = vmatpush2.bf16.msra.mxu0 0
    %9427 = vmatprep.subr.bf16.mxu0 0
    %9428 = vmatpush2.bf16.msra.mxu0 0
    %9429 = vmatprep.subr.bf16.mxu0 0
    %9430 = vmatpush2.bf16.msra.mxu0 0
    %9431 = vmatprep.subr.bf16.mxu0 0
    %9432 = vmatpush2.bf16.msra.mxu0 0
    %9433 = vmatprep.subr.bf16.mxu0 0
    %9434 = vmatpush2.bf16.msra.mxu0 0
    %9435 = vmatprep.subr.bf16.mxu0 0
    %9436 = vmatpush2.bf16.msra.mxu0 0
    %9437 = vmatprep.subr.bf16.mxu0 0
    %9438 = vmatpush2.bf16.msra.mxu0 0
    %9439 = vmatprep.mubr.bf16.mxu0 0
    %9440 = vmatmul.mubr.bf16.gmra.mxu0 %v9264
    %v9441 = vpop.f32.mrf.mxu0
    %v9442 = vadd.f32 %v3382, %v9441
    %v9443 = vpop.f32.mrf.mxu0
    %v9444 = vadd.f32 %v3386, %v9443
    %v9445 = vpop.f32.mrf.mxu0
    %v9446 = vadd.f32 %v3382, %v9445
    %v9447 = vpop.f32.mrf.mxu0
    %v9448 = vadd.f32 %v3386, %v9447
    %9449 = vdwg.mxu0
    %9450 = vmatprep.subr.bf16.mxu0 %v3526
    %9451 = vmatpush1.bf16.msra.mxu0 %v3525
    %9452 = vmatprep.subr.bf16.mxu0 %v3522
    %9453 = vmatpush1.bf16.msra.mxu0 %v3521
    %9454 = vmatprep.subr.bf16.mxu0 %v3518
    %9455 = vmatpush1.bf16.msra.mxu0 %v3517
    %9456 = vmatprep.subr.bf16.mxu0 %v3514
    %9457 = vmatpush1.bf16.msra.mxu0 %v3513
    %9458 = vmatprep.subr.bf16.mxu0 %v3510
    %9459 = vmatpush1.bf16.msra.mxu0 %v3509
    %9460 = vmatprep.subr.bf16.mxu0 %v3506
    %9461 = vmatpush1.bf16.msra.mxu0 %v3505
    %9462 = vmatprep.subr.bf16.mxu0 %v3502
    %9463 = vmatpush1.bf16.msra.mxu0 %v3501
    %9464 = vmatprep.subr.bf16.mxu0 %v3498
    %9465 = vmatpush1.bf16.msra.mxu0 %v3497
    %9466 = vmatprep.subr.bf16.mxu0 0
    %9467 = vmatpush2.bf16.msra.mxu0 0
    %9468 = vmatprep.subr.bf16.mxu0 0
    %9469 = vmatpush2.bf16.msra.mxu0 0
    %9470 = vmatprep.subr.bf16.mxu0 0
    %9471 = vmatpush2.bf16.msra.mxu0 0
    %9472 = vmatprep.subr.bf16.mxu0 0
    %9473 = vmatpush2.bf16.msra.mxu0 0
    %9474 = vmatprep.subr.bf16.mxu0 0
    %9475 = vmatpush2.bf16.msra.mxu0 0
    %9476 = vmatprep.subr.bf16.mxu0 0
    %9477 = vmatpush2.bf16.msra.mxu0 0
    %9478 = vmatprep.subr.bf16.mxu0 0
    %9479 = vmatpush2.bf16.msra.mxu0 0
    %9480 = vmatprep.subr.bf16.mxu0 0
    %9481 = vmatpush2.bf16.msra.mxu0 0
    %9482 = vmatprep.mubr.bf16.mxu0 0
    %9483 = vmatmul.mubr.bf16.gmra.mxu0 %v9264
    %v9484 = vpop.f32.mrf.mxu0
    %v9485 = vadd.f32 %v3390, %v9484
    %v9486 = vpop.f32.mrf.mxu0
    %v9487 = vadd.f32 %v3394, %v9486
    %v9488 = vpop.f32.mrf.mxu0
    %v9489 = vadd.f32 %v3390, %v9488
    %v9490 = vpop.f32.mrf.mxu0
    %v9491 = vadd.f32 %v3394, %v9490
    %9492 = vdwg.mxu0
    %v9493 = vpack.c.bf16 %v8485, %v8484
    %9494 = vmatprep.subr.bf16.mxu0 %v4859
    %9495 = vmatpush1.bf16.msra.mxu0 %v4858
    %9496 = vmatprep.subr.bf16.mxu0 %v4855
    %9497 = vmatpush1.bf16.msra.mxu0 %v4854
    %9498 = vmatprep.subr.bf16.mxu0 %v4851
    %9499 = vmatpush1.bf16.msra.mxu0 %v4850
    %9500 = vmatprep.subr.bf16.mxu0 %v4847
    %9501 = vmatpush1.bf16.msra.mxu0 %v4846
    %9502 = vmatprep.subr.bf16.mxu0 %v4843
    %9503 = vmatpush1.bf16.msra.mxu0 %v4842
    %9504 = vmatprep.subr.bf16.mxu0 %v4839
    %9505 = vmatpush1.bf16.msra.mxu0 %v4838
    %9506 = vmatprep.subr.bf16.mxu0 %v4835
    %9507 = vmatpush1.bf16.msra.mxu0 %v4834
    %9508 = vmatprep.subr.bf16.mxu0 %v4831
    %9509 = vmatpush1.bf16.msra.mxu0 %v4830
    %9510 = vmatprep.subr.bf16.mxu0 0
    %9511 = vmatpush2.bf16.msra.mxu0 0
    %9512 = vmatprep.subr.bf16.mxu0 0
    %9513 = vmatpush2.bf16.msra.mxu0 0
    %9514 = vmatprep.subr.bf16.mxu0 0
    %9515 = vmatpush2.bf16.msra.mxu0 0
    %9516 = vmatprep.subr.bf16.mxu0 0
    %9517 = vmatpush2.bf16.msra.mxu0 0
    %9518 = vmatprep.subr.bf16.mxu0 0
    %9519 = vmatpush2.bf16.msra.mxu0 0
    %9520 = vmatprep.subr.bf16.mxu0 0
    %9521 = vmatpush2.bf16.msra.mxu0 0
    %9522 = vmatprep.subr.bf16.mxu0 0
    %9523 = vmatpush2.bf16.msra.mxu0 0
    %9524 = vmatprep.subr.bf16.mxu0 0
    %9525 = vmatpush2.bf16.msra.mxu0 0
    %9526 = vmatprep.mubr.bf16.mxu0 0
    %9527 = vmatmul.mubr.bf16.gmra.mxu0 %v9493
    %v9528 = vpop.f32.mrf.mxu0
    %v9529 = vadd.f32 0.0, %v9528
    %v9530 = vpop.f32.mrf.mxu0
    %v9531 = vadd.f32 0.0, %v9530
    %v9532 = vpop.f32.mrf.mxu0
    %v9533 = vadd.f32 0.0, %v9532
    %v9534 = vpop.f32.mrf.mxu0
    %v9535 = vadd.f32 0.0, %v9534
    %9536 = vdwg.mxu0
    %9537 = vmatprep.subr.bf16.mxu0 %v4861
    %9538 = vmatpush1.bf16.msra.mxu0 %v4860
    %9539 = vmatprep.subr.bf16.mxu0 %v4857
    %9540 = vmatpush1.bf16.msra.mxu0 %v4856
    %9541 = vmatprep.subr.bf16.mxu0 %v4853
    %9542 = vmatpush1.bf16.msra.mxu0 %v4852
    %9543 = vmatprep.subr.bf16.mxu0 %v4849
    %9544 = vmatpush1.bf16.msra.mxu0 %v4848
    %9545 = vmatprep.subr.bf16.mxu0 %v4845
    %9546 = vmatpush1.bf16.msra.mxu0 %v4844
    %9547 = vmatprep.subr.bf16.mxu0 %v4841
    %9548 = vmatpush1.bf16.msra.mxu0 %v4840
    %9549 = vmatprep.subr.bf16.mxu0 %v4837
    %9550 = vmatpush1.bf16.msra.mxu0 %v4836
    %9551 = vmatprep.subr.bf16.mxu0 %v4833
    %9552 = vmatpush1.bf16.msra.mxu0 %v4832
    %9553 = vmatprep.subr.bf16.mxu0 0
    %9554 = vmatpush2.bf16.msra.mxu0 0
    %9555 = vmatprep.subr.bf16.mxu0 0
    %9556 = vmatpush2.bf16.msra.mxu0 0
    %9557 = vmatprep.subr.bf16.mxu0 0
    %9558 = vmatpush2.bf16.msra.mxu0 0
    %9559 = vmatprep.subr.bf16.mxu0 0
    %9560 = vmatpush2.bf16.msra.mxu0 0
    %9561 = vmatprep.subr.bf16.mxu0 0
    %9562 = vmatpush2.bf16.msra.mxu0 0
    %9563 = vmatprep.subr.bf16.mxu0 0
    %9564 = vmatpush2.bf16.msra.mxu0 0
    %9565 = vmatprep.subr.bf16.mxu0 0
    %9566 = vmatpush2.bf16.msra.mxu0 0
    %9567 = vmatprep.subr.bf16.mxu0 0
    %9568 = vmatpush2.bf16.msra.mxu0 0
    %9569 = vmatprep.mubr.bf16.mxu0 0
    %9570 = vmatmul.mubr.bf16.gmra.mxu0 %v9493
    %v9571 = vpop.f32.mrf.mxu0
    %v9572 = vadd.f32 0.0, %v9571
    %v9573 = vpop.f32.mrf.mxu0
    %v9574 = vadd.f32 0.0, %v9573
    %v9575 = vpop.f32.mrf.mxu0
    %v9576 = vadd.f32 0.0, %v9575
    %v9577 = vpop.f32.mrf.mxu0
    %v9578 = vadd.f32 0.0, %v9577
    %9579 = vdwg.mxu0
    %v9580 = vadd.f32 %v9442, %v9529
    %v9581 = vadd.f32 %v9444, %v9531
    %v9582 = vadd.f32 %v9485, %v9572
    %v9583 = vadd.f32 %v9487, %v9574
    %v9584 = vadd.f32 %v9446, %v9533
    %v9585 = vadd.f32 %v9448, %v9535
    %v9586 = vadd.f32 %v9489, %v9576
    %v9587 = vadd.f32 %v9491, %v9578
    %v9588 = vxor.u32 %v9580, 2147483648
    %v9589 = vxor.u32 %v9581, 2147483648
    %v9590 = vxor.u32 %v9582, 2147483648
    %v9591 = vxor.u32 %v9584, 2147483648
    %v9592 = vxor.u32 %v9585, 2147483648
    %v9593 = vxor.u32 %v9586, 2147483648
    %v9594 = vmul.f32 %v9588, 1.442695
    %v9595 = vpow.pop %v9594
    %v9596 = vmul.f32 %v9589, 1.442695
    %v9597 = vpow.pop %v9596
    %v9598 = vmul.f32 %v9590, 1.442695
    %v9599 = vpow.pop %v9598
    %v9600 = vmul.f32 %v9591, 1.442695
    %v9601 = vpow.pop %v9600
    %v9602 = vmul.f32 %v9592, 1.442695
    %v9603 = vpow.pop %v9602
    %v9604 = vmul.f32 %v9593, 1.442695
    %v9605 = vpow.pop %v9604
    %v9606 = vadd.f32 %v9595, 1.0
    %v9607 = vadd.f32 %v9597, 1.0
    %v9608 = vadd.f32 %v9599, 1.0
    %v9609 = vadd.f32 %v9601, 1.0
    %v9610 = vadd.f32 %v9603, 1.0
    %v9611 = vadd.f32 %v9605, 1.0
    %v9612 = vrcp.pop %v9606
    %v9613 = vmul.f32 1.0, %v9612
    %v9614 = vrcp.pop %v9607
    %v9615 = vmul.f32 1.0, %v9614
    %v9616 = vrcp.pop %v9608
    %v9617 = vmul.f32 1.0, %v9616
    %v9618 = vrcp.pop %v9609
    %v9619 = vmul.f32 1.0, %v9618
    %v9620 = vrcp.pop %v9610
    %v9621 = vmul.f32 1.0, %v9620
    %v9622 = vrcp.pop %v9611
    %v9623 = vmul.f32 1.0, %v9622
    %v9624 = vtanh.pop %v9583
    %v9625 = vtanh.pop %v9587
    %v9626 = vmul.f32 %v9615, %v8480
    %v9627 = vmul.f32 %v9621, %v8481
    %v9628 = vmul.f32 %v9613, %v9624
    %v9629 = vmul.f32 %v9619, %v9625
    %v9630 = vadd.f32 %v9626, %v9628
    %v9631 = vadd.f32 %v9627, %v9629
    %v9632 = vtanh.pop %v9630
    %v9633 = vtanh.pop %v9631
    %v9634 = vmul.f32 %v9617, %v9632
    %v9635 = vmul.f32 %v9623, %v9633
    %v9636 = vpack.c.bf16 %v9162, %v9162
    %v9637 = vpack.c.bf16 %v9163, %v9163
    %v9638 = vpack.c.bf16 %v9164, %v9164
    %v9639 = vpack.c.bf16 %v9165, %v9165
    %v9640 = vpack.c.bf16 %v9166, %v9166
    %v9641 = vpack.c.bf16 %v9167, %v9167
    %v9642 = vpack.c.bf16 %v9168, %v9168
    %v9643 = vpack.c.bf16 %v9169, %v9169
    %v9644 = vpack.c.bf16 %v9170, %v9170
    %v9645 = vpack.c.bf16 %v9171, %v9171
    %v9646 = vpack.c.bf16 %v9172, %v9172
    %v9647 = vpack.c.bf16 %v9173, %v9173
    %v9648 = vpack.c.bf16 %v9174, %v9174
    %v9649 = vpack.c.bf16 %v9175, %v9175
    %v9650 = vpack.c.bf16 %v9176, %v9176
    %v9651 = vpack.c.bf16 %v9177, %v9177
    %v9668 = vunpack.c.l.b16 %v9636
    %v9669 = vunpack.c.l.b16 %v9637
    %v9670 = vunpack.c.l.b16 %v9638
    %v9671 = vunpack.c.l.b16 %v9639
    %v9672 = vunpack.c.l.b16 %v9640
    %v9673 = vunpack.c.l.b16 %v9641
    %v9674 = vunpack.c.l.b16 %v9642
    %v9675 = vunpack.c.l.b16 %v9643
    %v9676 = vunpack.c.l.b16 %v9644
    %v9677 = vunpack.c.l.b16 %v9645
    %v9678 = vunpack.c.l.b16 %v9646
    %v9679 = vunpack.c.l.b16 %v9647
    %v9680 = vunpack.c.l.b16 %v9648
    %v9681 = vunpack.c.l.b16 %v9649
    %v9682 = vunpack.c.l.b16 %v9650
    %v9683 = vunpack.c.l.b16 %v9651
    %v9684 = vrot.slane %v9669, 7
    %v9685 = vsel %vm1102, %v9684, %v9668
    %v9686 = vrot.slane %v9670, 6
    %v9687 = vsel %vm1105, %v9686, %v9685
    %v9688 = vrot.slane %v9671, 5
    %v9689 = vsel %vm1108, %v9688, %v9687
    %v9690 = vrot.slane %v9672, 4
    %v9691 = vsel %vm1111, %v9690, %v9689
    %v9692 = vrot.slane %v9673, 3
    %v9693 = vsel %vm1114, %v9692, %v9691
    %v9694 = vrot.slane %v9674, 2
    %v9695 = vsel %vm1117, %v9694, %v9693
    %v9696 = vrot.slane %v9675, 1
    %v9697 = vsel %vm1120, %v9696, %v9695
    %v9698 = vrot.slane %v9677, 7
    %v9699 = vsel %vm1102, %v9698, %v9676
    %v9700 = vrot.slane %v9678, 6
    %v9701 = vsel %vm1105, %v9700, %v9699
    %v9702 = vrot.slane %v9679, 5
    %v9703 = vsel %vm1108, %v9702, %v9701
    %v9704 = vrot.slane %v9680, 4
    %v9705 = vsel %vm1111, %v9704, %v9703
    %v9706 = vrot.slane %v9681, 3
    %v9707 = vsel %vm1114, %v9706, %v9705
    %v9708 = vrot.slane %v9682, 2
    %v9709 = vsel %vm1117, %v9708, %v9707
    %v9710 = vrot.slane %v9683, 1
    %v9711 = vsel %vm1120, %v9710, %v9709
    %v9712 = vpack.c.b16 %v9711, %v9697
    %9714 = vmatprep.subr.bf16.mxu0 %v2060
    %9715 = vmatpush1.bf16.msra.mxu0 %v2059
    %9716 = vmatprep.subr.bf16.mxu0 %v2056
    %9717 = vmatpush1.bf16.msra.mxu0 %v2055
    %9718 = vmatprep.subr.bf16.mxu0 %v2052
    %9719 = vmatpush1.bf16.msra.mxu0 %v2051
    %9720 = vmatprep.subr.bf16.mxu0 %v2048
    %9721 = vmatpush1.bf16.msra.mxu0 %v2047
    %9722 = vmatprep.subr.bf16.mxu0 %v2044
    %9723 = vmatpush1.bf16.msra.mxu0 %v2043
    %9724 = vmatprep.subr.bf16.mxu0 %v2040
    %9725 = vmatpush1.bf16.msra.mxu0 %v2039
    %9726 = vmatprep.subr.bf16.mxu0 %v2036
    %9727 = vmatpush1.bf16.msra.mxu0 %v2035
    %9728 = vmatprep.subr.bf16.mxu0 %v2032
    %9729 = vmatpush1.bf16.msra.mxu0 %v2031
    %9730 = vmatprep.subr.bf16.mxu0 0
    %9731 = vmatpush2.bf16.msra.mxu0 0
    %9732 = vmatprep.subr.bf16.mxu0 0
    %9733 = vmatpush2.bf16.msra.mxu0 0
    %9734 = vmatprep.subr.bf16.mxu0 0
    %9735 = vmatpush2.bf16.msra.mxu0 0
    %9736 = vmatprep.subr.bf16.mxu0 0
    %9737 = vmatpush2.bf16.msra.mxu0 0
    %9738 = vmatprep.subr.bf16.mxu0 0
    %9739 = vmatpush2.bf16.msra.mxu0 0
    %9740 = vmatprep.subr.bf16.mxu0 0
    %9741 = vmatpush2.bf16.msra.mxu0 0
    %9742 = vmatprep.subr.bf16.mxu0 0
    %9743 = vmatpush2.bf16.msra.mxu0 0
    %9744 = vmatprep.subr.bf16.mxu0 0
    %9745 = vmatpush2.bf16.msra.mxu0 0
    %9746 = vmatprep.mubr.bf16.mxu0 0
    %9747 = vmatmul.mubr.bf16.gmra.mxu0 %v9712
    %v9748 = vpop.f32.mrf.mxu0
    %v9749 = vadd.f32 %v1918, %v9748
    %v9750 = vpop.f32.mrf.mxu0
    %v9751 = vadd.f32 %v1922, %v9750
    %v9752 = vpop.f32.mrf.mxu0
    %v9753 = vadd.f32 %v1918, %v9752
    %v9754 = vpop.f32.mrf.mxu0
    %v9755 = vadd.f32 %v1922, %v9754
    %9756 = vdwg.mxu0
    %9757 = vmatprep.subr.bf16.mxu0 %v2062
    %9758 = vmatpush1.bf16.msra.mxu0 %v2061
    %9759 = vmatprep.subr.bf16.mxu0 %v2058
    %9760 = vmatpush1.bf16.msra.mxu0 %v2057
    %9761 = vmatprep.subr.bf16.mxu0 %v2054
    %9762 = vmatpush1.bf16.msra.mxu0 %v2053
    %9763 = vmatprep.subr.bf16.mxu0 %v2050
    %9764 = vmatpush1.bf16.msra.mxu0 %v2049
    %9765 = vmatprep.subr.bf16.mxu0 %v2046
    %9766 = vmatpush1.bf16.msra.mxu0 %v2045
    %9767 = vmatprep.subr.bf16.mxu0 %v2042
    %9768 = vmatpush1.bf16.msra.mxu0 %v2041
    %9769 = vmatprep.subr.bf16.mxu0 %v2038
    %9770 = vmatpush1.bf16.msra.mxu0 %v2037
    %9771 = vmatprep.subr.bf16.mxu0 %v2034
    %9772 = vmatpush1.bf16.msra.mxu0 %v2033
    %9773 = vmatprep.subr.bf16.mxu0 0
    %9774 = vmatpush2.bf16.msra.mxu0 0
    %9775 = vmatprep.subr.bf16.mxu0 0
    %9776 = vmatpush2.bf16.msra.mxu0 0
    %9777 = vmatprep.subr.bf16.mxu0 0
    %9778 = vmatpush2.bf16.msra.mxu0 0
    %9779 = vmatprep.subr.bf16.mxu0 0
    %9780 = vmatpush2.bf16.msra.mxu0 0
    %9781 = vmatprep.subr.bf16.mxu0 0
    %9782 = vmatpush2.bf16.msra.mxu0 0
    %9783 = vmatprep.subr.bf16.mxu0 0
    %9784 = vmatpush2.bf16.msra.mxu0 0
    %9785 = vmatprep.subr.bf16.mxu0 0
    %9786 = vmatpush2.bf16.msra.mxu0 0
    %9787 = vmatprep.subr.bf16.mxu0 0
    %9788 = vmatpush2.bf16.msra.mxu0 0
    %9789 = vmatprep.mubr.bf16.mxu0 0
    %9790 = vmatmul.mubr.bf16.gmra.mxu0 %v9712
    %v9791 = vpop.f32.mrf.mxu0
    %v9792 = vadd.f32 %v1926, %v9791
    %v9793 = vpop.f32.mrf.mxu0
    %v9794 = vadd.f32 %v1930, %v9793
    %v9795 = vpop.f32.mrf.mxu0
    %v9796 = vadd.f32 %v1926, %v9795
    %v9797 = vpop.f32.mrf.mxu0
    %v9798 = vadd.f32 %v1930, %v9797
    %9799 = vdwg.mxu0
    %v9800 = vpack.c.bf16 %v9406, %v9405
    %9801 = vmatprep.subr.bf16.mxu0 %v3166
    %9802 = vmatpush1.bf16.msra.mxu0 %v3165
    %9803 = vmatprep.subr.bf16.mxu0 %v3162
    %9804 = vmatpush1.bf16.msra.mxu0 %v3161
    %9805 = vmatprep.subr.bf16.mxu0 %v3158
    %9806 = vmatpush1.bf16.msra.mxu0 %v3157
    %9807 = vmatprep.subr.bf16.mxu0 %v3154
    %9808 = vmatpush1.bf16.msra.mxu0 %v3153
    %9809 = vmatprep.subr.bf16.mxu0 %v3150
    %9810 = vmatpush1.bf16.msra.mxu0 %v3149
    %9811 = vmatprep.subr.bf16.mxu0 %v3146
    %9812 = vmatpush1.bf16.msra.mxu0 %v3145
    %9813 = vmatprep.subr.bf16.mxu0 %v3142
    %9814 = vmatpush1.bf16.msra.mxu0 %v3141
    %9815 = vmatprep.subr.bf16.mxu0 %v3138
    %9816 = vmatpush1.bf16.msra.mxu0 %v3137
    %9817 = vmatprep.subr.bf16.mxu0 0
    %9818 = vmatpush2.bf16.msra.mxu0 0
    %9819 = vmatprep.subr.bf16.mxu0 0
    %9820 = vmatpush2.bf16.msra.mxu0 0
    %9821 = vmatprep.subr.bf16.mxu0 0
    %9822 = vmatpush2.bf16.msra.mxu0 0
    %9823 = vmatprep.subr.bf16.mxu0 0
    %9824 = vmatpush2.bf16.msra.mxu0 0
    %9825 = vmatprep.subr.bf16.mxu0 0
    %9826 = vmatpush2.bf16.msra.mxu0 0
    %9827 = vmatprep.subr.bf16.mxu0 0
    %9828 = vmatpush2.bf16.msra.mxu0 0
    %9829 = vmatprep.subr.bf16.mxu0 0
    %9830 = vmatpush2.bf16.msra.mxu0 0
    %9831 = vmatprep.subr.bf16.mxu0 0
    %9832 = vmatpush2.bf16.msra.mxu0 0
    %9833 = vmatprep.mubr.bf16.mxu0 0
    %9834 = vmatmul.mubr.bf16.gmra.mxu0 %v9800
    %v9835 = vpop.f32.mrf.mxu0
    %v9836 = vadd.f32 0.0, %v9835
    %v9837 = vpop.f32.mrf.mxu0
    %v9838 = vadd.f32 0.0, %v9837
    %v9839 = vpop.f32.mrf.mxu0
    %v9840 = vadd.f32 0.0, %v9839
    %v9841 = vpop.f32.mrf.mxu0
    %v9842 = vadd.f32 0.0, %v9841
    %9843 = vdwg.mxu0
    %9844 = vmatprep.subr.bf16.mxu0 %v3168
    %9845 = vmatpush1.bf16.msra.mxu0 %v3167
    %9846 = vmatprep.subr.bf16.mxu0 %v3164
    %9847 = vmatpush1.bf16.msra.mxu0 %v3163
    %9848 = vmatprep.subr.bf16.mxu0 %v3160
    %9849 = vmatpush1.bf16.msra.mxu0 %v3159
    %9850 = vmatprep.subr.bf16.mxu0 %v3156
    %9851 = vmatpush1.bf16.msra.mxu0 %v3155
    %9852 = vmatprep.subr.bf16.mxu0 %v3152
    %9853 = vmatpush1.bf16.msra.mxu0 %v3151
    %9854 = vmatprep.subr.bf16.mxu0 %v3148
    %9855 = vmatpush1.bf16.msra.mxu0 %v3147
    %9856 = vmatprep.subr.bf16.mxu0 %v3144
    %9857 = vmatpush1.bf16.msra.mxu0 %v3143
    %9858 = vmatprep.subr.bf16.mxu0 %v3140
    %9859 = vmatpush1.bf16.msra.mxu0 %v3139
    %9860 = vmatprep.subr.bf16.mxu0 0
    %9861 = vmatpush2.bf16.msra.mxu0 0
    %9862 = vmatprep.subr.bf16.mxu0 0
    %9863 = vmatpush2.bf16.msra.mxu0 0
    %9864 = vmatprep.subr.bf16.mxu0 0
    %9865 = vmatpush2.bf16.msra.mxu0 0
    %9866 = vmatprep.subr.bf16.mxu0 0
    %9867 = vmatpush2.bf16.msra.mxu0 0
    %9868 = vmatprep.subr.bf16.mxu0 0
    %9869 = vmatpush2.bf16.msra.mxu0 0
    %9870 = vmatprep.subr.bf16.mxu0 0
    %9871 = vmatpush2.bf16.msra.mxu0 0
    %9872 = vmatprep.subr.bf16.mxu0 0
    %9873 = vmatpush2.bf16.msra.mxu0 0
    %9874 = vmatprep.subr.bf16.mxu0 0
    %9875 = vmatpush2.bf16.msra.mxu0 0
    %9876 = vmatprep.mubr.bf16.mxu0 0
    %9877 = vmatmul.mubr.bf16.gmra.mxu0 %v9800
    %v9878 = vpop.f32.mrf.mxu0
    %v9879 = vadd.f32 0.0, %v9878
    %v9880 = vpop.f32.mrf.mxu0
    %v9881 = vadd.f32 0.0, %v9880
    %v9882 = vpop.f32.mrf.mxu0
    %v9883 = vadd.f32 0.0, %v9882
    %v9884 = vpop.f32.mrf.mxu0
    %v9885 = vadd.f32 0.0, %v9884
    %9886 = vdwg.mxu0
    %v9887 = vadd.f32 %v9749, %v9836
    %v9888 = vadd.f32 %v9751, %v9838
    %v9889 = vadd.f32 %v9792, %v9879
    %v9890 = vadd.f32 %v9794, %v9881
    %v9891 = vadd.f32 %v9753, %v9840
    %v9892 = vadd.f32 %v9755, %v9842
    %v9893 = vadd.f32 %v9796, %v9883
    %v9894 = vadd.f32 %v9798, %v9885
    %v9895 = vxor.u32 %v9887, 2147483648
    %v9896 = vxor.u32 %v9888, 2147483648
    %v9897 = vxor.u32 %v9889, 2147483648
    %v9898 = vxor.u32 %v9891, 2147483648
    %v9899 = vxor.u32 %v9892, 2147483648
    %v9900 = vxor.u32 %v9893, 2147483648
    %v9901 = vmul.f32 %v9895, 1.442695
    %v9902 = vpow.pop %v9901
    %v9903 = vmul.f32 %v9896, 1.442695
    %v9904 = vpow.pop %v9903
    %v9905 = vmul.f32 %v9897, 1.442695
    %v9906 = vpow.pop %v9905
    %v9907 = vmul.f32 %v9898, 1.442695
    %v9908 = vpow.pop %v9907
    %v9909 = vmul.f32 %v9899, 1.442695
    %v9910 = vpow.pop %v9909
    %v9911 = vmul.f32 %v9900, 1.442695
    %v9912 = vpow.pop %v9911
    %v9913 = vadd.f32 %v9902, 1.0
    %v9914 = vadd.f32 %v9904, 1.0
    %v9915 = vadd.f32 %v9906, 1.0
    %v9916 = vadd.f32 %v9908, 1.0
    %v9917 = vadd.f32 %v9910, 1.0
    %v9918 = vadd.f32 %v9912, 1.0
    %v9919 = vrcp.pop %v9913
    %v9920 = vmul.f32 1.0, %v9919
    %v9921 = vrcp.pop %v9914
    %v9922 = vmul.f32 1.0, %v9921
    %v9923 = vrcp.pop %v9915
    %v9924 = vmul.f32 1.0, %v9923
    %v9925 = vrcp.pop %v9916
    %v9926 = vmul.f32 1.0, %v9925
    %v9927 = vrcp.pop %v9917
    %v9928 = vmul.f32 1.0, %v9927
    %v9929 = vrcp.pop %v9918
    %v9930 = vmul.f32 1.0, %v9929
    %v9931 = vtanh.pop %v9890
    %v9932 = vtanh.pop %v9894
    %v9933 = vmul.f32 %v9922, %v9401
    %v9934 = vmul.f32 %v9928, %v9402
    %v9935 = vmul.f32 %v9920, %v9931
    %v9936 = vmul.f32 %v9926, %v9932
    %v9937 = vadd.f32 %v9933, %v9935
    %v9938 = vadd.f32 %v9934, %v9936
    %v9939 = vtanh.pop %v9937
    %v9940 = vtanh.pop %v9938
    %v9941 = vmul.f32 %v9924, %v9939
    %v9942 = vmul.f32 %v9930, %v9940
    %9943 = vmatprep.subr.bf16.mxu0 %v3524
    %9944 = vmatpush1.bf16.msra.mxu0 %v3523
    %9945 = vmatprep.subr.bf16.mxu0 %v3520
    %9946 = vmatpush1.bf16.msra.mxu0 %v3519
    %9947 = vmatprep.subr.bf16.mxu0 %v3516
    %9948 = vmatpush1.bf16.msra.mxu0 %v3515
    %9949 = vmatprep.subr.bf16.mxu0 %v3512
    %9950 = vmatpush1.bf16.msra.mxu0 %v3511
    %9951 = vmatprep.subr.bf16.mxu0 %v3508
    %9952 = vmatpush1.bf16.msra.mxu0 %v3507
    %9953 = vmatprep.subr.bf16.mxu0 %v3504
    %9954 = vmatpush1.bf16.msra.mxu0 %v3503
    %9955 = vmatprep.subr.bf16.mxu0 %v3500
    %9956 = vmatpush1.bf16.msra.mxu0 %v3499
    %9957 = vmatprep.subr.bf16.mxu0 %v3496
    %9958 = vmatpush1.bf16.msra.mxu0 %v3495
    %9959 = vmatprep.subr.bf16.mxu0 0
    %9960 = vmatpush2.bf16.msra.mxu0 0
    %9961 = vmatprep.subr.bf16.mxu0 0
    %9962 = vmatpush2.bf16.msra.mxu0 0
    %9963 = vmatprep.subr.bf16.mxu0 0
    %9964 = vmatpush2.bf16.msra.mxu0 0
    %9965 = vmatprep.subr.bf16.mxu0 0
    %9966 = vmatpush2.bf16.msra.mxu0 0
    %9967 = vmatprep.subr.bf16.mxu0 0
    %9968 = vmatpush2.bf16.msra.mxu0 0
    %9969 = vmatprep.subr.bf16.mxu0 0
    %9970 = vmatpush2.bf16.msra.mxu0 0
    %9971 = vmatprep.subr.bf16.mxu0 0
    %9972 = vmatpush2.bf16.msra.mxu0 0
    %9973 = vmatprep.subr.bf16.mxu0 0
    %9974 = vmatpush2.bf16.msra.mxu0 0
    %9975 = vmatprep.mubr.bf16.mxu0 0
    %9976 = vmatmul.mubr.bf16.gmra.mxu0 %v9800
    %v9977 = vpop.f32.mrf.mxu0
    %v9978 = vadd.f32 %v3382, %v9977
    %v9979 = vpop.f32.mrf.mxu0
    %v9980 = vadd.f32 %v3386, %v9979
    %v9981 = vpop.f32.mrf.mxu0
    %v9982 = vadd.f32 %v3382, %v9981
    %v9983 = vpop.f32.mrf.mxu0
    %v9984 = vadd.f32 %v3386, %v9983
    %9985 = vdwg.mxu0
    %9986 = vmatprep.subr.bf16.mxu0 %v3526
    %9987 = vmatpush1.bf16.msra.mxu0 %v3525
    %9988 = vmatprep.subr.bf16.mxu0 %v3522
    %9989 = vmatpush1.bf16.msra.mxu0 %v3521
    %9990 = vmatprep.subr.bf16.mxu0 %v3518
    %9991 = vmatpush1.bf16.msra.mxu0 %v3517
    %9992 = vmatprep.subr.bf16.mxu0 %v3514
    %9993 = vmatpush1.bf16.msra.mxu0 %v3513
    %9994 = vmatprep.subr.bf16.mxu0 %v3510
    %9995 = vmatpush1.bf16.msra.mxu0 %v3509
    %9996 = vmatprep.subr.bf16.mxu0 %v3506
    %9997 = vmatpush1.bf16.msra.mxu0 %v3505
    %9998 = vmatprep.subr.bf16.mxu0 %v3502
    %9999 = vmatpush1.bf16.msra.mxu0 %v3501
    %10000 = vmatprep.subr.bf16.mxu0 %v3498
    %10001 = vmatpush1.bf16.msra.mxu0 %v3497
    %10002 = vmatprep.subr.bf16.mxu0 0
    %10003 = vmatpush2.bf16.msra.mxu0 0
    %10004 = vmatprep.subr.bf16.mxu0 0
    %10005 = vmatpush2.bf16.msra.mxu0 0
    %10006 = vmatprep.subr.bf16.mxu0 0
    %10007 = vmatpush2.bf16.msra.mxu0 0
    %10008 = vmatprep.subr.bf16.mxu0 0
    %10009 = vmatpush2.bf16.msra.mxu0 0
    %10010 = vmatprep.subr.bf16.mxu0 0
    %10011 = vmatpush2.bf16.msra.mxu0 0
    %10012 = vmatprep.subr.bf16.mxu0 0
    %10013 = vmatpush2.bf16.msra.mxu0 0
    %10014 = vmatprep.subr.bf16.mxu0 0
    %10015 = vmatpush2.bf16.msra.mxu0 0
    %10016 = vmatprep.subr.bf16.mxu0 0
    %10017 = vmatpush2.bf16.msra.mxu0 0
    %10018 = vmatprep.mubr.bf16.mxu0 0
    %10019 = vmatmul.mubr.bf16.gmra.mxu0 %v9800
    %v10020 = vpop.f32.mrf.mxu0
    %v10021 = vadd.f32 %v3390, %v10020
    %v10022 = vpop.f32.mrf.mxu0
    %v10023 = vadd.f32 %v3394, %v10022
    %v10024 = vpop.f32.mrf.mxu0
    %v10025 = vadd.f32 %v3390, %v10024
    %v10026 = vpop.f32.mrf.mxu0
    %v10027 = vadd.f32 %v3394, %v10026
    %10028 = vdwg.mxu0
    %v10029 = vpack.c.bf16 %v9635, %v9634
    %10030 = vmatprep.subr.bf16.mxu0 %v4859
    %10031 = vmatpush1.bf16.msra.mxu0 %v4858
    %10032 = vmatprep.subr.bf16.mxu0 %v4855
    %10033 = vmatpush1.bf16.msra.mxu0 %v4854
    %10034 = vmatprep.subr.bf16.mxu0 %v4851
    %10035 = vmatpush1.bf16.msra.mxu0 %v4850
    %10036 = vmatprep.subr.bf16.mxu0 %v4847
    %10037 = vmatpush1.bf16.msra.mxu0 %v4846
    %10038 = vmatprep.subr.bf16.mxu0 %v4843
    %10039 = vmatpush1.bf16.msra.mxu0 %v4842
    %10040 = vmatprep.subr.bf16.mxu0 %v4839
    %10041 = vmatpush1.bf16.msra.mxu0 %v4838
    %10042 = vmatprep.subr.bf16.mxu0 %v4835
    %10043 = vmatpush1.bf16.msra.mxu0 %v4834
    %10044 = vmatprep.subr.bf16.mxu0 %v4831
    %10045 = vmatpush1.bf16.msra.mxu0 %v4830
    %10046 = vmatprep.subr.bf16.mxu0 0
    %10047 = vmatpush2.bf16.msra.mxu0 0
    %10048 = vmatprep.subr.bf16.mxu0 0
    %10049 = vmatpush2.bf16.msra.mxu0 0
    %10050 = vmatprep.subr.bf16.mxu0 0
    %10051 = vmatpush2.bf16.msra.mxu0 0
    %10052 = vmatprep.subr.bf16.mxu0 0
    %10053 = vmatpush2.bf16.msra.mxu0 0
    %10054 = vmatprep.subr.bf16.mxu0 0
    %10055 = vmatpush2.bf16.msra.mxu0 0
    %10056 = vmatprep.subr.bf16.mxu0 0
    %10057 = vmatpush2.bf16.msra.mxu0 0
    %10058 = vmatprep.subr.bf16.mxu0 0
    %10059 = vmatpush2.bf16.msra.mxu0 0
    %10060 = vmatprep.subr.bf16.mxu0 0
    %10061 = vmatpush2.bf16.msra.mxu0 0
    %10062 = vmatprep.mubr.bf16.mxu0 0
    %10063 = vmatmul.mubr.bf16.gmra.mxu0 %v10029
    %v10064 = vpop.f32.mrf.mxu0
    %v10065 = vadd.f32 0.0, %v10064
    %v10066 = vpop.f32.mrf.mxu0
    %v10067 = vadd.f32 0.0, %v10066
    %v10068 = vpop.f32.mrf.mxu0
    %v10069 = vadd.f32 0.0, %v10068
    %v10070 = vpop.f32.mrf.mxu0
    %v10071 = vadd.f32 0.0, %v10070
    %10072 = vdwg.mxu0
    %10073 = vmatprep.subr.bf16.mxu0 %v4861
    %10074 = vmatpush1.bf16.msra.mxu0 %v4860
    %10075 = vmatprep.subr.bf16.mxu0 %v4857
    %10076 = vmatpush1.bf16.msra.mxu0 %v4856
    %10077 = vmatprep.subr.bf16.mxu0 %v4853
    %10078 = vmatpush1.bf16.msra.mxu0 %v4852
    %10079 = vmatprep.subr.bf16.mxu0 %v4849
    %10080 = vmatpush1.bf16.msra.mxu0 %v4848
    %10081 = vmatprep.subr.bf16.mxu0 %v4845
    %10082 = vmatpush1.bf16.msra.mxu0 %v4844
    %10083 = vmatprep.subr.bf16.mxu0 %v4841
    %10084 = vmatpush1.bf16.msra.mxu0 %v4840
    %10085 = vmatprep.subr.bf16.mxu0 %v4837
    %10086 = vmatpush1.bf16.msra.mxu0 %v4836
    %10087 = vmatprep.subr.bf16.mxu0 %v4833
    %10088 = vmatpush1.bf16.msra.mxu0 %v4832
    %10089 = vmatprep.subr.bf16.mxu0 0
    %10090 = vmatpush2.bf16.msra.mxu0 0
    %10091 = vmatprep.subr.bf16.mxu0 0
    %10092 = vmatpush2.bf16.msra.mxu0 0
    %10093 = vmatprep.subr.bf16.mxu0 0
    %10094 = vmatpush2.bf16.msra.mxu0 0
    %10095 = vmatprep.subr.bf16.mxu0 0
    %10096 = vmatpush2.bf16.msra.mxu0 0
    %10097 = vmatprep.subr.bf16.mxu0 0
    %10098 = vmatpush2.bf16.msra.mxu0 0
    %10099 = vmatprep.subr.bf16.mxu0 0
    %10100 = vmatpush2.bf16.msra.mxu0 0
    %10101 = vmatprep.subr.bf16.mxu0 0
    %10102 = vmatpush2.bf16.msra.mxu0 0
    %10103 = vmatprep.subr.bf16.mxu0 0
    %10104 = vmatpush2.bf16.msra.mxu0 0
    %10105 = vmatprep.mubr.bf16.mxu0 0
    %10106 = vmatmul.mubr.bf16.gmra.mxu0 %v10029
    %v10107 = vpop.f32.mrf.mxu0
    %v10108 = vadd.f32 0.0, %v10107
    %v10109 = vpop.f32.mrf.mxu0
    %v10110 = vadd.f32 0.0, %v10109
    %v10111 = vpop.f32.mrf.mxu0
    %v10112 = vadd.f32 0.0, %v10111
    %v10113 = vpop.f32.mrf.mxu0
    %v10114 = vadd.f32 0.0, %v10113
    %10115 = vdwg.mxu0
    %v10116 = vadd.f32 %v9978, %v10065
    %v10117 = vadd.f32 %v9980, %v10067
    %v10118 = vadd.f32 %v10021, %v10108
    %v10119 = vadd.f32 %v10023, %v10110
    %v10120 = vadd.f32 %v9982, %v10069
    %v10121 = vadd.f32 %v9984, %v10071
    %v10122 = vadd.f32 %v10025, %v10112
    %v10123 = vadd.f32 %v10027, %v10114
    %v10124 = vxor.u32 %v10116, 2147483648
    %v10125 = vxor.u32 %v10117, 2147483648
    %v10126 = vxor.u32 %v10118, 2147483648
    %v10127 = vxor.u32 %v10120, 2147483648
    %v10128 = vxor.u32 %v10121, 2147483648
    %v10129 = vxor.u32 %v10122, 2147483648
    %v10130 = vmul.f32 %v10124, 1.442695
    %v10131 = vpow.pop %v10130
    %v10132 = vmul.f32 %v10125, 1.442695
    %v10133 = vpow.pop %v10132
    %v10134 = vmul.f32 %v10126, 1.442695
    %v10135 = vpow.pop %v10134
    %v10136 = vmul.f32 %v10127, 1.442695
    %v10137 = vpow.pop %v10136
    %v10138 = vmul.f32 %v10128, 1.442695
    %v10139 = vpow.pop %v10138
    %v10140 = vmul.f32 %v10129, 1.442695
    %v10141 = vpow.pop %v10140
    %v10142 = vadd.f32 %v10131, 1.0
    %v10143 = vadd.f32 %v10133, 1.0
    %v10144 = vadd.f32 %v10135, 1.0
    %v10145 = vadd.f32 %v10137, 1.0
    %v10146 = vadd.f32 %v10139, 1.0
    %v10147 = vadd.f32 %v10141, 1.0
    %v10148 = vrcp.pop %v10142
    %v10149 = vmul.f32 1.0, %v10148
    %v10150 = vrcp.pop %v10143
    %v10151 = vmul.f32 1.0, %v10150
    %v10152 = vrcp.pop %v10144
    %v10153 = vmul.f32 1.0, %v10152
    %v10154 = vrcp.pop %v10145
    %v10155 = vmul.f32 1.0, %v10154
    %v10156 = vrcp.pop %v10146
    %v10157 = vmul.f32 1.0, %v10156
    %v10158 = vrcp.pop %v10147
    %v10159 = vmul.f32 1.0, %v10158
    %v10160 = vtanh.pop %v10119
    %v10161 = vtanh.pop %v10123
    %v10162 = vmul.f32 %v10151, %v9630
    %v10163 = vmul.f32 %v10157, %v9631
    %v10164 = vmul.f32 %v10149, %v10160
    %v10165 = vmul.f32 %v10155, %v10161
    %v10166 = vadd.f32 %v10162, %v10164
    %v10167 = vadd.f32 %v10163, %v10165
    %v10168 = vtanh.pop %v10166
    %v10169 = vtanh.pop %v10167
    %v10170 = vmul.f32 %v10153, %v10168
    %v10171 = vmul.f32 %v10159, %v10169
    %v10172 = vpack.c.bf16 %v9942, %v9941
    %10173 = vmatprep.subr.bf16.mxu0 %v3524
    %10174 = vmatpush1.bf16.msra.mxu0 %v3523
    %10175 = vmatprep.subr.bf16.mxu0 %v3520
    %10176 = vmatpush1.bf16.msra.mxu0 %v3519
    %10177 = vmatprep.subr.bf16.mxu0 %v3516
    %10178 = vmatpush1.bf16.msra.mxu0 %v3515
    %10179 = vmatprep.subr.bf16.mxu0 %v3512
    %10180 = vmatpush1.bf16.msra.mxu0 %v3511
    %10181 = vmatprep.subr.bf16.mxu0 %v3508
    %10182 = vmatpush1.bf16.msra.mxu0 %v3507
    %10183 = vmatprep.subr.bf16.mxu0 %v3504
    %10184 = vmatpush1.bf16.msra.mxu0 %v3503
    %10185 = vmatprep.subr.bf16.mxu0 %v3500
    %10186 = vmatpush1.bf16.msra.mxu0 %v3499
    %10187 = vmatprep.subr.bf16.mxu0 %v3496
    %10188 = vmatpush1.bf16.msra.mxu0 %v3495
    %10189 = vmatprep.subr.bf16.mxu0 0
    %10190 = vmatpush2.bf16.msra.mxu0 0
    %10191 = vmatprep.subr.bf16.mxu0 0
    %10192 = vmatpush2.bf16.msra.mxu0 0
    %10193 = vmatprep.subr.bf16.mxu0 0
    %10194 = vmatpush2.bf16.msra.mxu0 0
    %10195 = vmatprep.subr.bf16.mxu0 0
    %10196 = vmatpush2.bf16.msra.mxu0 0
    %10197 = vmatprep.subr.bf16.mxu0 0
    %10198 = vmatpush2.bf16.msra.mxu0 0
    %10199 = vmatprep.subr.bf16.mxu0 0
    %10200 = vmatpush2.bf16.msra.mxu0 0
    %10201 = vmatprep.subr.bf16.mxu0 0
    %10202 = vmatpush2.bf16.msra.mxu0 0
    %10203 = vmatprep.subr.bf16.mxu0 0
    %10204 = vmatpush2.bf16.msra.mxu0 0
    %10205 = vmatprep.mubr.bf16.mxu0 0
    %10206 = vmatmul.mubr.bf16.gmra.mxu0 %v10172
    %v10207 = vpop.f32.mrf.mxu0
    %v10208 = vadd.f32 %v3382, %v10207
    %v10209 = vpop.f32.mrf.mxu0
    %v10210 = vadd.f32 %v3386, %v10209
    %v10211 = vpop.f32.mrf.mxu0
    %v10212 = vadd.f32 %v3382, %v10211
    %v10213 = vpop.f32.mrf.mxu0
    %v10214 = vadd.f32 %v3386, %v10213
    %10215 = vdwg.mxu0
    %10216 = vmatprep.subr.bf16.mxu0 %v3526
    %10217 = vmatpush1.bf16.msra.mxu0 %v3525
    %10218 = vmatprep.subr.bf16.mxu0 %v3522
    %10219 = vmatpush1.bf16.msra.mxu0 %v3521
    %10220 = vmatprep.subr.bf16.mxu0 %v3518
    %10221 = vmatpush1.bf16.msra.mxu0 %v3517
    %10222 = vmatprep.subr.bf16.mxu0 %v3514
    %10223 = vmatpush1.bf16.msra.mxu0 %v3513
    %10224 = vmatprep.subr.bf16.mxu0 %v3510
    %10225 = vmatpush1.bf16.msra.mxu0 %v3509
    %10226 = vmatprep.subr.bf16.mxu0 %v3506
    %10227 = vmatpush1.bf16.msra.mxu0 %v3505
    %10228 = vmatprep.subr.bf16.mxu0 %v3502
    %10229 = vmatpush1.bf16.msra.mxu0 %v3501
    %10230 = vmatprep.subr.bf16.mxu0 %v3498
    %10231 = vmatpush1.bf16.msra.mxu0 %v3497
    %10232 = vmatprep.subr.bf16.mxu0 0
    %10233 = vmatpush2.bf16.msra.mxu0 0
    %10234 = vmatprep.subr.bf16.mxu0 0
    %10235 = vmatpush2.bf16.msra.mxu0 0
    %10236 = vmatprep.subr.bf16.mxu0 0
    %10237 = vmatpush2.bf16.msra.mxu0 0
    %10238 = vmatprep.subr.bf16.mxu0 0
    %10239 = vmatpush2.bf16.msra.mxu0 0
    %10240 = vmatprep.subr.bf16.mxu0 0
    %10241 = vmatpush2.bf16.msra.mxu0 0
    %10242 = vmatprep.subr.bf16.mxu0 0
    %10243 = vmatpush2.bf16.msra.mxu0 0
    %10244 = vmatprep.subr.bf16.mxu0 0
    %10245 = vmatpush2.bf16.msra.mxu0 0
    %10246 = vmatprep.subr.bf16.mxu0 0
    %10247 = vmatpush2.bf16.msra.mxu0 0
    %10248 = vmatprep.mubr.bf16.mxu0 0
    %10249 = vmatmul.mubr.bf16.gmra.mxu0 %v10172
    %v10250 = vpop.f32.mrf.mxu0
    %v10251 = vadd.f32 %v3390, %v10250
    %v10252 = vpop.f32.mrf.mxu0
    %v10253 = vadd.f32 %v3394, %v10252
    %v10254 = vpop.f32.mrf.mxu0
    %v10255 = vadd.f32 %v3390, %v10254
    %v10256 = vpop.f32.mrf.mxu0
    %v10257 = vadd.f32 %v3394, %v10256
    %10258 = vdwg.mxu0
    %v10259 = vpack.c.bf16 %v10171, %v10170
    %10260 = vmatprep.subr.bf16.mxu0 %v4859
    %10261 = vmatpush1.bf16.msra.mxu0 %v4858
    %10262 = vmatprep.subr.bf16.mxu0 %v4855
    %10263 = vmatpush1.bf16.msra.mxu0 %v4854
    %10264 = vmatprep.subr.bf16.mxu0 %v4851
    %10265 = vmatpush1.bf16.msra.mxu0 %v4850
    %10266 = vmatprep.subr.bf16.mxu0 %v4847
    %10267 = vmatpush1.bf16.msra.mxu0 %v4846
    %10268 = vmatprep.subr.bf16.mxu0 %v4843
    %10269 = vmatpush1.bf16.msra.mxu0 %v4842
    %10270 = vmatprep.subr.bf16.mxu0 %v4839
    %10271 = vmatpush1.bf16.msra.mxu0 %v4838
    %10272 = vmatprep.subr.bf16.mxu0 %v4835
    %10273 = vmatpush1.bf16.msra.mxu0 %v4834
    %10274 = vmatprep.subr.bf16.mxu0 %v4831
    %10275 = vmatpush1.bf16.msra.mxu0 %v4830
    %10276 = vmatprep.subr.bf16.mxu0 0
    %10277 = vmatpush2.bf16.msra.mxu0 0
    %10278 = vmatprep.subr.bf16.mxu0 0
    %10279 = vmatpush2.bf16.msra.mxu0 0
    %10280 = vmatprep.subr.bf16.mxu0 0
    %10281 = vmatpush2.bf16.msra.mxu0 0
    %10282 = vmatprep.subr.bf16.mxu0 0
    %10283 = vmatpush2.bf16.msra.mxu0 0
    %10284 = vmatprep.subr.bf16.mxu0 0
    %10285 = vmatpush2.bf16.msra.mxu0 0
    %10286 = vmatprep.subr.bf16.mxu0 0
    %10287 = vmatpush2.bf16.msra.mxu0 0
    %10288 = vmatprep.subr.bf16.mxu0 0
    %10289 = vmatpush2.bf16.msra.mxu0 0
    %10290 = vmatprep.subr.bf16.mxu0 0
    %10291 = vmatpush2.bf16.msra.mxu0 0
    %10292 = vmatprep.mubr.bf16.mxu0 0
    %10293 = vmatmul.mubr.bf16.gmra.mxu0 %v10259
    %v10294 = vpop.f32.mrf.mxu0
    %v10295 = vadd.f32 0.0, %v10294
    %v10296 = vpop.f32.mrf.mxu0
    %v10297 = vadd.f32 0.0, %v10296
    %v10298 = vpop.f32.mrf.mxu0
    %v10299 = vadd.f32 0.0, %v10298
    %v10300 = vpop.f32.mrf.mxu0
    %v10301 = vadd.f32 0.0, %v10300
    %10302 = vdwg.mxu0
    %10303 = vmatprep.subr.bf16.mxu0 %v4861
    %10304 = vmatpush1.bf16.msra.mxu0 %v4860
    %10305 = vmatprep.subr.bf16.mxu0 %v4857
    %10306 = vmatpush1.bf16.msra.mxu0 %v4856
    %10307 = vmatprep.subr.bf16.mxu0 %v4853
    %10308 = vmatpush1.bf16.msra.mxu0 %v4852
    %10309 = vmatprep.subr.bf16.mxu0 %v4849
    %10310 = vmatpush1.bf16.msra.mxu0 %v4848
    %10311 = vmatprep.subr.bf16.mxu0 %v4845
    %10312 = vmatpush1.bf16.msra.mxu0 %v4844
    %10313 = vmatprep.subr.bf16.mxu0 %v4841
    %10314 = vmatpush1.bf16.msra.mxu0 %v4840
    %10315 = vmatprep.subr.bf16.mxu0 %v4837
    %10316 = vmatpush1.bf16.msra.mxu0 %v4836
    %10317 = vmatprep.subr.bf16.mxu0 %v4833
    %10318 = vmatpush1.bf16.msra.mxu0 %v4832
    %10319 = vmatprep.subr.bf16.mxu0 0
    %10320 = vmatpush2.bf16.msra.mxu0 0
    %10321 = vmatprep.subr.bf16.mxu0 0
    %10322 = vmatpush2.bf16.msra.mxu0 0
    %10323 = vmatprep.subr.bf16.mxu0 0
    %10324 = vmatpush2.bf16.msra.mxu0 0
    %10325 = vmatprep.subr.bf16.mxu0 0
    %10326 = vmatpush2.bf16.msra.mxu0 0
    %10327 = vmatprep.subr.bf16.mxu0 0
    %10328 = vmatpush2.bf16.msra.mxu0 0
    %10329 = vmatprep.subr.bf16.mxu0 0
    %10330 = vmatpush2.bf16.msra.mxu0 0
    %10331 = vmatprep.subr.bf16.mxu0 0
    %10332 = vmatpush2.bf16.msra.mxu0 0
    %10333 = vmatprep.subr.bf16.mxu0 0
    %10334 = vmatpush2.bf16.msra.mxu0 0
    %10335 = vmatprep.mubr.bf16.mxu0 0
    %10336 = vmatmul.mubr.bf16.gmra.mxu0 %v10259
    %v10337 = vpop.f32.mrf.mxu0
    %v10338 = vadd.f32 0.0, %v10337
    %v10339 = vpop.f32.mrf.mxu0
    %v10340 = vadd.f32 0.0, %v10339
    %v10341 = vpop.f32.mrf.mxu0
    %v10342 = vadd.f32 0.0, %v10341
    %v10343 = vpop.f32.mrf.mxu0
    %v10344 = vadd.f32 0.0, %v10343
    %10345 = vdwg.mxu0
    %v10346 = vadd.f32 %v10208, %v10295
    %v10347 = vadd.f32 %v10210, %v10297
    %v10348 = vadd.f32 %v10251, %v10338
    %v10349 = vadd.f32 %v10253, %v10340
    %v10350 = vadd.f32 %v10212, %v10299
    %v10351 = vadd.f32 %v10214, %v10301
    %v10352 = vadd.f32 %v10255, %v10342
    %v10353 = vadd.f32 %v10257, %v10344
    %v10354 = vxor.u32 %v10346, 2147483648
    %v10355 = vxor.u32 %v10347, 2147483648
    %v10356 = vxor.u32 %v10348, 2147483648
    %v10357 = vxor.u32 %v10350, 2147483648
    %v10358 = vxor.u32 %v10351, 2147483648
    %v10359 = vxor.u32 %v10352, 2147483648
    %v10360 = vmul.f32 %v10354, 1.442695
    %v10361 = vpow.pop %v10360
    %v10362 = vmul.f32 %v10355, 1.442695
    %v10363 = vpow.pop %v10362
    %v10364 = vmul.f32 %v10356, 1.442695
    %v10365 = vpow.pop %v10364
    %v10366 = vmul.f32 %v10357, 1.442695
    %v10367 = vpow.pop %v10366
    %v10368 = vmul.f32 %v10358, 1.442695
    %v10369 = vpow.pop %v10368
    %v10370 = vmul.f32 %v10359, 1.442695
    %v10371 = vpow.pop %v10370
    %v10372 = vadd.f32 %v10361, 1.0
    %v10373 = vadd.f32 %v10363, 1.0
    %v10374 = vadd.f32 %v10365, 1.0
    %v10375 = vadd.f32 %v10367, 1.0
    %v10376 = vadd.f32 %v10369, 1.0
    %v10377 = vadd.f32 %v10371, 1.0
    %v10378 = vrcp.pop %v10372
    %v10379 = vmul.f32 1.0, %v10378
    %v10380 = vrcp.pop %v10373
    %v10381 = vmul.f32 1.0, %v10380
    %v10382 = vrcp.pop %v10374
    %v10383 = vmul.f32 1.0, %v10382
    %v10384 = vrcp.pop %v10375
    %v10385 = vmul.f32 1.0, %v10384
    %v10386 = vrcp.pop %v10376
    %v10387 = vmul.f32 1.0, %v10386
    %v10388 = vrcp.pop %v10377
    %v10389 = vmul.f32 1.0, %v10388
    %v10390 = vtanh.pop %v10349
    %v10391 = vtanh.pop %v10353
    %v10392 = vmul.f32 %v10381, %v10166
    %v10393 = vmul.f32 %v10387, %v10167
    %v10394 = vmul.f32 %v10379, %v10390
    %v10395 = vmul.f32 %v10385, %v10391
    %v10396 = vadd.f32 %v10392, %v10394
    %v10397 = vadd.f32 %v10393, %v10395
    %v10398 = vtanh.pop %v10396
    %v10399 = vtanh.pop %v10397
    %v10400 = vmul.f32 %v10383, %v10398
    %v10401 = vmul.f32 %v10389, %v10399
    %v10402 = vpack.c.bf16 %v10401, %v10400
    %v10403 = vld [vmem:[#allocation12] sm:$0xf]
    %v10404 = vld [vmem:[#allocation12 + $0x4] sm:$0xf]
    %v10405 = vld [vmem:[#allocation12 + $0x8] sm:$0xf]
    %v10406 = vld [vmem:[#allocation12 + $0xc] sm:$0xf]
    %v10407 = vld [vmem:[#allocation12 + $0x10] sm:$0xf]
    %v10408 = vld [vmem:[#allocation12 + $0x14] sm:$0xf]
    %v10409 = vld [vmem:[#allocation12 + $0x18] sm:$0xf]
    %v10410 = vld [vmem:[#allocation12 + $0x1c] sm:$0xf]
    %v10411 = vld [vmem:[#allocation12 + $0x20] sm:$0xf]
    %v10412 = vld [vmem:[#allocation12 + $0x24] sm:$0xf]
    %v10413 = vld [vmem:[#allocation12 + $0x28] sm:$0xf]
    %v10414 = vld [vmem:[#allocation12 + $0x2c] sm:$0xf]
    %v10415 = vld [vmem:[#allocation12 + $0x30] sm:$0xf]
    %v10416 = vld [vmem:[#allocation12 + $0x34] sm:$0xf]
    %v10417 = vld [vmem:[#allocation12 + $0x38] sm:$0xf]
    %v10418 = vld [vmem:[#allocation12 + $0x3c] sm:$0xf]
    %v10419 = vld [vmem:[%s6] sm:$0x1]
    %v10421 = vlaneseq
    %v10422 = vshrl.u32 %v10421, 7
    %v10423 = vsub.s32 0, %v10422
    %v10424 = vrot.slane %v10419, %v10423
    %v10442 = vunpack.c.l.b16 %v10403
    %v10443 = vunpack.c.l.b16 %v10404
    %v10444 = vunpack.c.l.b16 %v10405
    %v10445 = vunpack.c.l.b16 %v10406
    %v10446 = vunpack.c.l.b16 %v10407
    %v10447 = vunpack.c.l.b16 %v10408
    %v10448 = vunpack.c.l.b16 %v10409
    %v10449 = vunpack.c.l.b16 %v10410
    %v10450 = vunpack.c.l.b16 %v10411
    %v10451 = vunpack.c.l.b16 %v10412
    %v10452 = vunpack.c.l.b16 %v10413
    %v10453 = vunpack.c.l.b16 %v10414
    %v10454 = vunpack.c.l.b16 %v10415
    %v10455 = vunpack.c.l.b16 %v10416
    %v10456 = vunpack.c.l.b16 %v10417
    %v10457 = vunpack.c.l.b16 %v10418
    %v10458 = vpack.c.b16 %v10443, %v10442
    %v10459 = vpack.c.b16 %v10445, %v10444
    %v10460 = vpack.c.b16 %v10447, %v10446
    %v10461 = vpack.c.b16 %v10449, %v10448
    %v10462 = vpack.c.b16 %v10451, %v10450
    %v10463 = vpack.c.b16 %v10453, %v10452
    %v10464 = vpack.c.b16 %v10455, %v10454
    %v10465 = vpack.c.b16 %v10457, %v10456
    %10474 = vmatprep.subr.bf16.mxu0 0
    %10475 = vmatpush1.bf16.msra.mxu0 %v10465
    %10476 = vmatprep.subr.bf16.mxu0 0
    %10477 = vmatpush1.bf16.msra.mxu0 %v10464
    %10478 = vmatprep.subr.bf16.mxu0 0
    %10479 = vmatpush1.bf16.msra.mxu0 %v10463
    %10480 = vmatprep.subr.bf16.mxu0 0
    %10481 = vmatpush1.bf16.msra.mxu0 %v10462
    %10482 = vmatprep.subr.bf16.mxu0 0
    %10483 = vmatpush1.bf16.msra.mxu0 %v10461
    %10484 = vmatprep.subr.bf16.mxu0 0
    %10485 = vmatpush1.bf16.msra.mxu0 %v10460
    %10486 = vmatprep.subr.bf16.mxu0 0
    %10487 = vmatpush1.bf16.msra.mxu0 %v10459
    %10488 = vmatprep.subr.bf16.mxu0 0
    %10489 = vmatpush1.bf16.msra.mxu0 %v10458
    %10490 = vmatprep.subr.bf16.mxu0 0
    %10491 = vmatpush2.bf16.msra.mxu0 0
    %10492 = vmatprep.subr.bf16.mxu0 0
    %10493 = vmatpush2.bf16.msra.mxu0 0
    %10494 = vmatprep.subr.bf16.mxu0 0
    %10495 = vmatpush2.bf16.msra.mxu0 0
    %10496 = vmatprep.subr.bf16.mxu0 0
    %10497 = vmatpush2.bf16.msra.mxu0 0
    %10498 = vmatprep.subr.bf16.mxu0 0
    %10499 = vmatpush2.bf16.msra.mxu0 0
    %10500 = vmatprep.subr.bf16.mxu0 0
    %10501 = vmatpush2.bf16.msra.mxu0 0
    %10502 = vmatprep.subr.bf16.mxu0 0
    %10503 = vmatpush2.bf16.msra.mxu0 0
    %10504 = vmatprep.subr.bf16.mxu0 0
    %10505 = vmatpush2.bf16.msra.mxu0 0
    %10506 = vmatprep.mubr.bf16.mxu0 0
    %10507 = vmatmul.mubr.bf16.gmra.mxu0 %v10402
    %v10508 = vpop.f32.mrf.mxu0
    %v10509 = vadd.f32 %v10424, %v10508
    %v10510 = vpop.f32.mrf.mxu0
    %v10511 = vpop.f32.mrf.mxu0
    %v10512 = vadd.f32 %v10424, %v10511
    %v10513 = vpop.f32.mrf.mxu0
    %10514 = vdwg.mxu0
    %v10515 = vmax.f32 %v10509, 0.0
    %v10516 = vmax.f32 %v10512, 0.0
    %v10517 = vmul.f32 %v10515, %v10515
    %v10518 = vmul.f32 %v10516, %v10516
    %10519 = vadd.xlane.f32.xlu0 %v10517
    %v10520 = vpop.xlane.xlu0 %10519
    %10521 = vadd.xlane.f32.xlu0 %v10518
    %v10522 = vpop.xlane.xlu0 %10521
    %v10523 = vadd.f32 %v10520, 1e-12
    %v10524 = vadd.f32 %v10522, 1e-12
    %v10525 = vrsqrt.pop %v10523
    %v10526 = vrsqrt.pop %v10524
    %v10527 = vmul.f32 %v10515, %v10525
    %v10528 = vmul.f32 %v10516, %v10526
    %10529 = vst [vmem:[#allocation14] sm:$0xff] %v10527
    %10530 = vst [vmem:[#allocation14 + $0x8] sm:$0xff] %v10528
    // Predicated region
    $region54: #{tpu_custom_call.1} parent=1 // pred_check
      _
    $region55: #{tpu_custom_call.1} parent=1 // pred_check_branch
      %10532 = sbr.rel (0) target = $region57
    $region56: #{tpu_custom_call.1} parent=1 // pred_region
      %s10534 = ssub.s32 256, 256
      %10535 = vsyncadd [#allocation5], %s10534
      %s10536 = sshll.u32 [#allocation14], 4
      %s10537 = int_to_ptr.vmem [resolvable:$true] %s10536
      %10542 = dma.vmem_to_hbm [thread:$0]  %s10537, 256, %s7, [#allocation5], 128, 128, 8
    $region57: #{tpu_custom_call.1} parent=1 // pred_fallthru
      _
    // Predicated region
    $region58: #{tpu_custom_call.1} parent=1 // pred_check
      _
    $region59: #{tpu_custom_call.1} parent=1 // pred_check_branch
      %10544 = sbr.rel (0) target = $region61
    $region60: #{tpu_custom_call.1} parent=1 // pred_region
      %10545 = dma.done [#allocation5], 256
    $region61: #{tpu_custom_call.1} parent=1 // pred_fallthru
      _
    %10546 = vsyncpa [#allocation4], 1
    %10547 = vsyncpa [#allocation7], 1
    %10548 = vsyncpa [#allocation10], 1
    %10549 = vsyncpa [#allocation13], 1
    %10550 = vsyncpa [#allocation5], 1

</llo_original>
